<compile_context>
chip_gen: v7x
topology: tpu7x:2x2x1
jax: 0.10.0
libtpu: 0.0.40
codegen_flags: <defaults>
</compile_context>

<pallas_src>
import functools

import numpy as np
import jax
import jax.numpy as jnp
from jax import lax
from jax.experimental import pallas as pl
from jax.experimental.pallas import tpu as pltpu

HIDDEN = 1000            # logical hidden width of every MLP
HPAD = 1024              # hidden padded to a lane multiple
NUM_LOW_RANK = 5         # r
CPAD = 16                # class dims (6/7/9) padded to a common 16
OPAD = 128               # pair second-layer outputs (r*CPAD = 80) padded lane-dense
CC = CPAD * CPAD         # 256: flattened (c1, c2) output per pair, lane-dense
RCC = NUM_LOW_RANK * CC  # 1280: rank-expanded lane width
K_TILE = 512             # contraction tile for the 1024x1024 matmul of the s-head
PAIRS_PER_BLOCK = 2      # pair heads fused per grid step (12 % 2 == 0)

_PAIR_NAMES = ("so", "ov", "vs",                       # same-timestep pairs
               "ss", "oo", "vv",                       # temporal pairs
               "so_t", "ov_t", "vs_t", "os_t", "vo_t", "sv_t")
_TEMPORAL = {"ss", "oo", "vv", "so_t", "ov_t", "vs_t", "os_t", "vo_t", "sv_t"}


# ----------------------------- Pallas kernels -----------------------------

def _pair_kernel(x_ref, shift_ref, sel_a_ref, sel_b_ref,
                 w1a_ref, b1a_ref, w2a_ref, b2a_ref,
                 w1b_ref, b1b_ref, w2b_ref, b2b_ref,
                 out_ref):
    """PAIRS_PER_BLOCK fused low-rank pair heads per grid step.

    For each pair q in the block:
      A = ReLU(x @ W1a + b1a) @ W2a + b2a      (M, OPAD), packed col = r*CPAD + i
      B = ReLU(x @ W1b + b1b) @ W2b + b2b      (M, OPAD), packed col = r*CPAD + j
      A <- shift @ A                            (temporal pairs: row t uses feat[max(t-1,0)])
      out[m, i*CPAD + j] = sum_r A[m, r*CPAD + i] * B[m, r*CPAD + j]
    The rank expansion is done with two 0/1 matmuls against resident sel
    matrices (MXU work, no lane shuffles, no per-step iota construction).
    """
    f32 = jnp.float32
    x = x_ref[...]                                        # (M, D) f32
    sel_a = sel_a_ref[...]                                # (OPAD, RCC) f32, resident
    sel_b = sel_b_ref[...]                                # (OPAD, RCC) f32, resident

    for q in range(PAIRS_PER_BLOCK):
        def branch(w1_ref, b1_ref, w2_ref, b2_ref):
            h = jnp.dot(x, w1_ref[q].astype(f32),
                        preferred_element_type=f32) + b1_ref[q]
            h = jnp.maximum(h, 0.0)      # Dropout(p=0.3) -> identity (eval mode)
            return jnp.dot(h, w2_ref[q].astype(f32),
                           preferred_element_type=f32) + b2_ref[q]

        A = branch(w1a_ref, b1a_ref, w2a_ref, b2a_ref)    # (M, OPAD)
        B = branch(w1b_ref, b1b_ref, w2b_ref, b2b_ref)    # (M, OPAD)

        # Temporal row shift (identity matrix for same-timestep pairs) as a
        # tiny MXU matmul — no gathers between kernels.
        A = jnp.dot(shift_ref[q], A, preferred_element_type=f32)

        # Rank-5 contraction: expand both operands to (M, RCC) with one 0/1
        # matmul each, then 5 lane-aligned slice-multiply-accumulates.
        a_exp = jnp.dot(A, sel_a, preferred_element_type=f32)   # (M, RCC)
        b_exp = jnp.dot(B, sel_b, preferred_element_type=f32)   # (M, RCC)

        acc = a_exp[:, :CC] * b_exp[:, :CC]
        for r in range(1, NUM_LOW_RANK):
            acc = acc + (a_exp[:, r * CC:(r + 1) * CC] *
                         b_exp[:, r * CC:(r + 1) * CC])
        out_ref[q] = acc


def _sov_kernel(x_ref, w1_ref, b1_ref, w2_ref, b2_ref, w3_ref, b3_ref,
                wo_ref, bo_ref, wv_ref, bv_ref,
                s_ref, o_ref, v_ref, acc_ref):
    """s-head (dim -> 1000 -> 1000 -> s_classes) with the 1024x1024 second
    matmul streamed over K_TILE contraction slices (f32 VMEM accumulator),
    plus the tiny o / v single Linears folded in at step 0."""
    f32 = jnp.float32
    k = pl.program_id(0)
    x = x_ref[...]                                        # (M, D) f32

    @pl.when(k == 0)
    def _():
        acc_ref[...] = jnp.zeros_like(acc_ref)
        o_ref[...] = jnp.dot(x, wo_ref[...].astype(f32),
                             preferred_element_type=f32) + bo_ref[...]
        v_ref[...] = jnp.dot(x, wv_ref[...].astype(f32),
                             preferred_element_type=f32) + bv_ref[...]

    # k-th slice of h1 = ReLU(x @ W1 + b1), then accumulate h1_k @ W2[k-block, :]
    h1_k = jnp.maximum(
        jnp.dot(x, w1_ref[...].astype(f32),
                preferred_element_type=f32) + b1_ref[...], 0.0)
    acc_ref[...] += jnp.dot(h1_k, w2_ref[...].astype(f32),
                            preferred_element_type=f32)

    @pl.when(k == pl.num_programs(0) - 1)
    def _():
        h2 = jnp.maximum(acc_ref[...] + b2_ref[...], 0.0)
        s_ref[...] = jnp.dot(h2, w3_ref[...].astype(f32),
                             preferred_element_type=f32) + b3_ref[...]


# ----------------------------- kernel wrappers -----------------------------

def _pair_forward(x, shift, sel_a, sel_b, kp):
    M, D = x.shape
    NP = len(_PAIR_NAMES)
    assert NP % PAIRS_PER_BLOCK == 0
    G = NP // PAIRS_PER_BLOCK
    P = PAIRS_PER_BLOCK
    head = lambda p: (p, 0, 0)
    const2 = lambda p: (0, 0)
    return pl.pallas_call(
        _pair_kernel,
        out_shape=jax.ShapeDtypeStruct((NP, M, CC), jnp.float32),
        grid=(G,),
        in_specs=[
            pl.BlockSpec((M, D), const2),                 # x (resident)
            pl.BlockSpec((P, M, M), head),                # temporal-shift matrices
            pl.BlockSpec((OPAD, RCC), const2),            # sel_a (resident)
            pl.BlockSpec((OPAD, RCC), const2),            # sel_b (resident)
            pl.BlockSpec((P, D, HPAD), head),             # W1a (bf16, streamed)
            pl.BlockSpec((P, 1, HPAD), head),             # b1a
            pl.BlockSpec((P, HPAD, OPAD), head),          # W2a (bf16, streamed)
            pl.BlockSpec((P, 1, OPAD), head),             # b2a
            pl.BlockSpec((P, D, HPAD), head),             # W1b
            pl.BlockSpec((P, 1, HPAD), head),             # b1b
            pl.BlockSpec((P, HPAD, OPAD), head),          # W2b
            pl.BlockSpec((P, 1, OPAD), head),             # b2b
        ],
        out_specs=pl.BlockSpec((P, M, CC), head),
        compiler_params=pltpu.CompilerParams(
            dimension_semantics=("parallel",)),
    )(x, shift, sel_a, sel_b,
      kp["pair_w1a"], kp["pair_b1a"], kp["pair_w2a"], kp["pair_b2a"],
      kp["pair_w1b"], kp["pair_b1b"], kp["pair_w2b"], kp["pair_b2b"])


def _sov_forward(x, kp, s_classes, o_classes, v_classes):
    M, D = x.shape
    const = lambda k: (0, 0)
    return pl.pallas_call(
        _sov_kernel,
        out_shape=(jax.ShapeDtypeStruct((M, s_classes), jnp.float32),
                   jax.ShapeDtypeStruct((M, o_classes), jnp.float32),
                   jax.ShapeDtypeStruct((M, v_classes), jnp.float32)),
        grid=(HPAD // K_TILE,),
        in_specs=[
            pl.BlockSpec((M, D), const),                      # x (resident)
            pl.BlockSpec((D, K_TILE), lambda k: (0, k)),      # W1 k-slice
            pl.BlockSpec((1, K_TILE), lambda k: (0, k)),      # b1 k-slice
            pl.BlockSpec((K_TILE, HPAD), lambda k: (k, 0)),   # W2 k-slice (streamed)
            pl.BlockSpec((1, HPAD), const),                   # b2
            pl.BlockSpec((HPAD, s_classes), const),           # W3
            pl.BlockSpec((1, s_classes), const),              # b3
            pl.BlockSpec((D, o_classes), const),              # Wo
            pl.BlockSpec((1, o_classes), const),              # bo
            pl.BlockSpec((D, v_classes), const),              # Wv
            pl.BlockSpec((1, v_classes), const),              # bv
        ],
        out_specs=(pl.BlockSpec((M, s_classes), const),
                   pl.BlockSpec((M, o_classes), const),
                   pl.BlockSpec((M, v_classes), const)),
        scratch_shapes=[pltpu.VMEM((M, HPAD), jnp.float32)],
        compiler_params=pltpu.CompilerParams(
            dimension_semantics=("arbitrary",)),
    )(x, kp["s_w1"], kp["s_b1"], kp["s_w2"], kp["s_b2"], kp["s_w3"], kp["s_b3"],
      kp["o_w"], kp["o_b"], kp["v_w"], kp["v_b"])


# ----------------------------- parameter setup -----------------------------

def _init_linear(key, fan_in, fan_out):
    kw, kb = jax.random.split(key)
    bound = 1.0 / (fan_in ** 0.5)
    w = jax.random.uniform(kw, (fan_in, fan_out), jnp.float32, -bound, bound)
    b = jax.random.uniform(kb, (1, fan_out), jnp.float32, -bound, bound)
    # bf16 weights halve HBM traffic; biases stay f32 (f32 epilogue everywhere).
    return w.astype(jnp.bfloat16), b


def init_params(key, dim, s_classes, o_classes, v_classes):
    cls = {"s": s_classes, "o": o_classes, "v": v_classes}
    keys = iter(jax.random.split(key, 128))
    params = {}

    # self.s : dim -> 1000 -> 1000 -> s_classes
    w1, b1 = _init_linear(next(keys), dim, HIDDEN)
    w2, b2 = _init_linear(next(keys), HIDDEN, HIDDEN)
    w3, b3 = _init_linear(next(keys), HIDDEN, s_classes)
    params["s"] = (w1, b1, w2, b2, w3, b3)

    # self.o / self.v : single Linear
    params["o"] = _init_linear(next(keys), dim, o_classes)
    params["v"] = _init_linear(next(keys), dim, v_classes)

    # 12 pairs of BasicModules (each: dim -> 1000 -> out)
    for name in _PAIR_NAMES:
        c1, c2 = cls[name[0]], cls[name[1]]
        wa1, ba1 = _init_linear(next(keys), dim, HIDDEN)
        wa2, ba2 = _init_linear(next(keys), HIDDEN, c1 * NUM_LOW_RANK)
        params[name + "_a"] = (wa1, ba1, wa2, ba2)
        wb1, bb1 = _init_linear(next(keys), dim, HIDDEN)
        wb2, bb2 = _init_linear(next(keys), HIDDEN, NUM_LOW_RANK * c2)
        params[name + "_b"] = (wb1, bb1, wb2, bb2)
    return params


def _pad_to(a, shape):
    return jnp.pad(a, [(0, t - s) for s, t in zip(a.shape, shape)])


def pack_params(params, dim, s_classes, o_classes, v_classes):
    """Repack logical parameters into padded / stacked kernel layouts.
    Zero padding keeps the math identical to the unpadded model."""
    R = NUM_LOW_RANK
    cls = {"s": s_classes, "o": o_classes, "v": v_classes}
    kp = {}

    w1, b1, w2, b2, w3, b3 = params["s"]
    kp["s_w1"] = _pad_to(w1, (dim, HPAD))
    kp["s_b1"] = _pad_to(b1, (1, HPAD))
    kp["s_w2"] = _pad_to(w2, (HPAD, HPAD))
    kp["s_b2"] = _pad_to(b2, (1, HPAD))
    kp["s_w3"] = _pad_to(w3, (HPAD, s_classes))
    kp["s_b3"] = b3
    kp["o_w"], kp["o_b"] = params["o"]
    kp["v_w"], kp["v_b"] = params["v"]

    stacks = {n: [] for n in ("w1a", "b1a", "w2a", "b2a",
                              "w1b", "b1b", "w2b", "b2b")}
    for name in _PAIR_NAMES:
        c1, c2 = cls[name[0]], cls[name[1]]
        wa1, ba1, wa2, ba2 = params[name + "_a"]
        wb1, bb1, wb2, bb2 = params[name + "_b"]
        stacks["w1a"].append(_pad_to(wa1, (dim, HPAD)))
        stacks["b1a"].append(_pad_to(ba1, (1, HPAD)))
        stacks["w1b"].append(_pad_to(wb1, (dim, HPAD)))
        stacks["b1b"].append(_pad_to(bb1, (1, HPAD)))

        h = wa2.shape[0]
        # a-head second layer: logical column q = i*R + r  ->  packed p = r*CPAD + i
        wa2p = jnp.pad(wa2.reshape(h, c1, R).transpose(0, 2, 1),
                       ((0, HPAD - h), (0, 0), (0, CPAD - c1))
                       ).reshape(HPAD, R * CPAD)
        ba2p = jnp.pad(ba2.reshape(c1, R).transpose(1, 0),
                       ((0, 0), (0, CPAD - c1))).reshape(1, R * CPAD)
        # b-head second layer: logical column q = r*c2 + j  ->  packed p = r*CPAD + j
        wb2p = jnp.pad(wb2.reshape(h, R, c2),
                       ((0, HPAD - h), (0, 0), (0, CPAD - c2))
                       ).reshape(HPAD, R * CPAD)
        bb2p = jnp.pad(bb2.reshape(R, c2),
                       ((0, 0), (0, CPAD - c2))).reshape(1, R * CPAD)

        stacks["w2a"].append(_pad_to(wa2p, (HPAD, OPAD)))
        stacks["b2a"].append(_pad_to(ba2p, (1, OPAD)))
        stacks["w2b"].append(_pad_to(wb2p, (HPAD, OPAD)))
        stacks["b2b"].append(_pad_to(bb2p, (1, OPAD)))

    for n, lst in stacks.items():
        kp["pair_" + n] = jnp.stack(lst, axis=0)
    return kp


def _build_shift_mats(T, N):
    """(12, M, M) 0/1 matrices: identity for same-timestep pairs; for temporal
    pairs row (t, n) selects row (max(t-1, 0), n)."""
    M = T * N
    eye = np.eye(M, dtype=np.float32)
    shift = np.zeros((M, M), dtype=np.float32)
    for t in range(T):
        src = max(t - 1, 0)
        for n in range(N):
            shift[t * N + n, src * N + n] = 1.0
    mats = [shift if name in _TEMPORAL else eye for name in _PAIR_NAMES]
    return jnp.asarray(np.stack(mats, axis=0))


def _build_sel_mats():
    """Rank-expansion 0/1 matrices (OPAD, RCC), precomputed once host-side.

    sel_a[p, r*CC + c] = 1 iff p == r*CPAD + (c // CPAD)   (selects A[:, r*16+i])
    sel_b[p, r*CC + c] = 1 iff p == r*CPAD + (c %  CPAD)   (selects B[:, r*16+j])
    """
    p = np.arange(OPAD)[:, None]
    rc = np.arange(RCC)[None, :]
    r = rc // CC
    c = rc % CC
    sel_a = (p == r * CPAD + c // CPAD).astype(np.float32)
    sel_b = (p == r * CPAD + c % CPAD).astype(np.float32)
    return jnp.asarray(sel_a), jnp.asarray(sel_b)


# ----------------------------- forward pass -----------------------------

def async_tf_base_forward(rgb_feat, kp, s_classes, o_classes, v_classes):
    T, N, D = rgb_feat.shape
    M = T * N
    x = rgb_feat.reshape(M, D)

    s, o, v = _sov_forward(x, kp, s_classes, o_classes, v_classes)

    shift = _build_shift_mats(T, N)
    sel_a, sel_b = _build_sel_mats()
    pair = _pair_forward(x, shift, sel_a, sel_b, kp)         # (12, M, 256)
    pair = pair.reshape(len(_PAIR_NAMES), T, N, CPAD, CPAD)

    cls = {"s": s_classes, "o": o_classes, "v": v_classes}
    pair_outs = []
    for idx, name in enumerate(_PAIR_NAMES):
        c1, c2 = cls[name[0]], cls[name[1]]
        pair_outs.append(pair[idx, :, :, :c1, :c2])

    return (s.reshape(T, N, s_classes),
            o.reshape(T, N, o_classes),
            v.reshape(T, N, v_classes),
            *pair_outs)


# ----------------------------- pure-JAX reference -----------------------------

def reference_forward(rgb_feat, params, s_classes, o_classes, v_classes):
    T, N, D = rgb_feat.shape
    x = rgb_feat.reshape(T * N, D)
    f32 = jnp.float32

    def lin(h, w, b):
        return jnp.dot(h, w.astype(f32)) + b

    w1, b1, w2, b2, w3, b3 = params["s"]
    h = jnp.maximum(lin(x, w1, b1), 0.0)
    h = jnp.maximum(lin(h, w2, b2), 0.0)
    s = lin(h, w3, b3).reshape(T, N, s_classes)
    o = lin(x, *params["o"]).reshape(T, N, o_classes)
    v = lin(x, *params["v"]).reshape(T, N, v_classes)

    cls = {"s": s_classes, "o": o_classes, "v": v_classes}

    def mlp2(w1_, b1_, w2_, b2_):
        return lin(jnp.maximum(lin(x, w1_, b1_), 0.0), w2_, b2_)

    pair_outs = []
    for name in _PAIR_NAMES:
        c1, c2 = cls[name[0]], cls[name[1]]
        A = mlp2(*params[name + "_a"]).reshape(T, N, c1, NUM_LOW_RANK)
        B = mlp2(*params[name + "_b"]).reshape(T, N, NUM_LOW_RANK, c2)
        if name in _TEMPORAL:
            A = A[jnp.maximum(jnp.arange(T) - 1, 0)]
        pair_outs.append(jnp.einsum("tnir,tnrj->tnij", A, B))
    return (s, o, v, *pair_outs)


# ----------------------------- main -----------------------------

if __name__ == "__main__":
    T, N, DIM = 4, 2, 32
    S_CLASSES, O_CLASSES, V_CLASSES = 6, 7, 9

    key = jax.random.PRNGKey(0)
    k_feat, k_params = jax.random.split(key)
    rgb_feat = jax.random.normal(k_feat, (T, N, DIM), dtype=jnp.float32)

    params = init_params(k_params, DIM, S_CLASSES, O_CLASSES, V_CLASSES)
    kparams = pack_params(params, DIM, S_CLASSES, O_CLASSES, V_CLASSES)

    fwd = jax.jit(functools.partial(async_tf_base_forward,
                                    s_classes=S_CLASSES,
                                    o_classes=O_CLASSES,
                                    v_classes=V_CLASSES))
    outs = jax.block_until_ready(fwd(rgb_feat, kparams))

    expected_shapes = [
        (T, N, S_CLASSES), (T, N, O_CLASSES), (T, N, V_CLASSES),
        (T, N, S_CLASSES, O_CLASSES), (T, N, O_CLASSES, V_CLASSES),
        (T, N, V_CLASSES, S_CLASSES),
        (T, N, S_CLASSES, S_CLASSES), (T, N, O_CLASSES, O_CLASSES),
        (T, N, V_CLASSES, V_CLASSES),
        (T, N, S_CLASSES, O_CLASSES), (T, N, O_CLASSES, V_CLASSES),
        (T, N, V_CLASSES, S_CLASSES), (T, N, O_CLASSES, S_CLASSES),
        (T, N, V_CLASSES, O_CLASSES), (T, N, S_CLASSES, V_CLASSES),
    ]
    assert len(outs) == 15
    for out, shp in zip(outs, expected_shapes):
        assert out.shape == shp, (out.shape, shp)
        assert out.dtype == jnp.float32

    # numerical check against a pure-JAX reference (same bf16 weights)
    refs = jax.block_until_ready(
        reference_forward(rgb_feat, params, S_CLASSES, O_CLASSES, V_CLASSES))
    names = ["s", "o", "v"] + list(_PAIR_NAMES)
    for name, got, want in zip(names, outs, refs):
        np.testing.assert_allclose(np.asarray(got), np.asarray(want),
                                   rtol=2e-2, atol=2e-2, err_msg=name)

    print("KERNEL_OK")
</pallas_src>

<mosaic_0001>
module attributes {stable_mosaic.version = 11 : i64} {
  func.func @_pair_kernel(%arg0: i32, %arg1: memref<8x32xf32, #tpu.memory_space<vmem>>, %arg2: memref<2x8x8xf32, #tpu.memory_space<vmem>>, %arg3: memref<128x1280xf32, #tpu.memory_space<vmem>>, %arg4: memref<128x1280xf32, #tpu.memory_space<vmem>>, %arg5: memref<2x32x1024xbf16, #tpu.memory_space<vmem>>, %arg6: memref<2x1x1024xf32, #tpu.memory_space<vmem>>, %arg7: memref<2x1024x128xbf16, #tpu.memory_space<vmem>>, %arg8: memref<2x1x128xf32, #tpu.memory_space<vmem>>, %arg9: memref<2x32x1024xbf16, #tpu.memory_space<vmem>>, %arg10: memref<2x1x1024xf32, #tpu.memory_space<vmem>>, %arg11: memref<2x1024x128xbf16, #tpu.memory_space<vmem>>, %arg12: memref<2x1x128xf32, #tpu.memory_space<vmem>>, %arg13: memref<2x8x256xf32, #tpu.memory_space<vmem>>) attributes {dimension_semantics = [#tpu.dimension_semantics<parallel>], iteration_bounds = array<i64: 6>, scalar_prefetch = 0 : i64, scratch_operands = 0 : i64, tpu.core_type = #tpu.core_type<tc>, window_params = [{pipeline_mode = #tpu.pipeline_mode<synchronous>, transform_indices = @transform_0, window_bounds = array<i64: 8, 32>}, {transform_indices = @transform_1, window_bounds = array<i64: 2, 8, 8>}, {pipeline_mode = #tpu.pipeline_mode<synchronous>, transform_indices = @transform_2, window_bounds = array<i64: 128, 1280>}, {pipeline_mode = #tpu.pipeline_mode<synchronous>, transform_indices = @transform_3, window_bounds = array<i64: 128, 1280>}, {transform_indices = @transform_4, window_bounds = array<i64: 2, 32, 1024>}, {transform_indices = @transform_5, window_bounds = array<i64: 2, 1, 1024>}, {transform_indices = @transform_6, window_bounds = array<i64: 2, 1024, 128>}, {transform_indices = @transform_7, window_bounds = array<i64: 2, 1, 128>}, {transform_indices = @transform_8, window_bounds = array<i64: 2, 32, 1024>}, {transform_indices = @transform_9, window_bounds = array<i64: 2, 1, 1024>}, {transform_indices = @transform_10, window_bounds = array<i64: 2, 1024, 128>}, {transform_indices = @transform_11, window_bounds = array<i64: 2, 1, 128>}, {transform_indices = @transform_12, window_bounds = array<i64: 2, 8, 256>}]} {
    %c0 = arith.constant 0 : index
    %c0_0 = arith.constant 0 : index
    %0 = vector.load %arg1[%c0, %c0_0] : memref<8x32xf32, #tpu.memory_space<vmem>>, vector<8x32xf32>
    %c0_1 = arith.constant 0 : index
    %c0_2 = arith.constant 0 : index
    %1 = vector.load %arg3[%c0_1, %c0_2] : memref<128x1280xf32, #tpu.memory_space<vmem>>, vector<128x1280xf32>
    %c0_3 = arith.constant 0 : index
    %c0_4 = arith.constant 0 : index
    %2 = vector.load %arg4[%c0_3, %c0_4] : memref<128x1280xf32, #tpu.memory_space<vmem>>, vector<128x1280xf32>
    %c0_5 = arith.constant 0 : index
    %c0_6 = arith.constant 0 : index
    %c0_7 = arith.constant 0 : index
    %3 = vector.load %arg5[%c0_5, %c0_6, %c0_7] : memref<2x32x1024xbf16, #tpu.memory_space<vmem>>, vector<1x32x1024xbf16>
    %4 = vector.shape_cast %3 : vector<1x32x1024xbf16> to vector<32x1024xbf16>
    %5 = arith.extf %4 : vector<32x1024xbf16> to vector<32x1024xf32>
    %cst = arith.constant dense<0.000000e+00> : vector<8x1024xf32>
    %6 = tpu.matmul %0, %5, %cst {dimension_numbers = #tpu.dot_dimension_numbers<[1], [0], [0], [1], [0, 0, 1, 1], [], []>} : vector<8x32xf32>, vector<32x1024xf32>, vector<8x1024xf32> -> vector<8x1024xf32>
    %c0_8 = arith.constant 0 : index
    %c0_9 = arith.constant 0 : index
    %c0_10 = arith.constant 0 : index
    %7 = vector.load %arg6[%c0_8, %c0_9, %c0_10] : memref<2x1x1024xf32, #tpu.memory_space<vmem>>, vector<1x1x1024xf32>
    %8 = vector.shape_cast %7 : vector<1x1x1024xf32> to vector<1x1024xf32>
    %9 = vector.broadcast %8 : vector<1x1024xf32> to vector<8x1024xf32>
    %10 = arith.addf %6, %9 : vector<8x1024xf32>
    %cst_11 = arith.constant 0.000000e+00 : f32
    %11 = vector.broadcast %cst_11 : f32 to vector<8x1024xf32>
    %12 = arith.maximumf %10, %11 : vector<8x1024xf32>
    %c0_12 = arith.constant 0 : index
    %c0_13 = arith.constant 0 : index
    %c0_14 = arith.constant 0 : index
    %13 = vector.load %arg7[%c0_12, %c0_13, %c0_14] : memref<2x1024x128xbf16, #tpu.memory_space<vmem>>, vector<1x1024x128xbf16>
    %14 = vector.shape_cast %13 : vector<1x1024x128xbf16> to vector<1024x128xbf16>
    %15 = arith.extf %14 : vector<1024x128xbf16> to vector<1024x128xf32>
    %cst_15 = arith.constant dense<0.000000e+00> : vector<8x128xf32>
    %16 = tpu.matmul %12, %15, %cst_15 {dimension_numbers = #tpu.dot_dimension_numbers<[1], [0], [0], [1], [0, 0, 1, 1], [], []>} : vector<8x1024xf32>, vector<1024x128xf32>, vector<8x128xf32> -> vector<8x128xf32>
    %c0_16 = arith.constant 0 : index
    %c0_17 = arith.constant 0 : index
    %c0_18 = arith.constant 0 : index
    %17 = vector.load %arg8[%c0_16, %c0_17, %c0_18] : memref<2x1x128xf32, #tpu.memory_space<vmem>>, vector<1x1x128xf32>
    %18 = vector.shape_cast %17 : vector<1x1x128xf32> to vector<1x128xf32>
    %19 = vector.broadcast %18 : vector<1x128xf32> to vector<8x128xf32>
    %20 = arith.addf %16, %19 : vector<8x128xf32>
    %c0_19 = arith.constant 0 : index
    %c0_20 = arith.constant 0 : index
    %c0_21 = arith.constant 0 : index
    %21 = vector.load %arg9[%c0_19, %c0_20, %c0_21] : memref<2x32x1024xbf16, #tpu.memory_space<vmem>>, vector<1x32x1024xbf16>
    %22 = vector.shape_cast %21 : vector<1x32x1024xbf16> to vector<32x1024xbf16>
    %23 = arith.extf %22 : vector<32x1024xbf16> to vector<32x1024xf32>
    %cst_22 = arith.constant dense<0.000000e+00> : vector<8x1024xf32>
    %24 = tpu.matmul %0, %23, %cst_22 {dimension_numbers = #tpu.dot_dimension_numbers<[1], [0], [0], [1], [0, 0, 1, 1], [], []>} : vector<8x32xf32>, vector<32x1024xf32>, vector<8x1024xf32> -> vector<8x1024xf32>
    %c0_23 = arith.constant 0 : index
    %c0_24 = arith.constant 0 : index
    %c0_25 = arith.constant 0 : index
    %25 = vector.load %arg10[%c0_23, %c0_24, %c0_25] : memref<2x1x1024xf32, #tpu.memory_space<vmem>>, vector<1x1x1024xf32>
    %26 = vector.shape_cast %25 : vector<1x1x1024xf32> to vector<1x1024xf32>
    %27 = vector.broadcast %26 : vector<1x1024xf32> to vector<8x1024xf32>
    %28 = arith.addf %24, %27 : vector<8x1024xf32>
    %cst_26 = arith.constant 0.000000e+00 : f32
    %29 = vector.broadcast %cst_26 : f32 to vector<8x1024xf32>
    %30 = arith.maximumf %28, %29 : vector<8x1024xf32>
    %c0_27 = arith.constant 0 : index
    %c0_28 = arith.constant 0 : index
    %c0_29 = arith.constant 0 : index
    %31 = vector.load %arg11[%c0_27, %c0_28, %c0_29] : memref<2x1024x128xbf16, #tpu.memory_space<vmem>>, vector<1x1024x128xbf16>
    %32 = vector.shape_cast %31 : vector<1x1024x128xbf16> to vector<1024x128xbf16>
    %33 = arith.extf %32 : vector<1024x128xbf16> to vector<1024x128xf32>
    %cst_30 = arith.constant dense<0.000000e+00> : vector<8x128xf32>
    %34 = tpu.matmul %30, %33, %cst_30 {dimension_numbers = #tpu.dot_dimension_numbers<[1], [0], [0], [1], [0, 0, 1, 1], [], []>} : vector<8x1024xf32>, vector<1024x128xf32>, vector<8x128xf32> -> vector<8x128xf32>
    %c0_31 = arith.constant 0 : index
    %c0_32 = arith.constant 0 : index
    %c0_33 = arith.constant 0 : index
    %35 = vector.load %arg12[%c0_31, %c0_32, %c0_33] : memref<2x1x128xf32, #tpu.memory_space<vmem>>, vector<1x1x128xf32>
    %36 = vector.shape_cast %35 : vector<1x1x128xf32> to vector<1x128xf32>
    %37 = vector.broadcast %36 : vector<1x128xf32> to vector<8x128xf32>
    %38 = arith.addf %34, %37 : vector<8x128xf32>
    %c0_34 = arith.constant 0 : index
    %c0_35 = arith.constant 0 : index
    %c0_36 = arith.constant 0 : index
    %39 = vector.load %arg2[%c0_34, %c0_35, %c0_36] : memref<2x8x8xf32, #tpu.memory_space<vmem>>, vector<1x8x8xf32>
    %40 = vector.shape_cast %39 : vector<1x8x8xf32> to vector<8x8xf32>
    %cst_37 = arith.constant dense<0.000000e+00> : vector<8x128xf32>
    %41 = tpu.matmul %40, %20, %cst_37 {dimension_numbers = #tpu.dot_dimension_numbers<[1], [0], [0], [1], [0, 0, 1, 1], [], []>} : vector<8x8xf32>, vector<8x128xf32>, vector<8x128xf32> -> vector<8x128xf32>
    %cst_38 = arith.constant dense<0.000000e+00> : vector<8x1280xf32>
    %42 = tpu.matmul %41, %1, %cst_38 {dimension_numbers = #tpu.dot_dimension_numbers<[1], [0], [0], [1], [0, 0, 1, 1], [], []>} : vector<8x128xf32>, vector<128x1280xf32>, vector<8x1280xf32> -> vector<8x1280xf32>
    %cst_39 = arith.constant dense<0.000000e+00> : vector<8x1280xf32>
    %43 = tpu.matmul %38, %2, %cst_39 {dimension_numbers = #tpu.dot_dimension_numbers<[1], [0], [0], [1], [0, 0, 1, 1], [], []>} : vector<8x128xf32>, vector<128x1280xf32>, vector<8x1280xf32> -> vector<8x1280xf32>
    %44 = vector.extract_strided_slice %42 {offsets = [0, 0], sizes = [8, 256], strides = [1, 1]} : vector<8x1280xf32> to vector<8x256xf32>
    %45 = vector.extract_strided_slice %43 {offsets = [0, 0], sizes = [8, 256], strides = [1, 1]} : vector<8x1280xf32> to vector<8x256xf32>
    %46 = arith.mulf %44, %45 : vector<8x256xf32>
    %47 = vector.extract_strided_slice %42 {offsets = [0, 256], sizes = [8, 256], strides = [1, 1]} : vector<8x1280xf32> to vector<8x256xf32>
    %48 = vector.extract_strided_slice %43 {offsets = [0, 256], sizes = [8, 256], strides = [1, 1]} : vector<8x1280xf32> to vector<8x256xf32>
    %49 = arith.mulf %47, %48 : vector<8x256xf32>
    %50 = arith.addf %46, %49 : vector<8x256xf32>
    %51 = vector.extract_strided_slice %42 {offsets = [0, 512], sizes = [8, 256], strides = [1, 1]} : vector<8x1280xf32> to vector<8x256xf32>
    %52 = vector.extract_strided_slice %43 {offsets = [0, 512], sizes = [8, 256], strides = [1, 1]} : vector<8x1280xf32> to vector<8x256xf32>
    %53 = arith.mulf %51, %52 : vector<8x256xf32>
    %54 = arith.addf %50, %53 : vector<8x256xf32>
    %55 = vector.extract_strided_slice %42 {offsets = [0, 768], sizes = [8, 256], strides = [1, 1]} : vector<8x1280xf32> to vector<8x256xf32>
    %56 = vector.extract_strided_slice %43 {offsets = [0, 768], sizes = [8, 256], strides = [1, 1]} : vector<8x1280xf32> to vector<8x256xf32>
    %57 = arith.mulf %55, %56 : vector<8x256xf32>
    %58 = arith.addf %54, %57 : vector<8x256xf32>
    %59 = vector.extract_strided_slice %42 {offsets = [0, 1024], sizes = [8, 256], strides = [1, 1]} : vector<8x1280xf32> to vector<8x256xf32>
    %60 = vector.extract_strided_slice %43 {offsets = [0, 1024], sizes = [8, 256], strides = [1, 1]} : vector<8x1280xf32> to vector<8x256xf32>
    %61 = arith.mulf %59, %60 : vector<8x256xf32>
    %62 = arith.addf %58, %61 : vector<8x256xf32>
    %c0_40 = arith.constant 0 : index
    %c0_41 = arith.constant 0 : index
    %c0_42 = arith.constant 0 : index
    %63 = vector.load %arg13[%c0_40, %c0_41, %c0_42] : memref<2x8x256xf32, #tpu.memory_space<vmem>>, vector<1x8x256xf32>
    %64 = vector.shape_cast %63 : vector<1x8x256xf32> to vector<8x256xf32>
    %65 = vector.shape_cast %62 : vector<8x256xf32> to vector<1x8x256xf32>
    tpu.vector_store %arg13[%c0_40, %c0_41, %c0_42], %65 {strides = array<i32>} : memref<2x8x256xf32, #tpu.memory_space<vmem>>, vector<1x8x256xf32>,
    %c1 = arith.constant 1 : index
    %c0_43 = arith.constant 0 : index
    %c0_44 = arith.constant 0 : index
    %66 = vector.load %arg5[%c1, %c0_43, %c0_44] : memref<2x32x1024xbf16, #tpu.memory_space<vmem>>, vector<1x32x1024xbf16>
    %67 = vector.shape_cast %66 : vector<1x32x1024xbf16> to vector<32x1024xbf16>
    %68 = arith.extf %67 : vector<32x1024xbf16> to vector<32x1024xf32>
    %cst_45 = arith.constant dense<0.000000e+00> : vector<8x1024xf32>
    %69 = tpu.matmul %0, %68, %cst_45 {dimension_numbers = #tpu.dot_dimension_numbers<[1], [0], [0], [1], [0, 0, 1, 1], [], []>} : vector<8x32xf32>, vector<32x1024xf32>, vector<8x1024xf32> -> vector<8x1024xf32>
    %c1_46 = arith.constant 1 : index
    %c0_47 = arith.constant 0 : index
    %c0_48 = arith.constant 0 : index
    %70 = vector.load %arg6[%c1_46, %c0_47, %c0_48] : memref<2x1x1024xf32, #tpu.memory_space<vmem>>, vector<1x1x1024xf32>
    %71 = vector.shape_cast %70 : vector<1x1x1024xf32> to vector<1x1024xf32>
    %72 = vector.broadcast %71 : vector<1x1024xf32> to vector<8x1024xf32>
    %73 = arith.addf %69, %72 : vector<8x1024xf32>
    %cst_49 = arith.constant 0.000000e+00 : f32
    %74 = vector.broadcast %cst_49 : f32 to vector<8x1024xf32>
    %75 = arith.maximumf %73, %74 : vector<8x1024xf32>
    %c1_50 = arith.constant 1 : index
    %c0_51 = arith.constant 0 : index
    %c0_52 = arith.constant 0 : index
    %76 = vector.load %arg7[%c1_50, %c0_51, %c0_52] : memref<2x1024x128xbf16, #tpu.memory_space<vmem>>, vector<1x1024x128xbf16>
    %77 = vector.shape_cast %76 : vector<1x1024x128xbf16> to vector<1024x128xbf16>
    %78 = arith.extf %77 : vector<1024x128xbf16> to vector<1024x128xf32>
    %cst_53 = arith.constant dense<0.000000e+00> : vector<8x128xf32>
    %79 = tpu.matmul %75, %78, %cst_53 {dimension_numbers = #tpu.dot_dimension_numbers<[1], [0], [0], [1], [0, 0, 1, 1], [], []>} : vector<8x1024xf32>, vector<1024x128xf32>, vector<8x128xf32> -> vector<8x128xf32>
    %c1_54 = arith.constant 1 : index
    %c0_55 = arith.constant 0 : index
    %c0_56 = arith.constant 0 : index
    %80 = vector.load %arg8[%c1_54, %c0_55, %c0_56] : memref<2x1x128xf32, #tpu.memory_space<vmem>>, vector<1x1x128xf32>
    %81 = vector.shape_cast %80 : vector<1x1x128xf32> to vector<1x128xf32>
    %82 = vector.broadcast %81 : vector<1x128xf32> to vector<8x128xf32>
    %83 = arith.addf %79, %82 : vector<8x128xf32>
    %c1_57 = arith.constant 1 : index
    %c0_58 = arith.constant 0 : index
    %c0_59 = arith.constant 0 : index
    %84 = vector.load %arg9[%c1_57, %c0_58, %c0_59] : memref<2x32x1024xbf16, #tpu.memory_space<vmem>>, vector<1x32x1024xbf16>
    %85 = vector.shape_cast %84 : vector<1x32x1024xbf16> to vector<32x1024xbf16>
    %86 = arith.extf %85 : vector<32x1024xbf16> to vector<32x1024xf32>
    %cst_60 = arith.constant dense<0.000000e+00> : vector<8x1024xf32>
    %87 = tpu.matmul %0, %86, %cst_60 {dimension_numbers = #tpu.dot_dimension_numbers<[1], [0], [0], [1], [0, 0, 1, 1], [], []>} : vector<8x32xf32>, vector<32x1024xf32>, vector<8x1024xf32> -> vector<8x1024xf32>
    %c1_61 = arith.constant 1 : index
    %c0_62 = arith.constant 0 : index
    %c0_63 = arith.constant 0 : index
    %88 = vector.load %arg10[%c1_61, %c0_62, %c0_63] : memref<2x1x1024xf32, #tpu.memory_space<vmem>>, vector<1x1x1024xf32>
    %89 = vector.shape_cast %88 : vector<1x1x1024xf32> to vector<1x1024xf32>
    %90 = vector.broadcast %89 : vector<1x1024xf32> to vector<8x1024xf32>
    %91 = arith.addf %87, %90 : vector<8x1024xf32>
    %cst_64 = arith.constant 0.000000e+00 : f32
    %92 = vector.broadcast %cst_64 : f32 to vector<8x1024xf32>
    %93 = arith.maximumf %91, %92 : vector<8x1024xf32>
    %c1_65 = arith.constant 1 : index
    %c0_66 = arith.constant 0 : index
    %c0_67 = arith.constant 0 : index
    %94 = vector.load %arg11[%c1_65, %c0_66, %c0_67] : memref<2x1024x128xbf16, #tpu.memory_space<vmem>>, vector<1x1024x128xbf16>
    %95 = vector.shape_cast %94 : vector<1x1024x128xbf16> to vector<1024x128xbf16>
    %96 = arith.extf %95 : vector<1024x128xbf16> to vector<1024x128xf32>
    %cst_68 = arith.constant dense<0.000000e+00> : vector<8x128xf32>
    %97 = tpu.matmul %93, %96, %cst_68 {dimension_numbers = #tpu.dot_dimension_numbers<[1], [0], [0], [1], [0, 0, 1, 1], [], []>} : vector<8x1024xf32>, vector<1024x128xf32>, vector<8x128xf32> -> vector<8x128xf32>
    %c1_69 = arith.constant 1 : index
    %c0_70 = arith.constant 0 : index
    %c0_71 = arith.constant 0 : index
    %98 = vector.load %arg12[%c1_69, %c0_70, %c0_71] : memref<2x1x128xf32, #tpu.memory_space<vmem>>, vector<1x1x128xf32>
    %99 = vector.shape_cast %98 : vector<1x1x128xf32> to vector<1x128xf32>
    %100 = vector.broadcast %99 : vector<1x128xf32> to vector<8x128xf32>
    %101 = arith.addf %97, %100 : vector<8x128xf32>
    %c1_72 = arith.constant 1 : index
    %c0_73 = arith.constant 0 : index
    %c0_74 = arith.constant 0 : index
    %102 = vector.load %arg2[%c1_72, %c0_73, %c0_74] : memref<2x8x8xf32, #tpu.memory_space<vmem>>, vector<1x8x8xf32>
    %103 = vector.shape_cast %102 : vector<1x8x8xf32> to vector<8x8xf32>
    %cst_75 = arith.constant dense<0.000000e+00> : vector<8x128xf32>
    %104 = tpu.matmul %103, %83, %cst_75 {dimension_numbers = #tpu.dot_dimension_numbers<[1], [0], [0], [1], [0, 0, 1, 1], [], []>} : vector<8x8xf32>, vector<8x128xf32>, vector<8x128xf32> -> vector<8x128xf32>
    %cst_76 = arith.constant dense<0.000000e+00> : vector<8x1280xf32>
    %105 = tpu.matmul %104, %1, %cst_76 {dimension_numbers = #tpu.dot_dimension_numbers<[1], [0], [0], [1], [0, 0, 1, 1], [], []>} : vector<8x128xf32>, vector<128x1280xf32>, vector<8x1280xf32> -> vector<8x1280xf32>
    %cst_77 = arith.constant dense<0.000000e+00> : vector<8x1280xf32>
    %106 = tpu.matmul %101, %2, %cst_77 {dimension_numbers = #tpu.dot_dimension_numbers<[1], [0], [0], [1], [0, 0, 1, 1], [], []>} : vector<8x128xf32>, vector<128x1280xf32>, vector<8x1280xf32> -> vector<8x1280xf32>
    %107 = vector.extract_strided_slice %105 {offsets = [0, 0], sizes = [8, 256], strides = [1, 1]} : vector<8x1280xf32> to vector<8x256xf32>
    %108 = vector.extract_strided_slice %106 {offsets = [0, 0], sizes = [8, 256], strides = [1, 1]} : vector<8x1280xf32> to vector<8x256xf32>
    %109 = arith.mulf %107, %108 : vector<8x256xf32>
    %110 = vector.extract_strided_slice %105 {offsets = [0, 256], sizes = [8, 256], strides = [1, 1]} : vector<8x1280xf32> to vector<8x256xf32>
    %111 = vector.extract_strided_slice %106 {offsets = [0, 256], sizes = [8, 256], strides = [1, 1]} : vector<8x1280xf32> to vector<8x256xf32>
    %112 = arith.mulf %110, %111 : vector<8x256xf32>
    %113 = arith.addf %109, %112 : vector<8x256xf32>
    %114 = vector.extract_strided_slice %105 {offsets = [0, 512], sizes = [8, 256], strides = [1, 1]} : vector<8x1280xf32> to vector<8x256xf32>
    %115 = vector.extract_strided_slice %106 {offsets = [0, 512], sizes = [8, 256], strides = [1, 1]} : vector<8x1280xf32> to vector<8x256xf32>
    %116 = arith.mulf %114, %115 : vector<8x256xf32>
    %117 = arith.addf %113, %116 : vector<8x256xf32>
    %118 = vector.extract_strided_slice %105 {offsets = [0, 768], sizes = [8, 256], strides = [1, 1]} : vector<8x1280xf32> to vector<8x256xf32>
    %119 = vector.extract_strided_slice %106 {offsets = [0, 768], sizes = [8, 256], strides = [1, 1]} : vector<8x1280xf32> to vector<8x256xf32>
    %120 = arith.mulf %118, %119 : vector<8x256xf32>
    %121 = arith.addf %117, %120 : vector<8x256xf32>
    %122 = vector.extract_strided_slice %105 {offsets = [0, 1024], sizes = [8, 256], strides = [1, 1]} : vector<8x1280xf32> to vector<8x256xf32>
    %123 = vector.extract_strided_slice %106 {offsets = [0, 1024], sizes = [8, 256], strides = [1, 1]} : vector<8x1280xf32> to vector<8x256xf32>
    %124 = arith.mulf %122, %123 : vector<8x256xf32>
    %125 = arith.addf %121, %124 : vector<8x256xf32>
    %c1_78 = arith.constant 1 : index
    %c0_79 = arith.constant 0 : index
    %c0_80 = arith.constant 0 : index
    %126 = vector.load %arg13[%c1_78, %c0_79, %c0_80] : memref<2x8x256xf32, #tpu.memory_space<vmem>>, vector<1x8x256xf32>
    %127 = vector.shape_cast %126 : vector<1x8x256xf32> to vector<8x256xf32>
    %128 = vector.shape_cast %125 : vector<8x256xf32> to vector<1x8x256xf32>
    tpu.vector_store %arg13[%c1_78, %c0_79, %c0_80], %128 {strides = array<i32>} : memref<2x8x256xf32, #tpu.memory_space<vmem>>, vector<1x8x256xf32>,
    return
  }
  func.func @transform_0(%arg0: i32) -> (i32, i32) {
    %c0_i32 = arith.constant 0 : i32
    %c0_i32_0 = arith.constant 0 : i32
    %c0_i32_1 = arith.constant 0 : i32
    return %c0_i32, %c0_i32_0 : i32, i32
  }
  func.func @transform_1(%arg0: i32) -> (i32, i32, i32) {
    %c0_i32 = arith.constant 0 : i32
    %c0_i32_0 = arith.constant 0 : i32
    %c0_i32_1 = arith.constant 0 : i32
    return %arg0, %c0_i32, %c0_i32_0 : i32, i32, i32
  }
  func.func @transform_2(%arg0: i32) -> (i32, i32) {
    %c0_i32 = arith.constant 0 : i32
    %c0_i32_0 = arith.constant 0 : i32
    %c0_i32_1 = arith.constant 0 : i32
    return %c0_i32, %c0_i32_0 : i32, i32
  }
  func.func @transform_3(%arg0: i32) -> (i32, i32) {
    %c0_i32 = arith.constant 0 : i32
    %c0_i32_0 = arith.constant 0 : i32
    %c0_i32_1 = arith.constant 0 : i32
    return %c0_i32, %c0_i32_0 : i32, i32
  }
  func.func @transform_4(%arg0: i32) -> (i32, i32, i32) {
    %c0_i32 = arith.constant 0 : i32
    %c0_i32_0 = arith.constant 0 : i32
    %c0_i32_1 = arith.constant 0 : i32
    return %arg0, %c0_i32, %c0_i32_0 : i32, i32, i32
  }
  func.func @transform_5(%arg0: i32) -> (i32, i32, i32) {
    %c0_i32 = arith.constant 0 : i32
    %c0_i32_0 = arith.constant 0 : i32
    %c0_i32_1 = arith.constant 0 : i32
    return %arg0, %c0_i32, %c0_i32_0 : i32, i32, i32
  }
  func.func @transform_6(%arg0: i32) -> (i32, i32, i32) {
    %c0_i32 = arith.constant 0 : i32
    %c0_i32_0 = arith.constant 0 : i32
    %c0_i32_1 = arith.constant 0 : i32
    return %arg0, %c0_i32, %c0_i32_0 : i32, i32, i32
  }
  func.func @transform_7(%arg0: i32) -> (i32, i32, i32) {
    %c0_i32 = arith.constant 0 : i32
    %c0_i32_0 = arith.constant 0 : i32
    %c0_i32_1 = arith.constant 0 : i32
    return %arg0, %c0_i32, %c0_i32_0 : i32, i32, i32
  }
  func.func @transform_8(%arg0: i32) -> (i32, i32, i32) {
    %c0_i32 = arith.constant 0 : i32
    %c0_i32_0 = arith.constant 0 : i32
    %c0_i32_1 = arith.constant 0 : i32
    return %arg0, %c0_i32, %c0_i32_0 : i32, i32, i32
  }
  func.func @transform_9(%arg0: i32) -> (i32, i32, i32) {
    %c0_i32 = arith.constant 0 : i32
    %c0_i32_0 = arith.constant 0 : i32
    %c0_i32_1 = arith.constant 0 : i32
    return %arg0, %c0_i32, %c0_i32_0 : i32, i32, i32
  }
  func.func @transform_10(%arg0: i32) -> (i32, i32, i32) {
    %c0_i32 = arith.constant 0 : i32
    %c0_i32_0 = arith.constant 0 : i32
    %c0_i32_1 = arith.constant 0 : i32
    return %arg0, %c0_i32, %c0_i32_0 : i32, i32, i32
  }
  func.func @transform_11(%arg0: i32) -> (i32, i32, i32) {
    %c0_i32 = arith.constant 0 : i32
    %c0_i32_0 = arith.constant 0 : i32
    %c0_i32_1 = arith.constant 0 : i32
    return %arg0, %c0_i32, %c0_i32_0 : i32, i32, i32
  }
  func.func @transform_12(%arg0: i32) -> (i32, i32, i32) {
    %c0_i32 = arith.constant 0 : i32
    %c0_i32_0 = arith.constant 0 : i32
    %c0_i32_1 = arith.constant 0 : i32
    return %arg0, %c0_i32, %c0_i32_0 : i32, i32, i32
  }
}

module attributes {stable_mosaic.version = 11 : i64} {
  func.func @_sov_kernel(%arg0: i32, %arg1: memref<8x32xf32, #tpu.memory_space<vmem>>, %arg2: memref<32x512xbf16, #tpu.memory_space<vmem>>, %arg3: memref<1x512xf32, #tpu.memory_space<vmem>>, %arg4: memref<512x1024xbf16, #tpu.memory_space<vmem>>, %arg5: memref<1x1024xf32, #tpu.memory_space<vmem>>, %arg6: memref<1024x6xbf16, #tpu.memory_space<vmem>>, %arg7: memref<1x6xf32, #tpu.memory_space<vmem>>, %arg8: memref<32x7xbf16, #tpu.memory_space<vmem>>, %arg9: memref<1x7xf32, #tpu.memory_space<vmem>>, %arg10: memref<32x9xbf16, #tpu.memory_space<vmem>>, %arg11: memref<1x9xf32, #tpu.memory_space<vmem>>, %arg12: memref<8x6xf32, #tpu.memory_space<vmem>>, %arg13: memref<8x7xf32, #tpu.memory_space<vmem>>, %arg14: memref<8x9xf32, #tpu.memory_space<vmem>>, %arg15: memref<8x1024xf32, #tpu.memory_space<vmem>>) attributes {dimension_semantics = [#tpu.dimension_semantics<arbitrary>], iteration_bounds = array<i64: 2>, scalar_prefetch = 0 : i64, scratch_operands = 1 : i64, tpu.core_type = #tpu.core_type<tc>, window_params = [{pipeline_mode = #tpu.pipeline_mode<synchronous>, transform_indices = @transform_0, window_bounds = array<i64: 8, 32>}, {transform_indices = @transform_1, window_bounds = array<i64: 32, 512>}, {transform_indices = @transform_2, window_bounds = array<i64: 1, 512>}, {transform_indices = @transform_3, window_bounds = array<i64: 512, 1024>}, {pipeline_mode = #tpu.pipeline_mode<synchronous>, transform_indices = @transform_4, window_bounds = array<i64: 1, 1024>}, {pipeline_mode = #tpu.pipeline_mode<synchronous>, transform_indices = @transform_5, window_bounds = array<i64: 1024, 6>}, {pipeline_mode = #tpu.pipeline_mode<synchronous>, transform_indices = @transform_6, window_bounds = array<i64: 1, 6>}, {pipeline_mode = #tpu.pipeline_mode<synchronous>, transform_indices = @transform_7, window_bounds = array<i64: 32, 7>}, {pipeline_mode = #tpu.pipeline_mode<synchronous>, transform_indices = @transform_8, window_bounds = array<i64: 1, 7>}, {pipeline_mode = #tpu.pipeline_mode<synchronous>, transform_indices = @transform_9, window_bounds = array<i64: 32, 9>}, {pipeline_mode = #tpu.pipeline_mode<synchronous>, transform_indices = @transform_10, window_bounds = array<i64: 1, 9>}, {pipeline_mode = #tpu.pipeline_mode<synchronous>, transform_indices = @transform_11, window_bounds = array<i64: 8, 6>}, {pipeline_mode = #tpu.pipeline_mode<synchronous>, transform_indices = @transform_12, window_bounds = array<i64: 8, 7>}, {pipeline_mode = #tpu.pipeline_mode<synchronous>, transform_indices = @transform_13, window_bounds = array<i64: 8, 9>}]} {
    %c0 = arith.constant 0 : index
    %c0_0 = arith.constant 0 : index
    %0 = vector.load %arg1[%c0, %c0_0] : memref<8x32xf32, #tpu.memory_space<vmem>>, vector<8x32xf32>
    %c0_i32 = arith.constant 0 : i32
    %1 = arith.cmpi eq, %arg0, %c0_i32 : i32
    %2 = arith.extui %1 : i1 to i32
    %c0_i32_1 = arith.constant 0 : i32
    %3 = arith.cmpi ne, %2, %c0_i32_1 : i32
    scf.if %3 {
      %cst_15 = arith.constant 0.000000e+00 : f32
      %21 = vector.broadcast %cst_15 : f32 to vector<8x1024xf32>
      %c0_16 = arith.constant 0 : index
      %c0_17 = arith.constant 0 : index
      %22 = vector.load %arg15[%c0_16, %c0_17] : memref<8x1024xf32, #tpu.memory_space<vmem>>, vector<8x1024xf32>
      tpu.vector_store %arg15[%c0_16, %c0_17], %21 {strides = array<i32>} : memref<8x1024xf32, #tpu.memory_space<vmem>>, vector<8x1024xf32>,
      %c0_18 = arith.constant 0 : index
      %c0_19 = arith.constant 0 : index
      %23 = vector.load %arg8[%c0_18, %c0_19] : memref<32x7xbf16, #tpu.memory_space<vmem>>, vector<32x7xbf16>
      %24 = arith.extf %23 : vector<32x7xbf16> to vector<32x7xf32>
      %cst_20 = arith.constant dense<0.000000e+00> : vector<8x7xf32>
      %25 = tpu.matmul %0, %24, %cst_20 {dimension_numbers = #tpu.dot_dimension_numbers<[1], [0], [0], [1], [0, 0, 1, 1], [], []>} : vector<8x32xf32>, vector<32x7xf32>, vector<8x7xf32> -> vector<8x7xf32>
      %c0_21 = arith.constant 0 : index
      %c0_22 = arith.constant 0 : index
      %26 = vector.load %arg9[%c0_21, %c0_22] : memref<1x7xf32, #tpu.memory_space<vmem>>, vector<1x7xf32>
      %27 = vector.broadcast %26 : vector<1x7xf32> to vector<8x7xf32>
      %28 = arith.addf %25, %27 : vector<8x7xf32>
      %c0_23 = arith.constant 0 : index
      %c0_24 = arith.constant 0 : index
      %29 = vector.load %arg13[%c0_23, %c0_24] : memref<8x7xf32, #tpu.memory_space<vmem>>, vector<8x7xf32>
      tpu.vector_store %arg13[%c0_23, %c0_24], %28 {strides = array<i32>} : memref<8x7xf32, #tpu.memory_space<vmem>>, vector<8x7xf32>,
      %c0_25 = arith.constant 0 : index
      %c0_26 = arith.constant 0 : index
      %30 = vector.load %arg10[%c0_25, %c0_26] : memref<32x9xbf16, #tpu.memory_space<vmem>>, vector<32x9xbf16>
      %31 = arith.extf %30 : vector<32x9xbf16> to vector<32x9xf32>
      %cst_27 = arith.constant dense<0.000000e+00> : vector<8x9xf32>
      %32 = tpu.matmul %0, %31, %cst_27 {dimension_numbers = #tpu.dot_dimension_numbers<[1], [0], [0], [1], [0, 0, 1, 1], [], []>} : vector<8x32xf32>, vector<32x9xf32>, vector<8x9xf32> -> vector<8x9xf32>
      %c0_28 = arith.constant 0 : index
      %c0_29 = arith.constant 0 : index
      %33 = vector.load %arg11[%c0_28, %c0_29] : memref<1x9xf32, #tpu.memory_space<vmem>>, vector<1x9xf32>
      %34 = vector.broadcast %33 : vector<1x9xf32> to vector<8x9xf32>
      %35 = arith.addf %32, %34 : vector<8x9xf32>
      %c0_30 = arith.constant 0 : index
      %c0_31 = arith.constant 0 : index
      %36 = vector.load %arg14[%c0_30, %c0_31] : memref<8x9xf32, #tpu.memory_space<vmem>>, vector<8x9xf32>
      tpu.vector_store %arg14[%c0_30, %c0_31], %35 {strides = array<i32>} : memref<8x9xf32, #tpu.memory_space<vmem>>, vector<8x9xf32>,
    } else {
    }
    %c0_2 = arith.constant 0 : index
    %c0_3 = arith.constant 0 : index
    %4 = vector.load %arg2[%c0_2, %c0_3] : memref<32x512xbf16, #tpu.memory_space<vmem>>, vector<32x512xbf16>
    %5 = arith.extf %4 : vector<32x512xbf16> to vector<32x512xf32>
    %cst = arith.constant dense<0.000000e+00> : vector<8x512xf32>
    %6 = tpu.matmul %0, %5, %cst {dimension_numbers = #tpu.dot_dimension_numbers<[1], [0], [0], [1], [0, 0, 1, 1], [], []>} : vector<8x32xf32>, vector<32x512xf32>, vector<8x512xf32> -> vector<8x512xf32>
    %c0_4 = arith.constant 0 : index
    %c0_5 = arith.constant 0 : index
    %7 = vector.load %arg3[%c0_4, %c0_5] : memref<1x512xf32, #tpu.memory_space<vmem>>, vector<1x512xf32>
    %8 = vector.broadcast %7 : vector<1x512xf32> to vector<8x512xf32>
    %9 = arith.addf %6, %8 : vector<8x512xf32>
    %cst_6 = arith.constant 0.000000e+00 : f32
    %10 = vector.broadcast %cst_6 : f32 to vector<8x512xf32>
    %11 = arith.maximumf %9, %10 : vector<8x512xf32>
    %c0_7 = arith.constant 0 : index
    %c0_8 = arith.constant 0 : index
    %12 = vector.load %arg15[%c0_7, %c0_8] : memref<8x1024xf32, #tpu.memory_space<vmem>>, vector<8x1024xf32>
    %c0_9 = arith.constant 0 : index
    %c0_10 = arith.constant 0 : index
    %13 = vector.load %arg4[%c0_9, %c0_10] : memref<512x1024xbf16, #tpu.memory_space<vmem>>, vector<512x1024xbf16>
    %14 = arith.extf %13 : vector<512x1024xbf16> to vector<512x1024xf32>
    %cst_11 = arith.constant dense<0.000000e+00> : vector<8x1024xf32>
    %15 = tpu.matmul %11, %14, %cst_11 {dimension_numbers = #tpu.dot_dimension_numbers<[1], [0], [0], [1], [0, 0, 1, 1], [], []>} : vector<8x512xf32>, vector<512x1024xf32>, vector<8x1024xf32> -> vector<8x1024xf32>
    %16 = arith.addf %12, %15 : vector<8x1024xf32>
    %c0_12 = arith.constant 0 : index
    %c0_13 = arith.constant 0 : index
    %17 = vector.load %arg15[%c0_12, %c0_13] : memref<8x1024xf32, #tpu.memory_space<vmem>>, vector<8x1024xf32>
    tpu.vector_store %arg15[%c0_12, %c0_13], %16 {strides = array<i32>} : memref<8x1024xf32, #tpu.memory_space<vmem>>, vector<8x1024xf32>,
    %c1_i32 = arith.constant 1 : i32
    %18 = arith.cmpi eq, %arg0, %c1_i32 : i32
    %19 = arith.extui %18 : i1 to i32
    %c0_i32_14 = arith.constant 0 : i32
    %20 = arith.cmpi ne, %19, %c0_i32_14 : i32
    scf.if %20 {
      %c0_15 = arith.constant 0 : index
      %c0_16 = arith.constant 0 : index
      %21 = vector.load %arg15[%c0_15, %c0_16] : memref<8x1024xf32, #tpu.memory_space<vmem>>, vector<8x1024xf32>
      %c0_17 = arith.constant 0 : index
      %c0_18 = arith.constant 0 : index
      %22 = vector.load %arg5[%c0_17, %c0_18] : memref<1x1024xf32, #tpu.memory_space<vmem>>, vector<1x1024xf32>
      %23 = vector.broadcast %22 : vector<1x1024xf32> to vector<8x1024xf32>
      %24 = arith.addf %21, %23 : vector<8x1024xf32>
      %cst_19 = arith.constant 0.000000e+00 : f32
      %25 = vector.broadcast %cst_19 : f32 to vector<8x1024xf32>
      %26 = arith.maximumf %24, %25 : vector<8x1024xf32>
      %c0_20 = arith.constant 0 : index
      %c0_21 = arith.constant 0 : index
      %27 = vector.load %arg6[%c0_20, %c0_21] : memref<1024x6xbf16, #tpu.memory_space<vmem>>, vector<1024x6xbf16>
      %28 = arith.extf %27 : vector<1024x6xbf16> to vector<1024x6xf32>
      %cst_22 = arith.constant dense<0.000000e+00> : vector<8x6xf32>
      %29 = tpu.matmul %26, %28, %cst_22 {dimension_numbers = #tpu.dot_dimension_numbers<[1], [0], [0], [1], [0, 0, 1, 1], [], []>} : vector<8x1024xf32>, vector<1024x6xf32>, vector<8x6xf32> -> vector<8x6xf32>
      %c0_23 = arith.constant 0 : index
      %c0_24 = arith.constant 0 : index
      %30 = vector.load %arg7[%c0_23, %c0_24] : memref<1x6xf32, #tpu.memory_space<vmem>>, vector<1x6xf32>
      %31 = vector.broadcast %30 : vector<1x6xf32> to vector<8x6xf32>
      %32 = arith.addf %29, %31 : vector<8x6xf32>
      %c0_25 = arith.constant 0 : index
      %c0_26 = arith.constant 0 : index
      %33 = vector.load %arg12[%c0_25, %c0_26] : memref<8x6xf32, #tpu.memory_space<vmem>>, vector<8x6xf32>
      tpu.vector_store %arg12[%c0_25, %c0_26], %32 {strides = array<i32>} : memref<8x6xf32, #tpu.memory_space<vmem>>, vector<8x6xf32>,
    } else {
    }
    return
  }
  func.func @transform_0(%arg0: i32) -> (i32, i32) {
    %c0_i32 = arith.constant 0 : i32
    %c0_i32_0 = arith.constant 0 : i32
    %c0_i32_1 = arith.constant 0 : i32
    return %c0_i32, %c0_i32_0 : i32, i32
  }
  func.func @transform_1(%arg0: i32) -> (i32, i32) {
    %c0_i32 = arith.constant 0 : i32
    %c0_i32_0 = arith.constant 0 : i32
    return %c0_i32, %arg0 : i32, i32
  }
  func.func @transform_2(%arg0: i32) -> (i32, i32) {
    %c0_i32 = arith.constant 0 : i32
    %c0_i32_0 = arith.constant 0 : i32
    return %c0_i32, %arg0 : i32, i32
  }
  func.func @transform_3(%arg0: i32) -> (i32, i32) {
    %c0_i32 = arith.constant 0 : i32
    %c0_i32_0 = arith.constant 0 : i32
    return %arg0, %c0_i32 : i32, i32
  }
  func.func @transform_4(%arg0: i32) -> (i32, i32) {
    %c0_i32 = arith.constant 0 : i32
    %c0_i32_0 = arith.constant 0 : i32
    %c0_i32_1 = arith.constant 0 : i32
    return %c0_i32, %c0_i32_0 : i32, i32
  }
  func.func @transform_5(%arg0: i32) -> (i32, i32) {
    %c0_i32 = arith.constant 0 : i32
    %c0_i32_0 = arith.constant 0 : i32
    %c0_i32_1 = arith.constant 0 : i32
    return %c0_i32, %c0_i32_0 : i32, i32
  }
  func.func @transform_6(%arg0: i32) -> (i32, i32) {
    %c0_i32 = arith.constant 0 : i32
    %c0_i32_0 = arith.constant 0 : i32
    %c0_i32_1 = arith.constant 0 : i32
    return %c0_i32, %c0_i32_0 : i32, i32
  }
  func.func @transform_7(%arg0: i32) -> (i32, i32) {
    %c0_i32 = arith.constant 0 : i32
    %c0_i32_0 = arith.constant 0 : i32
    %c0_i32_1 = arith.constant 0 : i32
    return %c0_i32, %c0_i32_0 : i32, i32
  }
  func.func @transform_8(%arg0: i32) -> (i32, i32) {
    %c0_i32 = arith.constant 0 : i32
    %c0_i32_0 = arith.constant 0 : i32
    %c0_i32_1 = arith.constant 0 : i32
    return %c0_i32, %c0_i32_0 : i32, i32
  }
  func.func @transform_9(%arg0: i32) -> (i32, i32) {
    %c0_i32 = arith.constant 0 : i32
    %c0_i32_0 = arith.constant 0 : i32
    %c0_i32_1 = arith.constant 0 : i32
    return %c0_i32, %c0_i32_0 : i32, i32
  }
  func.func @transform_10(%arg0: i32) -> (i32, i32) {
    %c0_i32 = arith.constant 0 : i32
    %c0_i32_0 = arith.constant 0 : i32
    %c0_i32_1 = arith.constant 0 : i32
    return %c0_i32, %c0_i32_0 : i32, i32
  }
  func.func @transform_11(%arg0: i32) -> (i32, i32) {
    %c0_i32 = arith.constant 0 : i32
    %c0_i32_0 = arith.constant 0 : i32
    %c0_i32_1 = arith.constant 0 : i32
    return %c0_i32, %c0_i32_0 : i32, i32
  }
  func.func @transform_12(%arg0: i32) -> (i32, i32) {
    %c0_i32 = arith.constant 0 : i32
    %c0_i32_0 = arith.constant 0 : i32
    %c0_i32_1 = arith.constant 0 : i32
    return %c0_i32, %c0_i32_0 : i32, i32
  }
  func.func @transform_13(%arg0: i32) -> (i32, i32) {
    %c0_i32 = arith.constant 0 : i32
    %c0_i32_0 = arith.constant 0 : i32
    %c0_i32_1 = arith.constant 0 : i32
    return %c0_i32, %c0_i32_0 : i32, i32
  }
}

</mosaic_0001>

<llo_original>
// kernel: async_tf_base_forward.2
$region0: #{async_tf_base_forward.2}
  #allocation0 [shape = 'u32[]', space=smem, size = 0x4, offset = 0x4, fixed_abs, tag = 'smem constant byte address 0x4 - core index']
  #allocation1 [shape = 'u32[144,128]{1,0:T(1,128)}', space=vmem, size = 0x12000, scoped, tag = 'internal scratch']
  #allocation2 [shape = 'f32[8,1024]{1,0:T(8,128)}', space=vmem, size = 0x8000, scoped, tag = 'scratch operand']
  %s0 = inlined_call_operand.vmem [shape: f32[8,32], index: 0, kind: input, shape index: {}]
  %s1 = inlined_call_operand.vmem [shape: bf16[32,1024], index: 1, kind: input, shape index: {}]
  %s2 = inlined_call_operand.vmem [shape: f32[1,1024], index: 2, kind: input, shape index: {}]
  %s3 = inlined_call_operand.vmem [shape: bf16[1024,1024], index: 3, kind: input, shape index: {}]
  %s4 = inlined_call_operand.vmem [shape: f32[1,1024], index: 4, kind: input, shape index: {}]
  %s5 = inlined_call_operand.vmem [shape: bf16[1024,6], index: 5, kind: input, shape index: {}]
  %s6 = inlined_call_operand.vmem [shape: f32[1,6], index: 6, kind: input, shape index: {}]
  %s7 = inlined_call_operand.vmem [shape: bf16[32,7], index: 7, kind: input, shape index: {}]
  %s8 = inlined_call_operand.vmem [shape: f32[1,7], index: 8, kind: input, shape index: {}]
  %s9 = inlined_call_operand.vmem [shape: bf16[32,9], index: 9, kind: input, shape index: {}]
  %s10 = inlined_call_operand.vmem [shape: f32[1,9], index: 10, kind: input, shape index: {}]
  %s11 = inlined_call_operand.hbm [shape: f32[8,6], index: 11, kind: output, shape index: {0}]
  %s12 = inlined_call_operand.hbm [shape: f32[8,7], index: 12, kind: output, shape index: {1}]
  %s13 = inlined_call_operand.hbm [shape: f32[8,9], index: 13, kind: output, shape index: {2}]
  %14 = xla_tuple %s11, %s12, %s13
  %s15 = sld [smem:[#allocation0]]
  $region124: #{async_tf_base_forward.2} parent=0
    _
  %s17 = ssub.s32 1, %s15
  %s18 = scalar_select 0, %s17, %s15
  $region1: #{async_tf_base_forward.2} parent=0
    #allocation3 [shape = 'u8[65536]{0}', space=vmem, size = 0x10000, scoped, tag = 'input window, operand 1']
    #allocation4 [shape = 'u8[4096]{0}', space=vmem, size = 0x1000, scoped, tag = 'output window, operand 0, single buffered']
    #allocation5 [shape = 's32[2]{0}', space=sflag, size = 0x8, scoped, tag = 'scoped memory for async_tf_base_forward.2']
    #allocation6 [shape = 'u8[4096]{0}', space=vmem, size = 0x1000, scoped, tag = 'output window, operand 1, single buffered']
    #allocation7 [shape = 's32[1]{0}', space=sflag, size = 0x4, scoped, tag = 'scoped memory for async_tf_base_forward.2']
    #allocation8 [shape = 'u8[4096]{0}', space=vmem, size = 0x1000, scoped, tag = 'output window, operand 2, single buffered']
    %19 = vsyncpa [#allocation5], 0
    %20 = vsyncpa [#allocation7], 0
    loop: start=0, step=1, limit=4
    $region2: #{async_tf_base_forward.2} parent=1 // loop_pre_header
      _
    $region3: #{async_tf_base_forward.2} parent=1 // loop_header
      %s22 = sphi 0, %s26
      %p23 = scmp.ge.s32.totalorder %s22, 4
      %s30 = sphi 0, %s30
      %s32 = sphi 0, %s30
      %s33 = sphi 0, %s32
      %s47 = sphi 0, %s33
      %s53 = sphi 0, %s55
      %s56 = sphi 0, %s53
      %s57 = sphi 0, %s56
      %s73 = sphi 0, %s57
      %s79 = sphi 0, %s81
      %s82 = sphi 0, %s79
      %s83 = sphi 0, %s82
      %s99 = sphi 0, %s83
      %s105 = sphi 0, %s107
      %s108 = sphi 0, %s105
      %s109 = sphi 0, %s108
      %s125 = sphi 0, %s109
      %s129 = sphi 0, %s129
      %s131 = sphi 0, %s129
      %s132 = sphi 0, %s131
      %s146 = sphi 0, %s132
      %s150 = sphi 0, %s150
      %s152 = sphi 0, %s150
      %s153 = sphi 0, %s152
      %s167 = sphi 0, %s153
      %s171 = sphi 0, %s171
      %s173 = sphi 0, %s171
      %s174 = sphi 0, %s173
      %s188 = sphi 0, %s174
      %s192 = sphi 0, %s192
      %s194 = sphi 0, %s192
      %s195 = sphi 0, %s194
      %s209 = sphi 0, %s195
      %s213 = sphi 0, %s213
      %s215 = sphi 0, %s213
      %s216 = sphi 0, %s215
      %s230 = sphi 0, %s216
      %s234 = sphi 0, %s234
      %s236 = sphi 0, %s234
      %s237 = sphi 0, %s236
      %s251 = sphi 0, %s237
      %s255 = sphi 0, %s255
      %s257 = sphi 0, %s255
      %s258 = sphi 0, %s257
      %s272 = sphi 0, %s258
      %s276 = sphi 0, %s276
      %s278 = sphi 0, %s276
      %s279 = sphi 0, %s278
      %s293 = sphi 0, %s279
      %s297 = sphi 0, %s297
      %s299 = sphi 0, %s297
      %s300 = sphi 0, %s299
      %s314 = sphi 0, %s300
      %s318 = sphi 0, %s318
      %s320 = sphi 0, %s318
      %s321 = sphi 0, %s320
      %s335 = sphi 0, %s321
    $region4: #{async_tf_base_forward.2} parent=1 // loop_header_branch
      %25 = sbr.rel (%p23) target = $region8
    $region5: #{async_tf_base_forward.2} parent=1 // loop_body
      %s27 = ssub.s32 %s22, 1
      %s28 = ssub.s32 %s22, 2
      %s29 = sadd.s32 %s22, 1
      %s31 = sadd.s32 %s30, 1
      %p34 = scmp.eq.s32.totalorder %s22, 1
      %p35 = scmp.ne.s32.totalorder %s30, %s32
      %p36 = scmp.eq.s32.totalorder %s22, 0
      %p37 = por %p35, %p36
      %p38 = scmp.ne.s32.totalorder %s30, %s32
      %p39 = scmp.eq.s32.totalorder %s27, 1
      %p40 = por %p38, %p39
      %p41 = scmp.ne.s32.totalorder %s32, %s33
      %p42 = scmp.eq.s32.totalorder %s27, 0
      %p43 = por %p41, %p42
      %p44 = scmp.ne.s32.totalorder %s32, %s33
      %p45 = scmp.eq.s32.totalorder %s28, 1
      %p46 = por %p44, %p45
      %p48 = scmp.ne.s32.totalorder %s33, %s47
      %p49 = scmp.eq.s32.totalorder %s28, 0
      %p50 = por %p48, %p49
      %s51 = ssub.s32 %s22, %s29
      %p52 = scmp.eq.s32.totalorder %s51, 0
      %s54 = sadd.s32 %s53, 1
      %s55 = scalar_select %p52, %s53, %s54
      %p58 = pneg %p52
      %p59 = scmp.eq.s32.totalorder %s22, 1
      %p60 = por %p58, %p59
      %p61 = scmp.ne.s32.totalorder %s53, %s56
      %p62 = scmp.eq.s32.totalorder %s22, 0
      %p63 = por %p61, %p62
      %p64 = scmp.ne.s32.totalorder %s53, %s56
      %p65 = scmp.eq.s32.totalorder %s27, 1
      %p66 = por %p64, %p65
      %p67 = scmp.ne.s32.totalorder %s56, %s57
      %p68 = scmp.eq.s32.totalorder %s27, 0
      %p69 = por %p67, %p68
      %p70 = scmp.ne.s32.totalorder %s56, %s57
      %p71 = scmp.eq.s32.totalorder %s28, 1
      %p72 = por %p70, %p71
      %p74 = scmp.ne.s32.totalorder %s57, %s73
      %p75 = scmp.eq.s32.totalorder %s28, 0
      %p76 = por %p74, %p75
      %s77 = ssub.s32 %s22, %s29
      %p78 = scmp.eq.s32.totalorder %s77, 0
      %s80 = sadd.s32 %s79, 1
      %s81 = scalar_select %p78, %s79, %s80
      %p84 = pneg %p78
      %p85 = scmp.eq.s32.totalorder %s22, 1
      %p86 = por %p84, %p85
      %p87 = scmp.ne.s32.totalorder %s79, %s82
      %p88 = scmp.eq.s32.totalorder %s22, 0
      %p89 = por %p87, %p88
      %p90 = scmp.ne.s32.totalorder %s79, %s82
      %p91 = scmp.eq.s32.totalorder %s27, 1
      %p92 = por %p90, %p91
      %p93 = scmp.ne.s32.totalorder %s82, %s83
      %p94 = scmp.eq.s32.totalorder %s27, 0
      %p95 = por %p93, %p94
      %p96 = scmp.ne.s32.totalorder %s82, %s83
      %p97 = scmp.eq.s32.totalorder %s28, 1
      %p98 = por %p96, %p97
      %p100 = scmp.ne.s32.totalorder %s83, %s99
      %p101 = scmp.eq.s32.totalorder %s28, 0
      %p102 = por %p100, %p101
      %s103 = ssub.s32 %s22, %s29
      %p104 = scmp.eq.s32.totalorder %s103, 0
      %s106 = sadd.s32 %s105, 1
      %s107 = scalar_select %p104, %s105, %s106
      %p110 = pneg %p104
      %p111 = scmp.eq.s32.totalorder %s22, 1
      %p112 = por %p110, %p111
      %p113 = scmp.ne.s32.totalorder %s105, %s108
      %p114 = scmp.eq.s32.totalorder %s22, 0
      %p115 = por %p113, %p114
      %p116 = scmp.ne.s32.totalorder %s105, %s108
      %p117 = scmp.eq.s32.totalorder %s27, 1
      %p118 = por %p116, %p117
      %p119 = scmp.ne.s32.totalorder %s108, %s109
      %p120 = scmp.eq.s32.totalorder %s27, 0
      %p121 = por %p119, %p120
      %p122 = scmp.ne.s32.totalorder %s108, %s109
      %p123 = scmp.eq.s32.totalorder %s28, 1
      %p124 = por %p122, %p123
      %p126 = scmp.ne.s32.totalorder %s109, %s125
      %p127 = scmp.eq.s32.totalorder %s28, 0
      %p128 = por %p126, %p127
      %s130 = sadd.s32 %s129, 1
      %p133 = scmp.eq.s32.totalorder %s22, 1
      %p134 = scmp.ne.s32.totalorder %s129, %s131
      %p135 = scmp.eq.s32.totalorder %s22, 0
      %p136 = por %p134, %p135
      %p137 = scmp.ne.s32.totalorder %s129, %s131
      %p138 = scmp.eq.s32.totalorder %s27, 1
      %p139 = por %p137, %p138
      %p140 = scmp.ne.s32.totalorder %s131, %s132
      %p141 = scmp.eq.s32.totalorder %s27, 0
      %p142 = por %p140, %p141
      %p143 = scmp.ne.s32.totalorder %s131, %s132
      %p144 = scmp.eq.s32.totalorder %s28, 1
      %p145 = por %p143, %p144
      %p147 = scmp.ne.s32.totalorder %s132, %s146
      %p148 = scmp.eq.s32.totalorder %s28, 0
      %p149 = por %p147, %p148
      %s151 = sadd.s32 %s150, 1
      %p154 = scmp.eq.s32.totalorder %s22, 1
      %p155 = scmp.ne.s32.totalorder %s150, %s152
      %p156 = scmp.eq.s32.totalorder %s22, 0
      %p157 = por %p155, %p156
      %p158 = scmp.ne.s32.totalorder %s150, %s152
      %p159 = scmp.eq.s32.totalorder %s27, 1
      %p160 = por %p158, %p159
      %p161 = scmp.ne.s32.totalorder %s152, %s153
      %p162 = scmp.eq.s32.totalorder %s27, 0
      %p163 = por %p161, %p162
      %p164 = scmp.ne.s32.totalorder %s152, %s153
      %p165 = scmp.eq.s32.totalorder %s28, 1
      %p166 = por %p164, %p165
      %p168 = scmp.ne.s32.totalorder %s153, %s167
      %p169 = scmp.eq.s32.totalorder %s28, 0
      %p170 = por %p168, %p169
      %s172 = sadd.s32 %s171, 1
      %p175 = scmp.eq.s32.totalorder %s22, 1
      %p176 = scmp.ne.s32.totalorder %s171, %s173
      %p177 = scmp.eq.s32.totalorder %s22, 0
      %p178 = por %p176, %p177
      %p179 = scmp.ne.s32.totalorder %s171, %s173
      %p180 = scmp.eq.s32.totalorder %s27, 1
      %p181 = por %p179, %p180
      %p182 = scmp.ne.s32.totalorder %s173, %s174
      %p183 = scmp.eq.s32.totalorder %s27, 0
      %p184 = por %p182, %p183
      %p185 = scmp.ne.s32.totalorder %s173, %s174
      %p186 = scmp.eq.s32.totalorder %s28, 1
      %p187 = por %p185, %p186
      %p189 = scmp.ne.s32.totalorder %s174, %s188
      %p190 = scmp.eq.s32.totalorder %s28, 0
      %p191 = por %p189, %p190
      %s193 = sadd.s32 %s192, 1
      %p196 = scmp.eq.s32.totalorder %s22, 1
      %p197 = scmp.ne.s32.totalorder %s192, %s194
      %p198 = scmp.eq.s32.totalorder %s22, 0
      %p199 = por %p197, %p198
      %p200 = scmp.ne.s32.totalorder %s192, %s194
      %p201 = scmp.eq.s32.totalorder %s27, 1
      %p202 = por %p200, %p201
      %p203 = scmp.ne.s32.totalorder %s194, %s195
      %p204 = scmp.eq.s32.totalorder %s27, 0
      %p205 = por %p203, %p204
      %p206 = scmp.ne.s32.totalorder %s194, %s195
      %p207 = scmp.eq.s32.totalorder %s28, 1
      %p208 = por %p206, %p207
      %p210 = scmp.ne.s32.totalorder %s195, %s209
      %p211 = scmp.eq.s32.totalorder %s28, 0
      %p212 = por %p210, %p211
      %s214 = sadd.s32 %s213, 1
      %p217 = scmp.eq.s32.totalorder %s22, 1
      %p218 = scmp.ne.s32.totalorder %s213, %s215
      %p219 = scmp.eq.s32.totalorder %s22, 0
      %p220 = por %p218, %p219
      %p221 = scmp.ne.s32.totalorder %s213, %s215
      %p222 = scmp.eq.s32.totalorder %s27, 1
      %p223 = por %p221, %p222
      %p224 = scmp.ne.s32.totalorder %s215, %s216
      %p225 = scmp.eq.s32.totalorder %s27, 0
      %p226 = por %p224, %p225
      %p227 = scmp.ne.s32.totalorder %s215, %s216
      %p228 = scmp.eq.s32.totalorder %s28, 1
      %p229 = por %p227, %p228
      %p231 = scmp.ne.s32.totalorder %s216, %s230
      %p232 = scmp.eq.s32.totalorder %s28, 0
      %p233 = por %p231, %p232
      %s235 = sadd.s32 %s234, 1
      %p238 = scmp.eq.s32.totalorder %s22, 1
      %p239 = scmp.ne.s32.totalorder %s234, %s236
      %p240 = scmp.eq.s32.totalorder %s22, 0
      %p241 = por %p239, %p240
      %p242 = scmp.ne.s32.totalorder %s234, %s236
      %p243 = scmp.eq.s32.totalorder %s27, 1
      %p244 = por %p242, %p243
      %p245 = scmp.ne.s32.totalorder %s236, %s237
      %p246 = scmp.eq.s32.totalorder %s27, 0
      %p247 = por %p245, %p246
      %p248 = scmp.ne.s32.totalorder %s236, %s237
      %p249 = scmp.eq.s32.totalorder %s28, 1
      %p250 = por %p248, %p249
      %p252 = scmp.ne.s32.totalorder %s237, %s251
      %p253 = scmp.eq.s32.totalorder %s28, 0
      %p254 = por %p252, %p253
      %s256 = sadd.s32 %s255, 1
      %p259 = scmp.eq.s32.totalorder %s22, 1
      %p260 = scmp.ne.s32.totalorder %s255, %s257
      %p261 = scmp.eq.s32.totalorder %s22, 0
      %p262 = por %p260, %p261
      %p263 = scmp.ne.s32.totalorder %s255, %s257
      %p264 = scmp.eq.s32.totalorder %s27, 1
      %p265 = por %p263, %p264
      %p266 = scmp.ne.s32.totalorder %s257, %s258
      %p267 = scmp.eq.s32.totalorder %s27, 0
      %p268 = por %p266, %p267
      %p269 = scmp.ne.s32.totalorder %s257, %s258
      %p270 = scmp.eq.s32.totalorder %s28, 1
      %p271 = por %p269, %p270
      %p273 = scmp.ne.s32.totalorder %s258, %s272
      %p274 = scmp.eq.s32.totalorder %s28, 0
      %p275 = por %p273, %p274
      %s277 = sadd.s32 %s276, 1
      %p280 = scmp.eq.s32.totalorder %s22, 1
      %p281 = scmp.ne.s32.totalorder %s276, %s278
      %p282 = scmp.eq.s32.totalorder %s22, 0
      %p283 = por %p281, %p282
      %p284 = scmp.ne.s32.totalorder %s276, %s278
      %p285 = scmp.eq.s32.totalorder %s27, 1
      %p286 = por %p284, %p285
      %p287 = scmp.ne.s32.totalorder %s278, %s279
      %p288 = scmp.eq.s32.totalorder %s27, 0
      %p289 = por %p287, %p288
      %p290 = scmp.ne.s32.totalorder %s278, %s279
      %p291 = scmp.eq.s32.totalorder %s28, 1
      %p292 = por %p290, %p291
      %p294 = scmp.ne.s32.totalorder %s279, %s293
      %p295 = scmp.eq.s32.totalorder %s28, 0
      %p296 = por %p294, %p295
      %s298 = sadd.s32 %s297, 1
      %p301 = scmp.eq.s32.totalorder %s22, 1
      %p302 = scmp.ne.s32.totalorder %s297, %s299
      %p303 = scmp.eq.s32.totalorder %s22, 0
      %p304 = por %p302, %p303
      %p305 = scmp.ne.s32.totalorder %s297, %s299
      %p306 = scmp.eq.s32.totalorder %s27, 1
      %p307 = por %p305, %p306
      %p308 = scmp.ne.s32.totalorder %s299, %s300
      %p309 = scmp.eq.s32.totalorder %s27, 0
      %p310 = por %p308, %p309
      %p311 = scmp.ne.s32.totalorder %s299, %s300
      %p312 = scmp.eq.s32.totalorder %s28, 1
      %p313 = por %p311, %p312
      %p315 = scmp.ne.s32.totalorder %s300, %s314
      %p316 = scmp.eq.s32.totalorder %s28, 0
      %p317 = por %p315, %p316
      %s319 = sadd.s32 %s318, 1
      %p322 = scmp.eq.s32.totalorder %s22, 1
      %p323 = scmp.ne.s32.totalorder %s318, %s320
      %p324 = scmp.eq.s32.totalorder %s22, 0
      %p325 = por %p323, %p324
      %p326 = scmp.ne.s32.totalorder %s318, %s320
      %p327 = scmp.eq.s32.totalorder %s27, 1
      %p328 = por %p326, %p327
      %p329 = scmp.ne.s32.totalorder %s320, %s321
      %p330 = scmp.eq.s32.totalorder %s27, 0
      %p331 = por %p329, %p330
      %p332 = scmp.ne.s32.totalorder %s320, %s321
      %p333 = scmp.eq.s32.totalorder %s28, 1
      %p334 = por %p332, %p333
      %p336 = scmp.ne.s32.totalorder %s321, %s335
      %p337 = scmp.eq.s32.totalorder %s28, 0
      %p338 = por %p336, %p337
      %p339 = scmp.le.s32.totalorder 1, %s22
      %p340 = scmp.lt.s32.totalorder %s22, 3
      %p341 = pnand %p339, %p340
      %p342 = pneg %p341
      // Predicated region
      $region9: #{async_tf_base_forward.2} parent=5 // pred_check
        _
      $region10: #{async_tf_base_forward.2} parent=5 // pred_check_branch
        %344 = sbr.rel (%p341) target = $region12
      $region11: #{async_tf_base_forward.2} parent=5 // pred_region
        %s345 = ssub.s32 %s22, 1
        // Predicated region
        $region13: #{async_tf_base_forward.2} parent=11 // pred_check
          %p346 = pneg %p43
        $region14: #{async_tf_base_forward.2} parent=11 // pred_check_branch
          %348 = sbr.rel (%p346) target = $region16
        $region15: #{async_tf_base_forward.2} parent=11 // pred_region
          _
        $region16: #{async_tf_base_forward.2} parent=11 // pred_fallthru
          _
        // Predicated region
        $region17: #{async_tf_base_forward.2} parent=11 // pred_check
          %p349 = pneg %p142
        $region18: #{async_tf_base_forward.2} parent=11 // pred_check_branch
          %351 = sbr.rel (%p349) target = $region20
        $region19: #{async_tf_base_forward.2} parent=11 // pred_region
          _
        $region20: #{async_tf_base_forward.2} parent=11 // pred_fallthru
          _
        // Predicated region
        $region21: #{async_tf_base_forward.2} parent=11 // pred_check
          %p352 = pneg %p163
        $region22: #{async_tf_base_forward.2} parent=11 // pred_check_branch
          %354 = sbr.rel (%p352) target = $region24
        $region23: #{async_tf_base_forward.2} parent=11 // pred_region
          _
        $region24: #{async_tf_base_forward.2} parent=11 // pred_fallthru
          _
        // Predicated region
        $region25: #{async_tf_base_forward.2} parent=11 // pred_check
          %p355 = pneg %p184
        $region26: #{async_tf_base_forward.2} parent=11 // pred_check_branch
          %357 = sbr.rel (%p355) target = $region28
        $region27: #{async_tf_base_forward.2} parent=11 // pred_region
          _
        $region28: #{async_tf_base_forward.2} parent=11 // pred_fallthru
          _
        // Predicated region
        $region29: #{async_tf_base_forward.2} parent=11 // pred_check
          %p358 = pneg %p205
        $region30: #{async_tf_base_forward.2} parent=11 // pred_check_branch
          %360 = sbr.rel (%p358) target = $region32
        $region31: #{async_tf_base_forward.2} parent=11 // pred_region
          _
        $region32: #{async_tf_base_forward.2} parent=11 // pred_fallthru
          _
        // Predicated region
        $region33: #{async_tf_base_forward.2} parent=11 // pred_check
          %p361 = pneg %p226
        $region34: #{async_tf_base_forward.2} parent=11 // pred_check_branch
          %363 = sbr.rel (%p361) target = $region36
        $region35: #{async_tf_base_forward.2} parent=11 // pred_region
          _
        $region36: #{async_tf_base_forward.2} parent=11 // pred_fallthru
          _
        // Predicated region
        $region37: #{async_tf_base_forward.2} parent=11 // pred_check
          %p364 = pneg %p247
        $region38: #{async_tf_base_forward.2} parent=11 // pred_check_branch
          %366 = sbr.rel (%p364) target = $region40
        $region39: #{async_tf_base_forward.2} parent=11 // pred_region
          _
        $region40: #{async_tf_base_forward.2} parent=11 // pred_fallthru
          _
        // Predicated region
        $region41: #{async_tf_base_forward.2} parent=11 // pred_check
          %p367 = pneg %p268
        $region42: #{async_tf_base_forward.2} parent=11 // pred_check_branch
          %369 = sbr.rel (%p367) target = $region44
        $region43: #{async_tf_base_forward.2} parent=11 // pred_region
          _
        $region44: #{async_tf_base_forward.2} parent=11 // pred_fallthru
          _
      $region12: #{async_tf_base_forward.2} parent=5 // pred_fallthru
        _
      %p370 = scmp.lt.s32.totalorder %s22, 2
      // Predicated region
      $region45: #{async_tf_base_forward.2} parent=5 // pred_check
        %p371 = pneg %p370
      $region46: #{async_tf_base_forward.2} parent=5 // pred_check_branch
        %373 = sbr.rel (%p371) target = $region48
      $region47: #{async_tf_base_forward.2} parent=5 // pred_region
        // Predicated region
        $region49: #{async_tf_base_forward.2} parent=47 // pred_check
          %p374 = pneg %p63
        $region50: #{async_tf_base_forward.2} parent=47 // pred_check_branch
          %376 = sbr.rel (%p374) target = $region52
        $region51: #{async_tf_base_forward.2} parent=47 // pred_region
          %s377 = sand.u32 %s53, 1
          %s378 = sand.u32 %s53, 1
          %s379 = smul.addr %s378, 64
          %s380 = scalar_lea.vmem [#allocation3], %s379
          %s381 = smul.u32 4, %s22
          %s382 = smul.addr %s381, 4
          %s383 = scalar_lea.vmem %s1, %s382
          // Predicated region
          $region53: #{async_tf_base_forward.2} parent=51 // pred_check
            _
          $region54: #{async_tf_base_forward.2} parent=51 // pred_check_branch
            %385 = sbr.rel (0) target = $region56
          $region55: #{async_tf_base_forward.2} parent=51 // pred_region
            // Predicated region
            $region57: #{async_tf_base_forward.2} parent=55 // pred_check
              _
            $region58: #{async_tf_base_forward.2} parent=55 // pred_check_branch
              %387 = sbr.rel (0) target = $region60
            $region59: #{async_tf_base_forward.2} parent=55 // pred_region
              loop: start=0, step=1, limit=1
              $region61: #{async_tf_base_forward.2} parent=59 // loop_pre_header
                _
              $region62: #{async_tf_base_forward.2} parent=59 // loop_header
                %s389 = sphi 0, %s393
                %p390 = scmp.ge.s32.totalorder %s389, 1
                %s394 = sphi %s383, %s383
                %s395 = sphi %s380, %s380
              $region63: #{async_tf_base_forward.2} parent=59 // loop_header_branch
                %392 = sbr.rel (%p390) target = $region67
              $region64: #{async_tf_base_forward.2} parent=59 // loop_body
                %v396 = vld [vmem:[%s394] sm:$0xff]
                %397 = vst [vmem:[%s395] sm:$0xff] %v396
                %v398 = vld [vmem:[%s394 + $0x8] sm:$0xff]
                %399 = vst [vmem:[%s395 + $0x8] sm:$0xff] %v398
                %v400 = vld [vmem:[%s394 + $0x20] sm:$0xff]
                %401 = vst [vmem:[%s395 + $0x10] sm:$0xff] %v400
                %v402 = vld [vmem:[%s394 + $0x28] sm:$0xff]
                %403 = vst [vmem:[%s395 + $0x18] sm:$0xff] %v402
                %v404 = vld [vmem:[%s394 + $0x40] sm:$0xff]
                %405 = vst [vmem:[%s395 + $0x20] sm:$0xff] %v404
                %v406 = vld [vmem:[%s394 + $0x48] sm:$0xff]
                %407 = vst [vmem:[%s395 + $0x28] sm:$0xff] %v406
                %v408 = vld [vmem:[%s394 + $0x60] sm:$0xff]
                %409 = vst [vmem:[%s395 + $0x30] sm:$0xff] %v408
                %v410 = vld [vmem:[%s394 + $0x68] sm:$0xff]
                %411 = vst [vmem:[%s395 + $0x38] sm:$0xff] %v410
              $region65: #{async_tf_base_forward.2} parent=59 // loop_footer
                %s393 = sadd.s32 1, %s389
              $region66: #{async_tf_base_forward.2} parent=59 // loop_footer_branch
                %388 = sbr.rel target = $region62
              $region67: #{async_tf_base_forward.2} parent=59 // loop_exit
                _
            $region60: #{async_tf_base_forward.2} parent=55 // pred_fallthru
              _
            // Predicated region
            $region68: #{async_tf_base_forward.2} parent=55 // pred_check
              _
            $region69: #{async_tf_base_forward.2} parent=55 // pred_check_branch
              %413 = sbr.rel target = $region71
            $region70: #{async_tf_base_forward.2} parent=55 // pred_region
              _
            $region71: #{async_tf_base_forward.2} parent=55 // pred_fallthru
              _
          $region56: #{async_tf_base_forward.2} parent=51 // pred_fallthru
            _
          %414 = vnop
        $region52: #{async_tf_base_forward.2} parent=47 // pred_fallthru
          _
        // Predicated region
        $region72: #{async_tf_base_forward.2} parent=47 // pred_check
          %p415 = pneg %p89
        $region73: #{async_tf_base_forward.2} parent=47 // pred_check_branch
          %417 = sbr.rel (%p415) target = $region75
        $region74: #{async_tf_base_forward.2} parent=47 // pred_region
          %s418 = smul.u32 4, %s22
          %p419 = scmp.lt.s32.totalorder %s418, 7
          %s420 = scalar_select %p419, %s418, 7
          %s421 = scalar_lea.vmem %s2, %s420
          %s422 = smul.u32 4, %s22
        $region75: #{async_tf_base_forward.2} parent=47 // pred_fallthru
          _
        // Predicated region
        $region76: #{async_tf_base_forward.2} parent=47 // pred_check
          %p423 = pneg %p115
        $region77: #{async_tf_base_forward.2} parent=47 // pred_check_branch
          %425 = sbr.rel (%p423) target = $region79
        $region78: #{async_tf_base_forward.2} parent=47 // pred_region
          %s426 = smul.u32 64, %s22
          %p427 = scmp.lt.s32.totalorder %s426, 127
          %s428 = scalar_select %p427, %s426, 127
          %s429 = smul.addr %s428, 8
          %s430 = smul.addr %s429, 4
          %s431 = scalar_lea.vmem %s3, %s430
          %s432 = smul.u32 64, %s22
        $region79: #{async_tf_base_forward.2} parent=47 // pred_fallthru
          _
      $region48: #{async_tf_base_forward.2} parent=5 // pred_fallthru
        _
      %p433 = scmp.le.s32.totalorder 1, %s22
      %p434 = scmp.lt.s32.totalorder %s22, 3
      %p435 = pnand %p433, %p434
      %p436 = pneg %p435
      // Predicated region
      $region80: #{async_tf_base_forward.2} parent=5 // pred_check
        _
      $region81: #{async_tf_base_forward.2} parent=5 // pred_check_branch
        %438 = sbr.rel (%p435) target = $region83
      $region82: #{async_tf_base_forward.2} parent=5 // pred_region
        %s439 = ssub.s32 %s22, 1
        %s440 = sand.u32 %s56, 1
        %s441 = sand.u32 %s56, 1
        %s442 = smul.addr %s441, 64
        %s443 = scalar_lea.vmem [#allocation3], %s442
        // Predicated region
        $region84: #{async_tf_base_forward.2} parent=82 // pred_check
          %p444 = pneg %p69
        $region85: #{async_tf_base_forward.2} parent=82 // pred_check_branch
          %446 = sbr.rel (%p444) target = $region87
        $region86: #{async_tf_base_forward.2} parent=82 // pred_region
          _
        $region87: #{async_tf_base_forward.2} parent=82 // pred_fallthru
          _
        %p447 = pneg %p43
        %p448 = pneg %p40
        %s449 = sand.u32 %s56, 1
        %s450 = sand.u32 %s56, 1
        %s451 = smul.addr %s450, 64
        %s452 = scalar_lea.vmem [#allocation3], %s451
        %p453 = pneg %p69
        %p454 = pneg %p66
        %s455 = smul.u32 4, %s27
        %p456 = scmp.lt.s32.totalorder %s455, 7
        %s457 = scalar_select %p456, %s455, 7
        %s458 = scalar_lea.vmem %s2, %s457
        %p459 = pneg %p95
        %p460 = pneg %p92
        %s461 = smul.u32 64, %s27
        %p462 = scmp.lt.s32.totalorder %s461, 127
        %s463 = scalar_select %p462, %s461, 127
        %s464 = smul.addr %s463, 8
        %s465 = smul.addr %s464, 4
        %s466 = scalar_lea.vmem %s3, %s465
        %p467 = pneg %p121
        %p468 = pneg %p118
        %p469 = pneg %p142
        %p470 = pneg %p139
        %p471 = pneg %p163
        %p472 = pneg %p160
        %p473 = pneg %p184
        %p474 = pneg %p181
        %p475 = pneg %p205
        %p476 = pneg %p202
        %p477 = pneg %p226
        %p478 = pneg %p223
        %p479 = pneg %p247
        %p480 = pneg %p244
        %p481 = pneg %p268
        %p482 = pneg %p265
        %p483 = pneg %p289
        %p484 = pneg %p286
        %p485 = pneg %p310
        %p486 = pneg %p307
        %p487 = pneg %p331
        %p488 = pneg %p328
        %s489 = smul.u32 4, %s27
        %s490 = smul.u32 4, %s27
        %p491 = scmp.lt.s32.totalorder %s490, 7
        %s492 = scalar_select %p491, %s490, 7
        %s493 = scalar_lea.vmem %s2, %s492
        %s494 = smul.u32 4, %s27
        %s495 = smul.u32 64, %s27
        %p496 = scmp.lt.s32.totalorder %s495, 127
        %s497 = scalar_select %p496, %s495, 127
        %s498 = smul.addr %s497, 8
        %s499 = smul.addr %s498, 4
        %s500 = scalar_lea.vmem %s3, %s499
        %s501 = smul.u32 64, %s27
        %v502 = vld [vmem:[%s0] sm:$0xff]
        %p503 = scmp.eq.s32.totalorder %s27, 0
        // Predicated region
        $region88: #{async_tf_base_forward.2} parent=82 // pred_check
          %p504 = pneg %p503
        $region89: #{async_tf_base_forward.2} parent=82 // pred_check_branch
          %506 = sbr.rel (%p504) target = $region91
        $region90: #{async_tf_base_forward.2} parent=82 // pred_region
          %507 = vst [vmem:[#allocation2] sm:$0xff] 0.0
          %508 = vst [vmem:[#allocation2 + $0x8] sm:$0xff] 0.0
          %509 = vst [vmem:[#allocation2 + $0x10] sm:$0xff] 0.0
          %510 = vst [vmem:[#allocation2 + $0x18] sm:$0xff] 0.0
          %511 = vst [vmem:[#allocation2 + $0x20] sm:$0xff] 0.0
          %512 = vst [vmem:[#allocation2 + $0x28] sm:$0xff] 0.0
          %513 = vst [vmem:[#allocation2 + $0x30] sm:$0xff] 0.0
          %514 = vst [vmem:[#allocation2 + $0x38] sm:$0xff] 0.0
          %v515 = vld [vmem:[%s7] sm:$0xf]
          %v516 = vld [vmem:[%s7 + $0x4] sm:$0xf]
          %v517 = vld [vmem:[%s7 + $0x8] sm:$0xf]
          %v518 = vld [vmem:[%s7 + $0xc] sm:$0xf]
          %v519 = vunpack.c.l.bf16 %v515
          %v520 = vunpack.c.l.bf16 %v516
          %v521 = vunpack.c.l.bf16 %v517
          %v522 = vunpack.c.l.bf16 %v518
          %v523 = vld [vmem:[%s8] sm:$0x1]
          %v525 = vlaneseq
          %v526 = vshrl.u32 %v525, 7
          %v527 = vsub.s32 0, %v526
          %v528 = vrot.slane %v523, %v527
          %vm530 = vcmask 261120
          %v532 = vsel %vm530, %v502, 0
          %534 = vmatprep.subr.mxu0 0.0
          %535 = vmatpush1.msra.mxu0 %v519
          %536 = vmatprep.subr.mxu0 0.0
          %537 = vmatpush1.msra.mxu0 %v520
          %538 = vmatprep.subr.mxu0 0.0
          %539 = vmatpush1.msra.mxu0 %v521
          %540 = vmatprep.subr.mxu0 0.0
          %541 = vmatpush1.msra.mxu0 %v522
          %542 = vmatprep.subr.mxu0 0.0
          %543 = vmatpush1.msra.mxu0 0.0
          %544 = vmatprep.subr.mxu0 0.0
          %545 = vmatpush1.msra.mxu0 0.0
          %546 = vmatprep.subr.mxu0 0.0
          %547 = vmatpush1.msra.mxu0 0.0
          %548 = vmatprep.subr.mxu0 0.0
          %549 = vmatpush1.msra.mxu0 0.0
          %550 = vmatprep.subr.mxu0 0.0
          %551 = vmatpush1.msra.mxu0 0.0
          %552 = vmatprep.subr.mxu0 0.0
          %553 = vmatpush1.msra.mxu0 0.0
          %554 = vmatprep.subr.mxu0 0.0
          %555 = vmatpush1.msra.mxu0 0.0
          %556 = vmatprep.subr.mxu0 0.0
          %557 = vmatpush1.msra.mxu0 0.0
          %558 = vmatprep.subr.mxu0 0.0
          %559 = vmatpush1.msra.mxu0 0.0
          %560 = vmatprep.subr.mxu0 0.0
          %561 = vmatpush1.msra.mxu0 0.0
          %562 = vmatprep.subr.mxu0 0.0
          %563 = vmatpush1.msra.mxu0 0.0
          %564 = vmatprep.subr.mxu0 0.0
          %565 = vmatpush1.msra.mxu0 0.0
          %566 = vmatprep.subr.mxu0 0.0
          %567 = vmatpush1.msra.mxu0 0.0
          %568 = vmatprep.subr.mxu0 0.0
          %569 = vmatpush1.msra.mxu0 0.0
          %570 = vmatprep.subr.mxu0 0.0
          %571 = vmatpush1.msra.mxu0 0.0
          %572 = vmatprep.subr.mxu0 0.0
          %573 = vmatpush1.msra.mxu0 0.0
          %574 = vmatprep.subr.mxu0 0.0
          %575 = vmatpush1.msra.mxu0 0.0
          %576 = vmatprep.subr.mxu0 0.0
          %577 = vmatpush1.msra.mxu0 0.0
          %578 = vmatprep.subr.mxu0 0.0
          %579 = vmatpush1.msra.mxu0 0.0
          %580 = vmatprep.subr.mxu0 0.0
          %581 = vmatpush1.msra.mxu0 0.0
          %582 = vmatprep.subr.mxu0 0.0
          %583 = vmatpush1.msra.mxu0 0.0
          %584 = vmatprep.subr.mxu0 0.0
          %585 = vmatpush1.msra.mxu0 0.0
          %586 = vmatprep.subr.mxu0 0.0
          %587 = vmatpush1.msra.mxu0 0.0
          %588 = vmatprep.subr.mxu0 0.0
          %589 = vmatpush1.msra.mxu0 0.0
          %590 = vmatprep.subr.mxu0 0.0
          %591 = vmatpush1.msra.mxu0 0.0
          %592 = vmatprep.subr.mxu0 0.0
          %593 = vmatpush1.msra.mxu0 0.0
          %594 = vmatprep.subr.mxu0 0.0
          %595 = vmatpush1.msra.mxu0 0.0
          %596 = vmatprep.subr.mxu0 0.0
          %597 = vmatpush1.msra.mxu0 0.0
          %598 = vmatprep.mubr.f32.mxu0 0.0
          %599 = vmatmul.mubr.f32.gmra.mrb[0].mxu0 %v532
          %v600 = vpop.f32.mrb[0].mxu0
          %v601 = vadd.f32 %v528, %v600
          %v602 = vpop.f32.mrb[0].mxu0
          %603 = vdwg.mxu0
          %vm604 = vcmask 56320
          %605 = vst.msk [vmem:[#allocation6] sm:$0xff] %vm604, %v601
          %v606 = vld [vmem:[%s9] sm:$0xf]
          %v607 = vld [vmem:[%s9 + $0x4] sm:$0xf]
          %v608 = vld [vmem:[%s9 + $0x8] sm:$0xf]
          %v609 = vld [vmem:[%s9 + $0xc] sm:$0xf]
          %v610 = vunpack.c.l.bf16 %v606
          %v611 = vunpack.c.l.bf16 %v607
          %v612 = vunpack.c.l.bf16 %v608
          %v613 = vunpack.c.l.bf16 %v609
          %v614 = vld [vmem:[%s10] sm:$0x1]
          %v616 = vlaneseq
          %v617 = vshrl.u32 %v616, 7
          %v618 = vsub.s32 0, %v617
          %v619 = vrot.slane %v614, %v618
          %621 = vmatprep.subr.mxu0 0.0
          %622 = vmatpush1.msra.mxu0 %v610
          %623 = vmatprep.subr.mxu0 0.0
          %624 = vmatpush1.msra.mxu0 %v611
          %625 = vmatprep.subr.mxu0 0.0
          %626 = vmatpush1.msra.mxu0 %v612
          %627 = vmatprep.subr.mxu0 0.0
          %628 = vmatpush1.msra.mxu0 %v613
          %629 = vmatprep.subr.mxu0 0.0
          %630 = vmatpush1.msra.mxu0 0.0
          %631 = vmatprep.subr.mxu0 0.0
          %632 = vmatpush1.msra.mxu0 0.0
          %633 = vmatprep.subr.mxu0 0.0
          %634 = vmatpush1.msra.mxu0 0.0
          %635 = vmatprep.subr.mxu0 0.0
          %636 = vmatpush1.msra.mxu0 0.0
          %637 = vmatprep.subr.mxu0 0.0
          %638 = vmatpush1.msra.mxu0 0.0
          %639 = vmatprep.subr.mxu0 0.0
          %640 = vmatpush1.msra.mxu0 0.0
          %641 = vmatprep.subr.mxu0 0.0
          %642 = vmatpush1.msra.mxu0 0.0
          %643 = vmatprep.subr.mxu0 0.0
          %644 = vmatpush1.msra.mxu0 0.0
          %645 = vmatprep.subr.mxu0 0.0
          %646 = vmatpush1.msra.mxu0 0.0
          %647 = vmatprep.subr.mxu0 0.0
          %648 = vmatpush1.msra.mxu0 0.0
          %649 = vmatprep.subr.mxu0 0.0
          %650 = vmatpush1.msra.mxu0 0.0
          %651 = vmatprep.subr.mxu0 0.0
          %652 = vmatpush1.msra.mxu0 0.0
          %653 = vmatprep.subr.mxu0 0.0
          %654 = vmatpush1.msra.mxu0 0.0
          %655 = vmatprep.subr.mxu0 0.0
          %656 = vmatpush1.msra.mxu0 0.0
          %657 = vmatprep.subr.mxu0 0.0
          %658 = vmatpush1.msra.mxu0 0.0
          %659 = vmatprep.subr.mxu0 0.0
          %660 = vmatpush1.msra.mxu0 0.0
          %661 = vmatprep.subr.mxu0 0.0
          %662 = vmatpush1.msra.mxu0 0.0
          %663 = vmatprep.subr.mxu0 0.0
          %664 = vmatpush1.msra.mxu0 0.0
          %665 = vmatprep.subr.mxu0 0.0
          %666 = vmatpush1.msra.mxu0 0.0
          %667 = vmatprep.subr.mxu0 0.0
          %668 = vmatpush1.msra.mxu0 0.0
          %669 = vmatprep.subr.mxu0 0.0
          %670 = vmatpush1.msra.mxu0 0.0
          %671 = vmatprep.subr.mxu0 0.0
          %672 = vmatpush1.msra.mxu0 0.0
          %673 = vmatprep.subr.mxu0 0.0
          %674 = vmatpush1.msra.mxu0 0.0
          %675 = vmatprep.subr.mxu0 0.0
          %676 = vmatpush1.msra.mxu0 0.0
          %677 = vmatprep.subr.mxu0 0.0
          %678 = vmatpush1.msra.mxu0 0.0
          %679 = vmatprep.subr.mxu0 0.0
          %680 = vmatpush1.msra.mxu0 0.0
          %681 = vmatprep.subr.mxu0 0.0
          %682 = vmatpush1.msra.mxu0 0.0
          %683 = vmatprep.subr.mxu0 0.0
          %684 = vmatpush1.msra.mxu0 0.0
          %685 = vmatprep.mubr.f32.mxu0 0.0
          %686 = vmatmul.mubr.f32.gmra.mrb[0].mxu0 %v532
          %v687 = vpop.f32.mrb[0].mxu0
          %v688 = vadd.f32 %v619, %v687
          %v689 = vpop.f32.mrb[0].mxu0
          %690 = vdwg.mxu0
          %vm691 = vcmask 72704
          %692 = vst.msk [vmem:[#allocation8] sm:$0xff] %vm691, %v688
        $region91: #{async_tf_base_forward.2} parent=82 // pred_fallthru
          _
        %v693 = vld [vmem:[%s443] sm:$0xff]
        %v694 = vld [vmem:[%s443 + $0x8] sm:$0xff]
        %v695 = vld [vmem:[%s443 + $0x10] sm:$0xff]
        %v696 = vld [vmem:[%s443 + $0x18] sm:$0xff]
        %v697 = vld [vmem:[%s443 + $0x20] sm:$0xff]
        %v698 = vld [vmem:[%s443 + $0x28] sm:$0xff]
        %v699 = vld [vmem:[%s443 + $0x30] sm:$0xff]
        %v700 = vld [vmem:[%s443 + $0x38] sm:$0xff]
        %v701 = vunpack.c.l.bf16 %v693
        %v702 = vunpack.c.h.bf16 %v693
        %v703 = vunpack.c.l.bf16 %v694
        %v704 = vunpack.c.h.bf16 %v694
        %v705 = vunpack.c.l.bf16 %v695
        %v706 = vunpack.c.h.bf16 %v695
        %v707 = vunpack.c.l.bf16 %v696
        %v708 = vunpack.c.h.bf16 %v696
        %v709 = vunpack.c.l.bf16 %v697
        %v710 = vunpack.c.h.bf16 %v697
        %v711 = vunpack.c.l.bf16 %v698
        %v712 = vunpack.c.h.bf16 %v698
        %v713 = vunpack.c.l.bf16 %v699
        %v714 = vunpack.c.h.bf16 %v699
        %v715 = vunpack.c.l.bf16 %v700
        %v716 = vunpack.c.h.bf16 %v700
        %v717 = vld [vmem:[%s493] sm:$0xf]
        %v719 = vlaneseq
        %v720 = vshrl.u32 %v719, 7
        %v721 = vsub.s32 0, %v720
        %v722 = vrot.slane %v717, %v721
        %v723 = vlaneseq
        %v724 = vshrl.u32 %v723, 7
        %v725 = vsub.s32 1, %v724
        %v726 = vrot.slane %v717, %v725
        %v727 = vlaneseq
        %v728 = vshrl.u32 %v727, 7
        %v729 = vsub.s32 2, %v728
        %v730 = vrot.slane %v717, %v729
        %v731 = vlaneseq
        %v732 = vshrl.u32 %v731, 7
        %v733 = vsub.s32 3, %v732
        %v734 = vrot.slane %v717, %v733
        %vm739 = vcmask 261120
        %v741 = vsel %vm739, %v502, 0
        %743 = vmatprep.subr.mxu0 %v702
        %744 = vmatpush1.msra.mxu0 %v701
        %745 = vmatprep.subr.mxu0 %v706
        %746 = vmatpush1.msra.mxu0 %v705
        %747 = vmatprep.subr.mxu0 %v710
        %748 = vmatpush1.msra.mxu0 %v709
        %749 = vmatprep.subr.mxu0 %v714
        %750 = vmatpush1.msra.mxu0 %v713
        %751 = vmatprep.subr.mxu0 0.0
        %752 = vmatpush1.msra.mxu0 0.0
        %753 = vmatprep.subr.mxu0 0.0
        %754 = vmatpush1.msra.mxu0 0.0
        %755 = vmatprep.subr.mxu0 0.0
        %756 = vmatpush1.msra.mxu0 0.0
        %757 = vmatprep.subr.mxu0 0.0
        %758 = vmatpush1.msra.mxu0 0.0
        %759 = vmatprep.subr.mxu0 0.0
        %760 = vmatpush1.msra.mxu0 0.0
        %761 = vmatprep.subr.mxu0 0.0
        %762 = vmatpush1.msra.mxu0 0.0
        %763 = vmatprep.subr.mxu0 0.0
        %764 = vmatpush1.msra.mxu0 0.0
        %765 = vmatprep.subr.mxu0 0.0
        %766 = vmatpush1.msra.mxu0 0.0
        %767 = vmatprep.subr.mxu0 0.0
        %768 = vmatpush1.msra.mxu0 0.0
        %769 = vmatprep.subr.mxu0 0.0
        %770 = vmatpush1.msra.mxu0 0.0
        %771 = vmatprep.subr.mxu0 0.0
        %772 = vmatpush1.msra.mxu0 0.0
        %773 = vmatprep.subr.mxu0 0.0
        %774 = vmatpush1.msra.mxu0 0.0
        %775 = vmatprep.subr.mxu0 0.0
        %776 = vmatpush1.msra.mxu0 0.0
        %777 = vmatprep.subr.mxu0 0.0
        %778 = vmatpush1.msra.mxu0 0.0
        %779 = vmatprep.subr.mxu0 0.0
        %780 = vmatpush1.msra.mxu0 0.0
        %781 = vmatprep.subr.mxu0 0.0
        %782 = vmatpush1.msra.mxu0 0.0
        %783 = vmatprep.subr.mxu0 0.0
        %784 = vmatpush1.msra.mxu0 0.0
        %785 = vmatprep.subr.mxu0 0.0
        %786 = vmatpush1.msra.mxu0 0.0
        %787 = vmatprep.subr.mxu0 0.0
        %788 = vmatpush1.msra.mxu0 0.0
        %789 = vmatprep.subr.mxu0 0.0
        %790 = vmatpush1.msra.mxu0 0.0
        %791 = vmatprep.subr.mxu0 0.0
        %792 = vmatpush1.msra.mxu0 0.0
        %793 = vmatprep.subr.mxu0 0.0
        %794 = vmatpush1.msra.mxu0 0.0
        %795 = vmatprep.subr.mxu0 0.0
        %796 = vmatpush1.msra.mxu0 0.0
        %797 = vmatprep.subr.mxu0 0.0
        %798 = vmatpush1.msra.mxu0 0.0
        %799 = vmatprep.subr.mxu0 0.0
        %800 = vmatpush1.msra.mxu0 0.0
        %801 = vmatprep.subr.mxu0 0.0
        %802 = vmatpush1.msra.mxu0 0.0
        %803 = vmatprep.subr.mxu0 0.0
        %804 = vmatpush1.msra.mxu0 0.0
        %805 = vmatprep.subr.mxu0 0.0
        %806 = vmatpush1.msra.mxu0 0.0
        %807 = vmatprep.mubr.f32.mxu0 0.0
        %808 = vmatmul.mubr.f32.gmra.mrb[0].mxu0 %v741
        %v809 = vpop.f32.mrb[0].mxu0
        %v810 = vadd.f32 %v722, %v809
        %v811 = vpop.f32.mrb[0].mxu0
        %v812 = vadd.f32 %v726, %v811
        %813 = vdwg.mxu0
        %814 = vmatprep.subr.mxu0 %v704
        %815 = vmatpush1.msra.mxu0 %v703
        %816 = vmatprep.subr.mxu0 %v708
        %817 = vmatpush1.msra.mxu0 %v707
        %818 = vmatprep.subr.mxu0 %v712
        %819 = vmatpush1.msra.mxu0 %v711
        %820 = vmatprep.subr.mxu0 %v716
        %821 = vmatpush1.msra.mxu0 %v715
        %822 = vmatprep.subr.mxu0 0.0
        %823 = vmatpush1.msra.mxu0 0.0
        %824 = vmatprep.subr.mxu0 0.0
        %825 = vmatpush1.msra.mxu0 0.0
        %826 = vmatprep.subr.mxu0 0.0
        %827 = vmatpush1.msra.mxu0 0.0
        %828 = vmatprep.subr.mxu0 0.0
        %829 = vmatpush1.msra.mxu0 0.0
        %830 = vmatprep.subr.mxu0 0.0
        %831 = vmatpush1.msra.mxu0 0.0
        %832 = vmatprep.subr.mxu0 0.0
        %833 = vmatpush1.msra.mxu0 0.0
        %834 = vmatprep.subr.mxu0 0.0
        %835 = vmatpush1.msra.mxu0 0.0
        %836 = vmatprep.subr.mxu0 0.0
        %837 = vmatpush1.msra.mxu0 0.0
        %838 = vmatprep.subr.mxu0 0.0
        %839 = vmatpush1.msra.mxu0 0.0
        %840 = vmatprep.subr.mxu0 0.0
        %841 = vmatpush1.msra.mxu0 0.0
        %842 = vmatprep.subr.mxu0 0.0
        %843 = vmatpush1.msra.mxu0 0.0
        %844 = vmatprep.subr.mxu0 0.0
        %845 = vmatpush1.msra.mxu0 0.0
        %846 = vmatprep.subr.mxu0 0.0
        %847 = vmatpush1.msra.mxu0 0.0
        %848 = vmatprep.subr.mxu0 0.0
        %849 = vmatpush1.msra.mxu0 0.0
        %850 = vmatprep.subr.mxu0 0.0
        %851 = vmatpush1.msra.mxu0 0.0
        %852 = vmatprep.subr.mxu0 0.0
        %853 = vmatpush1.msra.mxu0 0.0
        %854 = vmatprep.subr.mxu0 0.0
        %855 = vmatpush1.msra.mxu0 0.0
        %856 = vmatprep.subr.mxu0 0.0
        %857 = vmatpush1.msra.mxu0 0.0
        %858 = vmatprep.subr.mxu0 0.0
        %859 = vmatpush1.msra.mxu0 0.0
        %860 = vmatprep.subr.mxu0 0.0
        %861 = vmatpush1.msra.mxu0 0.0
        %862 = vmatprep.subr.mxu0 0.0
        %863 = vmatpush1.msra.mxu0 0.0
        %864 = vmatprep.subr.mxu0 0.0
        %865 = vmatpush1.msra.mxu0 0.0
        %866 = vmatprep.subr.mxu0 0.0
        %867 = vmatpush1.msra.mxu0 0.0
        %868 = vmatprep.subr.mxu0 0.0
        %869 = vmatpush1.msra.mxu0 0.0
        %870 = vmatprep.subr.mxu0 0.0
        %871 = vmatpush1.msra.mxu0 0.0
        %872 = vmatprep.subr.mxu0 0.0
        %873 = vmatpush1.msra.mxu0 0.0
        %874 = vmatprep.subr.mxu0 0.0
        %875 = vmatpush1.msra.mxu0 0.0
        %876 = vmatprep.subr.mxu0 0.0
        %877 = vmatpush1.msra.mxu0 0.0
        %878 = vmatprep.mubr.f32.mxu0 0.0
        %879 = vmatmul.mubr.f32.gmra.mrb[0].mxu0 %v741
        %v880 = vpop.f32.mrb[0].mxu0
        %v881 = vadd.f32 %v730, %v880
        %v882 = vpop.f32.mrb[0].mxu0
        %v883 = vadd.f32 %v734, %v882
        %884 = vdwg.mxu0
        %v885 = vmax.f32 %v810, 0.0
        %v886 = vmax.f32 %v812, 0.0
        %v887 = vmax.f32 %v881, 0.0
        %v888 = vmax.f32 %v883, 0.0
        %v889 = vld [vmem:[#allocation2] sm:$0xff]
        %v890 = vld [vmem:[#allocation2 + $0x8] sm:$0xff]
        %v891 = vld [vmem:[#allocation2 + $0x10] sm:$0xff]
        %v892 = vld [vmem:[#allocation2 + $0x18] sm:$0xff]
        %v893 = vld [vmem:[#allocation2 + $0x20] sm:$0xff]
        %v894 = vld [vmem:[#allocation2 + $0x28] sm:$0xff]
        %v895 = vld [vmem:[#allocation2 + $0x30] sm:$0xff]
        %v896 = vld [vmem:[#allocation2 + $0x38] sm:$0xff]
        %v897 = vld [vmem:[%s500] sm:$0xff]
        %v898 = vld [vmem:[%s500 + $0x8] sm:$0xff]
        %v899 = vld [vmem:[%s500 + $0x10] sm:$0xff]
        %v900 = vld [vmem:[%s500 + $0x18] sm:$0xff]
        %v901 = vld [vmem:[%s500 + $0x20] sm:$0xff]
        %v902 = vld [vmem:[%s500 + $0x28] sm:$0xff]
        %v903 = vld [vmem:[%s500 + $0x30] sm:$0xff]
        %v904 = vld [vmem:[%s500 + $0x38] sm:$0xff]
        %v905 = vld [vmem:[%s500 + $0x40] sm:$0xff]
        %v906 = vld [vmem:[%s500 + $0x48] sm:$0xff]
        %v907 = vld [vmem:[%s500 + $0x50] sm:$0xff]
        %v908 = vld [vmem:[%s500 + $0x58] sm:$0xff]
        %v909 = vld [vmem:[%s500 + $0x60] sm:$0xff]
        %v910 = vld [vmem:[%s500 + $0x68] sm:$0xff]
        %v911 = vld [vmem:[%s500 + $0x70] sm:$0xff]
        %v912 = vld [vmem:[%s500 + $0x78] sm:$0xff]
        %v913 = vld [vmem:[%s500 + $0x80] sm:$0xff]
        %v914 = vld [vmem:[%s500 + $0x88] sm:$0xff]
        %v915 = vld [vmem:[%s500 + $0x90] sm:$0xff]
        %v916 = vld [vmem:[%s500 + $0x98] sm:$0xff]
        %v917 = vld [vmem:[%s500 + $0xa0] sm:$0xff]
        %v918 = vld [vmem:[%s500 + $0xa8] sm:$0xff]
        %v919 = vld [vmem:[%s500 + $0xb0] sm:$0xff]
        %v920 = vld [vmem:[%s500 + $0xb8] sm:$0xff]
        %v921 = vld [vmem:[%s500 + $0xc0] sm:$0xff]
        %v922 = vld [vmem:[%s500 + $0xc8] sm:$0xff]
        %v923 = vld [vmem:[%s500 + $0xd0] sm:$0xff]
        %v924 = vld [vmem:[%s500 + $0xd8] sm:$0xff]
        %v925 = vld [vmem:[%s500 + $0xe0] sm:$0xff]
        %v926 = vld [vmem:[%s500 + $0xe8] sm:$0xff]
        %v927 = vld [vmem:[%s500 + $0xf0] sm:$0xff]
        %v928 = vld [vmem:[%s500 + $0xf8] sm:$0xff]
        %v929 = vld [vmem:[%s500 + $0x100] sm:$0xff]
        %v930 = vld [vmem:[%s500 + $0x108] sm:$0xff]
        %v931 = vld [vmem:[%s500 + $0x110] sm:$0xff]
        %v932 = vld [vmem:[%s500 + $0x118] sm:$0xff]
        %v933 = vld [vmem:[%s500 + $0x120] sm:$0xff]
        %v934 = vld [vmem:[%s500 + $0x128] sm:$0xff]
        %v935 = vld [vmem:[%s500 + $0x130] sm:$0xff]
        %v936 = vld [vmem:[%s500 + $0x138] sm:$0xff]
        %v937 = vld [vmem:[%s500 + $0x140] sm:$0xff]
        %v938 = vld [vmem:[%s500 + $0x148] sm:$0xff]
        %v939 = vld [vmem:[%s500 + $0x150] sm:$0xff]
        %v940 = vld [vmem:[%s500 + $0x158] sm:$0xff]
        %v941 = vld [vmem:[%s500 + $0x160] sm:$0xff]
        %v942 = vld [vmem:[%s500 + $0x168] sm:$0xff]
        %v943 = vld [vmem:[%s500 + $0x170] sm:$0xff]
        %v944 = vld [vmem:[%s500 + $0x178] sm:$0xff]
        %v945 = vld [vmem:[%s500 + $0x180] sm:$0xff]
        %v946 = vld [vmem:[%s500 + $0x188] sm:$0xff]
        %v947 = vld [vmem:[%s500 + $0x190] sm:$0xff]
        %v948 = vld [vmem:[%s500 + $0x198] sm:$0xff]
        %v949 = vld [vmem:[%s500 + $0x1a0] sm:$0xff]
        %v950 = vld [vmem:[%s500 + $0x1a8] sm:$0xff]
        %v951 = vld [vmem:[%s500 + $0x1b0] sm:$0xff]
        %v952 = vld [vmem:[%s500 + $0x1b8] sm:$0xff]
        %v953 = vld [vmem:[%s500 + $0x1c0] sm:$0xff]
        %v954 = vld [vmem:[%s500 + $0x1c8] sm:$0xff]
        %v955 = vld [vmem:[%s500 + $0x1d0] sm:$0xff]
        %v956 = vld [vmem:[%s500 + $0x1d8] sm:$0xff]
        %v957 = vld [vmem:[%s500 + $0x1e0] sm:$0xff]
        %v958 = vld [vmem:[%s500 + $0x1e8] sm:$0xff]
        %v959 = vld [vmem:[%s500 + $0x1f0] sm:$0xff]
        %v960 = vld [vmem:[%s500 + $0x1f8] sm:$0xff]
        %v961 = vld [vmem:[%s500 + $0x200] sm:$0xff]
        %v962 = vld [vmem:[%s500 + $0x208] sm:$0xff]
        %v963 = vld [vmem:[%s500 + $0x210] sm:$0xff]
        %v964 = vld [vmem:[%s500 + $0x218] sm:$0xff]
        %v965 = vld [vmem:[%s500 + $0x220] sm:$0xff]
        %v966 = vld [vmem:[%s500 + $0x228] sm:$0xff]
        %v967 = vld [vmem:[%s500 + $0x230] sm:$0xff]
        %v968 = vld [vmem:[%s500 + $0x238] sm:$0xff]
        %v969 = vld [vmem:[%s500 + $0x240] sm:$0xff]
        %v970 = vld [vmem:[%s500 + $0x248] sm:$0xff]
        %v971 = vld [vmem:[%s500 + $0x250] sm:$0xff]
        %v972 = vld [vmem:[%s500 + $0x258] sm:$0xff]
        %v973 = vld [vmem:[%s500 + $0x260] sm:$0xff]
        %v974 = vld [vmem:[%s500 + $0x268] sm:$0xff]
        %v975 = vld [vmem:[%s500 + $0x270] sm:$0xff]
        %v976 = vld [vmem:[%s500 + $0x278] sm:$0xff]
        %v977 = vld [vmem:[%s500 + $0x280] sm:$0xff]
        %v978 = vld [vmem:[%s500 + $0x288] sm:$0xff]
        %v979 = vld [vmem:[%s500 + $0x290] sm:$0xff]
        %v980 = vld [vmem:[%s500 + $0x298] sm:$0xff]
        %v981 = vld [vmem:[%s500 + $0x2a0] sm:$0xff]
        %v982 = vld [vmem:[%s500 + $0x2a8] sm:$0xff]
        %v983 = vld [vmem:[%s500 + $0x2b0] sm:$0xff]
        %v984 = vld [vmem:[%s500 + $0x2b8] sm:$0xff]
        %v985 = vld [vmem:[%s500 + $0x2c0] sm:$0xff]
        %v986 = vld [vmem:[%s500 + $0x2c8] sm:$0xff]
        %v987 = vld [vmem:[%s500 + $0x2d0] sm:$0xff]
        %v988 = vld [vmem:[%s500 + $0x2d8] sm:$0xff]
        %v989 = vld [vmem:[%s500 + $0x2e0] sm:$0xff]
        %v990 = vld [vmem:[%s500 + $0x2e8] sm:$0xff]
        %v991 = vld [vmem:[%s500 + $0x2f0] sm:$0xff]
        %v992 = vld [vmem:[%s500 + $0x2f8] sm:$0xff]
        %v993 = vld [vmem:[%s500 + $0x300] sm:$0xff]
        %v994 = vld [vmem:[%s500 + $0x308] sm:$0xff]
        %v995 = vld [vmem:[%s500 + $0x310] sm:$0xff]
        %v996 = vld [vmem:[%s500 + $0x318] sm:$0xff]
        %v997 = vld [vmem:[%s500 + $0x320] sm:$0xff]
        %v998 = vld [vmem:[%s500 + $0x328] sm:$0xff]
        %v999 = vld [vmem:[%s500 + $0x330] sm:$0xff]
        %v1000 = vld [vmem:[%s500 + $0x338] sm:$0xff]
        %v1001 = vld [vmem:[%s500 + $0x340] sm:$0xff]
        %v1002 = vld [vmem:[%s500 + $0x348] sm:$0xff]
        %v1003 = vld [vmem:[%s500 + $0x350] sm:$0xff]
        %v1004 = vld [vmem:[%s500 + $0x358] sm:$0xff]
        %v1005 = vld [vmem:[%s500 + $0x360] sm:$0xff]
        %v1006 = vld [vmem:[%s500 + $0x368] sm:$0xff]
        %v1007 = vld [vmem:[%s500 + $0x370] sm:$0xff]
        %v1008 = vld [vmem:[%s500 + $0x378] sm:$0xff]
        %v1009 = vld [vmem:[%s500 + $0x380] sm:$0xff]
        %v1010 = vld [vmem:[%s500 + $0x388] sm:$0xff]
        %v1011 = vld [vmem:[%s500 + $0x390] sm:$0xff]
        %v1012 = vld [vmem:[%s500 + $0x398] sm:$0xff]
        %v1013 = vld [vmem:[%s500 + $0x3a0] sm:$0xff]
        %v1014 = vld [vmem:[%s500 + $0x3a8] sm:$0xff]
        %v1015 = vld [vmem:[%s500 + $0x3b0] sm:$0xff]
        %v1016 = vld [vmem:[%s500 + $0x3b8] sm:$0xff]
        %v1017 = vld [vmem:[%s500 + $0x3c0] sm:$0xff]
        %v1018 = vld [vmem:[%s500 + $0x3c8] sm:$0xff]
        %v1019 = vld [vmem:[%s500 + $0x3d0] sm:$0xff]
        %v1020 = vld [vmem:[%s500 + $0x3d8] sm:$0xff]
        %v1021 = vld [vmem:[%s500 + $0x3e0] sm:$0xff]
        %v1022 = vld [vmem:[%s500 + $0x3e8] sm:$0xff]
        %v1023 = vld [vmem:[%s500 + $0x3f0] sm:$0xff]
        %v1024 = vld [vmem:[%s500 + $0x3f8] sm:$0xff]
        %v1025 = vld [vmem:[%s500 + $0x400] sm:$0xff]
        %v1026 = vld [vmem:[%s500 + $0x408] sm:$0xff]
        %v1027 = vld [vmem:[%s500 + $0x410] sm:$0xff]
        %v1028 = vld [vmem:[%s500 + $0x418] sm:$0xff]
        %v1029 = vld [vmem:[%s500 + $0x420] sm:$0xff]
        %v1030 = vld [vmem:[%s500 + $0x428] sm:$0xff]
        %v1031 = vld [vmem:[%s500 + $0x430] sm:$0xff]
        %v1032 = vld [vmem:[%s500 + $0x438] sm:$0xff]
        %v1033 = vld [vmem:[%s500 + $0x440] sm:$0xff]
        %v1034 = vld [vmem:[%s500 + $0x448] sm:$0xff]
        %v1035 = vld [vmem:[%s500 + $0x450] sm:$0xff]
        %v1036 = vld [vmem:[%s500 + $0x458] sm:$0xff]
        %v1037 = vld [vmem:[%s500 + $0x460] sm:$0xff]
        %v1038 = vld [vmem:[%s500 + $0x468] sm:$0xff]
        %v1039 = vld [vmem:[%s500 + $0x470] sm:$0xff]
        %v1040 = vld [vmem:[%s500 + $0x478] sm:$0xff]
        %v1041 = vld [vmem:[%s500 + $0x480] sm:$0xff]
        %v1042 = vld [vmem:[%s500 + $0x488] sm:$0xff]
        %v1043 = vld [vmem:[%s500 + $0x490] sm:$0xff]
        %v1044 = vld [vmem:[%s500 + $0x498] sm:$0xff]
        %v1045 = vld [vmem:[%s500 + $0x4a0] sm:$0xff]
        %v1046 = vld [vmem:[%s500 + $0x4a8] sm:$0xff]
        %v1047 = vld [vmem:[%s500 + $0x4b0] sm:$0xff]
        %v1048 = vld [vmem:[%s500 + $0x4b8] sm:$0xff]
        %v1049 = vld [vmem:[%s500 + $0x4c0] sm:$0xff]
        %v1050 = vld [vmem:[%s500 + $0x4c8] sm:$0xff]
        %v1051 = vld [vmem:[%s500 + $0x4d0] sm:$0xff]
        %v1052 = vld [vmem:[%s500 + $0x4d8] sm:$0xff]
        %v1053 = vld [vmem:[%s500 + $0x4e0] sm:$0xff]
        %v1054 = vld [vmem:[%s500 + $0x4e8] sm:$0xff]
        %v1055 = vld [vmem:[%s500 + $0x4f0] sm:$0xff]
        %v1056 = vld [vmem:[%s500 + $0x4f8] sm:$0xff]
        %v1057 = vld [vmem:[%s500 + $0x500] sm:$0xff]
        %v1058 = vld [vmem:[%s500 + $0x508] sm:$0xff]
        %v1059 = vld [vmem:[%s500 + $0x510] sm:$0xff]
        %v1060 = vld [vmem:[%s500 + $0x518] sm:$0xff]
        %v1061 = vld [vmem:[%s500 + $0x520] sm:$0xff]
        %v1062 = vld [vmem:[%s500 + $0x528] sm:$0xff]
        %v1063 = vld [vmem:[%s500 + $0x530] sm:$0xff]
        %v1064 = vld [vmem:[%s500 + $0x538] sm:$0xff]
        %v1065 = vld [vmem:[%s500 + $0x540] sm:$0xff]
        %v1066 = vld [vmem:[%s500 + $0x548] sm:$0xff]
        %v1067 = vld [vmem:[%s500 + $0x550] sm:$0xff]
        %v1068 = vld [vmem:[%s500 + $0x558] sm:$0xff]
        %v1069 = vld [vmem:[%s500 + $0x560] sm:$0xff]
        %v1070 = vld [vmem:[%s500 + $0x568] sm:$0xff]
        %v1071 = vld [vmem:[%s500 + $0x570] sm:$0xff]
        %v1072 = vld [vmem:[%s500 + $0x578] sm:$0xff]
        %v1073 = vld [vmem:[%s500 + $0x580] sm:$0xff]
        %v1074 = vld [vmem:[%s500 + $0x588] sm:$0xff]
        %v1075 = vld [vmem:[%s500 + $0x590] sm:$0xff]
        %v1076 = vld [vmem:[%s500 + $0x598] sm:$0xff]
        %v1077 = vld [vmem:[%s500 + $0x5a0] sm:$0xff]
        %v1078 = vld [vmem:[%s500 + $0x5a8] sm:$0xff]
        %v1079 = vld [vmem:[%s500 + $0x5b0] sm:$0xff]
        %v1080 = vld [vmem:[%s500 + $0x5b8] sm:$0xff]
        %v1081 = vld [vmem:[%s500 + $0x5c0] sm:$0xff]
        %v1082 = vld [vmem:[%s500 + $0x5c8] sm:$0xff]
        %v1083 = vld [vmem:[%s500 + $0x5d0] sm:$0xff]
        %v1084 = vld [vmem:[%s500 + $0x5d8] sm:$0xff]
        %v1085 = vld [vmem:[%s500 + $0x5e0] sm:$0xff]
        %v1086 = vld [vmem:[%s500 + $0x5e8] sm:$0xff]
        %v1087 = vld [vmem:[%s500 + $0x5f0] sm:$0xff]
        %v1088 = vld [vmem:[%s500 + $0x5f8] sm:$0xff]
        %v1089 = vld [vmem:[%s500 + $0x600] sm:$0xff]
        %v1090 = vld [vmem:[%s500 + $0x608] sm:$0xff]
        %v1091 = vld [vmem:[%s500 + $0x610] sm:$0xff]
        %v1092 = vld [vmem:[%s500 + $0x618] sm:$0xff]
        %v1093 = vld [vmem:[%s500 + $0x620] sm:$0xff]
        %v1094 = vld [vmem:[%s500 + $0x628] sm:$0xff]
        %v1095 = vld [vmem:[%s500 + $0x630] sm:$0xff]
        %v1096 = vld [vmem:[%s500 + $0x638] sm:$0xff]
        %v1097 = vld [vmem:[%s500 + $0x640] sm:$0xff]
        %v1098 = vld [vmem:[%s500 + $0x648] sm:$0xff]
        %v1099 = vld [vmem:[%s500 + $0x650] sm:$0xff]
        %v1100 = vld [vmem:[%s500 + $0x658] sm:$0xff]
        %v1101 = vld [vmem:[%s500 + $0x660] sm:$0xff]
        %v1102 = vld [vmem:[%s500 + $0x668] sm:$0xff]
        %v1103 = vld [vmem:[%s500 + $0x670] sm:$0xff]
        %v1104 = vld [vmem:[%s500 + $0x678] sm:$0xff]
        %v1105 = vld [vmem:[%s500 + $0x680] sm:$0xff]
        %v1106 = vld [vmem:[%s500 + $0x688] sm:$0xff]
        %v1107 = vld [vmem:[%s500 + $0x690] sm:$0xff]
        %v1108 = vld [vmem:[%s500 + $0x698] sm:$0xff]
        %v1109 = vld [vmem:[%s500 + $0x6a0] sm:$0xff]
        %v1110 = vld [vmem:[%s500 + $0x6a8] sm:$0xff]
        %v1111 = vld [vmem:[%s500 + $0x6b0] sm:$0xff]
        %v1112 = vld [vmem:[%s500 + $0x6b8] sm:$0xff]
        %v1113 = vld [vmem:[%s500 + $0x6c0] sm:$0xff]
        %v1114 = vld [vmem:[%s500 + $0x6c8] sm:$0xff]
        %v1115 = vld [vmem:[%s500 + $0x6d0] sm:$0xff]
        %v1116 = vld [vmem:[%s500 + $0x6d8] sm:$0xff]
        %v1117 = vld [vmem:[%s500 + $0x6e0] sm:$0xff]
        %v1118 = vld [vmem:[%s500 + $0x6e8] sm:$0xff]
        %v1119 = vld [vmem:[%s500 + $0x6f0] sm:$0xff]
        %v1120 = vld [vmem:[%s500 + $0x6f8] sm:$0xff]
        %v1121 = vld [vmem:[%s500 + $0x700] sm:$0xff]
        %v1122 = vld [vmem:[%s500 + $0x708] sm:$0xff]
        %v1123 = vld [vmem:[%s500 + $0x710] sm:$0xff]
        %v1124 = vld [vmem:[%s500 + $0x718] sm:$0xff]
        %v1125 = vld [vmem:[%s500 + $0x720] sm:$0xff]
        %v1126 = vld [vmem:[%s500 + $0x728] sm:$0xff]
        %v1127 = vld [vmem:[%s500 + $0x730] sm:$0xff]
        %v1128 = vld [vmem:[%s500 + $0x738] sm:$0xff]
        %v1129 = vld [vmem:[%s500 + $0x740] sm:$0xff]
        %v1130 = vld [vmem:[%s500 + $0x748] sm:$0xff]
        %v1131 = vld [vmem:[%s500 + $0x750] sm:$0xff]
        %v1132 = vld [vmem:[%s500 + $0x758] sm:$0xff]
        %v1133 = vld [vmem:[%s500 + $0x760] sm:$0xff]
        %v1134 = vld [vmem:[%s500 + $0x768] sm:$0xff]
        %v1135 = vld [vmem:[%s500 + $0x770] sm:$0xff]
        %v1136 = vld [vmem:[%s500 + $0x778] sm:$0xff]
        %v1137 = vld [vmem:[%s500 + $0x780] sm:$0xff]
        %v1138 = vld [vmem:[%s500 + $0x788] sm:$0xff]
        %v1139 = vld [vmem:[%s500 + $0x790] sm:$0xff]
        %v1140 = vld [vmem:[%s500 + $0x798] sm:$0xff]
        %v1141 = vld [vmem:[%s500 + $0x7a0] sm:$0xff]
        %v1142 = vld [vmem:[%s500 + $0x7a8] sm:$0xff]
        %v1143 = vld [vmem:[%s500 + $0x7b0] sm:$0xff]
        %v1144 = vld [vmem:[%s500 + $0x7b8] sm:$0xff]
        %v1145 = vld [vmem:[%s500 + $0x7c0] sm:$0xff]
        %v1146 = vld [vmem:[%s500 + $0x7c8] sm:$0xff]
        %v1147 = vld [vmem:[%s500 + $0x7d0] sm:$0xff]
        %v1148 = vld [vmem:[%s500 + $0x7d8] sm:$0xff]
        %v1149 = vld [vmem:[%s500 + $0x7e0] sm:$0xff]
        %v1150 = vld [vmem:[%s500 + $0x7e8] sm:$0xff]
        %v1151 = vld [vmem:[%s500 + $0x7f0] sm:$0xff]
        %v1152 = vld [vmem:[%s500 + $0x7f8] sm:$0xff]
        %v1153 = vunpack.c.l.bf16 %v897
        %v1154 = vunpack.c.h.bf16 %v897
        %v1155 = vunpack.c.l.bf16 %v898
        %v1156 = vunpack.c.h.bf16 %v898
        %v1157 = vunpack.c.l.bf16 %v899
        %v1158 = vunpack.c.h.bf16 %v899
        %v1159 = vunpack.c.l.bf16 %v900
        %v1160 = vunpack.c.h.bf16 %v900
        %v1161 = vunpack.c.l.bf16 %v901
        %v1162 = vunpack.c.h.bf16 %v901
        %v1163 = vunpack.c.l.bf16 %v902
        %v1164 = vunpack.c.h.bf16 %v902
        %v1165 = vunpack.c.l.bf16 %v903
        %v1166 = vunpack.c.h.bf16 %v903
        %v1167 = vunpack.c.l.bf16 %v904
        %v1168 = vunpack.c.h.bf16 %v904
        %v1169 = vunpack.c.l.bf16 %v905
        %v1170 = vunpack.c.h.bf16 %v905
        %v1171 = vunpack.c.l.bf16 %v906
        %v1172 = vunpack.c.h.bf16 %v906
        %v1173 = vunpack.c.l.bf16 %v907
        %v1174 = vunpack.c.h.bf16 %v907
        %v1175 = vunpack.c.l.bf16 %v908
        %v1176 = vunpack.c.h.bf16 %v908
        %v1177 = vunpack.c.l.bf16 %v909
        %v1178 = vunpack.c.h.bf16 %v909
        %v1179 = vunpack.c.l.bf16 %v910
        %v1180 = vunpack.c.h.bf16 %v910
        %v1181 = vunpack.c.l.bf16 %v911
        %v1182 = vunpack.c.h.bf16 %v911
        %v1183 = vunpack.c.l.bf16 %v912
        %v1184 = vunpack.c.h.bf16 %v912
        %v1185 = vunpack.c.l.bf16 %v913
        %v1186 = vunpack.c.h.bf16 %v913
        %v1187 = vunpack.c.l.bf16 %v914
        %v1188 = vunpack.c.h.bf16 %v914
        %v1189 = vunpack.c.l.bf16 %v915
        %v1190 = vunpack.c.h.bf16 %v915
        %v1191 = vunpack.c.l.bf16 %v916
        %v1192 = vunpack.c.h.bf16 %v916
        %v1193 = vunpack.c.l.bf16 %v917
        %v1194 = vunpack.c.h.bf16 %v917
        %v1195 = vunpack.c.l.bf16 %v918
        %v1196 = vunpack.c.h.bf16 %v918
        %v1197 = vunpack.c.l.bf16 %v919
        %v1198 = vunpack.c.h.bf16 %v919
        %v1199 = vunpack.c.l.bf16 %v920
        %v1200 = vunpack.c.h.bf16 %v920
        %v1201 = vunpack.c.l.bf16 %v921
        %v1202 = vunpack.c.h.bf16 %v921
        %v1203 = vunpack.c.l.bf16 %v922
        %v1204 = vunpack.c.h.bf16 %v922
        %v1205 = vunpack.c.l.bf16 %v923
        %v1206 = vunpack.c.h.bf16 %v923
        %v1207 = vunpack.c.l.bf16 %v924
        %v1208 = vunpack.c.h.bf16 %v924
        %v1209 = vunpack.c.l.bf16 %v925
        %v1210 = vunpack.c.h.bf16 %v925
        %v1211 = vunpack.c.l.bf16 %v926
        %v1212 = vunpack.c.h.bf16 %v926
        %v1213 = vunpack.c.l.bf16 %v927
        %v1214 = vunpack.c.h.bf16 %v927
        %v1215 = vunpack.c.l.bf16 %v928
        %v1216 = vunpack.c.h.bf16 %v928
        %v1217 = vunpack.c.l.bf16 %v929
        %v1218 = vunpack.c.h.bf16 %v929
        %v1219 = vunpack.c.l.bf16 %v930
        %v1220 = vunpack.c.h.bf16 %v930
        %v1221 = vunpack.c.l.bf16 %v931
        %v1222 = vunpack.c.h.bf16 %v931
        %v1223 = vunpack.c.l.bf16 %v932
        %v1224 = vunpack.c.h.bf16 %v932
        %v1225 = vunpack.c.l.bf16 %v933
        %v1226 = vunpack.c.h.bf16 %v933
        %v1227 = vunpack.c.l.bf16 %v934
        %v1228 = vunpack.c.h.bf16 %v934
        %v1229 = vunpack.c.l.bf16 %v935
        %v1230 = vunpack.c.h.bf16 %v935
        %v1231 = vunpack.c.l.bf16 %v936
        %v1232 = vunpack.c.h.bf16 %v936
        %v1233 = vunpack.c.l.bf16 %v937
        %v1234 = vunpack.c.h.bf16 %v937
        %v1235 = vunpack.c.l.bf16 %v938
        %v1236 = vunpack.c.h.bf16 %v938
        %v1237 = vunpack.c.l.bf16 %v939
        %v1238 = vunpack.c.h.bf16 %v939
        %v1239 = vunpack.c.l.bf16 %v940
        %v1240 = vunpack.c.h.bf16 %v940
        %v1241 = vunpack.c.l.bf16 %v941
        %v1242 = vunpack.c.h.bf16 %v941
        %v1243 = vunpack.c.l.bf16 %v942
        %v1244 = vunpack.c.h.bf16 %v942
        %v1245 = vunpack.c.l.bf16 %v943
        %v1246 = vunpack.c.h.bf16 %v943
        %v1247 = vunpack.c.l.bf16 %v944
        %v1248 = vunpack.c.h.bf16 %v944
        %v1249 = vunpack.c.l.bf16 %v945
        %v1250 = vunpack.c.h.bf16 %v945
        %v1251 = vunpack.c.l.bf16 %v946
        %v1252 = vunpack.c.h.bf16 %v946
        %v1253 = vunpack.c.l.bf16 %v947
        %v1254 = vunpack.c.h.bf16 %v947
        %v1255 = vunpack.c.l.bf16 %v948
        %v1256 = vunpack.c.h.bf16 %v948
        %v1257 = vunpack.c.l.bf16 %v949
        %v1258 = vunpack.c.h.bf16 %v949
        %v1259 = vunpack.c.l.bf16 %v950
        %v1260 = vunpack.c.h.bf16 %v950
        %v1261 = vunpack.c.l.bf16 %v951
        %v1262 = vunpack.c.h.bf16 %v951
        %v1263 = vunpack.c.l.bf16 %v952
        %v1264 = vunpack.c.h.bf16 %v952
        %v1265 = vunpack.c.l.bf16 %v953
        %v1266 = vunpack.c.h.bf16 %v953
        %v1267 = vunpack.c.l.bf16 %v954
        %v1268 = vunpack.c.h.bf16 %v954
        %v1269 = vunpack.c.l.bf16 %v955
        %v1270 = vunpack.c.h.bf16 %v955
        %v1271 = vunpack.c.l.bf16 %v956
        %v1272 = vunpack.c.h.bf16 %v956
        %v1273 = vunpack.c.l.bf16 %v957
        %v1274 = vunpack.c.h.bf16 %v957
        %v1275 = vunpack.c.l.bf16 %v958
        %v1276 = vunpack.c.h.bf16 %v958
        %v1277 = vunpack.c.l.bf16 %v959
        %v1278 = vunpack.c.h.bf16 %v959
        %v1279 = vunpack.c.l.bf16 %v960
        %v1280 = vunpack.c.h.bf16 %v960
        %v1281 = vunpack.c.l.bf16 %v961
        %v1282 = vunpack.c.h.bf16 %v961
        %v1283 = vunpack.c.l.bf16 %v962
        %v1284 = vunpack.c.h.bf16 %v962
        %v1285 = vunpack.c.l.bf16 %v963
        %v1286 = vunpack.c.h.bf16 %v963
        %v1287 = vunpack.c.l.bf16 %v964
        %v1288 = vunpack.c.h.bf16 %v964
        %v1289 = vunpack.c.l.bf16 %v965
        %v1290 = vunpack.c.h.bf16 %v965
        %v1291 = vunpack.c.l.bf16 %v966
        %v1292 = vunpack.c.h.bf16 %v966
        %v1293 = vunpack.c.l.bf16 %v967
        %v1294 = vunpack.c.h.bf16 %v967
        %v1295 = vunpack.c.l.bf16 %v968
        %v1296 = vunpack.c.h.bf16 %v968
        %v1297 = vunpack.c.l.bf16 %v969
        %v1298 = vunpack.c.h.bf16 %v969
        %v1299 = vunpack.c.l.bf16 %v970
        %v1300 = vunpack.c.h.bf16 %v970
        %v1301 = vunpack.c.l.bf16 %v971
        %v1302 = vunpack.c.h.bf16 %v971
        %v1303 = vunpack.c.l.bf16 %v972
        %v1304 = vunpack.c.h.bf16 %v972
        %v1305 = vunpack.c.l.bf16 %v973
        %v1306 = vunpack.c.h.bf16 %v973
        %v1307 = vunpack.c.l.bf16 %v974
        %v1308 = vunpack.c.h.bf16 %v974
        %v1309 = vunpack.c.l.bf16 %v975
        %v1310 = vunpack.c.h.bf16 %v975
        %v1311 = vunpack.c.l.bf16 %v976
        %v1312 = vunpack.c.h.bf16 %v976
        %v1313 = vunpack.c.l.bf16 %v977
        %v1314 = vunpack.c.h.bf16 %v977
        %v1315 = vunpack.c.l.bf16 %v978
        %v1316 = vunpack.c.h.bf16 %v978
        %v1317 = vunpack.c.l.bf16 %v979
        %v1318 = vunpack.c.h.bf16 %v979
        %v1319 = vunpack.c.l.bf16 %v980
        %v1320 = vunpack.c.h.bf16 %v980
        %v1321 = vunpack.c.l.bf16 %v981
        %v1322 = vunpack.c.h.bf16 %v981
        %v1323 = vunpack.c.l.bf16 %v982
        %v1324 = vunpack.c.h.bf16 %v982
        %v1325 = vunpack.c.l.bf16 %v983
        %v1326 = vunpack.c.h.bf16 %v983
        %v1327 = vunpack.c.l.bf16 %v984
        %v1328 = vunpack.c.h.bf16 %v984
        %v1329 = vunpack.c.l.bf16 %v985
        %v1330 = vunpack.c.h.bf16 %v985
        %v1331 = vunpack.c.l.bf16 %v986
        %v1332 = vunpack.c.h.bf16 %v986
        %v1333 = vunpack.c.l.bf16 %v987
        %v1334 = vunpack.c.h.bf16 %v987
        %v1335 = vunpack.c.l.bf16 %v988
        %v1336 = vunpack.c.h.bf16 %v988
        %v1337 = vunpack.c.l.bf16 %v989
        %v1338 = vunpack.c.h.bf16 %v989
        %v1339 = vunpack.c.l.bf16 %v990
        %v1340 = vunpack.c.h.bf16 %v990
        %v1341 = vunpack.c.l.bf16 %v991
        %v1342 = vunpack.c.h.bf16 %v991
        %v1343 = vunpack.c.l.bf16 %v992
        %v1344 = vunpack.c.h.bf16 %v992
        %v1345 = vunpack.c.l.bf16 %v993
        %v1346 = vunpack.c.h.bf16 %v993
        %v1347 = vunpack.c.l.bf16 %v994
        %v1348 = vunpack.c.h.bf16 %v994
        %v1349 = vunpack.c.l.bf16 %v995
        %v1350 = vunpack.c.h.bf16 %v995
        %v1351 = vunpack.c.l.bf16 %v996
        %v1352 = vunpack.c.h.bf16 %v996
        %v1353 = vunpack.c.l.bf16 %v997
        %v1354 = vunpack.c.h.bf16 %v997
        %v1355 = vunpack.c.l.bf16 %v998
        %v1356 = vunpack.c.h.bf16 %v998
        %v1357 = vunpack.c.l.bf16 %v999
        %v1358 = vunpack.c.h.bf16 %v999
        %v1359 = vunpack.c.l.bf16 %v1000
        %v1360 = vunpack.c.h.bf16 %v1000
        %v1361 = vunpack.c.l.bf16 %v1001
        %v1362 = vunpack.c.h.bf16 %v1001
        %v1363 = vunpack.c.l.bf16 %v1002
        %v1364 = vunpack.c.h.bf16 %v1002
        %v1365 = vunpack.c.l.bf16 %v1003
        %v1366 = vunpack.c.h.bf16 %v1003
        %v1367 = vunpack.c.l.bf16 %v1004
        %v1368 = vunpack.c.h.bf16 %v1004
        %v1369 = vunpack.c.l.bf16 %v1005
        %v1370 = vunpack.c.h.bf16 %v1005
        %v1371 = vunpack.c.l.bf16 %v1006
        %v1372 = vunpack.c.h.bf16 %v1006
        %v1373 = vunpack.c.l.bf16 %v1007
        %v1374 = vunpack.c.h.bf16 %v1007
        %v1375 = vunpack.c.l.bf16 %v1008
        %v1376 = vunpack.c.h.bf16 %v1008
        %v1377 = vunpack.c.l.bf16 %v1009
        %v1378 = vunpack.c.h.bf16 %v1009
        %v1379 = vunpack.c.l.bf16 %v1010
        %v1380 = vunpack.c.h.bf16 %v1010
        %v1381 = vunpack.c.l.bf16 %v1011
        %v1382 = vunpack.c.h.bf16 %v1011
        %v1383 = vunpack.c.l.bf16 %v1012
        %v1384 = vunpack.c.h.bf16 %v1012
        %v1385 = vunpack.c.l.bf16 %v1013
        %v1386 = vunpack.c.h.bf16 %v1013
        %v1387 = vunpack.c.l.bf16 %v1014
        %v1388 = vunpack.c.h.bf16 %v1014
        %v1389 = vunpack.c.l.bf16 %v1015
        %v1390 = vunpack.c.h.bf16 %v1015
        %v1391 = vunpack.c.l.bf16 %v1016
        %v1392 = vunpack.c.h.bf16 %v1016
        %v1393 = vunpack.c.l.bf16 %v1017
        %v1394 = vunpack.c.h.bf16 %v1017
        %v1395 = vunpack.c.l.bf16 %v1018
        %v1396 = vunpack.c.h.bf16 %v1018
        %v1397 = vunpack.c.l.bf16 %v1019
        %v1398 = vunpack.c.h.bf16 %v1019
        %v1399 = vunpack.c.l.bf16 %v1020
        %v1400 = vunpack.c.h.bf16 %v1020
        %v1401 = vunpack.c.l.bf16 %v1021
        %v1402 = vunpack.c.h.bf16 %v1021
        %v1403 = vunpack.c.l.bf16 %v1022
        %v1404 = vunpack.c.h.bf16 %v1022
        %v1405 = vunpack.c.l.bf16 %v1023
        %v1406 = vunpack.c.h.bf16 %v1023
        %v1407 = vunpack.c.l.bf16 %v1024
        %v1408 = vunpack.c.h.bf16 %v1024
        %v1409 = vunpack.c.l.bf16 %v1025
        %v1410 = vunpack.c.h.bf16 %v1025
        %v1411 = vunpack.c.l.bf16 %v1026
        %v1412 = vunpack.c.h.bf16 %v1026
        %v1413 = vunpack.c.l.bf16 %v1027
        %v1414 = vunpack.c.h.bf16 %v1027
        %v1415 = vunpack.c.l.bf16 %v1028
        %v1416 = vunpack.c.h.bf16 %v1028
        %v1417 = vunpack.c.l.bf16 %v1029
        %v1418 = vunpack.c.h.bf16 %v1029
        %v1419 = vunpack.c.l.bf16 %v1030
        %v1420 = vunpack.c.h.bf16 %v1030
        %v1421 = vunpack.c.l.bf16 %v1031
        %v1422 = vunpack.c.h.bf16 %v1031
        %v1423 = vunpack.c.l.bf16 %v1032
        %v1424 = vunpack.c.h.bf16 %v1032
        %v1425 = vunpack.c.l.bf16 %v1033
        %v1426 = vunpack.c.h.bf16 %v1033
        %v1427 = vunpack.c.l.bf16 %v1034
        %v1428 = vunpack.c.h.bf16 %v1034
        %v1429 = vunpack.c.l.bf16 %v1035
        %v1430 = vunpack.c.h.bf16 %v1035
        %v1431 = vunpack.c.l.bf16 %v1036
        %v1432 = vunpack.c.h.bf16 %v1036
        %v1433 = vunpack.c.l.bf16 %v1037
        %v1434 = vunpack.c.h.bf16 %v1037
        %v1435 = vunpack.c.l.bf16 %v1038
        %v1436 = vunpack.c.h.bf16 %v1038
        %v1437 = vunpack.c.l.bf16 %v1039
        %v1438 = vunpack.c.h.bf16 %v1039
        %v1439 = vunpack.c.l.bf16 %v1040
        %v1440 = vunpack.c.h.bf16 %v1040
        %v1441 = vunpack.c.l.bf16 %v1041
        %v1442 = vunpack.c.h.bf16 %v1041
        %v1443 = vunpack.c.l.bf16 %v1042
        %v1444 = vunpack.c.h.bf16 %v1042
        %v1445 = vunpack.c.l.bf16 %v1043
        %v1446 = vunpack.c.h.bf16 %v1043
        %v1447 = vunpack.c.l.bf16 %v1044
        %v1448 = vunpack.c.h.bf16 %v1044
        %v1449 = vunpack.c.l.bf16 %v1045
        %v1450 = vunpack.c.h.bf16 %v1045
        %v1451 = vunpack.c.l.bf16 %v1046
        %v1452 = vunpack.c.h.bf16 %v1046
        %v1453 = vunpack.c.l.bf16 %v1047
        %v1454 = vunpack.c.h.bf16 %v1047
        %v1455 = vunpack.c.l.bf16 %v1048
        %v1456 = vunpack.c.h.bf16 %v1048
        %v1457 = vunpack.c.l.bf16 %v1049
        %v1458 = vunpack.c.h.bf16 %v1049
        %v1459 = vunpack.c.l.bf16 %v1050
        %v1460 = vunpack.c.h.bf16 %v1050
        %v1461 = vunpack.c.l.bf16 %v1051
        %v1462 = vunpack.c.h.bf16 %v1051
        %v1463 = vunpack.c.l.bf16 %v1052
        %v1464 = vunpack.c.h.bf16 %v1052
        %v1465 = vunpack.c.l.bf16 %v1053
        %v1466 = vunpack.c.h.bf16 %v1053
        %v1467 = vunpack.c.l.bf16 %v1054
        %v1468 = vunpack.c.h.bf16 %v1054
        %v1469 = vunpack.c.l.bf16 %v1055
        %v1470 = vunpack.c.h.bf16 %v1055
        %v1471 = vunpack.c.l.bf16 %v1056
        %v1472 = vunpack.c.h.bf16 %v1056
        %v1473 = vunpack.c.l.bf16 %v1057
        %v1474 = vunpack.c.h.bf16 %v1057
        %v1475 = vunpack.c.l.bf16 %v1058
        %v1476 = vunpack.c.h.bf16 %v1058
        %v1477 = vunpack.c.l.bf16 %v1059
        %v1478 = vunpack.c.h.bf16 %v1059
        %v1479 = vunpack.c.l.bf16 %v1060
        %v1480 = vunpack.c.h.bf16 %v1060
        %v1481 = vunpack.c.l.bf16 %v1061
        %v1482 = vunpack.c.h.bf16 %v1061
        %v1483 = vunpack.c.l.bf16 %v1062
        %v1484 = vunpack.c.h.bf16 %v1062
        %v1485 = vunpack.c.l.bf16 %v1063
        %v1486 = vunpack.c.h.bf16 %v1063
        %v1487 = vunpack.c.l.bf16 %v1064
        %v1488 = vunpack.c.h.bf16 %v1064
        %v1489 = vunpack.c.l.bf16 %v1065
        %v1490 = vunpack.c.h.bf16 %v1065
        %v1491 = vunpack.c.l.bf16 %v1066
        %v1492 = vunpack.c.h.bf16 %v1066
        %v1493 = vunpack.c.l.bf16 %v1067
        %v1494 = vunpack.c.h.bf16 %v1067
        %v1495 = vunpack.c.l.bf16 %v1068
        %v1496 = vunpack.c.h.bf16 %v1068
        %v1497 = vunpack.c.l.bf16 %v1069
        %v1498 = vunpack.c.h.bf16 %v1069
        %v1499 = vunpack.c.l.bf16 %v1070
        %v1500 = vunpack.c.h.bf16 %v1070
        %v1501 = vunpack.c.l.bf16 %v1071
        %v1502 = vunpack.c.h.bf16 %v1071
        %v1503 = vunpack.c.l.bf16 %v1072
        %v1504 = vunpack.c.h.bf16 %v1072
        %v1505 = vunpack.c.l.bf16 %v1073
        %v1506 = vunpack.c.h.bf16 %v1073
        %v1507 = vunpack.c.l.bf16 %v1074
        %v1508 = vunpack.c.h.bf16 %v1074
        %v1509 = vunpack.c.l.bf16 %v1075
        %v1510 = vunpack.c.h.bf16 %v1075
        %v1511 = vunpack.c.l.bf16 %v1076
        %v1512 = vunpack.c.h.bf16 %v1076
        %v1513 = vunpack.c.l.bf16 %v1077
        %v1514 = vunpack.c.h.bf16 %v1077
        %v1515 = vunpack.c.l.bf16 %v1078
        %v1516 = vunpack.c.h.bf16 %v1078
        %v1517 = vunpack.c.l.bf16 %v1079
        %v1518 = vunpack.c.h.bf16 %v1079
        %v1519 = vunpack.c.l.bf16 %v1080
        %v1520 = vunpack.c.h.bf16 %v1080
        %v1521 = vunpack.c.l.bf16 %v1081
        %v1522 = vunpack.c.h.bf16 %v1081
        %v1523 = vunpack.c.l.bf16 %v1082
        %v1524 = vunpack.c.h.bf16 %v1082
        %v1525 = vunpack.c.l.bf16 %v1083
        %v1526 = vunpack.c.h.bf16 %v1083
        %v1527 = vunpack.c.l.bf16 %v1084
        %v1528 = vunpack.c.h.bf16 %v1084
        %v1529 = vunpack.c.l.bf16 %v1085
        %v1530 = vunpack.c.h.bf16 %v1085
        %v1531 = vunpack.c.l.bf16 %v1086
        %v1532 = vunpack.c.h.bf16 %v1086
        %v1533 = vunpack.c.l.bf16 %v1087
        %v1534 = vunpack.c.h.bf16 %v1087
        %v1535 = vunpack.c.l.bf16 %v1088
        %v1536 = vunpack.c.h.bf16 %v1088
        %v1537 = vunpack.c.l.bf16 %v1089
        %v1538 = vunpack.c.h.bf16 %v1089
        %v1539 = vunpack.c.l.bf16 %v1090
        %v1540 = vunpack.c.h.bf16 %v1090
        %v1541 = vunpack.c.l.bf16 %v1091
        %v1542 = vunpack.c.h.bf16 %v1091
        %v1543 = vunpack.c.l.bf16 %v1092
        %v1544 = vunpack.c.h.bf16 %v1092
        %v1545 = vunpack.c.l.bf16 %v1093
        %v1546 = vunpack.c.h.bf16 %v1093
        %v1547 = vunpack.c.l.bf16 %v1094
        %v1548 = vunpack.c.h.bf16 %v1094
        %v1549 = vunpack.c.l.bf16 %v1095
        %v1550 = vunpack.c.h.bf16 %v1095
        %v1551 = vunpack.c.l.bf16 %v1096
        %v1552 = vunpack.c.h.bf16 %v1096
        %v1553 = vunpack.c.l.bf16 %v1097
        %v1554 = vunpack.c.h.bf16 %v1097
        %v1555 = vunpack.c.l.bf16 %v1098
        %v1556 = vunpack.c.h.bf16 %v1098
        %v1557 = vunpack.c.l.bf16 %v1099
        %v1558 = vunpack.c.h.bf16 %v1099
        %v1559 = vunpack.c.l.bf16 %v1100
        %v1560 = vunpack.c.h.bf16 %v1100
        %v1561 = vunpack.c.l.bf16 %v1101
        %v1562 = vunpack.c.h.bf16 %v1101
        %v1563 = vunpack.c.l.bf16 %v1102
        %v1564 = vunpack.c.h.bf16 %v1102
        %v1565 = vunpack.c.l.bf16 %v1103
        %v1566 = vunpack.c.h.bf16 %v1103
        %v1567 = vunpack.c.l.bf16 %v1104
        %v1568 = vunpack.c.h.bf16 %v1104
        %v1569 = vunpack.c.l.bf16 %v1105
        %v1570 = vunpack.c.h.bf16 %v1105
        %v1571 = vunpack.c.l.bf16 %v1106
        %v1572 = vunpack.c.h.bf16 %v1106
        %v1573 = vunpack.c.l.bf16 %v1107
        %v1574 = vunpack.c.h.bf16 %v1107
        %v1575 = vunpack.c.l.bf16 %v1108
        %v1576 = vunpack.c.h.bf16 %v1108
        %v1577 = vunpack.c.l.bf16 %v1109
        %v1578 = vunpack.c.h.bf16 %v1109
        %v1579 = vunpack.c.l.bf16 %v1110
        %v1580 = vunpack.c.h.bf16 %v1110
        %v1581 = vunpack.c.l.bf16 %v1111
        %v1582 = vunpack.c.h.bf16 %v1111
        %v1583 = vunpack.c.l.bf16 %v1112
        %v1584 = vunpack.c.h.bf16 %v1112
        %v1585 = vunpack.c.l.bf16 %v1113
        %v1586 = vunpack.c.h.bf16 %v1113
        %v1587 = vunpack.c.l.bf16 %v1114
        %v1588 = vunpack.c.h.bf16 %v1114
        %v1589 = vunpack.c.l.bf16 %v1115
        %v1590 = vunpack.c.h.bf16 %v1115
        %v1591 = vunpack.c.l.bf16 %v1116
        %v1592 = vunpack.c.h.bf16 %v1116
        %v1593 = vunpack.c.l.bf16 %v1117
        %v1594 = vunpack.c.h.bf16 %v1117
        %v1595 = vunpack.c.l.bf16 %v1118
        %v1596 = vunpack.c.h.bf16 %v1118
        %v1597 = vunpack.c.l.bf16 %v1119
        %v1598 = vunpack.c.h.bf16 %v1119
        %v1599 = vunpack.c.l.bf16 %v1120
        %v1600 = vunpack.c.h.bf16 %v1120
        %v1601 = vunpack.c.l.bf16 %v1121
        %v1602 = vunpack.c.h.bf16 %v1121
        %v1603 = vunpack.c.l.bf16 %v1122
        %v1604 = vunpack.c.h.bf16 %v1122
        %v1605 = vunpack.c.l.bf16 %v1123
        %v1606 = vunpack.c.h.bf16 %v1123
        %v1607 = vunpack.c.l.bf16 %v1124
        %v1608 = vunpack.c.h.bf16 %v1124
        %v1609 = vunpack.c.l.bf16 %v1125
        %v1610 = vunpack.c.h.bf16 %v1125
        %v1611 = vunpack.c.l.bf16 %v1126
        %v1612 = vunpack.c.h.bf16 %v1126
        %v1613 = vunpack.c.l.bf16 %v1127
        %v1614 = vunpack.c.h.bf16 %v1127
        %v1615 = vunpack.c.l.bf16 %v1128
        %v1616 = vunpack.c.h.bf16 %v1128
        %v1617 = vunpack.c.l.bf16 %v1129
        %v1618 = vunpack.c.h.bf16 %v1129
        %v1619 = vunpack.c.l.bf16 %v1130
        %v1620 = vunpack.c.h.bf16 %v1130
        %v1621 = vunpack.c.l.bf16 %v1131
        %v1622 = vunpack.c.h.bf16 %v1131
        %v1623 = vunpack.c.l.bf16 %v1132
        %v1624 = vunpack.c.h.bf16 %v1132
        %v1625 = vunpack.c.l.bf16 %v1133
        %v1626 = vunpack.c.h.bf16 %v1133
        %v1627 = vunpack.c.l.bf16 %v1134
        %v1628 = vunpack.c.h.bf16 %v1134
        %v1629 = vunpack.c.l.bf16 %v1135
        %v1630 = vunpack.c.h.bf16 %v1135
        %v1631 = vunpack.c.l.bf16 %v1136
        %v1632 = vunpack.c.h.bf16 %v1136
        %v1633 = vunpack.c.l.bf16 %v1137
        %v1634 = vunpack.c.h.bf16 %v1137
        %v1635 = vunpack.c.l.bf16 %v1138
        %v1636 = vunpack.c.h.bf16 %v1138
        %v1637 = vunpack.c.l.bf16 %v1139
        %v1638 = vunpack.c.h.bf16 %v1139
        %v1639 = vunpack.c.l.bf16 %v1140
        %v1640 = vunpack.c.h.bf16 %v1140
        %v1641 = vunpack.c.l.bf16 %v1141
        %v1642 = vunpack.c.h.bf16 %v1141
        %v1643 = vunpack.c.l.bf16 %v1142
        %v1644 = vunpack.c.h.bf16 %v1142
        %v1645 = vunpack.c.l.bf16 %v1143
        %v1646 = vunpack.c.h.bf16 %v1143
        %v1647 = vunpack.c.l.bf16 %v1144
        %v1648 = vunpack.c.h.bf16 %v1144
        %v1649 = vunpack.c.l.bf16 %v1145
        %v1650 = vunpack.c.h.bf16 %v1145
        %v1651 = vunpack.c.l.bf16 %v1146
        %v1652 = vunpack.c.h.bf16 %v1146
        %v1653 = vunpack.c.l.bf16 %v1147
        %v1654 = vunpack.c.h.bf16 %v1147
        %v1655 = vunpack.c.l.bf16 %v1148
        %v1656 = vunpack.c.h.bf16 %v1148
        %v1657 = vunpack.c.l.bf16 %v1149
        %v1658 = vunpack.c.h.bf16 %v1149
        %v1659 = vunpack.c.l.bf16 %v1150
        %v1660 = vunpack.c.h.bf16 %v1150
        %v1661 = vunpack.c.l.bf16 %v1151
        %v1662 = vunpack.c.h.bf16 %v1151
        %v1663 = vunpack.c.l.bf16 %v1152
        %v1664 = vunpack.c.h.bf16 %v1152
        %1665 = vmatprep.subr.mxu0 %v1154
        %1666 = vmatpush1.msra.mxu0 %v1153
        %1667 = vmatprep.subr.mxu0 %v1162
        %1668 = vmatpush1.msra.mxu0 %v1161
        %1669 = vmatprep.subr.mxu0 %v1170
        %1670 = vmatpush1.msra.mxu0 %v1169
        %1671 = vmatprep.subr.mxu0 %v1178
        %1672 = vmatpush1.msra.mxu0 %v1177
        %1673 = vmatprep.subr.mxu0 %v1186
        %1674 = vmatpush1.msra.mxu0 %v1185
        %1675 = vmatprep.subr.mxu0 %v1194
        %1676 = vmatpush1.msra.mxu0 %v1193
        %1677 = vmatprep.subr.mxu0 %v1202
        %1678 = vmatpush1.msra.mxu0 %v1201
        %1679 = vmatprep.subr.mxu0 %v1210
        %1680 = vmatpush1.msra.mxu0 %v1209
        %1681 = vmatprep.subr.mxu0 %v1218
        %1682 = vmatpush1.msra.mxu0 %v1217
        %1683 = vmatprep.subr.mxu0 %v1226
        %1684 = vmatpush1.msra.mxu0 %v1225
        %1685 = vmatprep.subr.mxu0 %v1234
        %1686 = vmatpush1.msra.mxu0 %v1233
        %1687 = vmatprep.subr.mxu0 %v1242
        %1688 = vmatpush1.msra.mxu0 %v1241
        %1689 = vmatprep.subr.mxu0 %v1250
        %1690 = vmatpush1.msra.mxu0 %v1249
        %1691 = vmatprep.subr.mxu0 %v1258
        %1692 = vmatpush1.msra.mxu0 %v1257
        %1693 = vmatprep.subr.mxu0 %v1266
        %1694 = vmatpush1.msra.mxu0 %v1265
        %1695 = vmatprep.subr.mxu0 %v1274
        %1696 = vmatpush1.msra.mxu0 %v1273
        %1697 = vmatprep.subr.mxu0 %v1282
        %1698 = vmatpush1.msra.mxu0 %v1281
        %1699 = vmatprep.subr.mxu0 %v1290
        %1700 = vmatpush1.msra.mxu0 %v1289
        %1701 = vmatprep.subr.mxu0 %v1298
        %1702 = vmatpush1.msra.mxu0 %v1297
        %1703 = vmatprep.subr.mxu0 %v1306
        %1704 = vmatpush1.msra.mxu0 %v1305
        %1705 = vmatprep.subr.mxu0 %v1314
        %1706 = vmatpush1.msra.mxu0 %v1313
        %1707 = vmatprep.subr.mxu0 %v1322
        %1708 = vmatpush1.msra.mxu0 %v1321
        %1709 = vmatprep.subr.mxu0 %v1330
        %1710 = vmatpush1.msra.mxu0 %v1329
        %1711 = vmatprep.subr.mxu0 %v1338
        %1712 = vmatpush1.msra.mxu0 %v1337
        %1713 = vmatprep.subr.mxu0 %v1346
        %1714 = vmatpush1.msra.mxu0 %v1345
        %1715 = vmatprep.subr.mxu0 %v1354
        %1716 = vmatpush1.msra.mxu0 %v1353
        %1717 = vmatprep.subr.mxu0 %v1362
        %1718 = vmatpush1.msra.mxu0 %v1361
        %1719 = vmatprep.subr.mxu0 %v1370
        %1720 = vmatpush1.msra.mxu0 %v1369
        %1721 = vmatprep.subr.mxu0 %v1378
        %1722 = vmatpush1.msra.mxu0 %v1377
        %1723 = vmatprep.subr.mxu0 %v1386
        %1724 = vmatpush1.msra.mxu0 %v1385
        %1725 = vmatprep.subr.mxu0 %v1394
        %1726 = vmatpush1.msra.mxu0 %v1393
        %1727 = vmatprep.subr.mxu0 %v1402
        %1728 = vmatpush1.msra.mxu0 %v1401
        %1729 = vmatprep.mubr.f32.mxu0 %v886
        %1730 = vmatmul.mubr.f32.gmra.mrb[0].mxu0 %v885
        %v1731 = vpop.f32.mrb[0].mxu0
        %v1732 = vadd.f32 0.0, %v1731
        %v1733 = vpop.f32.mrb[0].mxu0
        %v1734 = vadd.f32 0.0, %v1733
        %1735 = vdwg.mxu0
        %1736 = vmatprep.subr.mxu0 %v1410
        %1737 = vmatpush1.msra.mxu0 %v1409
        %1738 = vmatprep.subr.mxu0 %v1418
        %1739 = vmatpush1.msra.mxu0 %v1417
        %1740 = vmatprep.subr.mxu0 %v1426
        %1741 = vmatpush1.msra.mxu0 %v1425
        %1742 = vmatprep.subr.mxu0 %v1434
        %1743 = vmatpush1.msra.mxu0 %v1433
        %1744 = vmatprep.subr.mxu0 %v1442
        %1745 = vmatpush1.msra.mxu0 %v1441
        %1746 = vmatprep.subr.mxu0 %v1450
        %1747 = vmatpush1.msra.mxu0 %v1449
        %1748 = vmatprep.subr.mxu0 %v1458
        %1749 = vmatpush1.msra.mxu0 %v1457
        %1750 = vmatprep.subr.mxu0 %v1466
        %1751 = vmatpush1.msra.mxu0 %v1465
        %1752 = vmatprep.subr.mxu0 %v1474
        %1753 = vmatpush1.msra.mxu0 %v1473
        %1754 = vmatprep.subr.mxu0 %v1482
        %1755 = vmatpush1.msra.mxu0 %v1481
        %1756 = vmatprep.subr.mxu0 %v1490
        %1757 = vmatpush1.msra.mxu0 %v1489
        %1758 = vmatprep.subr.mxu0 %v1498
        %1759 = vmatpush1.msra.mxu0 %v1497
        %1760 = vmatprep.subr.mxu0 %v1506
        %1761 = vmatpush1.msra.mxu0 %v1505
        %1762 = vmatprep.subr.mxu0 %v1514
        %1763 = vmatpush1.msra.mxu0 %v1513
        %1764 = vmatprep.subr.mxu0 %v1522
        %1765 = vmatpush1.msra.mxu0 %v1521
        %1766 = vmatprep.subr.mxu0 %v1530
        %1767 = vmatpush1.msra.mxu0 %v1529
        %1768 = vmatprep.subr.mxu0 %v1538
        %1769 = vmatpush1.msra.mxu0 %v1537
        %1770 = vmatprep.subr.mxu0 %v1546
        %1771 = vmatpush1.msra.mxu0 %v1545
        %1772 = vmatprep.subr.mxu0 %v1554
        %1773 = vmatpush1.msra.mxu0 %v1553
        %1774 = vmatprep.subr.mxu0 %v1562
        %1775 = vmatpush1.msra.mxu0 %v1561
        %1776 = vmatprep.subr.mxu0 %v1570
        %1777 = vmatpush1.msra.mxu0 %v1569
        %1778 = vmatprep.subr.mxu0 %v1578
        %1779 = vmatpush1.msra.mxu0 %v1577
        %1780 = vmatprep.subr.mxu0 %v1586
        %1781 = vmatpush1.msra.mxu0 %v1585
        %1782 = vmatprep.subr.mxu0 %v1594
        %1783 = vmatpush1.msra.mxu0 %v1593
        %1784 = vmatprep.subr.mxu0 %v1602
        %1785 = vmatpush1.msra.mxu0 %v1601
        %1786 = vmatprep.subr.mxu0 %v1610
        %1787 = vmatpush1.msra.mxu0 %v1609
        %1788 = vmatprep.subr.mxu0 %v1618
        %1789 = vmatpush1.msra.mxu0 %v1617
        %1790 = vmatprep.subr.mxu0 %v1626
        %1791 = vmatpush1.msra.mxu0 %v1625
        %1792 = vmatprep.subr.mxu0 %v1634
        %1793 = vmatpush1.msra.mxu0 %v1633
        %1794 = vmatprep.subr.mxu0 %v1642
        %1795 = vmatpush1.msra.mxu0 %v1641
        %1796 = vmatprep.subr.mxu0 %v1650
        %1797 = vmatpush1.msra.mxu0 %v1649
        %1798 = vmatprep.subr.mxu0 %v1658
        %1799 = vmatpush1.msra.mxu0 %v1657
        %1800 = vmatprep.mubr.f32.mxu0 %v888
        %1801 = vmatmul.mubr.f32.gmra.mrb[0].mxu0 %v887
        %v1802 = vpop.f32.mrb[0].mxu0
        %v1803 = vadd.f32 %v1732, %v1802
        %v1804 = vpop.f32.mrb[0].mxu0
        %v1805 = vadd.f32 %v1734, %v1804
        %1806 = vdwg.mxu0
        %1807 = vmatprep.subr.mxu0 %v1156
        %1808 = vmatpush1.msra.mxu0 %v1155
        %1809 = vmatprep.subr.mxu0 %v1164
        %1810 = vmatpush1.msra.mxu0 %v1163
        %1811 = vmatprep.subr.mxu0 %v1172
        %1812 = vmatpush1.msra.mxu0 %v1171
        %1813 = vmatprep.subr.mxu0 %v1180
        %1814 = vmatpush1.msra.mxu0 %v1179
        %1815 = vmatprep.subr.mxu0 %v1188
        %1816 = vmatpush1.msra.mxu0 %v1187
        %1817 = vmatprep.subr.mxu0 %v1196
        %1818 = vmatpush1.msra.mxu0 %v1195
        %1819 = vmatprep.subr.mxu0 %v1204
        %1820 = vmatpush1.msra.mxu0 %v1203
        %1821 = vmatprep.subr.mxu0 %v1212
        %1822 = vmatpush1.msra.mxu0 %v1211
        %1823 = vmatprep.subr.mxu0 %v1220
        %1824 = vmatpush1.msra.mxu0 %v1219
        %1825 = vmatprep.subr.mxu0 %v1228
        %1826 = vmatpush1.msra.mxu0 %v1227
        %1827 = vmatprep.subr.mxu0 %v1236
        %1828 = vmatpush1.msra.mxu0 %v1235
        %1829 = vmatprep.subr.mxu0 %v1244
        %1830 = vmatpush1.msra.mxu0 %v1243
        %1831 = vmatprep.subr.mxu0 %v1252
        %1832 = vmatpush1.msra.mxu0 %v1251
        %1833 = vmatprep.subr.mxu0 %v1260
        %1834 = vmatpush1.msra.mxu0 %v1259
        %1835 = vmatprep.subr.mxu0 %v1268
        %1836 = vmatpush1.msra.mxu0 %v1267
        %1837 = vmatprep.subr.mxu0 %v1276
        %1838 = vmatpush1.msra.mxu0 %v1275
        %1839 = vmatprep.subr.mxu0 %v1284
        %1840 = vmatpush1.msra.mxu0 %v1283
        %1841 = vmatprep.subr.mxu0 %v1292
        %1842 = vmatpush1.msra.mxu0 %v1291
        %1843 = vmatprep.subr.mxu0 %v1300
        %1844 = vmatpush1.msra.mxu0 %v1299
        %1845 = vmatprep.subr.mxu0 %v1308
        %1846 = vmatpush1.msra.mxu0 %v1307
        %1847 = vmatprep.subr.mxu0 %v1316
        %1848 = vmatpush1.msra.mxu0 %v1315
        %1849 = vmatprep.subr.mxu0 %v1324
        %1850 = vmatpush1.msra.mxu0 %v1323
        %1851 = vmatprep.subr.mxu0 %v1332
        %1852 = vmatpush1.msra.mxu0 %v1331
        %1853 = vmatprep.subr.mxu0 %v1340
        %1854 = vmatpush1.msra.mxu0 %v1339
        %1855 = vmatprep.subr.mxu0 %v1348
        %1856 = vmatpush1.msra.mxu0 %v1347
        %1857 = vmatprep.subr.mxu0 %v1356
        %1858 = vmatpush1.msra.mxu0 %v1355
        %1859 = vmatprep.subr.mxu0 %v1364
        %1860 = vmatpush1.msra.mxu0 %v1363
        %1861 = vmatprep.subr.mxu0 %v1372
        %1862 = vmatpush1.msra.mxu0 %v1371
        %1863 = vmatprep.subr.mxu0 %v1380
        %1864 = vmatpush1.msra.mxu0 %v1379
        %1865 = vmatprep.subr.mxu0 %v1388
        %1866 = vmatpush1.msra.mxu0 %v1387
        %1867 = vmatprep.subr.mxu0 %v1396
        %1868 = vmatpush1.msra.mxu0 %v1395
        %1869 = vmatprep.subr.mxu0 %v1404
        %1870 = vmatpush1.msra.mxu0 %v1403
        %1871 = vmatprep.mubr.f32.mxu0 %v886
        %1872 = vmatmul.mubr.f32.gmra.mrb[0].mxu0 %v885
        %v1873 = vpop.f32.mrb[0].mxu0
        %v1874 = vadd.f32 0.0, %v1873
        %v1875 = vpop.f32.mrb[0].mxu0
        %v1876 = vadd.f32 0.0, %v1875
        %1877 = vdwg.mxu0
        %1878 = vmatprep.subr.mxu0 %v1412
        %1879 = vmatpush1.msra.mxu0 %v1411
        %1880 = vmatprep.subr.mxu0 %v1420
        %1881 = vmatpush1.msra.mxu0 %v1419
        %1882 = vmatprep.subr.mxu0 %v1428
        %1883 = vmatpush1.msra.mxu0 %v1427
        %1884 = vmatprep.subr.mxu0 %v1436
        %1885 = vmatpush1.msra.mxu0 %v1435
        %1886 = vmatprep.subr.mxu0 %v1444
        %1887 = vmatpush1.msra.mxu0 %v1443
        %1888 = vmatprep.subr.mxu0 %v1452
        %1889 = vmatpush1.msra.mxu0 %v1451
        %1890 = vmatprep.subr.mxu0 %v1460
        %1891 = vmatpush1.msra.mxu0 %v1459
        %1892 = vmatprep.subr.mxu0 %v1468
        %1893 = vmatpush1.msra.mxu0 %v1467
        %1894 = vmatprep.subr.mxu0 %v1476
        %1895 = vmatpush1.msra.mxu0 %v1475
        %1896 = vmatprep.subr.mxu0 %v1484
        %1897 = vmatpush1.msra.mxu0 %v1483
        %1898 = vmatprep.subr.mxu0 %v1492
        %1899 = vmatpush1.msra.mxu0 %v1491
        %1900 = vmatprep.subr.mxu0 %v1500
        %1901 = vmatpush1.msra.mxu0 %v1499
        %1902 = vmatprep.subr.mxu0 %v1508
        %1903 = vmatpush1.msra.mxu0 %v1507
        %1904 = vmatprep.subr.mxu0 %v1516
        %1905 = vmatpush1.msra.mxu0 %v1515
        %1906 = vmatprep.subr.mxu0 %v1524
        %1907 = vmatpush1.msra.mxu0 %v1523
        %1908 = vmatprep.subr.mxu0 %v1532
        %1909 = vmatpush1.msra.mxu0 %v1531
        %1910 = vmatprep.subr.mxu0 %v1540
        %1911 = vmatpush1.msra.mxu0 %v1539
        %1912 = vmatprep.subr.mxu0 %v1548
        %1913 = vmatpush1.msra.mxu0 %v1547
        %1914 = vmatprep.subr.mxu0 %v1556
        %1915 = vmatpush1.msra.mxu0 %v1555
        %1916 = vmatprep.subr.mxu0 %v1564
        %1917 = vmatpush1.msra.mxu0 %v1563
        %1918 = vmatprep.subr.mxu0 %v1572
        %1919 = vmatpush1.msra.mxu0 %v1571
        %1920 = vmatprep.subr.mxu0 %v1580
        %1921 = vmatpush1.msra.mxu0 %v1579
        %1922 = vmatprep.subr.mxu0 %v1588
        %1923 = vmatpush1.msra.mxu0 %v1587
        %1924 = vmatprep.subr.mxu0 %v1596
        %1925 = vmatpush1.msra.mxu0 %v1595
        %1926 = vmatprep.subr.mxu0 %v1604
        %1927 = vmatpush1.msra.mxu0 %v1603
        %1928 = vmatprep.subr.mxu0 %v1612
        %1929 = vmatpush1.msra.mxu0 %v1611
        %1930 = vmatprep.subr.mxu0 %v1620
        %1931 = vmatpush1.msra.mxu0 %v1619
        %1932 = vmatprep.subr.mxu0 %v1628
        %1933 = vmatpush1.msra.mxu0 %v1627
        %1934 = vmatprep.subr.mxu0 %v1636
        %1935 = vmatpush1.msra.mxu0 %v1635
        %1936 = vmatprep.subr.mxu0 %v1644
        %1937 = vmatpush1.msra.mxu0 %v1643
        %1938 = vmatprep.subr.mxu0 %v1652
        %1939 = vmatpush1.msra.mxu0 %v1651
        %1940 = vmatprep.subr.mxu0 %v1660
        %1941 = vmatpush1.msra.mxu0 %v1659
        %1942 = vmatprep.mubr.f32.mxu0 %v888
        %1943 = vmatmul.mubr.f32.gmra.mrb[0].mxu0 %v887
        %v1944 = vpop.f32.mrb[0].mxu0
        %v1945 = vadd.f32 %v1874, %v1944
        %v1946 = vpop.f32.mrb[0].mxu0
        %v1947 = vadd.f32 %v1876, %v1946
        %1948 = vdwg.mxu0
        %1949 = vmatprep.subr.mxu0 %v1158
        %1950 = vmatpush1.msra.mxu0 %v1157
        %1951 = vmatprep.subr.mxu0 %v1166
        %1952 = vmatpush1.msra.mxu0 %v1165
        %1953 = vmatprep.subr.mxu0 %v1174
        %1954 = vmatpush1.msra.mxu0 %v1173
        %1955 = vmatprep.subr.mxu0 %v1182
        %1956 = vmatpush1.msra.mxu0 %v1181
        %1957 = vmatprep.subr.mxu0 %v1190
        %1958 = vmatpush1.msra.mxu0 %v1189
        %1959 = vmatprep.subr.mxu0 %v1198
        %1960 = vmatpush1.msra.mxu0 %v1197
        %1961 = vmatprep.subr.mxu0 %v1206
        %1962 = vmatpush1.msra.mxu0 %v1205
        %1963 = vmatprep.subr.mxu0 %v1214
        %1964 = vmatpush1.msra.mxu0 %v1213
        %1965 = vmatprep.subr.mxu0 %v1222
        %1966 = vmatpush1.msra.mxu0 %v1221
        %1967 = vmatprep.subr.mxu0 %v1230
        %1968 = vmatpush1.msra.mxu0 %v1229
        %1969 = vmatprep.subr.mxu0 %v1238
        %1970 = vmatpush1.msra.mxu0 %v1237
        %1971 = vmatprep.subr.mxu0 %v1246
        %1972 = vmatpush1.msra.mxu0 %v1245
        %1973 = vmatprep.subr.mxu0 %v1254
        %1974 = vmatpush1.msra.mxu0 %v1253
        %1975 = vmatprep.subr.mxu0 %v1262
        %1976 = vmatpush1.msra.mxu0 %v1261
        %1977 = vmatprep.subr.mxu0 %v1270
        %1978 = vmatpush1.msra.mxu0 %v1269
        %1979 = vmatprep.subr.mxu0 %v1278
        %1980 = vmatpush1.msra.mxu0 %v1277
        %1981 = vmatprep.subr.mxu0 %v1286
        %1982 = vmatpush1.msra.mxu0 %v1285
        %1983 = vmatprep.subr.mxu0 %v1294
        %1984 = vmatpush1.msra.mxu0 %v1293
        %1985 = vmatprep.subr.mxu0 %v1302
        %1986 = vmatpush1.msra.mxu0 %v1301
        %1987 = vmatprep.subr.mxu0 %v1310
        %1988 = vmatpush1.msra.mxu0 %v1309
        %1989 = vmatprep.subr.mxu0 %v1318
        %1990 = vmatpush1.msra.mxu0 %v1317
        %1991 = vmatprep.subr.mxu0 %v1326
        %1992 = vmatpush1.msra.mxu0 %v1325
        %1993 = vmatprep.subr.mxu0 %v1334
        %1994 = vmatpush1.msra.mxu0 %v1333
        %1995 = vmatprep.subr.mxu0 %v1342
        %1996 = vmatpush1.msra.mxu0 %v1341
        %1997 = vmatprep.subr.mxu0 %v1350
        %1998 = vmatpush1.msra.mxu0 %v1349
        %1999 = vmatprep.subr.mxu0 %v1358
        %2000 = vmatpush1.msra.mxu0 %v1357
        %2001 = vmatprep.subr.mxu0 %v1366
        %2002 = vmatpush1.msra.mxu0 %v1365
        %2003 = vmatprep.subr.mxu0 %v1374
        %2004 = vmatpush1.msra.mxu0 %v1373
        %2005 = vmatprep.subr.mxu0 %v1382
        %2006 = vmatpush1.msra.mxu0 %v1381
        %2007 = vmatprep.subr.mxu0 %v1390
        %2008 = vmatpush1.msra.mxu0 %v1389
        %2009 = vmatprep.subr.mxu0 %v1398
        %2010 = vmatpush1.msra.mxu0 %v1397
        %2011 = vmatprep.subr.mxu0 %v1406
        %2012 = vmatpush1.msra.mxu0 %v1405
        %2013 = vmatprep.mubr.f32.mxu0 %v886
        %2014 = vmatmul.mubr.f32.gmra.mrb[0].mxu0 %v885
        %v2015 = vpop.f32.mrb[0].mxu0
        %v2016 = vadd.f32 0.0, %v2015
        %v2017 = vpop.f32.mrb[0].mxu0
        %v2018 = vadd.f32 0.0, %v2017
        %2019 = vdwg.mxu0
        %2020 = vmatprep.subr.mxu0 %v1414
        %2021 = vmatpush1.msra.mxu0 %v1413
        %2022 = vmatprep.subr.mxu0 %v1422
        %2023 = vmatpush1.msra.mxu0 %v1421
        %2024 = vmatprep.subr.mxu0 %v1430
        %2025 = vmatpush1.msra.mxu0 %v1429
        %2026 = vmatprep.subr.mxu0 %v1438
        %2027 = vmatpush1.msra.mxu0 %v1437
        %2028 = vmatprep.subr.mxu0 %v1446
        %2029 = vmatpush1.msra.mxu0 %v1445
        %2030 = vmatprep.subr.mxu0 %v1454
        %2031 = vmatpush1.msra.mxu0 %v1453
        %2032 = vmatprep.subr.mxu0 %v1462
        %2033 = vmatpush1.msra.mxu0 %v1461
        %2034 = vmatprep.subr.mxu0 %v1470
        %2035 = vmatpush1.msra.mxu0 %v1469
        %2036 = vmatprep.subr.mxu0 %v1478
        %2037 = vmatpush1.msra.mxu0 %v1477
        %2038 = vmatprep.subr.mxu0 %v1486
        %2039 = vmatpush1.msra.mxu0 %v1485
        %2040 = vmatprep.subr.mxu0 %v1494
        %2041 = vmatpush1.msra.mxu0 %v1493
        %2042 = vmatprep.subr.mxu0 %v1502
        %2043 = vmatpush1.msra.mxu0 %v1501
        %2044 = vmatprep.subr.mxu0 %v1510
        %2045 = vmatpush1.msra.mxu0 %v1509
        %2046 = vmatprep.subr.mxu0 %v1518
        %2047 = vmatpush1.msra.mxu0 %v1517
        %2048 = vmatprep.subr.mxu0 %v1526
        %2049 = vmatpush1.msra.mxu0 %v1525
        %2050 = vmatprep.subr.mxu0 %v1534
        %2051 = vmatpush1.msra.mxu0 %v1533
        %2052 = vmatprep.subr.mxu0 %v1542
        %2053 = vmatpush1.msra.mxu0 %v1541
        %2054 = vmatprep.subr.mxu0 %v1550
        %2055 = vmatpush1.msra.mxu0 %v1549
        %2056 = vmatprep.subr.mxu0 %v1558
        %2057 = vmatpush1.msra.mxu0 %v1557
        %2058 = vmatprep.subr.mxu0 %v1566
        %2059 = vmatpush1.msra.mxu0 %v1565
        %2060 = vmatprep.subr.mxu0 %v1574
        %2061 = vmatpush1.msra.mxu0 %v1573
        %2062 = vmatprep.subr.mxu0 %v1582
        %2063 = vmatpush1.msra.mxu0 %v1581
        %2064 = vmatprep.subr.mxu0 %v1590
        %2065 = vmatpush1.msra.mxu0 %v1589
        %2066 = vmatprep.subr.mxu0 %v1598
        %2067 = vmatpush1.msra.mxu0 %v1597
        %2068 = vmatprep.subr.mxu0 %v1606
        %2069 = vmatpush1.msra.mxu0 %v1605
        %2070 = vmatprep.subr.mxu0 %v1614
        %2071 = vmatpush1.msra.mxu0 %v1613
        %2072 = vmatprep.subr.mxu0 %v1622
        %2073 = vmatpush1.msra.mxu0 %v1621
        %2074 = vmatprep.subr.mxu0 %v1630
        %2075 = vmatpush1.msra.mxu0 %v1629
        %2076 = vmatprep.subr.mxu0 %v1638
        %2077 = vmatpush1.msra.mxu0 %v1637
        %2078 = vmatprep.subr.mxu0 %v1646
        %2079 = vmatpush1.msra.mxu0 %v1645
        %2080 = vmatprep.subr.mxu0 %v1654
        %2081 = vmatpush1.msra.mxu0 %v1653
        %2082 = vmatprep.subr.mxu0 %v1662
        %2083 = vmatpush1.msra.mxu0 %v1661
        %2084 = vmatprep.mubr.f32.mxu0 %v888
        %2085 = vmatmul.mubr.f32.gmra.mrb[0].mxu0 %v887
        %v2086 = vpop.f32.mrb[0].mxu0
        %v2087 = vadd.f32 %v2016, %v2086
        %v2088 = vpop.f32.mrb[0].mxu0
        %v2089 = vadd.f32 %v2018, %v2088
        %2090 = vdwg.mxu0
        %2091 = vmatprep.subr.mxu0 %v1160
        %2092 = vmatpush1.msra.mxu0 %v1159
        %2093 = vmatprep.subr.mxu0 %v1168
        %2094 = vmatpush1.msra.mxu0 %v1167
        %2095 = vmatprep.subr.mxu0 %v1176
        %2096 = vmatpush1.msra.mxu0 %v1175
        %2097 = vmatprep.subr.mxu0 %v1184
        %2098 = vmatpush1.msra.mxu0 %v1183
        %2099 = vmatprep.subr.mxu0 %v1192
        %2100 = vmatpush1.msra.mxu0 %v1191
        %2101 = vmatprep.subr.mxu0 %v1200
        %2102 = vmatpush1.msra.mxu0 %v1199
        %2103 = vmatprep.subr.mxu0 %v1208
        %2104 = vmatpush1.msra.mxu0 %v1207
        %2105 = vmatprep.subr.mxu0 %v1216
        %2106 = vmatpush1.msra.mxu0 %v1215
        %2107 = vmatprep.subr.mxu0 %v1224
        %2108 = vmatpush1.msra.mxu0 %v1223
        %2109 = vmatprep.subr.mxu0 %v1232
        %2110 = vmatpush1.msra.mxu0 %v1231
        %2111 = vmatprep.subr.mxu0 %v1240
        %2112 = vmatpush1.msra.mxu0 %v1239
        %2113 = vmatprep.subr.mxu0 %v1248
        %2114 = vmatpush1.msra.mxu0 %v1247
        %2115 = vmatprep.subr.mxu0 %v1256
        %2116 = vmatpush1.msra.mxu0 %v1255
        %2117 = vmatprep.subr.mxu0 %v1264
        %2118 = vmatpush1.msra.mxu0 %v1263
        %2119 = vmatprep.subr.mxu0 %v1272
        %2120 = vmatpush1.msra.mxu0 %v1271
        %2121 = vmatprep.subr.mxu0 %v1280
        %2122 = vmatpush1.msra.mxu0 %v1279
        %2123 = vmatprep.subr.mxu0 %v1288
        %2124 = vmatpush1.msra.mxu0 %v1287
        %2125 = vmatprep.subr.mxu0 %v1296
        %2126 = vmatpush1.msra.mxu0 %v1295
        %2127 = vmatprep.subr.mxu0 %v1304
        %2128 = vmatpush1.msra.mxu0 %v1303
        %2129 = vmatprep.subr.mxu0 %v1312
        %2130 = vmatpush1.msra.mxu0 %v1311
        %2131 = vmatprep.subr.mxu0 %v1320
        %2132 = vmatpush1.msra.mxu0 %v1319
        %2133 = vmatprep.subr.mxu0 %v1328
        %2134 = vmatpush1.msra.mxu0 %v1327
        %2135 = vmatprep.subr.mxu0 %v1336
        %2136 = vmatpush1.msra.mxu0 %v1335
        %2137 = vmatprep.subr.mxu0 %v1344
        %2138 = vmatpush1.msra.mxu0 %v1343
        %2139 = vmatprep.subr.mxu0 %v1352
        %2140 = vmatpush1.msra.mxu0 %v1351
        %2141 = vmatprep.subr.mxu0 %v1360
        %2142 = vmatpush1.msra.mxu0 %v1359
        %2143 = vmatprep.subr.mxu0 %v1368
        %2144 = vmatpush1.msra.mxu0 %v1367
        %2145 = vmatprep.subr.mxu0 %v1376
        %2146 = vmatpush1.msra.mxu0 %v1375
        %2147 = vmatprep.subr.mxu0 %v1384
        %2148 = vmatpush1.msra.mxu0 %v1383
        %2149 = vmatprep.subr.mxu0 %v1392
        %2150 = vmatpush1.msra.mxu0 %v1391
        %2151 = vmatprep.subr.mxu0 %v1400
        %2152 = vmatpush1.msra.mxu0 %v1399
        %2153 = vmatprep.subr.mxu0 %v1408
        %2154 = vmatpush1.msra.mxu0 %v1407
        %2155 = vmatprep.mubr.f32.mxu0 %v886
        %2156 = vmatmul.mubr.f32.gmra.mrb[0].mxu0 %v885
        %v2157 = vpop.f32.mrb[0].mxu0
        %v2158 = vadd.f32 0.0, %v2157
        %v2159 = vpop.f32.mrb[0].mxu0
        %v2160 = vadd.f32 0.0, %v2159
        %2161 = vdwg.mxu0
        %2162 = vmatprep.subr.mxu0 %v1416
        %2163 = vmatpush1.msra.mxu0 %v1415
        %2164 = vmatprep.subr.mxu0 %v1424
        %2165 = vmatpush1.msra.mxu0 %v1423
        %2166 = vmatprep.subr.mxu0 %v1432
        %2167 = vmatpush1.msra.mxu0 %v1431
        %2168 = vmatprep.subr.mxu0 %v1440
        %2169 = vmatpush1.msra.mxu0 %v1439
        %2170 = vmatprep.subr.mxu0 %v1448
        %2171 = vmatpush1.msra.mxu0 %v1447
        %2172 = vmatprep.subr.mxu0 %v1456
        %2173 = vmatpush1.msra.mxu0 %v1455
        %2174 = vmatprep.subr.mxu0 %v1464
        %2175 = vmatpush1.msra.mxu0 %v1463
        %2176 = vmatprep.subr.mxu0 %v1472
        %2177 = vmatpush1.msra.mxu0 %v1471
        %2178 = vmatprep.subr.mxu0 %v1480
        %2179 = vmatpush1.msra.mxu0 %v1479
        %2180 = vmatprep.subr.mxu0 %v1488
        %2181 = vmatpush1.msra.mxu0 %v1487
        %2182 = vmatprep.subr.mxu0 %v1496
        %2183 = vmatpush1.msra.mxu0 %v1495
        %2184 = vmatprep.subr.mxu0 %v1504
        %2185 = vmatpush1.msra.mxu0 %v1503
        %2186 = vmatprep.subr.mxu0 %v1512
        %2187 = vmatpush1.msra.mxu0 %v1511
        %2188 = vmatprep.subr.mxu0 %v1520
        %2189 = vmatpush1.msra.mxu0 %v1519
        %2190 = vmatprep.subr.mxu0 %v1528
        %2191 = vmatpush1.msra.mxu0 %v1527
        %2192 = vmatprep.subr.mxu0 %v1536
        %2193 = vmatpush1.msra.mxu0 %v1535
        %2194 = vmatprep.subr.mxu0 %v1544
        %2195 = vmatpush1.msra.mxu0 %v1543
        %2196 = vmatprep.subr.mxu0 %v1552
        %2197 = vmatpush1.msra.mxu0 %v1551
        %2198 = vmatprep.subr.mxu0 %v1560
        %2199 = vmatpush1.msra.mxu0 %v1559
        %2200 = vmatprep.subr.mxu0 %v1568
        %2201 = vmatpush1.msra.mxu0 %v1567
        %2202 = vmatprep.subr.mxu0 %v1576
        %2203 = vmatpush1.msra.mxu0 %v1575
        %2204 = vmatprep.subr.mxu0 %v1584
        %2205 = vmatpush1.msra.mxu0 %v1583
        %2206 = vmatprep.subr.mxu0 %v1592
        %2207 = vmatpush1.msra.mxu0 %v1591
        %2208 = vmatprep.subr.mxu0 %v1600
        %2209 = vmatpush1.msra.mxu0 %v1599
        %2210 = vmatprep.subr.mxu0 %v1608
        %2211 = vmatpush1.msra.mxu0 %v1607
        %2212 = vmatprep.subr.mxu0 %v1616
        %2213 = vmatpush1.msra.mxu0 %v1615
        %2214 = vmatprep.subr.mxu0 %v1624
        %2215 = vmatpush1.msra.mxu0 %v1623
        %2216 = vmatprep.subr.mxu0 %v1632
        %2217 = vmatpush1.msra.mxu0 %v1631
        %2218 = vmatprep.subr.mxu0 %v1640
        %2219 = vmatpush1.msra.mxu0 %v1639
        %2220 = vmatprep.subr.mxu0 %v1648
        %2221 = vmatpush1.msra.mxu0 %v1647
        %2222 = vmatprep.subr.mxu0 %v1656
        %2223 = vmatpush1.msra.mxu0 %v1655
        %2224 = vmatprep.subr.mxu0 %v1664
        %2225 = vmatpush1.msra.mxu0 %v1663
        %2226 = vmatprep.mubr.f32.mxu0 %v888
        %2227 = vmatmul.mubr.f32.gmra.mrb[0].mxu0 %v887
        %v2228 = vpop.f32.mrb[0].mxu0
        %v2229 = vadd.f32 %v2158, %v2228
        %v2230 = vpop.f32.mrb[0].mxu0
        %v2231 = vadd.f32 %v2160, %v2230
        %2232 = vdwg.mxu0
        %v2233 = vadd.f32 %v889, %v1803
        %v2234 = vadd.f32 %v890, %v1805
        %v2235 = vadd.f32 %v891, %v1945
        %v2236 = vadd.f32 %v892, %v1947
        %v2237 = vadd.f32 %v893, %v2087
        %v2238 = vadd.f32 %v894, %v2089
        %v2239 = vadd.f32 %v895, %v2229
        %v2240 = vadd.f32 %v896, %v2231
        %2241 = vst [vmem:[#allocation2] sm:$0xff] %v2233
        %2242 = vst [vmem:[#allocation2 + $0x8] sm:$0xff] %v2234
        %2243 = vst [vmem:[#allocation2 + $0x10] sm:$0xff] %v2235
        %2244 = vst [vmem:[#allocation2 + $0x18] sm:$0xff] %v2236
        %2245 = vst [vmem:[#allocation2 + $0x20] sm:$0xff] %v2237
        %2246 = vst [vmem:[#allocation2 + $0x28] sm:$0xff] %v2238
        %2247 = vst [vmem:[#allocation2 + $0x30] sm:$0xff] %v2239
        %2248 = vst [vmem:[#allocation2 + $0x38] sm:$0xff] %v2240
        %p2249 = scmp.eq.s32.totalorder %s27, 1
        // Predicated region
        $region92: #{async_tf_base_forward.2} parent=82 // pred_check
          %p2250 = pneg %p2249
        $region93: #{async_tf_base_forward.2} parent=82 // pred_check_branch
          %2252 = sbr.rel (%p2250) target = $region95
        $region94: #{async_tf_base_forward.2} parent=82 // pred_region
          %v2253 = vld [vmem:[#allocation2] sm:$0xff]
          %v2254 = vld [vmem:[#allocation2 + $0x8] sm:$0xff]
          %v2255 = vld [vmem:[#allocation2 + $0x10] sm:$0xff]
          %v2256 = vld [vmem:[#allocation2 + $0x18] sm:$0xff]
          %v2257 = vld [vmem:[#allocation2 + $0x20] sm:$0xff]
          %v2258 = vld [vmem:[#allocation2 + $0x28] sm:$0xff]
          %v2259 = vld [vmem:[#allocation2 + $0x30] sm:$0xff]
          %v2260 = vld [vmem:[#allocation2 + $0x38] sm:$0xff]
          %v2261 = vld [vmem:[%s4] sm:$0xff]
          %v2263 = vlaneseq
          %v2264 = vshrl.u32 %v2263, 7
          %v2265 = vsub.s32 0, %v2264
          %v2266 = vrot.slane %v2261, %v2265
          %v2267 = vlaneseq
          %v2268 = vshrl.u32 %v2267, 7
          %v2269 = vsub.s32 1, %v2268
          %v2270 = vrot.slane %v2261, %v2269
          %v2271 = vlaneseq
          %v2272 = vshrl.u32 %v2271, 7
          %v2273 = vsub.s32 2, %v2272
          %v2274 = vrot.slane %v2261, %v2273
          %v2275 = vlaneseq
          %v2276 = vshrl.u32 %v2275, 7
          %v2277 = vsub.s32 3, %v2276
          %v2278 = vrot.slane %v2261, %v2277
          %v2279 = vlaneseq
          %v2280 = vshrl.u32 %v2279, 7
          %v2281 = vsub.s32 4, %v2280
          %v2282 = vrot.slane %v2261, %v2281
          %v2283 = vlaneseq
          %v2284 = vshrl.u32 %v2283, 7
          %v2285 = vsub.s32 5, %v2284
          %v2286 = vrot.slane %v2261, %v2285
          %v2287 = vlaneseq
          %v2288 = vshrl.u32 %v2287, 7
          %v2289 = vsub.s32 6, %v2288
          %v2290 = vrot.slane %v2261, %v2289
          %v2291 = vlaneseq
          %v2292 = vshrl.u32 %v2291, 7
          %v2293 = vsub.s32 7, %v2292
          %v2294 = vrot.slane %v2261, %v2293
          %v2303 = vadd.f32 %v2253, %v2266
          %v2304 = vadd.f32 %v2254, %v2270
          %v2305 = vadd.f32 %v2255, %v2274
          %v2306 = vadd.f32 %v2256, %v2278
          %v2307 = vadd.f32 %v2257, %v2282
          %v2308 = vadd.f32 %v2258, %v2286
          %v2309 = vadd.f32 %v2259, %v2290
          %v2310 = vadd.f32 %v2260, %v2294
          %v2311 = vmax.f32 %v2303, 0.0
          %v2312 = vmax.f32 %v2304, 0.0
          %v2313 = vmax.f32 %v2305, 0.0
          %v2314 = vmax.f32 %v2306, 0.0
          %v2315 = vmax.f32 %v2307, 0.0
          %v2316 = vmax.f32 %v2308, 0.0
          %v2317 = vmax.f32 %v2309, 0.0
          %v2318 = vmax.f32 %v2310, 0.0
          %v2319 = vld [vmem:[%s5] sm:$0xf]
          %v2320 = vld [vmem:[%s5 + $0x4] sm:$0xf]
          %v2321 = vld [vmem:[%s5 + $0x8] sm:$0xf]
          %v2322 = vld [vmem:[%s5 + $0xc] sm:$0xf]
          %v2323 = vld [vmem:[%s5 + $0x10] sm:$0xf]
          %v2324 = vld [vmem:[%s5 + $0x14] sm:$0xf]
          %v2325 = vld [vmem:[%s5 + $0x18] sm:$0xf]
          %v2326 = vld [vmem:[%s5 + $0x1c] sm:$0xf]
          %v2327 = vld [vmem:[%s5 + $0x20] sm:$0xf]
          %v2328 = vld [vmem:[%s5 + $0x24] sm:$0xf]
          %v2329 = vld [vmem:[%s5 + $0x28] sm:$0xf]
          %v2330 = vld [vmem:[%s5 + $0x2c] sm:$0xf]
          %v2331 = vld [vmem:[%s5 + $0x30] sm:$0xf]
          %v2332 = vld [vmem:[%s5 + $0x34] sm:$0xf]
          %v2333 = vld [vmem:[%s5 + $0x38] sm:$0xf]
          %v2334 = vld [vmem:[%s5 + $0x3c] sm:$0xf]
          %v2335 = vld [vmem:[%s5 + $0x40] sm:$0xf]
          %v2336 = vld [vmem:[%s5 + $0x44] sm:$0xf]
          %v2337 = vld [vmem:[%s5 + $0x48] sm:$0xf]
          %v2338 = vld [vmem:[%s5 + $0x4c] sm:$0xf]
          %v2339 = vld [vmem:[%s5 + $0x50] sm:$0xf]
          %v2340 = vld [vmem:[%s5 + $0x54] sm:$0xf]
          %v2341 = vld [vmem:[%s5 + $0x58] sm:$0xf]
          %v2342 = vld [vmem:[%s5 + $0x5c] sm:$0xf]
          %v2343 = vld [vmem:[%s5 + $0x60] sm:$0xf]
          %v2344 = vld [vmem:[%s5 + $0x64] sm:$0xf]
          %v2345 = vld [vmem:[%s5 + $0x68] sm:$0xf]
          %v2346 = vld [vmem:[%s5 + $0x6c] sm:$0xf]
          %v2347 = vld [vmem:[%s5 + $0x70] sm:$0xf]
          %v2348 = vld [vmem:[%s5 + $0x74] sm:$0xf]
          %v2349 = vld [vmem:[%s5 + $0x78] sm:$0xf]
          %v2350 = vld [vmem:[%s5 + $0x7c] sm:$0xf]
          %v2351 = vld [vmem:[%s5 + $0x80] sm:$0xf]
          %v2352 = vld [vmem:[%s5 + $0x84] sm:$0xf]
          %v2353 = vld [vmem:[%s5 + $0x88] sm:$0xf]
          %v2354 = vld [vmem:[%s5 + $0x8c] sm:$0xf]
          %v2355 = vld [vmem:[%s5 + $0x90] sm:$0xf]
          %v2356 = vld [vmem:[%s5 + $0x94] sm:$0xf]
          %v2357 = vld [vmem:[%s5 + $0x98] sm:$0xf]
          %v2358 = vld [vmem:[%s5 + $0x9c] sm:$0xf]
          %v2359 = vld [vmem:[%s5 + $0xa0] sm:$0xf]
          %v2360 = vld [vmem:[%s5 + $0xa4] sm:$0xf]
          %v2361 = vld [vmem:[%s5 + $0xa8] sm:$0xf]
          %v2362 = vld [vmem:[%s5 + $0xac] sm:$0xf]
          %v2363 = vld [vmem:[%s5 + $0xb0] sm:$0xf]
          %v2364 = vld [vmem:[%s5 + $0xb4] sm:$0xf]
          %v2365 = vld [vmem:[%s5 + $0xb8] sm:$0xf]
          %v2366 = vld [vmem:[%s5 + $0xbc] sm:$0xf]
          %v2367 = vld [vmem:[%s5 + $0xc0] sm:$0xf]
          %v2368 = vld [vmem:[%s5 + $0xc4] sm:$0xf]
          %v2369 = vld [vmem:[%s5 + $0xc8] sm:$0xf]
          %v2370 = vld [vmem:[%s5 + $0xcc] sm:$0xf]
          %v2371 = vld [vmem:[%s5 + $0xd0] sm:$0xf]
          %v2372 = vld [vmem:[%s5 + $0xd4] sm:$0xf]
          %v2373 = vld [vmem:[%s5 + $0xd8] sm:$0xf]
          %v2374 = vld [vmem:[%s5 + $0xdc] sm:$0xf]
          %v2375 = vld [vmem:[%s5 + $0xe0] sm:$0xf]
          %v2376 = vld [vmem:[%s5 + $0xe4] sm:$0xf]
          %v2377 = vld [vmem:[%s5 + $0xe8] sm:$0xf]
          %v2378 = vld [vmem:[%s5 + $0xec] sm:$0xf]
          %v2379 = vld [vmem:[%s5 + $0xf0] sm:$0xf]
          %v2380 = vld [vmem:[%s5 + $0xf4] sm:$0xf]
          %v2381 = vld [vmem:[%s5 + $0xf8] sm:$0xf]
          %v2382 = vld [vmem:[%s5 + $0xfc] sm:$0xf]
          %v2383 = vld [vmem:[%s5 + $0x100] sm:$0xf]
          %v2384 = vld [vmem:[%s5 + $0x104] sm:$0xf]
          %v2385 = vld [vmem:[%s5 + $0x108] sm:$0xf]
          %v2386 = vld [vmem:[%s5 + $0x10c] sm:$0xf]
          %v2387 = vld [vmem:[%s5 + $0x110] sm:$0xf]
          %v2388 = vld [vmem:[%s5 + $0x114] sm:$0xf]
          %v2389 = vld [vmem:[%s5 + $0x118] sm:$0xf]
          %v2390 = vld [vmem:[%s5 + $0x11c] sm:$0xf]
          %v2391 = vld [vmem:[%s5 + $0x120] sm:$0xf]
          %v2392 = vld [vmem:[%s5 + $0x124] sm:$0xf]
          %v2393 = vld [vmem:[%s5 + $0x128] sm:$0xf]
          %v2394 = vld [vmem:[%s5 + $0x12c] sm:$0xf]
          %v2395 = vld [vmem:[%s5 + $0x130] sm:$0xf]
          %v2396 = vld [vmem:[%s5 + $0x134] sm:$0xf]
          %v2397 = vld [vmem:[%s5 + $0x138] sm:$0xf]
          %v2398 = vld [vmem:[%s5 + $0x13c] sm:$0xf]
          %v2399 = vld [vmem:[%s5 + $0x140] sm:$0xf]
          %v2400 = vld [vmem:[%s5 + $0x144] sm:$0xf]
          %v2401 = vld [vmem:[%s5 + $0x148] sm:$0xf]
          %v2402 = vld [vmem:[%s5 + $0x14c] sm:$0xf]
          %v2403 = vld [vmem:[%s5 + $0x150] sm:$0xf]
          %v2404 = vld [vmem:[%s5 + $0x154] sm:$0xf]
          %v2405 = vld [vmem:[%s5 + $0x158] sm:$0xf]
          %v2406 = vld [vmem:[%s5 + $0x15c] sm:$0xf]
          %v2407 = vld [vmem:[%s5 + $0x160] sm:$0xf]
          %v2408 = vld [vmem:[%s5 + $0x164] sm:$0xf]
          %v2409 = vld [vmem:[%s5 + $0x168] sm:$0xf]
          %v2410 = vld [vmem:[%s5 + $0x16c] sm:$0xf]
          %v2411 = vld [vmem:[%s5 + $0x170] sm:$0xf]
          %v2412 = vld [vmem:[%s5 + $0x174] sm:$0xf]
          %v2413 = vld [vmem:[%s5 + $0x178] sm:$0xf]
          %v2414 = vld [vmem:[%s5 + $0x17c] sm:$0xf]
          %v2415 = vld [vmem:[%s5 + $0x180] sm:$0xf]
          %v2416 = vld [vmem:[%s5 + $0x184] sm:$0xf]
          %v2417 = vld [vmem:[%s5 + $0x188] sm:$0xf]
          %v2418 = vld [vmem:[%s5 + $0x18c] sm:$0xf]
          %v2419 = vld [vmem:[%s5 + $0x190] sm:$0xf]
          %v2420 = vld [vmem:[%s5 + $0x194] sm:$0xf]
          %v2421 = vld [vmem:[%s5 + $0x198] sm:$0xf]
          %v2422 = vld [vmem:[%s5 + $0x19c] sm:$0xf]
          %v2423 = vld [vmem:[%s5 + $0x1a0] sm:$0xf]
          %v2424 = vld [vmem:[%s5 + $0x1a4] sm:$0xf]
          %v2425 = vld [vmem:[%s5 + $0x1a8] sm:$0xf]
          %v2426 = vld [vmem:[%s5 + $0x1ac] sm:$0xf]
          %v2427 = vld [vmem:[%s5 + $0x1b0] sm:$0xf]
          %v2428 = vld [vmem:[%s5 + $0x1b4] sm:$0xf]
          %v2429 = vld [vmem:[%s5 + $0x1b8] sm:$0xf]
          %v2430 = vld [vmem:[%s5 + $0x1bc] sm:$0xf]
          %v2431 = vld [vmem:[%s5 + $0x1c0] sm:$0xf]
          %v2432 = vld [vmem:[%s5 + $0x1c4] sm:$0xf]
          %v2433 = vld [vmem:[%s5 + $0x1c8] sm:$0xf]
          %v2434 = vld [vmem:[%s5 + $0x1cc] sm:$0xf]
          %v2435 = vld [vmem:[%s5 + $0x1d0] sm:$0xf]
          %v2436 = vld [vmem:[%s5 + $0x1d4] sm:$0xf]
          %v2437 = vld [vmem:[%s5 + $0x1d8] sm:$0xf]
          %v2438 = vld [vmem:[%s5 + $0x1dc] sm:$0xf]
          %v2439 = vld [vmem:[%s5 + $0x1e0] sm:$0xf]
          %v2440 = vld [vmem:[%s5 + $0x1e4] sm:$0xf]
          %v2441 = vld [vmem:[%s5 + $0x1e8] sm:$0xf]
          %v2442 = vld [vmem:[%s5 + $0x1ec] sm:$0xf]
          %v2443 = vld [vmem:[%s5 + $0x1f0] sm:$0xf]
          %v2444 = vld [vmem:[%s5 + $0x1f4] sm:$0xf]
          %v2445 = vld [vmem:[%s5 + $0x1f8] sm:$0xf]
          %v2446 = vld [vmem:[%s5 + $0x1fc] sm:$0xf]
          %v2447 = vunpack.c.l.bf16 %v2319
          %v2448 = vunpack.c.l.bf16 %v2320
          %v2449 = vunpack.c.l.bf16 %v2321
          %v2450 = vunpack.c.l.bf16 %v2322
          %v2451 = vunpack.c.l.bf16 %v2323
          %v2452 = vunpack.c.l.bf16 %v2324
          %v2453 = vunpack.c.l.bf16 %v2325
          %v2454 = vunpack.c.l.bf16 %v2326
          %v2455 = vunpack.c.l.bf16 %v2327
          %v2456 = vunpack.c.l.bf16 %v2328
          %v2457 = vunpack.c.l.bf16 %v2329
          %v2458 = vunpack.c.l.bf16 %v2330
          %v2459 = vunpack.c.l.bf16 %v2331
          %v2460 = vunpack.c.l.bf16 %v2332
          %v2461 = vunpack.c.l.bf16 %v2333
          %v2462 = vunpack.c.l.bf16 %v2334
          %v2463 = vunpack.c.l.bf16 %v2335
          %v2464 = vunpack.c.l.bf16 %v2336
          %v2465 = vunpack.c.l.bf16 %v2337
          %v2466 = vunpack.c.l.bf16 %v2338
          %v2467 = vunpack.c.l.bf16 %v2339
          %v2468 = vunpack.c.l.bf16 %v2340
          %v2469 = vunpack.c.l.bf16 %v2341
          %v2470 = vunpack.c.l.bf16 %v2342
          %v2471 = vunpack.c.l.bf16 %v2343
          %v2472 = vunpack.c.l.bf16 %v2344
          %v2473 = vunpack.c.l.bf16 %v2345
          %v2474 = vunpack.c.l.bf16 %v2346
          %v2475 = vunpack.c.l.bf16 %v2347
          %v2476 = vunpack.c.l.bf16 %v2348
          %v2477 = vunpack.c.l.bf16 %v2349
          %v2478 = vunpack.c.l.bf16 %v2350
          %v2479 = vunpack.c.l.bf16 %v2351
          %v2480 = vunpack.c.l.bf16 %v2352
          %v2481 = vunpack.c.l.bf16 %v2353
          %v2482 = vunpack.c.l.bf16 %v2354
          %v2483 = vunpack.c.l.bf16 %v2355
          %v2484 = vunpack.c.l.bf16 %v2356
          %v2485 = vunpack.c.l.bf16 %v2357
          %v2486 = vunpack.c.l.bf16 %v2358
          %v2487 = vunpack.c.l.bf16 %v2359
          %v2488 = vunpack.c.l.bf16 %v2360
          %v2489 = vunpack.c.l.bf16 %v2361
          %v2490 = vunpack.c.l.bf16 %v2362
          %v2491 = vunpack.c.l.bf16 %v2363
          %v2492 = vunpack.c.l.bf16 %v2364
          %v2493 = vunpack.c.l.bf16 %v2365
          %v2494 = vunpack.c.l.bf16 %v2366
          %v2495 = vunpack.c.l.bf16 %v2367
          %v2496 = vunpack.c.l.bf16 %v2368
          %v2497 = vunpack.c.l.bf16 %v2369
          %v2498 = vunpack.c.l.bf16 %v2370
          %v2499 = vunpack.c.l.bf16 %v2371
          %v2500 = vunpack.c.l.bf16 %v2372
          %v2501 = vunpack.c.l.bf16 %v2373
          %v2502 = vunpack.c.l.bf16 %v2374
          %v2503 = vunpack.c.l.bf16 %v2375
          %v2504 = vunpack.c.l.bf16 %v2376
          %v2505 = vunpack.c.l.bf16 %v2377
          %v2506 = vunpack.c.l.bf16 %v2378
          %v2507 = vunpack.c.l.bf16 %v2379
          %v2508 = vunpack.c.l.bf16 %v2380
          %v2509 = vunpack.c.l.bf16 %v2381
          %v2510 = vunpack.c.l.bf16 %v2382
          %v2511 = vunpack.c.l.bf16 %v2383
          %v2512 = vunpack.c.l.bf16 %v2384
          %v2513 = vunpack.c.l.bf16 %v2385
          %v2514 = vunpack.c.l.bf16 %v2386
          %v2515 = vunpack.c.l.bf16 %v2387
          %v2516 = vunpack.c.l.bf16 %v2388
          %v2517 = vunpack.c.l.bf16 %v2389
          %v2518 = vunpack.c.l.bf16 %v2390
          %v2519 = vunpack.c.l.bf16 %v2391
          %v2520 = vunpack.c.l.bf16 %v2392
          %v2521 = vunpack.c.l.bf16 %v2393
          %v2522 = vunpack.c.l.bf16 %v2394
          %v2523 = vunpack.c.l.bf16 %v2395
          %v2524 = vunpack.c.l.bf16 %v2396
          %v2525 = vunpack.c.l.bf16 %v2397
          %v2526 = vunpack.c.l.bf16 %v2398
          %v2527 = vunpack.c.l.bf16 %v2399
          %v2528 = vunpack.c.l.bf16 %v2400
          %v2529 = vunpack.c.l.bf16 %v2401
          %v2530 = vunpack.c.l.bf16 %v2402
          %v2531 = vunpack.c.l.bf16 %v2403
          %v2532 = vunpack.c.l.bf16 %v2404
          %v2533 = vunpack.c.l.bf16 %v2405
          %v2534 = vunpack.c.l.bf16 %v2406
          %v2535 = vunpack.c.l.bf16 %v2407
          %v2536 = vunpack.c.l.bf16 %v2408
          %v2537 = vunpack.c.l.bf16 %v2409
          %v2538 = vunpack.c.l.bf16 %v2410
          %v2539 = vunpack.c.l.bf16 %v2411
          %v2540 = vunpack.c.l.bf16 %v2412
          %v2541 = vunpack.c.l.bf16 %v2413
          %v2542 = vunpack.c.l.bf16 %v2414
          %v2543 = vunpack.c.l.bf16 %v2415
          %v2544 = vunpack.c.l.bf16 %v2416
          %v2545 = vunpack.c.l.bf16 %v2417
          %v2546 = vunpack.c.l.bf16 %v2418
          %v2547 = vunpack.c.l.bf16 %v2419
          %v2548 = vunpack.c.l.bf16 %v2420
          %v2549 = vunpack.c.l.bf16 %v2421
          %v2550 = vunpack.c.l.bf16 %v2422
          %v2551 = vunpack.c.l.bf16 %v2423
          %v2552 = vunpack.c.l.bf16 %v2424
          %v2553 = vunpack.c.l.bf16 %v2425
          %v2554 = vunpack.c.l.bf16 %v2426
          %v2555 = vunpack.c.l.bf16 %v2427
          %v2556 = vunpack.c.l.bf16 %v2428
          %v2557 = vunpack.c.l.bf16 %v2429
          %v2558 = vunpack.c.l.bf16 %v2430
          %v2559 = vunpack.c.l.bf16 %v2431
          %v2560 = vunpack.c.l.bf16 %v2432
          %v2561 = vunpack.c.l.bf16 %v2433
          %v2562 = vunpack.c.l.bf16 %v2434
          %v2563 = vunpack.c.l.bf16 %v2435
          %v2564 = vunpack.c.l.bf16 %v2436
          %v2565 = vunpack.c.l.bf16 %v2437
          %v2566 = vunpack.c.l.bf16 %v2438
          %v2567 = vunpack.c.l.bf16 %v2439
          %v2568 = vunpack.c.l.bf16 %v2440
          %v2569 = vunpack.c.l.bf16 %v2441
          %v2570 = vunpack.c.l.bf16 %v2442
          %v2571 = vunpack.c.l.bf16 %v2443
          %v2572 = vunpack.c.l.bf16 %v2444
          %v2573 = vunpack.c.l.bf16 %v2445
          %v2574 = vunpack.c.l.bf16 %v2446
          %v2575 = vld [vmem:[%s6] sm:$0x1]
          %v2577 = vlaneseq
          %v2578 = vshrl.u32 %v2577, 7
          %v2579 = vsub.s32 0, %v2578
          %v2580 = vrot.slane %v2575, %v2579
          %2582 = vmatprep.subr.mxu0 0.0
          %2583 = vmatpush1.msra.mxu0 %v2447
          %2584 = vmatprep.subr.mxu0 0.0
          %2585 = vmatpush1.msra.mxu0 %v2448
          %2586 = vmatprep.subr.mxu0 0.0
          %2587 = vmatpush1.msra.mxu0 %v2449
          %2588 = vmatprep.subr.mxu0 0.0
          %2589 = vmatpush1.msra.mxu0 %v2450
          %2590 = vmatprep.subr.mxu0 0.0
          %2591 = vmatpush1.msra.mxu0 %v2451
          %2592 = vmatprep.subr.mxu0 0.0
          %2593 = vmatpush1.msra.mxu0 %v2452
          %2594 = vmatprep.subr.mxu0 0.0
          %2595 = vmatpush1.msra.mxu0 %v2453
          %2596 = vmatprep.subr.mxu0 0.0
          %2597 = vmatpush1.msra.mxu0 %v2454
          %2598 = vmatprep.subr.mxu0 0.0
          %2599 = vmatpush1.msra.mxu0 %v2455
          %2600 = vmatprep.subr.mxu0 0.0
          %2601 = vmatpush1.msra.mxu0 %v2456
          %2602 = vmatprep.subr.mxu0 0.0
          %2603 = vmatpush1.msra.mxu0 %v2457
          %2604 = vmatprep.subr.mxu0 0.0
          %2605 = vmatpush1.msra.mxu0 %v2458
          %2606 = vmatprep.subr.mxu0 0.0
          %2607 = vmatpush1.msra.mxu0 %v2459
          %2608 = vmatprep.subr.mxu0 0.0
          %2609 = vmatpush1.msra.mxu0 %v2460
          %2610 = vmatprep.subr.mxu0 0.0
          %2611 = vmatpush1.msra.mxu0 %v2461
          %2612 = vmatprep.subr.mxu0 0.0
          %2613 = vmatpush1.msra.mxu0 %v2462
          %2614 = vmatprep.subr.mxu0 0.0
          %2615 = vmatpush1.msra.mxu0 %v2463
          %2616 = vmatprep.subr.mxu0 0.0
          %2617 = vmatpush1.msra.mxu0 %v2464
          %2618 = vmatprep.subr.mxu0 0.0
          %2619 = vmatpush1.msra.mxu0 %v2465
          %2620 = vmatprep.subr.mxu0 0.0
          %2621 = vmatpush1.msra.mxu0 %v2466
          %2622 = vmatprep.subr.mxu0 0.0
          %2623 = vmatpush1.msra.mxu0 %v2467
          %2624 = vmatprep.subr.mxu0 0.0
          %2625 = vmatpush1.msra.mxu0 %v2468
          %2626 = vmatprep.subr.mxu0 0.0
          %2627 = vmatpush1.msra.mxu0 %v2469
          %2628 = vmatprep.subr.mxu0 0.0
          %2629 = vmatpush1.msra.mxu0 %v2470
          %2630 = vmatprep.subr.mxu0 0.0
          %2631 = vmatpush1.msra.mxu0 %v2471
          %2632 = vmatprep.subr.mxu0 0.0
          %2633 = vmatpush1.msra.mxu0 %v2472
          %2634 = vmatprep.subr.mxu0 0.0
          %2635 = vmatpush1.msra.mxu0 %v2473
          %2636 = vmatprep.subr.mxu0 0.0
          %2637 = vmatpush1.msra.mxu0 %v2474
          %2638 = vmatprep.subr.mxu0 0.0
          %2639 = vmatpush1.msra.mxu0 %v2475
          %2640 = vmatprep.subr.mxu0 0.0
          %2641 = vmatpush1.msra.mxu0 %v2476
          %2642 = vmatprep.subr.mxu0 0.0
          %2643 = vmatpush1.msra.mxu0 %v2477
          %2644 = vmatprep.subr.mxu0 0.0
          %2645 = vmatpush1.msra.mxu0 %v2478
          %2646 = vmatprep.mubr.f32.mxu0 %v2312
          %2647 = vmatmul.mubr.f32.gmra.mrb[0].mxu0 %v2311
          %v2648 = vpop.f32.mrb[0].mxu0
          %v2649 = vadd.f32 %v2580, %v2648
          %v2650 = vpop.f32.mrb[0].mxu0
          %2651 = vdwg.mxu0
          %2652 = vmatprep.subr.mxu0 0.0
          %2653 = vmatpush1.msra.mxu0 %v2479
          %2654 = vmatprep.subr.mxu0 0.0
          %2655 = vmatpush1.msra.mxu0 %v2480
          %2656 = vmatprep.subr.mxu0 0.0
          %2657 = vmatpush1.msra.mxu0 %v2481
          %2658 = vmatprep.subr.mxu0 0.0
          %2659 = vmatpush1.msra.mxu0 %v2482
          %2660 = vmatprep.subr.mxu0 0.0
          %2661 = vmatpush1.msra.mxu0 %v2483
          %2662 = vmatprep.subr.mxu0 0.0
          %2663 = vmatpush1.msra.mxu0 %v2484
          %2664 = vmatprep.subr.mxu0 0.0
          %2665 = vmatpush1.msra.mxu0 %v2485
          %2666 = vmatprep.subr.mxu0 0.0
          %2667 = vmatpush1.msra.mxu0 %v2486
          %2668 = vmatprep.subr.mxu0 0.0
          %2669 = vmatpush1.msra.mxu0 %v2487
          %2670 = vmatprep.subr.mxu0 0.0
          %2671 = vmatpush1.msra.mxu0 %v2488
          %2672 = vmatprep.subr.mxu0 0.0
          %2673 = vmatpush1.msra.mxu0 %v2489
          %2674 = vmatprep.subr.mxu0 0.0
          %2675 = vmatpush1.msra.mxu0 %v2490
          %2676 = vmatprep.subr.mxu0 0.0
          %2677 = vmatpush1.msra.mxu0 %v2491
          %2678 = vmatprep.subr.mxu0 0.0
          %2679 = vmatpush1.msra.mxu0 %v2492
          %2680 = vmatprep.subr.mxu0 0.0
          %2681 = vmatpush1.msra.mxu0 %v2493
          %2682 = vmatprep.subr.mxu0 0.0
          %2683 = vmatpush1.msra.mxu0 %v2494
          %2684 = vmatprep.subr.mxu0 0.0
          %2685 = vmatpush1.msra.mxu0 %v2495
          %2686 = vmatprep.subr.mxu0 0.0
          %2687 = vmatpush1.msra.mxu0 %v2496
          %2688 = vmatprep.subr.mxu0 0.0
          %2689 = vmatpush1.msra.mxu0 %v2497
          %2690 = vmatprep.subr.mxu0 0.0
          %2691 = vmatpush1.msra.mxu0 %v2498
          %2692 = vmatprep.subr.mxu0 0.0
          %2693 = vmatpush1.msra.mxu0 %v2499
          %2694 = vmatprep.subr.mxu0 0.0
          %2695 = vmatpush1.msra.mxu0 %v2500
          %2696 = vmatprep.subr.mxu0 0.0
          %2697 = vmatpush1.msra.mxu0 %v2501
          %2698 = vmatprep.subr.mxu0 0.0
          %2699 = vmatpush1.msra.mxu0 %v2502
          %2700 = vmatprep.subr.mxu0 0.0
          %2701 = vmatpush1.msra.mxu0 %v2503
          %2702 = vmatprep.subr.mxu0 0.0
          %2703 = vmatpush1.msra.mxu0 %v2504
          %2704 = vmatprep.subr.mxu0 0.0
          %2705 = vmatpush1.msra.mxu0 %v2505
          %2706 = vmatprep.subr.mxu0 0.0
          %2707 = vmatpush1.msra.mxu0 %v2506
          %2708 = vmatprep.subr.mxu0 0.0
          %2709 = vmatpush1.msra.mxu0 %v2507
          %2710 = vmatprep.subr.mxu0 0.0
          %2711 = vmatpush1.msra.mxu0 %v2508
          %2712 = vmatprep.subr.mxu0 0.0
          %2713 = vmatpush1.msra.mxu0 %v2509
          %2714 = vmatprep.subr.mxu0 0.0
          %2715 = vmatpush1.msra.mxu0 %v2510
          %2716 = vmatprep.mubr.f32.mxu0 %v2314
          %2717 = vmatmul.mubr.f32.gmra.mrb[0].mxu0 %v2313
          %v2718 = vpop.f32.mrb[0].mxu0
          %v2719 = vadd.f32 %v2649, %v2718
          %v2720 = vpop.f32.mrb[0].mxu0
          %2721 = vdwg.mxu0
          %2722 = vmatprep.subr.mxu0 0.0
          %2723 = vmatpush1.msra.mxu0 %v2511
          %2724 = vmatprep.subr.mxu0 0.0
          %2725 = vmatpush1.msra.mxu0 %v2512
          %2726 = vmatprep.subr.mxu0 0.0
          %2727 = vmatpush1.msra.mxu0 %v2513
          %2728 = vmatprep.subr.mxu0 0.0
          %2729 = vmatpush1.msra.mxu0 %v2514
          %2730 = vmatprep.subr.mxu0 0.0
          %2731 = vmatpush1.msra.mxu0 %v2515
          %2732 = vmatprep.subr.mxu0 0.0
          %2733 = vmatpush1.msra.mxu0 %v2516
          %2734 = vmatprep.subr.mxu0 0.0
          %2735 = vmatpush1.msra.mxu0 %v2517
          %2736 = vmatprep.subr.mxu0 0.0
          %2737 = vmatpush1.msra.mxu0 %v2518
          %2738 = vmatprep.subr.mxu0 0.0
          %2739 = vmatpush1.msra.mxu0 %v2519
          %2740 = vmatprep.subr.mxu0 0.0
          %2741 = vmatpush1.msra.mxu0 %v2520
          %2742 = vmatprep.subr.mxu0 0.0
          %2743 = vmatpush1.msra.mxu0 %v2521
          %2744 = vmatprep.subr.mxu0 0.0
          %2745 = vmatpush1.msra.mxu0 %v2522
          %2746 = vmatprep.subr.mxu0 0.0
          %2747 = vmatpush1.msra.mxu0 %v2523
          %2748 = vmatprep.subr.mxu0 0.0
          %2749 = vmatpush1.msra.mxu0 %v2524
          %2750 = vmatprep.subr.mxu0 0.0
          %2751 = vmatpush1.msra.mxu0 %v2525
          %2752 = vmatprep.subr.mxu0 0.0
          %2753 = vmatpush1.msra.mxu0 %v2526
          %2754 = vmatprep.subr.mxu0 0.0
          %2755 = vmatpush1.msra.mxu0 %v2527
          %2756 = vmatprep.subr.mxu0 0.0
          %2757 = vmatpush1.msra.mxu0 %v2528
          %2758 = vmatprep.subr.mxu0 0.0
          %2759 = vmatpush1.msra.mxu0 %v2529
          %2760 = vmatprep.subr.mxu0 0.0
          %2761 = vmatpush1.msra.mxu0 %v2530
          %2762 = vmatprep.subr.mxu0 0.0
          %2763 = vmatpush1.msra.mxu0 %v2531
          %2764 = vmatprep.subr.mxu0 0.0
          %2765 = vmatpush1.msra.mxu0 %v2532
          %2766 = vmatprep.subr.mxu0 0.0
          %2767 = vmatpush1.msra.mxu0 %v2533
          %2768 = vmatprep.subr.mxu0 0.0
          %2769 = vmatpush1.msra.mxu0 %v2534
          %2770 = vmatprep.subr.mxu0 0.0
          %2771 = vmatpush1.msra.mxu0 %v2535
          %2772 = vmatprep.subr.mxu0 0.0
          %2773 = vmatpush1.msra.mxu0 %v2536
          %2774 = vmatprep.subr.mxu0 0.0
          %2775 = vmatpush1.msra.mxu0 %v2537
          %2776 = vmatprep.subr.mxu0 0.0
          %2777 = vmatpush1.msra.mxu0 %v2538
          %2778 = vmatprep.subr.mxu0 0.0
          %2779 = vmatpush1.msra.mxu0 %v2539
          %2780 = vmatprep.subr.mxu0 0.0
          %2781 = vmatpush1.msra.mxu0 %v2540
          %2782 = vmatprep.subr.mxu0 0.0
          %2783 = vmatpush1.msra.mxu0 %v2541
          %2784 = vmatprep.subr.mxu0 0.0
          %2785 = vmatpush1.msra.mxu0 %v2542
          %2786 = vmatprep.mubr.f32.mxu0 %v2316
          %2787 = vmatmul.mubr.f32.gmra.mrb[0].mxu0 %v2315
          %v2788 = vpop.f32.mrb[0].mxu0
          %v2789 = vadd.f32 %v2719, %v2788
          %v2790 = vpop.f32.mrb[0].mxu0
          %2791 = vdwg.mxu0
          %2792 = vmatprep.subr.mxu0 0.0
          %2793 = vmatpush1.msra.mxu0 %v2543
          %2794 = vmatprep.subr.mxu0 0.0
          %2795 = vmatpush1.msra.mxu0 %v2544
          %2796 = vmatprep.subr.mxu0 0.0
          %2797 = vmatpush1.msra.mxu0 %v2545
          %2798 = vmatprep.subr.mxu0 0.0
          %2799 = vmatpush1.msra.mxu0 %v2546
          %2800 = vmatprep.subr.mxu0 0.0
          %2801 = vmatpush1.msra.mxu0 %v2547
          %2802 = vmatprep.subr.mxu0 0.0
          %2803 = vmatpush1.msra.mxu0 %v2548
          %2804 = vmatprep.subr.mxu0 0.0
          %2805 = vmatpush1.msra.mxu0 %v2549
          %2806 = vmatprep.subr.mxu0 0.0
          %2807 = vmatpush1.msra.mxu0 %v2550
          %2808 = vmatprep.subr.mxu0 0.0
          %2809 = vmatpush1.msra.mxu0 %v2551
          %2810 = vmatprep.subr.mxu0 0.0
          %2811 = vmatpush1.msra.mxu0 %v2552
          %2812 = vmatprep.subr.mxu0 0.0
          %2813 = vmatpush1.msra.mxu0 %v2553
          %2814 = vmatprep.subr.mxu0 0.0
          %2815 = vmatpush1.msra.mxu0 %v2554
          %2816 = vmatprep.subr.mxu0 0.0
          %2817 = vmatpush1.msra.mxu0 %v2555
          %2818 = vmatprep.subr.mxu0 0.0
          %2819 = vmatpush1.msra.mxu0 %v2556
          %2820 = vmatprep.subr.mxu0 0.0
          %2821 = vmatpush1.msra.mxu0 %v2557
          %2822 = vmatprep.subr.mxu0 0.0
          %2823 = vmatpush1.msra.mxu0 %v2558
          %2824 = vmatprep.subr.mxu0 0.0
          %2825 = vmatpush1.msra.mxu0 %v2559
          %2826 = vmatprep.subr.mxu0 0.0
          %2827 = vmatpush1.msra.mxu0 %v2560
          %2828 = vmatprep.subr.mxu0 0.0
          %2829 = vmatpush1.msra.mxu0 %v2561
          %2830 = vmatprep.subr.mxu0 0.0
          %2831 = vmatpush1.msra.mxu0 %v2562
          %2832 = vmatprep.subr.mxu0 0.0
          %2833 = vmatpush1.msra.mxu0 %v2563
          %2834 = vmatprep.subr.mxu0 0.0
          %2835 = vmatpush1.msra.mxu0 %v2564
          %2836 = vmatprep.subr.mxu0 0.0
          %2837 = vmatpush1.msra.mxu0 %v2565
          %2838 = vmatprep.subr.mxu0 0.0
          %2839 = vmatpush1.msra.mxu0 %v2566
          %2840 = vmatprep.subr.mxu0 0.0
          %2841 = vmatpush1.msra.mxu0 %v2567
          %2842 = vmatprep.subr.mxu0 0.0
          %2843 = vmatpush1.msra.mxu0 %v2568
          %2844 = vmatprep.subr.mxu0 0.0
          %2845 = vmatpush1.msra.mxu0 %v2569
          %2846 = vmatprep.subr.mxu0 0.0
          %2847 = vmatpush1.msra.mxu0 %v2570
          %2848 = vmatprep.subr.mxu0 0.0
          %2849 = vmatpush1.msra.mxu0 %v2571
          %2850 = vmatprep.subr.mxu0 0.0
          %2851 = vmatpush1.msra.mxu0 %v2572
          %2852 = vmatprep.subr.mxu0 0.0
          %2853 = vmatpush1.msra.mxu0 %v2573
          %2854 = vmatprep.subr.mxu0 0.0
          %2855 = vmatpush1.msra.mxu0 %v2574
          %2856 = vmatprep.mubr.f32.mxu0 %v2318
          %2857 = vmatmul.mubr.f32.gmra.mrb[0].mxu0 %v2317
          %v2858 = vpop.f32.mrb[0].mxu0
          %v2859 = vadd.f32 %v2789, %v2858
          %v2860 = vpop.f32.mrb[0].mxu0
          %2861 = vdwg.mxu0
          %vm2862 = vcmask 48128
          %2863 = vst.msk [vmem:[#allocation4] sm:$0xff] %vm2862, %v2859
        $region95: #{async_tf_base_forward.2} parent=82 // pred_fallthru
          _
        // Predicated region
        $region96: #{async_tf_base_forward.2} parent=82 // pred_check
          %p2864 = pneg %p286
        $region97: #{async_tf_base_forward.2} parent=82 // pred_check_branch
          %2866 = sbr.rel (%p2864) target = $region99
        $region98: #{async_tf_base_forward.2} parent=82 // pred_region
          %s2868 = ssub.s32 128, 128
          %2869 = vsyncadd [#allocation5], %s2868
          %s2871 = sshll.u32 [#allocation4], 4
          %s2872 = int_to_ptr.vmem [resolvable:$true] %s2871
          %2874 = dma.vmem_to_hbm [thread:$0]  %s2872, 128, %s11, [#allocation5]
        $region99: #{async_tf_base_forward.2} parent=82 // pred_fallthru
          _
        // Predicated region
        $region100: #{async_tf_base_forward.2} parent=82 // pred_check
          %p2875 = pneg %p307
        $region101: #{async_tf_base_forward.2} parent=82 // pred_check_branch
          %2877 = sbr.rel (%p2875) target = $region103
        $region102: #{async_tf_base_forward.2} parent=82 // pred_region
          %s2879 = ssub.s32 128, 128
          %2880 = vsyncadd [#allocation7], %s2879
          %s2882 = sshll.u32 [#allocation6], 4
          %s2883 = int_to_ptr.vmem [resolvable:$true] %s2882
          %2885 = dma.vmem_to_hbm [thread:$0]  %s2883, 128, %s12, [#allocation7]
        $region103: #{async_tf_base_forward.2} parent=82 // pred_fallthru
          _
        // Predicated region
        $region104: #{async_tf_base_forward.2} parent=82 // pred_check
          %p2886 = pneg %p328
        $region105: #{async_tf_base_forward.2} parent=82 // pred_check_branch
          %2888 = sbr.rel (%p2886) target = $region107
        $region106: #{async_tf_base_forward.2} parent=82 // pred_region
          %s2890 = ssub.s32 128, 128
          %2891 = vsyncadd [#allocation7], %s2890
          %s2893 = sshll.u32 [#allocation8], 4
          %s2894 = int_to_ptr.vmem [resolvable:$true] %s2893
          %2896 = dma.vmem_to_hbm [thread:$0]  %s2894, 128, %s13, [#allocation7]
        $region107: #{async_tf_base_forward.2} parent=82 // pred_fallthru
          _
        // Predicated region
        $region108: #{async_tf_base_forward.2} parent=82 // pred_check
          %p2897 = pneg %p286
        $region109: #{async_tf_base_forward.2} parent=82 // pred_check_branch
          %2899 = sbr.rel (%p2897) target = $region111
        $region110: #{async_tf_base_forward.2} parent=82 // pred_region
          %2900 = dma.done [#allocation5], 128
        $region111: #{async_tf_base_forward.2} parent=82 // pred_fallthru
          _
        // Predicated region
        $region112: #{async_tf_base_forward.2} parent=82 // pred_check
          %p2901 = pneg %p307
        $region113: #{async_tf_base_forward.2} parent=82 // pred_check_branch
          %2903 = sbr.rel (%p2901) target = $region115
        $region114: #{async_tf_base_forward.2} parent=82 // pred_region
          %2904 = dma.done [#allocation7], 128
        $region115: #{async_tf_base_forward.2} parent=82 // pred_fallthru
          _
        // Predicated region
        $region116: #{async_tf_base_forward.2} parent=82 // pred_check
          %p2905 = pneg %p328
        $region117: #{async_tf_base_forward.2} parent=82 // pred_check_branch
          %2907 = sbr.rel (%p2905) target = $region119
        $region118: #{async_tf_base_forward.2} parent=82 // pred_region
          %2908 = dma.done [#allocation7], 128
        $region119: #{async_tf_base_forward.2} parent=82 // pred_fallthru
          _
      $region83: #{async_tf_base_forward.2} parent=5 // pred_fallthru
        _
      %p2909 = scmp.le.s32.totalorder 2, %s22
      // Predicated region
      $region120: #{async_tf_base_forward.2} parent=5 // pred_check
        %p2910 = pneg %p2909
      $region121: #{async_tf_base_forward.2} parent=5 // pred_check_branch
        %2912 = sbr.rel (%p2910) target = $region123
      $region122: #{async_tf_base_forward.2} parent=5 // pred_region
        %s2913 = ssub.s32 %s22, 2
      $region123: #{async_tf_base_forward.2} parent=5 // pred_fallthru
        _
    $region6: #{async_tf_base_forward.2} parent=1 // loop_footer
      %s26 = sadd.s32 1, %s22
    $region7: #{async_tf_base_forward.2} parent=1 // loop_footer_branch
      %21 = sbr.rel target = $region3
    $region8: #{async_tf_base_forward.2} parent=1 // loop_exit
      _
    %2914 = vsyncpa [#allocation5], 1
    %s2915 = scalar_lea.sflag [#allocation5], 1
    %2916 = vsyncpa %s2915, 1
    %2917 = vsyncpa [#allocation7], 1

// kernel: async_tf_base_forward.3
$region0: #{async_tf_base_forward.3}
  #allocation0 [shape = 'u32[]', space=smem, size = 0x4, offset = 0x4, fixed_abs, tag = 'smem constant byte address 0x4 - core index']
  #allocation1 [shape = 'u32[144,128]{1,0:T(1,128)}', space=vmem, size = 0x12000, scoped, tag = 'internal scratch']
  %s0 = inlined_call_operand.hbm [shape: f32[8,32], index: 0, kind: input, shape index: {}]
  %s1 = inlined_call_operand.hbm [shape: f32[12,8,8], index: 1, kind: input, shape index: {}]
  %s2 = inlined_call_operand.hbm [shape: f32[128,1280], index: 2, kind: input, shape index: {}]
  %s3 = inlined_call_operand.hbm [shape: f32[128,1280], index: 3, kind: input, shape index: {}]
  %s4 = inlined_call_operand.hbm [shape: bf16[12,32,1024], index: 4, kind: input, shape index: {}]
  %s5 = inlined_call_operand.hbm [shape: f32[12,1,1024], index: 5, kind: input, shape index: {}]
  %s6 = inlined_call_operand.hbm [shape: bf16[12,1024,128], index: 6, kind: input, shape index: {}]
  %s7 = inlined_call_operand.hbm [shape: f32[12,1,128], index: 7, kind: input, shape index: {}]
  %s8 = inlined_call_operand.hbm [shape: bf16[12,32,1024], index: 8, kind: input, shape index: {}]
  %s9 = inlined_call_operand.hbm [shape: f32[12,1,1024], index: 9, kind: input, shape index: {}]
  %s10 = inlined_call_operand.hbm [shape: bf16[12,1024,128], index: 10, kind: input, shape index: {}]
  %s11 = inlined_call_operand.hbm [shape: f32[12,1,128], index: 11, kind: input, shape index: {}]
  %s12 = inlined_call_operand.vmem [shape: f32[12,8,256], index: 12, kind: output, shape index: {}]
  %s13 = sld [smem:[#allocation0]]
  $region129: #{async_tf_base_forward.3} parent=0
    _
  %s15 = ssub.s32 1, %s13
  %s16 = scalar_select 0, %s15, %s13
  $region1: #{async_tf_base_forward.3} parent=0
    #allocation2 [shape = 'u8[4096]{0}', space=vmem, size = 0x1000, scoped, tag = 'input window, operand 0, single buffered']
    #allocation3 [shape = 's32[2]{0}', space=sflag, size = 0x8, scoped, tag = 'scoped memory for async_tf_base_forward.3']
    #allocation4 [shape = 'u8[16384]{0}', space=vmem, size = 0x4000, scoped, tag = 'input window, operand 1']
    #allocation5 [shape = 's32[2]{0}', space=sflag, size = 0x8, scoped, tag = 'scoped memory for async_tf_base_forward.3']
    #allocation6 [shape = 'u8[655360]{0}', space=vmem, size = 0xa0000, scoped, tag = 'input window, operand 2, single buffered']
    #allocation7 [shape = 'u8[655360]{0}', space=vmem, size = 0xa0000, scoped, tag = 'input window, operand 3, single buffered']
    #allocation8 [shape = 's32[1]{0}', space=sflag, size = 0x4, scoped, tag = 'scoped memory for async_tf_base_forward.3']
    #allocation9 [shape = 'u8[262144]{0}', space=vmem, size = 0x40000, scoped, tag = 'input window, operand 4']
    #allocation10 [shape = 'u8[16384]{0}', space=vmem, size = 0x4000, scoped, tag = 'input window, operand 5']
    #allocation11 [shape = 'u8[1048576]{0}', space=vmem, size = 0x100000, scoped, tag = 'input window, operand 6']
    #allocation12 [shape = 'u8[2048]{0}', space=vmem, size = 0x800, scoped, tag = 'input window, operand 7']
    #allocation13 [shape = 'u8[262144]{0}', space=vmem, size = 0x40000, scoped, tag = 'input window, operand 8']
    #allocation14 [shape = 'u8[16384]{0}', space=vmem, size = 0x4000, scoped, tag = 'input window, operand 9']
    #allocation15 [shape = 'u8[1048576]{0}', space=vmem, size = 0x100000, scoped, tag = 'input window, operand 10']
    #allocation16 [shape = 'u8[2048]{0}', space=vmem, size = 0x800, scoped, tag = 'input window, operand 11']
    %17 = vsyncpa [#allocation3], 0
    %18 = vsyncpa [#allocation5], 0
    %s19 = scalar_lea.sflag [#allocation5], 1
    %20 = vsyncpa %s19, 0
    %21 = vsyncpa [#allocation8], 0
    loop: start=0, step=1, limit=8
    $region2: #{async_tf_base_forward.3} parent=1 // loop_pre_header
      _
    $region3: #{async_tf_base_forward.3} parent=1 // loop_header
      %s23 = sphi 0, %s27
      %p24 = scmp.ge.s32.totalorder %s23, 8
      %s31 = sphi 0, %s31
      %s33 = sphi 0, %s31
      %s34 = sphi 0, %s33
      %s48 = sphi 0, %s34
      %s54 = sphi 0, %s56
      %s57 = sphi 0, %s54
      %s58 = sphi 0, %s57
      %s74 = sphi 0, %s58
      %s78 = sphi 0, %s78
      %s80 = sphi 0, %s78
      %s81 = sphi 0, %s80
      %s95 = sphi 0, %s81
      %s99 = sphi 0, %s99
      %s101 = sphi 0, %s99
      %s102 = sphi 0, %s101
      %s116 = sphi 0, %s102
      %s122 = sphi 0, %s124
      %s125 = sphi 0, %s122
      %s126 = sphi 0, %s125
      %s142 = sphi 0, %s126
      %s148 = sphi 0, %s150
      %s151 = sphi 0, %s148
      %s152 = sphi 0, %s151
      %s168 = sphi 0, %s152
      %s174 = sphi 0, %s176
      %s177 = sphi 0, %s174
      %s178 = sphi 0, %s177
      %s194 = sphi 0, %s178
      %s200 = sphi 0, %s202
      %s203 = sphi 0, %s200
      %s204 = sphi 0, %s203
      %s220 = sphi 0, %s204
      %s226 = sphi 0, %s228
      %s229 = sphi 0, %s226
      %s230 = sphi 0, %s229
      %s246 = sphi 0, %s230
      %s252 = sphi 0, %s254
      %s255 = sphi 0, %s252
      %s256 = sphi 0, %s255
      %s272 = sphi 0, %s256
      %s278 = sphi 0, %s280
      %s281 = sphi 0, %s278
      %s282 = sphi 0, %s281
      %s298 = sphi 0, %s282
      %s304 = sphi 0, %s306
      %s307 = sphi 0, %s304
      %s308 = sphi 0, %s307
      %s324 = sphi 0, %s308
      %s330 = sphi 0, %s332
      %s333 = sphi 0, %s330
      %s334 = sphi 0, %s333
      %s350 = sphi 0, %s334
    $region4: #{async_tf_base_forward.3} parent=1 // loop_header_branch
      %26 = sbr.rel (%p24) target = $region8
    $region5: #{async_tf_base_forward.3} parent=1 // loop_body
      %s28 = ssub.s32 %s23, 1
      %s29 = ssub.s32 %s23, 2
      %s30 = sadd.s32 %s23, 1
      %s32 = sadd.s32 %s31, 1
      %p35 = scmp.eq.s32.totalorder %s23, 5
      %p36 = scmp.ne.s32.totalorder %s31, %s33
      %p37 = scmp.eq.s32.totalorder %s23, 0
      %p38 = por %p36, %p37
      %p39 = scmp.ne.s32.totalorder %s31, %s33
      %p40 = scmp.eq.s32.totalorder %s28, 5
      %p41 = por %p39, %p40
      %p42 = scmp.ne.s32.totalorder %s33, %s34
      %p43 = scmp.eq.s32.totalorder %s28, 0
      %p44 = por %p42, %p43
      %p45 = scmp.ne.s32.totalorder %s33, %s34
      %p46 = scmp.eq.s32.totalorder %s29, 5
      %p47 = por %p45, %p46
      %p49 = scmp.ne.s32.totalorder %s34, %s48
      %p50 = scmp.eq.s32.totalorder %s29, 0
      %p51 = por %p49, %p50
      %s52 = ssub.s32 %s23, %s30
      %p53 = scmp.eq.s32.totalorder %s52, 0
      %s55 = sadd.s32 %s54, 1
      %s56 = scalar_select %p53, %s54, %s55
      %p59 = pneg %p53
      %p60 = scmp.eq.s32.totalorder %s23, 5
      %p61 = por %p59, %p60
      %p62 = scmp.ne.s32.totalorder %s54, %s57
      %p63 = scmp.eq.s32.totalorder %s23, 0
      %p64 = por %p62, %p63
      %p65 = scmp.ne.s32.totalorder %s54, %s57
      %p66 = scmp.eq.s32.totalorder %s28, 5
      %p67 = por %p65, %p66
      %p68 = scmp.ne.s32.totalorder %s57, %s58
      %p69 = scmp.eq.s32.totalorder %s28, 0
      %p70 = por %p68, %p69
      %p71 = scmp.ne.s32.totalorder %s57, %s58
      %p72 = scmp.eq.s32.totalorder %s29, 5
      %p73 = por %p71, %p72
      %p75 = scmp.ne.s32.totalorder %s58, %s74
      %p76 = scmp.eq.s32.totalorder %s29, 0
      %p77 = por %p75, %p76
      %s79 = sadd.s32 %s78, 1
      %p82 = scmp.eq.s32.totalorder %s23, 5
      %p83 = scmp.ne.s32.totalorder %s78, %s80
      %p84 = scmp.eq.s32.totalorder %s23, 0
      %p85 = por %p83, %p84
      %p86 = scmp.ne.s32.totalorder %s78, %s80
      %p87 = scmp.eq.s32.totalorder %s28, 5
      %p88 = por %p86, %p87
      %p89 = scmp.ne.s32.totalorder %s80, %s81
      %p90 = scmp.eq.s32.totalorder %s28, 0
      %p91 = por %p89, %p90
      %p92 = scmp.ne.s32.totalorder %s80, %s81
      %p93 = scmp.eq.s32.totalorder %s29, 5
      %p94 = por %p92, %p93
      %p96 = scmp.ne.s32.totalorder %s81, %s95
      %p97 = scmp.eq.s32.totalorder %s29, 0
      %p98 = por %p96, %p97
      %s100 = sadd.s32 %s99, 1
      %p103 = scmp.eq.s32.totalorder %s23, 5
      %p104 = scmp.ne.s32.totalorder %s99, %s101
      %p105 = scmp.eq.s32.totalorder %s23, 0
      %p106 = por %p104, %p105
      %p107 = scmp.ne.s32.totalorder %s99, %s101
      %p108 = scmp.eq.s32.totalorder %s28, 5
      %p109 = por %p107, %p108
      %p110 = scmp.ne.s32.totalorder %s101, %s102
      %p111 = scmp.eq.s32.totalorder %s28, 0
      %p112 = por %p110, %p111
      %p113 = scmp.ne.s32.totalorder %s101, %s102
      %p114 = scmp.eq.s32.totalorder %s29, 5
      %p115 = por %p113, %p114
      %p117 = scmp.ne.s32.totalorder %s102, %s116
      %p118 = scmp.eq.s32.totalorder %s29, 0
      %p119 = por %p117, %p118
      %s120 = ssub.s32 %s23, %s30
      %p121 = scmp.eq.s32.totalorder %s120, 0
      %s123 = sadd.s32 %s122, 1
      %s124 = scalar_select %p121, %s122, %s123
      %p127 = pneg %p121
      %p128 = scmp.eq.s32.totalorder %s23, 5
      %p129 = por %p127, %p128
      %p130 = scmp.ne.s32.totalorder %s122, %s125
      %p131 = scmp.eq.s32.totalorder %s23, 0
      %p132 = por %p130, %p131
      %p133 = scmp.ne.s32.totalorder %s122, %s125
      %p134 = scmp.eq.s32.totalorder %s28, 5
      %p135 = por %p133, %p134
      %p136 = scmp.ne.s32.totalorder %s125, %s126
      %p137 = scmp.eq.s32.totalorder %s28, 0
      %p138 = por %p136, %p137
      %p139 = scmp.ne.s32.totalorder %s125, %s126
      %p140 = scmp.eq.s32.totalorder %s29, 5
      %p141 = por %p139, %p140
      %p143 = scmp.ne.s32.totalorder %s126, %s142
      %p144 = scmp.eq.s32.totalorder %s29, 0
      %p145 = por %p143, %p144
      %s146 = ssub.s32 %s23, %s30
      %p147 = scmp.eq.s32.totalorder %s146, 0
      %s149 = sadd.s32 %s148, 1
      %s150 = scalar_select %p147, %s148, %s149
      %p153 = pneg %p147
      %p154 = scmp.eq.s32.totalorder %s23, 5
      %p155 = por %p153, %p154
      %p156 = scmp.ne.s32.totalorder %s148, %s151
      %p157 = scmp.eq.s32.totalorder %s23, 0
      %p158 = por %p156, %p157
      %p159 = scmp.ne.s32.totalorder %s148, %s151
      %p160 = scmp.eq.s32.totalorder %s28, 5
      %p161 = por %p159, %p160
      %p162 = scmp.ne.s32.totalorder %s151, %s152
      %p163 = scmp.eq.s32.totalorder %s28, 0
      %p164 = por %p162, %p163
      %p165 = scmp.ne.s32.totalorder %s151, %s152
      %p166 = scmp.eq.s32.totalorder %s29, 5
      %p167 = por %p165, %p166
      %p169 = scmp.ne.s32.totalorder %s152, %s168
      %p170 = scmp.eq.s32.totalorder %s29, 0
      %p171 = por %p169, %p170
      %s172 = ssub.s32 %s23, %s30
      %p173 = scmp.eq.s32.totalorder %s172, 0
      %s175 = sadd.s32 %s174, 1
      %s176 = scalar_select %p173, %s174, %s175
      %p179 = pneg %p173
      %p180 = scmp.eq.s32.totalorder %s23, 5
      %p181 = por %p179, %p180
      %p182 = scmp.ne.s32.totalorder %s174, %s177
      %p183 = scmp.eq.s32.totalorder %s23, 0
      %p184 = por %p182, %p183
      %p185 = scmp.ne.s32.totalorder %s174, %s177
      %p186 = scmp.eq.s32.totalorder %s28, 5
      %p187 = por %p185, %p186
      %p188 = scmp.ne.s32.totalorder %s177, %s178
      %p189 = scmp.eq.s32.totalorder %s28, 0
      %p190 = por %p188, %p189
      %p191 = scmp.ne.s32.totalorder %s177, %s178
      %p192 = scmp.eq.s32.totalorder %s29, 5
      %p193 = por %p191, %p192
      %p195 = scmp.ne.s32.totalorder %s178, %s194
      %p196 = scmp.eq.s32.totalorder %s29, 0
      %p197 = por %p195, %p196
      %s198 = ssub.s32 %s23, %s30
      %p199 = scmp.eq.s32.totalorder %s198, 0
      %s201 = sadd.s32 %s200, 1
      %s202 = scalar_select %p199, %s200, %s201
      %p205 = pneg %p199
      %p206 = scmp.eq.s32.totalorder %s23, 5
      %p207 = por %p205, %p206
      %p208 = scmp.ne.s32.totalorder %s200, %s203
      %p209 = scmp.eq.s32.totalorder %s23, 0
      %p210 = por %p208, %p209
      %p211 = scmp.ne.s32.totalorder %s200, %s203
      %p212 = scmp.eq.s32.totalorder %s28, 5
      %p213 = por %p211, %p212
      %p214 = scmp.ne.s32.totalorder %s203, %s204
      %p215 = scmp.eq.s32.totalorder %s28, 0
      %p216 = por %p214, %p215
      %p217 = scmp.ne.s32.totalorder %s203, %s204
      %p218 = scmp.eq.s32.totalorder %s29, 5
      %p219 = por %p217, %p218
      %p221 = scmp.ne.s32.totalorder %s204, %s220
      %p222 = scmp.eq.s32.totalorder %s29, 0
      %p223 = por %p221, %p222
      %s224 = ssub.s32 %s23, %s30
      %p225 = scmp.eq.s32.totalorder %s224, 0
      %s227 = sadd.s32 %s226, 1
      %s228 = scalar_select %p225, %s226, %s227
      %p231 = pneg %p225
      %p232 = scmp.eq.s32.totalorder %s23, 5
      %p233 = por %p231, %p232
      %p234 = scmp.ne.s32.totalorder %s226, %s229
      %p235 = scmp.eq.s32.totalorder %s23, 0
      %p236 = por %p234, %p235
      %p237 = scmp.ne.s32.totalorder %s226, %s229
      %p238 = scmp.eq.s32.totalorder %s28, 5
      %p239 = por %p237, %p238
      %p240 = scmp.ne.s32.totalorder %s229, %s230
      %p241 = scmp.eq.s32.totalorder %s28, 0
      %p242 = por %p240, %p241
      %p243 = scmp.ne.s32.totalorder %s229, %s230
      %p244 = scmp.eq.s32.totalorder %s29, 5
      %p245 = por %p243, %p244
      %p247 = scmp.ne.s32.totalorder %s230, %s246
      %p248 = scmp.eq.s32.totalorder %s29, 0
      %p249 = por %p247, %p248
      %s250 = ssub.s32 %s23, %s30
      %p251 = scmp.eq.s32.totalorder %s250, 0
      %s253 = sadd.s32 %s252, 1
      %s254 = scalar_select %p251, %s252, %s253
      %p257 = pneg %p251
      %p258 = scmp.eq.s32.totalorder %s23, 5
      %p259 = por %p257, %p258
      %p260 = scmp.ne.s32.totalorder %s252, %s255
      %p261 = scmp.eq.s32.totalorder %s23, 0
      %p262 = por %p260, %p261
      %p263 = scmp.ne.s32.totalorder %s252, %s255
      %p264 = scmp.eq.s32.totalorder %s28, 5
      %p265 = por %p263, %p264
      %p266 = scmp.ne.s32.totalorder %s255, %s256
      %p267 = scmp.eq.s32.totalorder %s28, 0
      %p268 = por %p266, %p267
      %p269 = scmp.ne.s32.totalorder %s255, %s256
      %p270 = scmp.eq.s32.totalorder %s29, 5
      %p271 = por %p269, %p270
      %p273 = scmp.ne.s32.totalorder %s256, %s272
      %p274 = scmp.eq.s32.totalorder %s29, 0
      %p275 = por %p273, %p274
      %s276 = ssub.s32 %s23, %s30
      %p277 = scmp.eq.s32.totalorder %s276, 0
      %s279 = sadd.s32 %s278, 1
      %s280 = scalar_select %p277, %s278, %s279
      %p283 = pneg %p277
      %p284 = scmp.eq.s32.totalorder %s23, 5
      %p285 = por %p283, %p284
      %p286 = scmp.ne.s32.totalorder %s278, %s281
      %p287 = scmp.eq.s32.totalorder %s23, 0
      %p288 = por %p286, %p287
      %p289 = scmp.ne.s32.totalorder %s278, %s281
      %p290 = scmp.eq.s32.totalorder %s28, 5
      %p291 = por %p289, %p290
      %p292 = scmp.ne.s32.totalorder %s281, %s282
      %p293 = scmp.eq.s32.totalorder %s28, 0
      %p294 = por %p292, %p293
      %p295 = scmp.ne.s32.totalorder %s281, %s282
      %p296 = scmp.eq.s32.totalorder %s29, 5
      %p297 = por %p295, %p296
      %p299 = scmp.ne.s32.totalorder %s282, %s298
      %p300 = scmp.eq.s32.totalorder %s29, 0
      %p301 = por %p299, %p300
      %s302 = ssub.s32 %s23, %s30
      %p303 = scmp.eq.s32.totalorder %s302, 0
      %s305 = sadd.s32 %s304, 1
      %s306 = scalar_select %p303, %s304, %s305
      %p309 = pneg %p303
      %p310 = scmp.eq.s32.totalorder %s23, 5
      %p311 = por %p309, %p310
      %p312 = scmp.ne.s32.totalorder %s304, %s307
      %p313 = scmp.eq.s32.totalorder %s23, 0
      %p314 = por %p312, %p313
      %p315 = scmp.ne.s32.totalorder %s304, %s307
      %p316 = scmp.eq.s32.totalorder %s28, 5
      %p317 = por %p315, %p316
      %p318 = scmp.ne.s32.totalorder %s307, %s308
      %p319 = scmp.eq.s32.totalorder %s28, 0
      %p320 = por %p318, %p319
      %p321 = scmp.ne.s32.totalorder %s307, %s308
      %p322 = scmp.eq.s32.totalorder %s29, 5
      %p323 = por %p321, %p322
      %p325 = scmp.ne.s32.totalorder %s308, %s324
      %p326 = scmp.eq.s32.totalorder %s29, 0
      %p327 = por %p325, %p326
      %s328 = ssub.s32 %s23, %s30
      %p329 = scmp.eq.s32.totalorder %s328, 0
      %s331 = sadd.s32 %s330, 1
      %s332 = scalar_select %p329, %s330, %s331
      %p335 = pneg %p329
      %p336 = scmp.eq.s32.totalorder %s23, 5
      %p337 = por %p335, %p336
      %p338 = scmp.ne.s32.totalorder %s330, %s333
      %p339 = scmp.eq.s32.totalorder %s23, 0
      %p340 = por %p338, %p339
      %p341 = scmp.ne.s32.totalorder %s330, %s333
      %p342 = scmp.eq.s32.totalorder %s28, 5
      %p343 = por %p341, %p342
      %p344 = scmp.ne.s32.totalorder %s333, %s334
      %p345 = scmp.eq.s32.totalorder %s28, 0
      %p346 = por %p344, %p345
      %p347 = scmp.ne.s32.totalorder %s333, %s334
      %p348 = scmp.eq.s32.totalorder %s29, 5
      %p349 = por %p347, %p348
      %p351 = scmp.ne.s32.totalorder %s334, %s350
      %p352 = scmp.eq.s32.totalorder %s29, 0
      %p353 = por %p351, %p352
      %p354 = scmp.le.s32.totalorder 1, %s23
      %p355 = scmp.lt.s32.totalorder %s23, 7
      %p356 = pnand %p354, %p355
      %p357 = pneg %p356
      // Predicated region
      $region9: #{async_tf_base_forward.3} parent=5 // pred_check
        _
      $region10: #{async_tf_base_forward.3} parent=5 // pred_check_branch
        %359 = sbr.rel (%p356) target = $region12
      $region11: #{async_tf_base_forward.3} parent=5 // pred_region
        %s360 = ssub.s32 %s23, 1
        // Predicated region
        $region13: #{async_tf_base_forward.3} parent=11 // pred_check
          %p361 = pneg %p44
        $region14: #{async_tf_base_forward.3} parent=11 // pred_check_branch
          %363 = sbr.rel (%p361) target = $region16
        $region15: #{async_tf_base_forward.3} parent=11 // pred_region
          %s365 = ssub.s32 128, 128
          %366 = vsyncadd [#allocation3], %s365
          %s368 = sshll.u32 [#allocation2], 4
          %s369 = int_to_ptr.vmem [resolvable:$true] %s368
          %371 = dma.hbm_to_vmem [thread:$0]  %s0, 128, %s369, [#allocation3]
        $region16: #{async_tf_base_forward.3} parent=11 // pred_fallthru
          _
        // Predicated region
        $region17: #{async_tf_base_forward.3} parent=11 // pred_check
          %p372 = pneg %p91
        $region18: #{async_tf_base_forward.3} parent=11 // pred_check_branch
          %374 = sbr.rel (%p372) target = $region20
        $region19: #{async_tf_base_forward.3} parent=11 // pred_region
          %s376 = ssub.s32 20480, 20480
          %377 = vsyncadd [#allocation5], %s376
          %s378 = sshll.u32 [#allocation6], 4
          %s379 = int_to_ptr.vmem [resolvable:$true] %s378
          %384 = dma.hbm_to_vmem [thread:$0]  %s2, 20480, %s379, [#allocation5], 1280, 1280, 80
        $region20: #{async_tf_base_forward.3} parent=11 // pred_fallthru
          _
        // Predicated region
        $region21: #{async_tf_base_forward.3} parent=11 // pred_check
          %p385 = pneg %p112
        $region22: #{async_tf_base_forward.3} parent=11 // pred_check_branch
          %387 = sbr.rel (%p385) target = $region24
        $region23: #{async_tf_base_forward.3} parent=11 // pred_region
          %s389 = ssub.s32 20480, 20480
          %390 = vsyncadd [#allocation8], %s389
          %s391 = sshll.u32 [#allocation7], 4
          %s392 = int_to_ptr.vmem [resolvable:$true] %s391
          %397 = dma.hbm_to_vmem [thread:$0]  %s3, 20480, %s392, [#allocation8], 1280, 1280, 80
        $region24: #{async_tf_base_forward.3} parent=11 // pred_fallthru
          _
      $region12: #{async_tf_base_forward.3} parent=5 // pred_fallthru
        _
      %p398 = scmp.lt.s32.totalorder %s23, 6
      // Predicated region
      $region25: #{async_tf_base_forward.3} parent=5 // pred_check
        %p399 = pneg %p398
      $region26: #{async_tf_base_forward.3} parent=5 // pred_check_branch
        %401 = sbr.rel (%p399) target = $region28
      $region27: #{async_tf_base_forward.3} parent=5 // pred_region
        // Predicated region
        $region29: #{async_tf_base_forward.3} parent=27 // pred_check
          %p402 = pneg %p64
        $region30: #{async_tf_base_forward.3} parent=27 // pred_check_branch
          %404 = sbr.rel (%p402) target = $region32
        $region31: #{async_tf_base_forward.3} parent=27 // pred_region
          %s405 = sand.u32 %s23, 1
          %s406 = scalar_lea.sflag [#allocation5], %s405
          %s407 = sand.u32 %s54, 1
          %s408 = smul.addr %s407, 16
          %s409 = scalar_lea.vmem [#allocation4], %s408
          %s410 = smul.u32 2, %s23
          %s412 = ssub.s32 256, 256
          %413 = vsyncadd %s406, %s412
          %s414 = smul.addr %s410, 128
          %s415 = scalar_lea.hbm %s1, %s414
          %s416 = sshll.u32 %s409, 4
          %s417 = int_to_ptr.vmem [resolvable:$true] %s416
          %422 = dma.hbm_to_vmem [thread:$0]  %s415, 256, %s417, %s406, 128, 128, 8
        $region32: #{async_tf_base_forward.3} parent=27 // pred_fallthru
          _
        // Predicated region
        $region33: #{async_tf_base_forward.3} parent=27 // pred_check
          %p423 = pneg %p132
        $region34: #{async_tf_base_forward.3} parent=27 // pred_check_branch
          %425 = sbr.rel (%p423) target = $region36
        $region35: #{async_tf_base_forward.3} parent=27 // pred_region
          %s426 = sand.u32 %s23, 1
          %s427 = scalar_lea.sflag [#allocation3], %s426
          %s428 = sand.u32 %s122, 1
          %s429 = smul.addr %s428, 256
          %s430 = scalar_lea.vmem [#allocation9], %s429
          %s431 = smul.u32 2, %s23
          %s433 = ssub.s32 4096, 4096
          %434 = vsyncadd %s427, %s433
          %s435 = smul.addr %s431, 32
          %s436 = smul.addr %s435, 64
          %s437 = scalar_lea.hbm %s4, %s436
          %s438 = sshll.u32 %s430, 4
          %s439 = int_to_ptr.vmem [resolvable:$true] %s438
          %444 = dma.hbm_to_vmem [thread:$0]  %s437, 4096, %s439, %s427, 512, 512, 32
        $region36: #{async_tf_base_forward.3} parent=27 // pred_fallthru
          _
        // Predicated region
        $region37: #{async_tf_base_forward.3} parent=27 // pred_check
          %p445 = pneg %p158
        $region38: #{async_tf_base_forward.3} parent=27 // pred_check_branch
          %447 = sbr.rel (%p445) target = $region40
        $region39: #{async_tf_base_forward.3} parent=27 // pred_region
          %s448 = sand.u32 %s23, 1
          %s449 = scalar_lea.sflag [#allocation5], %s448
          %s450 = sand.u32 %s148, 1
          %s451 = smul.addr %s450, 16
          %s452 = scalar_lea.vmem [#allocation10], %s451
          %s453 = smul.u32 2, %s23
          %s455 = ssub.s32 256, 256
          %456 = vsyncadd %s449, %s455
          %s457 = smul.addr %s453, 8
          %s458 = smul.addr %s457, 16
          %s459 = scalar_lea.hbm %s5, %s458
          %s460 = sshll.u32 %s452, 4
          %s461 = int_to_ptr.vmem [resolvable:$true] %s460
          %466 = dma.hbm_to_vmem [thread:$0]  %s459, 256, %s461, %s449, 128, 128, 8
        $region40: #{async_tf_base_forward.3} parent=27 // pred_fallthru
          _
        // Predicated region
        $region41: #{async_tf_base_forward.3} parent=27 // pred_check
          %p467 = pneg %p184
        $region42: #{async_tf_base_forward.3} parent=27 // pred_check_branch
          %469 = sbr.rel (%p467) target = $region44
        $region43: #{async_tf_base_forward.3} parent=27 // pred_region
          %s470 = sand.u32 %s23, 1
          %s471 = scalar_lea.sflag [#allocation3], %s470
          %s472 = sand.u32 %s174, 1
          %s473 = smul.addr %s472, 1024
          %s474 = scalar_lea.vmem [#allocation11], %s473
          %s475 = smul.u32 2, %s23
          %s477 = ssub.s32 16384, 16384
          %478 = vsyncadd %s471, %s477
          %s479 = smul.addr %s475, 128
          %s480 = smul.addr %s479, 64
          %s481 = scalar_lea.hbm %s6, %s480
          %s482 = sshll.u32 %s474, 4
          %s483 = int_to_ptr.vmem [resolvable:$true] %s482
          %488 = dma.hbm_to_vmem [thread:$0]  %s481, 16384, %s483, %s471, 64, 64, 4
        $region44: #{async_tf_base_forward.3} parent=27 // pred_fallthru
          _
        // Predicated region
        $region45: #{async_tf_base_forward.3} parent=27 // pred_check
          %p489 = pneg %p210
        $region46: #{async_tf_base_forward.3} parent=27 // pred_check_branch
          %491 = sbr.rel (%p489) target = $region48
        $region47: #{async_tf_base_forward.3} parent=27 // pred_region
          %s492 = sand.u32 %s23, 1
          %s493 = scalar_lea.sflag [#allocation5], %s492
          %s494 = sand.u32 %s200, 1
          %s495 = smul.addr %s494, 2
          %s496 = scalar_lea.vmem [#allocation12], %s495
          %s497 = smul.u32 2, %s23
          %s499 = ssub.s32 32, 32
          %500 = vsyncadd %s493, %s499
          %s501 = smul.addr %s497, 16
          %s502 = scalar_lea.hbm %s7, %s501
          %s503 = sshll.u32 %s496, 4
          %s504 = int_to_ptr.vmem [resolvable:$true] %s503
          %509 = dma.hbm_to_vmem [thread:$0]  %s502, 32, %s504, %s493, 16, 16, 1
        $region48: #{async_tf_base_forward.3} parent=27 // pred_fallthru
          _
        // Predicated region
        $region49: #{async_tf_base_forward.3} parent=27 // pred_check
          %p510 = pneg %p236
        $region50: #{async_tf_base_forward.3} parent=27 // pred_check_branch
          %512 = sbr.rel (%p510) target = $region52
        $region51: #{async_tf_base_forward.3} parent=27 // pred_region
          %s513 = sand.u32 %s23, 1
          %s514 = scalar_lea.sflag [#allocation3], %s513
          %s515 = sand.u32 %s226, 1
          %s516 = smul.addr %s515, 256
          %s517 = scalar_lea.vmem [#allocation13], %s516
          %s518 = smul.u32 2, %s23
          %s520 = ssub.s32 4096, 4096
          %521 = vsyncadd %s514, %s520
          %s522 = smul.addr %s518, 32
          %s523 = smul.addr %s522, 64
          %s524 = scalar_lea.hbm %s8, %s523
          %s525 = sshll.u32 %s517, 4
          %s526 = int_to_ptr.vmem [resolvable:$true] %s525
          %531 = dma.hbm_to_vmem [thread:$0]  %s524, 4096, %s526, %s514, 512, 512, 32
        $region52: #{async_tf_base_forward.3} parent=27 // pred_fallthru
          _
        // Predicated region
        $region53: #{async_tf_base_forward.3} parent=27 // pred_check
          %p532 = pneg %p262
        $region54: #{async_tf_base_forward.3} parent=27 // pred_check_branch
          %534 = sbr.rel (%p532) target = $region56
        $region55: #{async_tf_base_forward.3} parent=27 // pred_region
          %s535 = sand.u32 %s23, 1
          %s536 = scalar_lea.sflag [#allocation5], %s535
          %s537 = sand.u32 %s252, 1
          %s538 = smul.addr %s537, 16
          %s539 = scalar_lea.vmem [#allocation14], %s538
          %s540 = smul.u32 2, %s23
          %s542 = ssub.s32 256, 256
          %543 = vsyncadd %s536, %s542
          %s544 = smul.addr %s540, 8
          %s545 = smul.addr %s544, 16
          %s546 = scalar_lea.hbm %s9, %s545
          %s547 = sshll.u32 %s539, 4
          %s548 = int_to_ptr.vmem [resolvable:$true] %s547
          %553 = dma.hbm_to_vmem [thread:$0]  %s546, 256, %s548, %s536, 128, 128, 8
        $region56: #{async_tf_base_forward.3} parent=27 // pred_fallthru
          _
        // Predicated region
        $region57: #{async_tf_base_forward.3} parent=27 // pred_check
          %p554 = pneg %p288
        $region58: #{async_tf_base_forward.3} parent=27 // pred_check_branch
          %556 = sbr.rel (%p554) target = $region60
        $region59: #{async_tf_base_forward.3} parent=27 // pred_region
          %s557 = sand.u32 %s23, 1
          %s558 = scalar_lea.sflag [#allocation3], %s557
          %s559 = sand.u32 %s278, 1
          %s560 = smul.addr %s559, 1024
          %s561 = scalar_lea.vmem [#allocation15], %s560
          %s562 = smul.u32 2, %s23
          %s564 = ssub.s32 16384, 16384
          %565 = vsyncadd %s558, %s564
          %s566 = smul.addr %s562, 128
          %s567 = smul.addr %s566, 64
          %s568 = scalar_lea.hbm %s10, %s567
          %s569 = sshll.u32 %s561, 4
          %s570 = int_to_ptr.vmem [resolvable:$true] %s569
          %575 = dma.hbm_to_vmem [thread:$0]  %s568, 16384, %s570, %s558, 64, 64, 4
        $region60: #{async_tf_base_forward.3} parent=27 // pred_fallthru
          _
        // Predicated region
        $region61: #{async_tf_base_forward.3} parent=27 // pred_check
          %p576 = pneg %p314
        $region62: #{async_tf_base_forward.3} parent=27 // pred_check_branch
          %578 = sbr.rel (%p576) target = $region64
        $region63: #{async_tf_base_forward.3} parent=27 // pred_region
          %s579 = sand.u32 %s23, 1
          %s580 = scalar_lea.sflag [#allocation5], %s579
          %s581 = sand.u32 %s304, 1
          %s582 = smul.addr %s581, 2
          %s583 = scalar_lea.vmem [#allocation16], %s582
          %s584 = smul.u32 2, %s23
          %s586 = ssub.s32 32, 32
          %587 = vsyncadd %s580, %s586
          %s588 = smul.addr %s584, 16
          %s589 = scalar_lea.hbm %s11, %s588
          %s590 = sshll.u32 %s583, 4
          %s591 = int_to_ptr.vmem [resolvable:$true] %s590
          %596 = dma.hbm_to_vmem [thread:$0]  %s589, 32, %s591, %s580, 16, 16, 1
        $region64: #{async_tf_base_forward.3} parent=27 // pred_fallthru
          _
      $region28: #{async_tf_base_forward.3} parent=5 // pred_fallthru
        _
      %p597 = scmp.le.s32.totalorder 1, %s23
      %p598 = scmp.lt.s32.totalorder %s23, 7
      %p599 = pnand %p597, %p598
      %p600 = pneg %p599
      // Predicated region
      $region65: #{async_tf_base_forward.3} parent=5 // pred_check
        _
      $region66: #{async_tf_base_forward.3} parent=5 // pred_check_branch
        %602 = sbr.rel (%p599) target = $region68
      $region67: #{async_tf_base_forward.3} parent=5 // pred_region
        %s603 = ssub.s32 %s23, 1
        // Predicated region
        $region69: #{async_tf_base_forward.3} parent=67 // pred_check
          %p604 = pneg %p44
        $region70: #{async_tf_base_forward.3} parent=67 // pred_check_branch
          %606 = sbr.rel (%p604) target = $region72
        $region71: #{async_tf_base_forward.3} parent=67 // pred_region
          %607 = dma.done [#allocation3], 128
        $region72: #{async_tf_base_forward.3} parent=67 // pred_fallthru
          _
        %s608 = sand.u32 %s28, 1
        %s609 = scalar_lea.sflag [#allocation5], %s608
        %s610 = sand.u32 %s57, 1
        %s611 = smul.addr %s610, 16
        %s612 = scalar_lea.vmem [#allocation4], %s611
        // Predicated region
        $region73: #{async_tf_base_forward.3} parent=67 // pred_check
          %p613 = pneg %p70
        $region74: #{async_tf_base_forward.3} parent=67 // pred_check_branch
          %615 = sbr.rel (%p613) target = $region76
        $region75: #{async_tf_base_forward.3} parent=67 // pred_region
          %616 = dma.done %s609, 256
        $region76: #{async_tf_base_forward.3} parent=67 // pred_fallthru
          _
        // Predicated region
        $region77: #{async_tf_base_forward.3} parent=67 // pred_check
          %p617 = pneg %p91
        $region78: #{async_tf_base_forward.3} parent=67 // pred_check_branch
          %619 = sbr.rel (%p617) target = $region80
        $region79: #{async_tf_base_forward.3} parent=67 // pred_region
          %620 = dma.done [#allocation5], 20480
        $region80: #{async_tf_base_forward.3} parent=67 // pred_fallthru
          _
        // Predicated region
        $region81: #{async_tf_base_forward.3} parent=67 // pred_check
          %p621 = pneg %p112
        $region82: #{async_tf_base_forward.3} parent=67 // pred_check_branch
          %623 = sbr.rel (%p621) target = $region84
        $region83: #{async_tf_base_forward.3} parent=67 // pred_region
          %624 = dma.done [#allocation8], 20480
        $region84: #{async_tf_base_forward.3} parent=67 // pred_fallthru
          _
        %s625 = sand.u32 %s28, 1
        %s626 = scalar_lea.sflag [#allocation3], %s625
        %s627 = sand.u32 %s125, 1
        %s628 = smul.addr %s627, 256
        %s629 = scalar_lea.vmem [#allocation9], %s628
        // Predicated region
        $region85: #{async_tf_base_forward.3} parent=67 // pred_check
          %p630 = pneg %p138
        $region86: #{async_tf_base_forward.3} parent=67 // pred_check_branch
          %632 = sbr.rel (%p630) target = $region88
        $region87: #{async_tf_base_forward.3} parent=67 // pred_region
          %633 = dma.done %s626, 4096
        $region88: #{async_tf_base_forward.3} parent=67 // pred_fallthru
          _
        %s634 = sand.u32 %s28, 1
        %s635 = scalar_lea.sflag [#allocation5], %s634
        %s636 = sand.u32 %s151, 1
        %s637 = smul.addr %s636, 16
        %s638 = scalar_lea.vmem [#allocation10], %s637
        // Predicated region
        $region89: #{async_tf_base_forward.3} parent=67 // pred_check
          %p639 = pneg %p164
        $region90: #{async_tf_base_forward.3} parent=67 // pred_check_branch
          %641 = sbr.rel (%p639) target = $region92
        $region91: #{async_tf_base_forward.3} parent=67 // pred_region
          %642 = dma.done %s635, 256
        $region92: #{async_tf_base_forward.3} parent=67 // pred_fallthru
          _
        %s643 = sand.u32 %s28, 1
        %s644 = scalar_lea.sflag [#allocation3], %s643
        %s645 = sand.u32 %s177, 1
        %s646 = smul.addr %s645, 1024
        %s647 = scalar_lea.vmem [#allocation11], %s646
        // Predicated region
        $region93: #{async_tf_base_forward.3} parent=67 // pred_check
          %p648 = pneg %p190
        $region94: #{async_tf_base_forward.3} parent=67 // pred_check_branch
          %650 = sbr.rel (%p648) target = $region96
        $region95: #{async_tf_base_forward.3} parent=67 // pred_region
          %651 = dma.done %s644, 16384
        $region96: #{async_tf_base_forward.3} parent=67 // pred_fallthru
          _
        %s652 = sand.u32 %s28, 1
        %s653 = scalar_lea.sflag [#allocation5], %s652
        %s654 = sand.u32 %s203, 1
        %s655 = smul.addr %s654, 2
        %s656 = scalar_lea.vmem [#allocation12], %s655
        // Predicated region
        $region97: #{async_tf_base_forward.3} parent=67 // pred_check
          %p657 = pneg %p216
        $region98: #{async_tf_base_forward.3} parent=67 // pred_check_branch
          %659 = sbr.rel (%p657) target = $region100
        $region99: #{async_tf_base_forward.3} parent=67 // pred_region
          %660 = dma.done %s653, 32
        $region100: #{async_tf_base_forward.3} parent=67 // pred_fallthru
          _
        %s661 = sand.u32 %s28, 1
        %s662 = scalar_lea.sflag [#allocation3], %s661
        %s663 = sand.u32 %s229, 1
        %s664 = smul.addr %s663, 256
        %s665 = scalar_lea.vmem [#allocation13], %s664
        // Predicated region
        $region101: #{async_tf_base_forward.3} parent=67 // pred_check
          %p666 = pneg %p242
        $region102: #{async_tf_base_forward.3} parent=67 // pred_check_branch
          %668 = sbr.rel (%p666) target = $region104
        $region103: #{async_tf_base_forward.3} parent=67 // pred_region
          %669 = dma.done %s662, 4096
        $region104: #{async_tf_base_forward.3} parent=67 // pred_fallthru
          _
        %s670 = sand.u32 %s28, 1
        %s671 = scalar_lea.sflag [#allocation5], %s670
        %s672 = sand.u32 %s255, 1
        %s673 = smul.addr %s672, 16
        %s674 = scalar_lea.vmem [#allocation14], %s673
        // Predicated region
        $region105: #{async_tf_base_forward.3} parent=67 // pred_check
          %p675 = pneg %p268
        $region106: #{async_tf_base_forward.3} parent=67 // pred_check_branch
          %677 = sbr.rel (%p675) target = $region108
        $region107: #{async_tf_base_forward.3} parent=67 // pred_region
          %678 = dma.done %s671, 256
        $region108: #{async_tf_base_forward.3} parent=67 // pred_fallthru
          _
        %s679 = sand.u32 %s28, 1
        %s680 = scalar_lea.sflag [#allocation3], %s679
        %s681 = sand.u32 %s281, 1
        %s682 = smul.addr %s681, 1024
        %s683 = scalar_lea.vmem [#allocation15], %s682
        // Predicated region
        $region109: #{async_tf_base_forward.3} parent=67 // pred_check
          %p684 = pneg %p294
        $region110: #{async_tf_base_forward.3} parent=67 // pred_check_branch
          %686 = sbr.rel (%p684) target = $region112
        $region111: #{async_tf_base_forward.3} parent=67 // pred_region
          %687 = dma.done %s680, 16384
        $region112: #{async_tf_base_forward.3} parent=67 // pred_fallthru
          _
        %s688 = sand.u32 %s28, 1
        %s689 = scalar_lea.sflag [#allocation5], %s688
        %s690 = sand.u32 %s307, 1
        %s691 = smul.addr %s690, 2
        %s692 = scalar_lea.vmem [#allocation16], %s691
        // Predicated region
        $region113: #{async_tf_base_forward.3} parent=67 // pred_check
          %p693 = pneg %p320
        $region114: #{async_tf_base_forward.3} parent=67 // pred_check_branch
          %695 = sbr.rel (%p693) target = $region116
        $region115: #{async_tf_base_forward.3} parent=67 // pred_region
          %696 = dma.done %s689, 32
        $region116: #{async_tf_base_forward.3} parent=67 // pred_fallthru
          _
        %p697 = pneg %p44
        %p698 = pneg %p41
        %s699 = sand.u32 %s28, 1
        %s700 = scalar_lea.sflag [#allocation5], %s699
        %s701 = sand.u32 %s57, 1
        %s702 = smul.addr %s701, 16
        %s703 = scalar_lea.vmem [#allocation4], %s702
        %p704 = pneg %p70
        %p705 = pneg %p67
        %p706 = pneg %p91
        %p707 = pneg %p88
        %p708 = pneg %p112
        %p709 = pneg %p109
        %s710 = sand.u32 %s28, 1
        %s711 = scalar_lea.sflag [#allocation3], %s710
        %s712 = sand.u32 %s125, 1
        %s713 = smul.addr %s712, 256
        %s714 = scalar_lea.vmem [#allocation9], %s713
        %p715 = pneg %p138
        %p716 = pneg %p135
        %s717 = sand.u32 %s28, 1
        %s718 = scalar_lea.sflag [#allocation5], %s717
        %s719 = sand.u32 %s151, 1
        %s720 = smul.addr %s719, 16
        %s721 = scalar_lea.vmem [#allocation10], %s720
        %p722 = pneg %p164
        %p723 = pneg %p161
        %s724 = sand.u32 %s28, 1
        %s725 = scalar_lea.sflag [#allocation3], %s724
        %s726 = sand.u32 %s177, 1
        %s727 = smul.addr %s726, 1024
        %s728 = scalar_lea.vmem [#allocation11], %s727
        %p729 = pneg %p190
        %p730 = pneg %p187
        %s731 = sand.u32 %s28, 1
        %s732 = scalar_lea.sflag [#allocation5], %s731
        %s733 = sand.u32 %s203, 1
        %s734 = smul.addr %s733, 2
        %s735 = scalar_lea.vmem [#allocation12], %s734
        %p736 = pneg %p216
        %p737 = pneg %p213
        %s738 = sand.u32 %s28, 1
        %s739 = scalar_lea.sflag [#allocation3], %s738
        %s740 = sand.u32 %s229, 1
        %s741 = smul.addr %s740, 256
        %s742 = scalar_lea.vmem [#allocation13], %s741
        %p743 = pneg %p242
        %p744 = pneg %p239
        %s745 = sand.u32 %s28, 1
        %s746 = scalar_lea.sflag [#allocation5], %s745
        %s747 = sand.u32 %s255, 1
        %s748 = smul.addr %s747, 16
        %s749 = scalar_lea.vmem [#allocation14], %s748
        %p750 = pneg %p268
        %p751 = pneg %p265
        %s752 = sand.u32 %s28, 1
        %s753 = scalar_lea.sflag [#allocation3], %s752
        %s754 = sand.u32 %s281, 1
        %s755 = smul.addr %s754, 1024
        %s756 = scalar_lea.vmem [#allocation15], %s755
        %p757 = pneg %p294
        %p758 = pneg %p291
        %s759 = sand.u32 %s28, 1
        %s760 = scalar_lea.sflag [#allocation5], %s759
        %s761 = sand.u32 %s307, 1
        %s762 = smul.addr %s761, 2
        %s763 = scalar_lea.vmem [#allocation16], %s762
        %p764 = pneg %p320
        %p765 = pneg %p317
        %p766 = pneg %p346
        %p767 = pneg %p343
        %s768 = smul.u32 2, %s28
        %p769 = scmp.lt.s32.totalorder %s768, 11
        %s770 = scalar_select %p769, %s768, 11
        %s771 = smul.addr %s770, 2
        %s772 = smul.addr %s771, 8
        %s773 = scalar_lea.vmem %s12, %s772
        %s774 = smul.u32 2, %s28
        %s775 = smul.u32 2, %s28
        %s776 = smul.u32 2, %s28
        %s777 = smul.u32 2, %s28
        %s778 = smul.u32 2, %s28
        %s779 = smul.u32 2, %s28
        %s780 = smul.u32 2, %s28
        %s781 = smul.u32 2, %s28
        %s782 = smul.u32 2, %s28
        %s783 = smul.u32 2, %s28
        %p784 = scmp.lt.s32.totalorder %s783, 11
        %s785 = scalar_select %p784, %s783, 11
        %s786 = smul.addr %s785, 2
        %s787 = smul.addr %s786, 8
        %s788 = scalar_lea.vmem %s12, %s787
        %s789 = smul.u32 2, %s28
        %v790 = vld [vmem:[#allocation2] sm:$0xff]
        %v791 = vld [vmem:[#allocation6] sm:$0xff]
        %v792 = vld [vmem:[#allocation6 + $0x8] sm:$0xff]
        %v793 = vld [vmem:[#allocation6 + $0x10] sm:$0xff]
        %v794 = vld [vmem:[#allocation6 + $0x18] sm:$0xff]
        %v795 = vld [vmem:[#allocation6 + $0x20] sm:$0xff]
        %v796 = vld [vmem:[#allocation6 + $0x28] sm:$0xff]
        %v797 = vld [vmem:[#allocation6 + $0x30] sm:$0xff]
        %v798 = vld [vmem:[#allocation6 + $0x38] sm:$0xff]
        %v799 = vld [vmem:[#allocation6 + $0x40] sm:$0xff]
        %v800 = vld [vmem:[#allocation6 + $0x48] sm:$0xff]
        %v801 = vld [vmem:[#allocation6 + $0x50] sm:$0xff]
        %v802 = vld [vmem:[#allocation6 + $0x58] sm:$0xff]
        %v803 = vld [vmem:[#allocation6 + $0x60] sm:$0xff]
        %v804 = vld [vmem:[#allocation6 + $0x68] sm:$0xff]
        %v805 = vld [vmem:[#allocation6 + $0x70] sm:$0xff]
        %v806 = vld [vmem:[#allocation6 + $0x78] sm:$0xff]
        %v807 = vld [vmem:[#allocation6 + $0x80] sm:$0xff]
        %v808 = vld [vmem:[#allocation6 + $0x88] sm:$0xff]
        %v809 = vld [vmem:[#allocation6 + $0x90] sm:$0xff]
        %v810 = vld [vmem:[#allocation6 + $0x98] sm:$0xff]
        %v811 = vld [vmem:[#allocation6 + $0xa0] sm:$0xff]
        %v812 = vld [vmem:[#allocation6 + $0xa8] sm:$0xff]
        %v813 = vld [vmem:[#allocation6 + $0xb0] sm:$0xff]
        %v814 = vld [vmem:[#allocation6 + $0xb8] sm:$0xff]
        %v815 = vld [vmem:[#allocation6 + $0xc0] sm:$0xff]
        %v816 = vld [vmem:[#allocation6 + $0xc8] sm:$0xff]
        %v817 = vld [vmem:[#allocation6 + $0xd0] sm:$0xff]
        %v818 = vld [vmem:[#allocation6 + $0xd8] sm:$0xff]
        %v819 = vld [vmem:[#allocation6 + $0xe0] sm:$0xff]
        %v820 = vld [vmem:[#allocation6 + $0xe8] sm:$0xff]
        %v821 = vld [vmem:[#allocation6 + $0xf0] sm:$0xff]
        %v822 = vld [vmem:[#allocation6 + $0xf8] sm:$0xff]
        %v823 = vld [vmem:[#allocation6 + $0x100] sm:$0xff]
        %v824 = vld [vmem:[#allocation6 + $0x108] sm:$0xff]
        %v825 = vld [vmem:[#allocation6 + $0x110] sm:$0xff]
        %v826 = vld [vmem:[#allocation6 + $0x118] sm:$0xff]
        %v827 = vld [vmem:[#allocation6 + $0x120] sm:$0xff]
        %v828 = vld [vmem:[#allocation6 + $0x128] sm:$0xff]
        %v829 = vld [vmem:[#allocation6 + $0x130] sm:$0xff]
        %v830 = vld [vmem:[#allocation6 + $0x138] sm:$0xff]
        %v831 = vld [vmem:[#allocation6 + $0x140] sm:$0xff]
        %v832 = vld [vmem:[#allocation6 + $0x148] sm:$0xff]
        %v833 = vld [vmem:[#allocation6 + $0x150] sm:$0xff]
        %v834 = vld [vmem:[#allocation6 + $0x158] sm:$0xff]
        %v835 = vld [vmem:[#allocation6 + $0x160] sm:$0xff]
        %v836 = vld [vmem:[#allocation6 + $0x168] sm:$0xff]
        %v837 = vld [vmem:[#allocation6 + $0x170] sm:$0xff]
        %v838 = vld [vmem:[#allocation6 + $0x178] sm:$0xff]
        %v839 = vld [vmem:[#allocation6 + $0x180] sm:$0xff]
        %v840 = vld [vmem:[#allocation6 + $0x188] sm:$0xff]
        %v841 = vld [vmem:[#allocation6 + $0x190] sm:$0xff]
        %v842 = vld [vmem:[#allocation6 + $0x198] sm:$0xff]
        %v843 = vld [vmem:[#allocation6 + $0x1a0] sm:$0xff]
        %v844 = vld [vmem:[#allocation6 + $0x1a8] sm:$0xff]
        %v845 = vld [vmem:[#allocation6 + $0x1b0] sm:$0xff]
        %v846 = vld [vmem:[#allocation6 + $0x1b8] sm:$0xff]
        %v847 = vld [vmem:[#allocation6 + $0x1c0] sm:$0xff]
        %v848 = vld [vmem:[#allocation6 + $0x1c8] sm:$0xff]
        %v849 = vld [vmem:[#allocation6 + $0x1d0] sm:$0xff]
        %v850 = vld [vmem:[#allocation6 + $0x1d8] sm:$0xff]
        %v851 = vld [vmem:[#allocation6 + $0x1e0] sm:$0xff]
        %v852 = vld [vmem:[#allocation6 + $0x1e8] sm:$0xff]
        %v853 = vld [vmem:[#allocation6 + $0x1f0] sm:$0xff]
        %v854 = vld [vmem:[#allocation6 + $0x1f8] sm:$0xff]
        %v855 = vld [vmem:[#allocation6 + $0x200] sm:$0xff]
        %v856 = vld [vmem:[#allocation6 + $0x208] sm:$0xff]
        %v857 = vld [vmem:[#allocation6 + $0x210] sm:$0xff]
        %v858 = vld [vmem:[#allocation6 + $0x218] sm:$0xff]
        %v859 = vld [vmem:[#allocation6 + $0x220] sm:$0xff]
        %v860 = vld [vmem:[#allocation6 + $0x228] sm:$0xff]
        %v861 = vld [vmem:[#allocation6 + $0x230] sm:$0xff]
        %v862 = vld [vmem:[#allocation6 + $0x238] sm:$0xff]
        %v863 = vld [vmem:[#allocation6 + $0x240] sm:$0xff]
        %v864 = vld [vmem:[#allocation6 + $0x248] sm:$0xff]
        %v865 = vld [vmem:[#allocation6 + $0x250] sm:$0xff]
        %v866 = vld [vmem:[#allocation6 + $0x258] sm:$0xff]
        %v867 = vld [vmem:[#allocation6 + $0x260] sm:$0xff]
        %v868 = vld [vmem:[#allocation6 + $0x268] sm:$0xff]
        %v869 = vld [vmem:[#allocation6 + $0x270] sm:$0xff]
        %v870 = vld [vmem:[#allocation6 + $0x278] sm:$0xff]
        %v871 = vld [vmem:[#allocation6 + $0x280] sm:$0xff]
        %v872 = vld [vmem:[#allocation6 + $0x288] sm:$0xff]
        %v873 = vld [vmem:[#allocation6 + $0x290] sm:$0xff]
        %v874 = vld [vmem:[#allocation6 + $0x298] sm:$0xff]
        %v875 = vld [vmem:[#allocation6 + $0x2a0] sm:$0xff]
        %v876 = vld [vmem:[#allocation6 + $0x2a8] sm:$0xff]
        %v877 = vld [vmem:[#allocation6 + $0x2b0] sm:$0xff]
        %v878 = vld [vmem:[#allocation6 + $0x2b8] sm:$0xff]
        %v879 = vld [vmem:[#allocation6 + $0x2c0] sm:$0xff]
        %v880 = vld [vmem:[#allocation6 + $0x2c8] sm:$0xff]
        %v881 = vld [vmem:[#allocation6 + $0x2d0] sm:$0xff]
        %v882 = vld [vmem:[#allocation6 + $0x2d8] sm:$0xff]
        %v883 = vld [vmem:[#allocation6 + $0x2e0] sm:$0xff]
        %v884 = vld [vmem:[#allocation6 + $0x2e8] sm:$0xff]
        %v885 = vld [vmem:[#allocation6 + $0x2f0] sm:$0xff]
        %v886 = vld [vmem:[#allocation6 + $0x2f8] sm:$0xff]
        %v887 = vld [vmem:[#allocation6 + $0x300] sm:$0xff]
        %v888 = vld [vmem:[#allocation6 + $0x308] sm:$0xff]
        %v889 = vld [vmem:[#allocation6 + $0x310] sm:$0xff]
        %v890 = vld [vmem:[#allocation6 + $0x318] sm:$0xff]
        %v891 = vld [vmem:[#allocation6 + $0x320] sm:$0xff]
        %v892 = vld [vmem:[#allocation6 + $0x328] sm:$0xff]
        %v893 = vld [vmem:[#allocation6 + $0x330] sm:$0xff]
        %v894 = vld [vmem:[#allocation6 + $0x338] sm:$0xff]
        %v895 = vld [vmem:[#allocation6 + $0x340] sm:$0xff]
        %v896 = vld [vmem:[#allocation6 + $0x348] sm:$0xff]
        %v897 = vld [vmem:[#allocation6 + $0x350] sm:$0xff]
        %v898 = vld [vmem:[#allocation6 + $0x358] sm:$0xff]
        %v899 = vld [vmem:[#allocation6 + $0x360] sm:$0xff]
        %v900 = vld [vmem:[#allocation6 + $0x368] sm:$0xff]
        %v901 = vld [vmem:[#allocation6 + $0x370] sm:$0xff]
        %v902 = vld [vmem:[#allocation6 + $0x378] sm:$0xff]
        %v903 = vld [vmem:[#allocation6 + $0x380] sm:$0xff]
        %v904 = vld [vmem:[#allocation6 + $0x388] sm:$0xff]
        %v905 = vld [vmem:[#allocation6 + $0x390] sm:$0xff]
        %v906 = vld [vmem:[#allocation6 + $0x398] sm:$0xff]
        %v907 = vld [vmem:[#allocation6 + $0x3a0] sm:$0xff]
        %v908 = vld [vmem:[#allocation6 + $0x3a8] sm:$0xff]
        %v909 = vld [vmem:[#allocation6 + $0x3b0] sm:$0xff]
        %v910 = vld [vmem:[#allocation6 + $0x3b8] sm:$0xff]
        %v911 = vld [vmem:[#allocation6 + $0x3c0] sm:$0xff]
        %v912 = vld [vmem:[#allocation6 + $0x3c8] sm:$0xff]
        %v913 = vld [vmem:[#allocation6 + $0x3d0] sm:$0xff]
        %v914 = vld [vmem:[#allocation6 + $0x3d8] sm:$0xff]
        %v915 = vld [vmem:[#allocation6 + $0x3e0] sm:$0xff]
        %v916 = vld [vmem:[#allocation6 + $0x3e8] sm:$0xff]
        %v917 = vld [vmem:[#allocation6 + $0x3f0] sm:$0xff]
        %v918 = vld [vmem:[#allocation6 + $0x3f8] sm:$0xff]
        %v919 = vld [vmem:[#allocation6 + $0x400] sm:$0xff]
        %v920 = vld [vmem:[#allocation6 + $0x408] sm:$0xff]
        %v921 = vld [vmem:[#allocation6 + $0x410] sm:$0xff]
        %v922 = vld [vmem:[#allocation6 + $0x418] sm:$0xff]
        %v923 = vld [vmem:[#allocation6 + $0x420] sm:$0xff]
        %v924 = vld [vmem:[#allocation6 + $0x428] sm:$0xff]
        %v925 = vld [vmem:[#allocation6 + $0x430] sm:$0xff]
        %v926 = vld [vmem:[#allocation6 + $0x438] sm:$0xff]
        %v927 = vld [vmem:[#allocation6 + $0x440] sm:$0xff]
        %v928 = vld [vmem:[#allocation6 + $0x448] sm:$0xff]
        %v929 = vld [vmem:[#allocation6 + $0x450] sm:$0xff]
        %v930 = vld [vmem:[#allocation6 + $0x458] sm:$0xff]
        %v931 = vld [vmem:[#allocation6 + $0x460] sm:$0xff]
        %v932 = vld [vmem:[#allocation6 + $0x468] sm:$0xff]
        %v933 = vld [vmem:[#allocation6 + $0x470] sm:$0xff]
        %v934 = vld [vmem:[#allocation6 + $0x478] sm:$0xff]
        %v935 = vld [vmem:[#allocation6 + $0x480] sm:$0xff]
        %v936 = vld [vmem:[#allocation6 + $0x488] sm:$0xff]
        %v937 = vld [vmem:[#allocation6 + $0x490] sm:$0xff]
        %v938 = vld [vmem:[#allocation6 + $0x498] sm:$0xff]
        %v939 = vld [vmem:[#allocation6 + $0x4a0] sm:$0xff]
        %v940 = vld [vmem:[#allocation6 + $0x4a8] sm:$0xff]
        %v941 = vld [vmem:[#allocation6 + $0x4b0] sm:$0xff]
        %v942 = vld [vmem:[#allocation6 + $0x4b8] sm:$0xff]
        %v943 = vld [vmem:[#allocation6 + $0x4c0] sm:$0xff]
        %v944 = vld [vmem:[#allocation6 + $0x4c8] sm:$0xff]
        %v945 = vld [vmem:[#allocation6 + $0x4d0] sm:$0xff]
        %v946 = vld [vmem:[#allocation6 + $0x4d8] sm:$0xff]
        %v947 = vld [vmem:[#allocation6 + $0x4e0] sm:$0xff]
        %v948 = vld [vmem:[#allocation6 + $0x4e8] sm:$0xff]
        %v949 = vld [vmem:[#allocation6 + $0x4f0] sm:$0xff]
        %v950 = vld [vmem:[#allocation6 + $0x4f8] sm:$0xff]
        %v951 = vld [vmem:[#allocation7] sm:$0xff]
        %v952 = vld [vmem:[#allocation7 + $0x8] sm:$0xff]
        %v953 = vld [vmem:[#allocation7 + $0x10] sm:$0xff]
        %v954 = vld [vmem:[#allocation7 + $0x18] sm:$0xff]
        %v955 = vld [vmem:[#allocation7 + $0x20] sm:$0xff]
        %v956 = vld [vmem:[#allocation7 + $0x28] sm:$0xff]
        %v957 = vld [vmem:[#allocation7 + $0x30] sm:$0xff]
        %v958 = vld [vmem:[#allocation7 + $0x38] sm:$0xff]
        %v959 = vld [vmem:[#allocation7 + $0x40] sm:$0xff]
        %v960 = vld [vmem:[#allocation7 + $0x48] sm:$0xff]
        %v961 = vld [vmem:[#allocation7 + $0x50] sm:$0xff]
        %v962 = vld [vmem:[#allocation7 + $0x58] sm:$0xff]
        %v963 = vld [vmem:[#allocation7 + $0x60] sm:$0xff]
        %v964 = vld [vmem:[#allocation7 + $0x68] sm:$0xff]
        %v965 = vld [vmem:[#allocation7 + $0x70] sm:$0xff]
        %v966 = vld [vmem:[#allocation7 + $0x78] sm:$0xff]
        %v967 = vld [vmem:[#allocation7 + $0x80] sm:$0xff]
        %v968 = vld [vmem:[#allocation7 + $0x88] sm:$0xff]
        %v969 = vld [vmem:[#allocation7 + $0x90] sm:$0xff]
        %v970 = vld [vmem:[#allocation7 + $0x98] sm:$0xff]
        %v971 = vld [vmem:[#allocation7 + $0xa0] sm:$0xff]
        %v972 = vld [vmem:[#allocation7 + $0xa8] sm:$0xff]
        %v973 = vld [vmem:[#allocation7 + $0xb0] sm:$0xff]
        %v974 = vld [vmem:[#allocation7 + $0xb8] sm:$0xff]
        %v975 = vld [vmem:[#allocation7 + $0xc0] sm:$0xff]
        %v976 = vld [vmem:[#allocation7 + $0xc8] sm:$0xff]
        %v977 = vld [vmem:[#allocation7 + $0xd0] sm:$0xff]
        %v978 = vld [vmem:[#allocation7 + $0xd8] sm:$0xff]
        %v979 = vld [vmem:[#allocation7 + $0xe0] sm:$0xff]
        %v980 = vld [vmem:[#allocation7 + $0xe8] sm:$0xff]
        %v981 = vld [vmem:[#allocation7 + $0xf0] sm:$0xff]
        %v982 = vld [vmem:[#allocation7 + $0xf8] sm:$0xff]
        %v983 = vld [vmem:[#allocation7 + $0x100] sm:$0xff]
        %v984 = vld [vmem:[#allocation7 + $0x108] sm:$0xff]
        %v985 = vld [vmem:[#allocation7 + $0x110] sm:$0xff]
        %v986 = vld [vmem:[#allocation7 + $0x118] sm:$0xff]
        %v987 = vld [vmem:[#allocation7 + $0x120] sm:$0xff]
        %v988 = vld [vmem:[#allocation7 + $0x128] sm:$0xff]
        %v989 = vld [vmem:[#allocation7 + $0x130] sm:$0xff]
        %v990 = vld [vmem:[#allocation7 + $0x138] sm:$0xff]
        %v991 = vld [vmem:[#allocation7 + $0x140] sm:$0xff]
        %v992 = vld [vmem:[#allocation7 + $0x148] sm:$0xff]
        %v993 = vld [vmem:[#allocation7 + $0x150] sm:$0xff]
        %v994 = vld [vmem:[#allocation7 + $0x158] sm:$0xff]
        %v995 = vld [vmem:[#allocation7 + $0x160] sm:$0xff]
        %v996 = vld [vmem:[#allocation7 + $0x168] sm:$0xff]
        %v997 = vld [vmem:[#allocation7 + $0x170] sm:$0xff]
        %v998 = vld [vmem:[#allocation7 + $0x178] sm:$0xff]
        %v999 = vld [vmem:[#allocation7 + $0x180] sm:$0xff]
        %v1000 = vld [vmem:[#allocation7 + $0x188] sm:$0xff]
        %v1001 = vld [vmem:[#allocation7 + $0x190] sm:$0xff]
        %v1002 = vld [vmem:[#allocation7 + $0x198] sm:$0xff]
        %v1003 = vld [vmem:[#allocation7 + $0x1a0] sm:$0xff]
        %v1004 = vld [vmem:[#allocation7 + $0x1a8] sm:$0xff]
        %v1005 = vld [vmem:[#allocation7 + $0x1b0] sm:$0xff]
        %v1006 = vld [vmem:[#allocation7 + $0x1b8] sm:$0xff]
        %v1007 = vld [vmem:[#allocation7 + $0x1c0] sm:$0xff]
        %v1008 = vld [vmem:[#allocation7 + $0x1c8] sm:$0xff]
        %v1009 = vld [vmem:[#allocation7 + $0x1d0] sm:$0xff]
        %v1010 = vld [vmem:[#allocation7 + $0x1d8] sm:$0xff]
        %v1011 = vld [vmem:[#allocation7 + $0x1e0] sm:$0xff]
        %v1012 = vld [vmem:[#allocation7 + $0x1e8] sm:$0xff]
        %v1013 = vld [vmem:[#allocation7 + $0x1f0] sm:$0xff]
        %v1014 = vld [vmem:[#allocation7 + $0x1f8] sm:$0xff]
        %v1015 = vld [vmem:[#allocation7 + $0x200] sm:$0xff]
        %v1016 = vld [vmem:[#allocation7 + $0x208] sm:$0xff]
        %v1017 = vld [vmem:[#allocation7 + $0x210] sm:$0xff]
        %v1018 = vld [vmem:[#allocation7 + $0x218] sm:$0xff]
        %v1019 = vld [vmem:[#allocation7 + $0x220] sm:$0xff]
        %v1020 = vld [vmem:[#allocation7 + $0x228] sm:$0xff]
        %v1021 = vld [vmem:[#allocation7 + $0x230] sm:$0xff]
        %v1022 = vld [vmem:[#allocation7 + $0x238] sm:$0xff]
        %v1023 = vld [vmem:[#allocation7 + $0x240] sm:$0xff]
        %v1024 = vld [vmem:[#allocation7 + $0x248] sm:$0xff]
        %v1025 = vld [vmem:[#allocation7 + $0x250] sm:$0xff]
        %v1026 = vld [vmem:[#allocation7 + $0x258] sm:$0xff]
        %v1027 = vld [vmem:[#allocation7 + $0x260] sm:$0xff]
        %v1028 = vld [vmem:[#allocation7 + $0x268] sm:$0xff]
        %v1029 = vld [vmem:[#allocation7 + $0x270] sm:$0xff]
        %v1030 = vld [vmem:[#allocation7 + $0x278] sm:$0xff]
        %v1031 = vld [vmem:[#allocation7 + $0x280] sm:$0xff]
        %v1032 = vld [vmem:[#allocation7 + $0x288] sm:$0xff]
        %v1033 = vld [vmem:[#allocation7 + $0x290] sm:$0xff]
        %v1034 = vld [vmem:[#allocation7 + $0x298] sm:$0xff]
        %v1035 = vld [vmem:[#allocation7 + $0x2a0] sm:$0xff]
        %v1036 = vld [vmem:[#allocation7 + $0x2a8] sm:$0xff]
        %v1037 = vld [vmem:[#allocation7 + $0x2b0] sm:$0xff]
        %v1038 = vld [vmem:[#allocation7 + $0x2b8] sm:$0xff]
        %v1039 = vld [vmem:[#allocation7 + $0x2c0] sm:$0xff]
        %v1040 = vld [vmem:[#allocation7 + $0x2c8] sm:$0xff]
        %v1041 = vld [vmem:[#allocation7 + $0x2d0] sm:$0xff]
        %v1042 = vld [vmem:[#allocation7 + $0x2d8] sm:$0xff]
        %v1043 = vld [vmem:[#allocation7 + $0x2e0] sm:$0xff]
        %v1044 = vld [vmem:[#allocation7 + $0x2e8] sm:$0xff]
        %v1045 = vld [vmem:[#allocation7 + $0x2f0] sm:$0xff]
        %v1046 = vld [vmem:[#allocation7 + $0x2f8] sm:$0xff]
        %v1047 = vld [vmem:[#allocation7 + $0x300] sm:$0xff]
        %v1048 = vld [vmem:[#allocation7 + $0x308] sm:$0xff]
        %v1049 = vld [vmem:[#allocation7 + $0x310] sm:$0xff]
        %v1050 = vld [vmem:[#allocation7 + $0x318] sm:$0xff]
        %v1051 = vld [vmem:[#allocation7 + $0x320] sm:$0xff]
        %v1052 = vld [vmem:[#allocation7 + $0x328] sm:$0xff]
        %v1053 = vld [vmem:[#allocation7 + $0x330] sm:$0xff]
        %v1054 = vld [vmem:[#allocation7 + $0x338] sm:$0xff]
        %v1055 = vld [vmem:[#allocation7 + $0x340] sm:$0xff]
        %v1056 = vld [vmem:[#allocation7 + $0x348] sm:$0xff]
        %v1057 = vld [vmem:[#allocation7 + $0x350] sm:$0xff]
        %v1058 = vld [vmem:[#allocation7 + $0x358] sm:$0xff]
        %v1059 = vld [vmem:[#allocation7 + $0x360] sm:$0xff]
        %v1060 = vld [vmem:[#allocation7 + $0x368] sm:$0xff]
        %v1061 = vld [vmem:[#allocation7 + $0x370] sm:$0xff]
        %v1062 = vld [vmem:[#allocation7 + $0x378] sm:$0xff]
        %v1063 = vld [vmem:[#allocation7 + $0x380] sm:$0xff]
        %v1064 = vld [vmem:[#allocation7 + $0x388] sm:$0xff]
        %v1065 = vld [vmem:[#allocation7 + $0x390] sm:$0xff]
        %v1066 = vld [vmem:[#allocation7 + $0x398] sm:$0xff]
        %v1067 = vld [vmem:[#allocation7 + $0x3a0] sm:$0xff]
        %v1068 = vld [vmem:[#allocation7 + $0x3a8] sm:$0xff]
        %v1069 = vld [vmem:[#allocation7 + $0x3b0] sm:$0xff]
        %v1070 = vld [vmem:[#allocation7 + $0x3b8] sm:$0xff]
        %v1071 = vld [vmem:[#allocation7 + $0x3c0] sm:$0xff]
        %v1072 = vld [vmem:[#allocation7 + $0x3c8] sm:$0xff]
        %v1073 = vld [vmem:[#allocation7 + $0x3d0] sm:$0xff]
        %v1074 = vld [vmem:[#allocation7 + $0x3d8] sm:$0xff]
        %v1075 = vld [vmem:[#allocation7 + $0x3e0] sm:$0xff]
        %v1076 = vld [vmem:[#allocation7 + $0x3e8] sm:$0xff]
        %v1077 = vld [vmem:[#allocation7 + $0x3f0] sm:$0xff]
        %v1078 = vld [vmem:[#allocation7 + $0x3f8] sm:$0xff]
        %v1079 = vld [vmem:[#allocation7 + $0x400] sm:$0xff]
        %v1080 = vld [vmem:[#allocation7 + $0x408] sm:$0xff]
        %v1081 = vld [vmem:[#allocation7 + $0x410] sm:$0xff]
        %v1082 = vld [vmem:[#allocation7 + $0x418] sm:$0xff]
        %v1083 = vld [vmem:[#allocation7 + $0x420] sm:$0xff]
        %v1084 = vld [vmem:[#allocation7 + $0x428] sm:$0xff]
        %v1085 = vld [vmem:[#allocation7 + $0x430] sm:$0xff]
        %v1086 = vld [vmem:[#allocation7 + $0x438] sm:$0xff]
        %v1087 = vld [vmem:[#allocation7 + $0x440] sm:$0xff]
        %v1088 = vld [vmem:[#allocation7 + $0x448] sm:$0xff]
        %v1089 = vld [vmem:[#allocation7 + $0x450] sm:$0xff]
        %v1090 = vld [vmem:[#allocation7 + $0x458] sm:$0xff]
        %v1091 = vld [vmem:[#allocation7 + $0x460] sm:$0xff]
        %v1092 = vld [vmem:[#allocation7 + $0x468] sm:$0xff]
        %v1093 = vld [vmem:[#allocation7 + $0x470] sm:$0xff]
        %v1094 = vld [vmem:[#allocation7 + $0x478] sm:$0xff]
        %v1095 = vld [vmem:[#allocation7 + $0x480] sm:$0xff]
        %v1096 = vld [vmem:[#allocation7 + $0x488] sm:$0xff]
        %v1097 = vld [vmem:[#allocation7 + $0x490] sm:$0xff]
        %v1098 = vld [vmem:[#allocation7 + $0x498] sm:$0xff]
        %v1099 = vld [vmem:[#allocation7 + $0x4a0] sm:$0xff]
        %v1100 = vld [vmem:[#allocation7 + $0x4a8] sm:$0xff]
        %v1101 = vld [vmem:[#allocation7 + $0x4b0] sm:$0xff]
        %v1102 = vld [vmem:[#allocation7 + $0x4b8] sm:$0xff]
        %v1103 = vld [vmem:[#allocation7 + $0x4c0] sm:$0xff]
        %v1104 = vld [vmem:[#allocation7 + $0x4c8] sm:$0xff]
        %v1105 = vld [vmem:[#allocation7 + $0x4d0] sm:$0xff]
        %v1106 = vld [vmem:[#allocation7 + $0x4d8] sm:$0xff]
        %v1107 = vld [vmem:[#allocation7 + $0x4e0] sm:$0xff]
        %v1108 = vld [vmem:[#allocation7 + $0x4e8] sm:$0xff]
        %v1109 = vld [vmem:[#allocation7 + $0x4f0] sm:$0xff]
        %v1110 = vld [vmem:[#allocation7 + $0x4f8] sm:$0xff]
        %v1111 = vld [vmem:[%s629] sm:$0xff]
        %v1112 = vld [vmem:[%s629 + $0x8] sm:$0xff]
        %v1113 = vld [vmem:[%s629 + $0x10] sm:$0xff]
        %v1114 = vld [vmem:[%s629 + $0x18] sm:$0xff]
        %v1115 = vld [vmem:[%s629 + $0x20] sm:$0xff]
        %v1116 = vld [vmem:[%s629 + $0x28] sm:$0xff]
        %v1117 = vld [vmem:[%s629 + $0x30] sm:$0xff]
        %v1118 = vld [vmem:[%s629 + $0x38] sm:$0xff]
        %v1119 = vld [vmem:[%s629 + $0x40] sm:$0xff]
        %v1120 = vld [vmem:[%s629 + $0x48] sm:$0xff]
        %v1121 = vld [vmem:[%s629 + $0x50] sm:$0xff]
        %v1122 = vld [vmem:[%s629 + $0x58] sm:$0xff]
        %v1123 = vld [vmem:[%s629 + $0x60] sm:$0xff]
        %v1124 = vld [vmem:[%s629 + $0x68] sm:$0xff]
        %v1125 = vld [vmem:[%s629 + $0x70] sm:$0xff]
        %v1126 = vld [vmem:[%s629 + $0x78] sm:$0xff]
        %v1127 = vunpack.c.l.bf16 %v1111
        %v1128 = vunpack.c.h.bf16 %v1111
        %v1129 = vunpack.c.l.bf16 %v1112
        %v1130 = vunpack.c.h.bf16 %v1112
        %v1131 = vunpack.c.l.bf16 %v1113
        %v1132 = vunpack.c.h.bf16 %v1113
        %v1133 = vunpack.c.l.bf16 %v1114
        %v1134 = vunpack.c.h.bf16 %v1114
        %v1135 = vunpack.c.l.bf16 %v1115
        %v1136 = vunpack.c.h.bf16 %v1115
        %v1137 = vunpack.c.l.bf16 %v1116
        %v1138 = vunpack.c.h.bf16 %v1116
        %v1139 = vunpack.c.l.bf16 %v1117
        %v1140 = vunpack.c.h.bf16 %v1117
        %v1141 = vunpack.c.l.bf16 %v1118
        %v1142 = vunpack.c.h.bf16 %v1118
        %v1143 = vunpack.c.l.bf16 %v1119
        %v1144 = vunpack.c.h.bf16 %v1119
        %v1145 = vunpack.c.l.bf16 %v1120
        %v1146 = vunpack.c.h.bf16 %v1120
        %v1147 = vunpack.c.l.bf16 %v1121
        %v1148 = vunpack.c.h.bf16 %v1121
        %v1149 = vunpack.c.l.bf16 %v1122
        %v1150 = vunpack.c.h.bf16 %v1122
        %v1151 = vunpack.c.l.bf16 %v1123
        %v1152 = vunpack.c.h.bf16 %v1123
        %v1153 = vunpack.c.l.bf16 %v1124
        %v1154 = vunpack.c.h.bf16 %v1124
        %v1155 = vunpack.c.l.bf16 %v1125
        %v1156 = vunpack.c.h.bf16 %v1125
        %v1157 = vunpack.c.l.bf16 %v1126
        %v1158 = vunpack.c.h.bf16 %v1126
        %v1159 = vld [vmem:[%s638] sm:$0xff]
        %v1161 = vlaneseq
        %v1162 = vshrl.u32 %v1161, 7
        %v1163 = vsub.s32 0, %v1162
        %v1164 = vrot.slane %v1159, %v1163
        %v1165 = vlaneseq
        %v1166 = vshrl.u32 %v1165, 7
        %v1167 = vsub.s32 1, %v1166
        %v1168 = vrot.slane %v1159, %v1167
        %v1169 = vlaneseq
        %v1170 = vshrl.u32 %v1169, 7
        %v1171 = vsub.s32 2, %v1170
        %v1172 = vrot.slane %v1159, %v1171
        %v1173 = vlaneseq
        %v1174 = vshrl.u32 %v1173, 7
        %v1175 = vsub.s32 3, %v1174
        %v1176 = vrot.slane %v1159, %v1175
        %v1177 = vlaneseq
        %v1178 = vshrl.u32 %v1177, 7
        %v1179 = vsub.s32 4, %v1178
        %v1180 = vrot.slane %v1159, %v1179
        %v1181 = vlaneseq
        %v1182 = vshrl.u32 %v1181, 7
        %v1183 = vsub.s32 5, %v1182
        %v1184 = vrot.slane %v1159, %v1183
        %v1185 = vlaneseq
        %v1186 = vshrl.u32 %v1185, 7
        %v1187 = vsub.s32 6, %v1186
        %v1188 = vrot.slane %v1159, %v1187
        %v1189 = vlaneseq
        %v1190 = vshrl.u32 %v1189, 7
        %v1191 = vsub.s32 7, %v1190
        %v1192 = vrot.slane %v1159, %v1191
        %vm1201 = vcmask 261120
        %v1203 = vsel %vm1201, %v790, 0
        %1205 = vmatprep.subr.mxu0 %v1128
        %1206 = vmatpush1.msra.mxu0 %v1127
        %1207 = vmatprep.subr.mxu0 %v1136
        %1208 = vmatpush1.msra.mxu0 %v1135
        %1209 = vmatprep.subr.mxu0 %v1144
        %1210 = vmatpush1.msra.mxu0 %v1143
        %1211 = vmatprep.subr.mxu0 %v1152
        %1212 = vmatpush1.msra.mxu0 %v1151
        %1213 = vmatprep.subr.mxu0 0.0
        %1214 = vmatpush1.msra.mxu0 0.0
        %1215 = vmatprep.subr.mxu0 0.0
        %1216 = vmatpush1.msra.mxu0 0.0
        %1217 = vmatprep.subr.mxu0 0.0
        %1218 = vmatpush1.msra.mxu0 0.0
        %1219 = vmatprep.subr.mxu0 0.0
        %1220 = vmatpush1.msra.mxu0 0.0
        %1221 = vmatprep.subr.mxu0 0.0
        %1222 = vmatpush1.msra.mxu0 0.0
        %1223 = vmatprep.subr.mxu0 0.0
        %1224 = vmatpush1.msra.mxu0 0.0
        %1225 = vmatprep.subr.mxu0 0.0
        %1226 = vmatpush1.msra.mxu0 0.0
        %1227 = vmatprep.subr.mxu0 0.0
        %1228 = vmatpush1.msra.mxu0 0.0
        %1229 = vmatprep.subr.mxu0 0.0
        %1230 = vmatpush1.msra.mxu0 0.0
        %1231 = vmatprep.subr.mxu0 0.0
        %1232 = vmatpush1.msra.mxu0 0.0
        %1233 = vmatprep.subr.mxu0 0.0
        %1234 = vmatpush1.msra.mxu0 0.0
        %1235 = vmatprep.subr.mxu0 0.0
        %1236 = vmatpush1.msra.mxu0 0.0
        %1237 = vmatprep.subr.mxu0 0.0
        %1238 = vmatpush1.msra.mxu0 0.0
        %1239 = vmatprep.subr.mxu0 0.0
        %1240 = vmatpush1.msra.mxu0 0.0
        %1241 = vmatprep.subr.mxu0 0.0
        %1242 = vmatpush1.msra.mxu0 0.0
        %1243 = vmatprep.subr.mxu0 0.0
        %1244 = vmatpush1.msra.mxu0 0.0
        %1245 = vmatprep.subr.mxu0 0.0
        %1246 = vmatpush1.msra.mxu0 0.0
        %1247 = vmatprep.subr.mxu0 0.0
        %1248 = vmatpush1.msra.mxu0 0.0
        %1249 = vmatprep.subr.mxu0 0.0
        %1250 = vmatpush1.msra.mxu0 0.0
        %1251 = vmatprep.subr.mxu0 0.0
        %1252 = vmatpush1.msra.mxu0 0.0
        %1253 = vmatprep.subr.mxu0 0.0
        %1254 = vmatpush1.msra.mxu0 0.0
        %1255 = vmatprep.subr.mxu0 0.0
        %1256 = vmatpush1.msra.mxu0 0.0
        %1257 = vmatprep.subr.mxu0 0.0
        %1258 = vmatpush1.msra.mxu0 0.0
        %1259 = vmatprep.subr.mxu0 0.0
        %1260 = vmatpush1.msra.mxu0 0.0
        %1261 = vmatprep.subr.mxu0 0.0
        %1262 = vmatpush1.msra.mxu0 0.0
        %1263 = vmatprep.subr.mxu0 0.0
        %1264 = vmatpush1.msra.mxu0 0.0
        %1265 = vmatprep.subr.mxu0 0.0
        %1266 = vmatpush1.msra.mxu0 0.0
        %1267 = vmatprep.subr.mxu0 0.0
        %1268 = vmatpush1.msra.mxu0 0.0
        %1269 = vmatprep.mubr.f32.mxu0 0.0
        %1270 = vmatmul.mubr.f32.gmra.mrb[0].mxu0 %v1203
        %v1271 = vpop.f32.mrb[0].mxu0
        %v1272 = vadd.f32 %v1164, %v1271
        %v1273 = vpop.f32.mrb[0].mxu0
        %v1274 = vadd.f32 %v1168, %v1273
        %1275 = vdwg.mxu0
        %1276 = vmatprep.subr.mxu0 %v1130
        %1277 = vmatpush1.msra.mxu0 %v1129
        %1278 = vmatprep.subr.mxu0 %v1138
        %1279 = vmatpush1.msra.mxu0 %v1137
        %1280 = vmatprep.subr.mxu0 %v1146
        %1281 = vmatpush1.msra.mxu0 %v1145
        %1282 = vmatprep.subr.mxu0 %v1154
        %1283 = vmatpush1.msra.mxu0 %v1153
        %1284 = vmatprep.subr.mxu0 0.0
        %1285 = vmatpush1.msra.mxu0 0.0
        %1286 = vmatprep.subr.mxu0 0.0
        %1287 = vmatpush1.msra.mxu0 0.0
        %1288 = vmatprep.subr.mxu0 0.0
        %1289 = vmatpush1.msra.mxu0 0.0
        %1290 = vmatprep.subr.mxu0 0.0
        %1291 = vmatpush1.msra.mxu0 0.0
        %1292 = vmatprep.subr.mxu0 0.0
        %1293 = vmatpush1.msra.mxu0 0.0
        %1294 = vmatprep.subr.mxu0 0.0
        %1295 = vmatpush1.msra.mxu0 0.0
        %1296 = vmatprep.subr.mxu0 0.0
        %1297 = vmatpush1.msra.mxu0 0.0
        %1298 = vmatprep.subr.mxu0 0.0
        %1299 = vmatpush1.msra.mxu0 0.0
        %1300 = vmatprep.subr.mxu0 0.0
        %1301 = vmatpush1.msra.mxu0 0.0
        %1302 = vmatprep.subr.mxu0 0.0
        %1303 = vmatpush1.msra.mxu0 0.0
        %1304 = vmatprep.subr.mxu0 0.0
        %1305 = vmatpush1.msra.mxu0 0.0
        %1306 = vmatprep.subr.mxu0 0.0
        %1307 = vmatpush1.msra.mxu0 0.0
        %1308 = vmatprep.subr.mxu0 0.0
        %1309 = vmatpush1.msra.mxu0 0.0
        %1310 = vmatprep.subr.mxu0 0.0
        %1311 = vmatpush1.msra.mxu0 0.0
        %1312 = vmatprep.subr.mxu0 0.0
        %1313 = vmatpush1.msra.mxu0 0.0
        %1314 = vmatprep.subr.mxu0 0.0
        %1315 = vmatpush1.msra.mxu0 0.0
        %1316 = vmatprep.subr.mxu0 0.0
        %1317 = vmatpush1.msra.mxu0 0.0
        %1318 = vmatprep.subr.mxu0 0.0
        %1319 = vmatpush1.msra.mxu0 0.0
        %1320 = vmatprep.subr.mxu0 0.0
        %1321 = vmatpush1.msra.mxu0 0.0
        %1322 = vmatprep.subr.mxu0 0.0
        %1323 = vmatpush1.msra.mxu0 0.0
        %1324 = vmatprep.subr.mxu0 0.0
        %1325 = vmatpush1.msra.mxu0 0.0
        %1326 = vmatprep.subr.mxu0 0.0
        %1327 = vmatpush1.msra.mxu0 0.0
        %1328 = vmatprep.subr.mxu0 0.0
        %1329 = vmatpush1.msra.mxu0 0.0
        %1330 = vmatprep.subr.mxu0 0.0
        %1331 = vmatpush1.msra.mxu0 0.0
        %1332 = vmatprep.subr.mxu0 0.0
        %1333 = vmatpush1.msra.mxu0 0.0
        %1334 = vmatprep.subr.mxu0 0.0
        %1335 = vmatpush1.msra.mxu0 0.0
        %1336 = vmatprep.subr.mxu0 0.0
        %1337 = vmatpush1.msra.mxu0 0.0
        %1338 = vmatprep.subr.mxu0 0.0
        %1339 = vmatpush1.msra.mxu0 0.0
        %1340 = vmatprep.mubr.f32.mxu0 0.0
        %1341 = vmatmul.mubr.f32.gmra.mrb[0].mxu0 %v1203
        %v1342 = vpop.f32.mrb[0].mxu0
        %v1343 = vadd.f32 %v1172, %v1342
        %v1344 = vpop.f32.mrb[0].mxu0
        %v1345 = vadd.f32 %v1176, %v1344
        %1346 = vdwg.mxu0
        %1347 = vmatprep.subr.mxu0 %v1132
        %1348 = vmatpush1.msra.mxu0 %v1131
        %1349 = vmatprep.subr.mxu0 %v1140
        %1350 = vmatpush1.msra.mxu0 %v1139
        %1351 = vmatprep.subr.mxu0 %v1148
        %1352 = vmatpush1.msra.mxu0 %v1147
        %1353 = vmatprep.subr.mxu0 %v1156
        %1354 = vmatpush1.msra.mxu0 %v1155
        %1355 = vmatprep.subr.mxu0 0.0
        %1356 = vmatpush1.msra.mxu0 0.0
        %1357 = vmatprep.subr.mxu0 0.0
        %1358 = vmatpush1.msra.mxu0 0.0
        %1359 = vmatprep.subr.mxu0 0.0
        %1360 = vmatpush1.msra.mxu0 0.0
        %1361 = vmatprep.subr.mxu0 0.0
        %1362 = vmatpush1.msra.mxu0 0.0
        %1363 = vmatprep.subr.mxu0 0.0
        %1364 = vmatpush1.msra.mxu0 0.0
        %1365 = vmatprep.subr.mxu0 0.0
        %1366 = vmatpush1.msra.mxu0 0.0
        %1367 = vmatprep.subr.mxu0 0.0
        %1368 = vmatpush1.msra.mxu0 0.0
        %1369 = vmatprep.subr.mxu0 0.0
        %1370 = vmatpush1.msra.mxu0 0.0
        %1371 = vmatprep.subr.mxu0 0.0
        %1372 = vmatpush1.msra.mxu0 0.0
        %1373 = vmatprep.subr.mxu0 0.0
        %1374 = vmatpush1.msra.mxu0 0.0
        %1375 = vmatprep.subr.mxu0 0.0
        %1376 = vmatpush1.msra.mxu0 0.0
        %1377 = vmatprep.subr.mxu0 0.0
        %1378 = vmatpush1.msra.mxu0 0.0
        %1379 = vmatprep.subr.mxu0 0.0
        %1380 = vmatpush1.msra.mxu0 0.0
        %1381 = vmatprep.subr.mxu0 0.0
        %1382 = vmatpush1.msra.mxu0 0.0
        %1383 = vmatprep.subr.mxu0 0.0
        %1384 = vmatpush1.msra.mxu0 0.0
        %1385 = vmatprep.subr.mxu0 0.0
        %1386 = vmatpush1.msra.mxu0 0.0
        %1387 = vmatprep.subr.mxu0 0.0
        %1388 = vmatpush1.msra.mxu0 0.0
        %1389 = vmatprep.subr.mxu0 0.0
        %1390 = vmatpush1.msra.mxu0 0.0
        %1391 = vmatprep.subr.mxu0 0.0
        %1392 = vmatpush1.msra.mxu0 0.0
        %1393 = vmatprep.subr.mxu0 0.0
        %1394 = vmatpush1.msra.mxu0 0.0
        %1395 = vmatprep.subr.mxu0 0.0
        %1396 = vmatpush1.msra.mxu0 0.0
        %1397 = vmatprep.subr.mxu0 0.0
        %1398 = vmatpush1.msra.mxu0 0.0
        %1399 = vmatprep.subr.mxu0 0.0
        %1400 = vmatpush1.msra.mxu0 0.0
        %1401 = vmatprep.subr.mxu0 0.0
        %1402 = vmatpush1.msra.mxu0 0.0
        %1403 = vmatprep.subr.mxu0 0.0
        %1404 = vmatpush1.msra.mxu0 0.0
        %1405 = vmatprep.subr.mxu0 0.0
        %1406 = vmatpush1.msra.mxu0 0.0
        %1407 = vmatprep.subr.mxu0 0.0
        %1408 = vmatpush1.msra.mxu0 0.0
        %1409 = vmatprep.subr.mxu0 0.0
        %1410 = vmatpush1.msra.mxu0 0.0
        %1411 = vmatprep.mubr.f32.mxu0 0.0
        %1412 = vmatmul.mubr.f32.gmra.mrb[0].mxu0 %v1203
        %v1413 = vpop.f32.mrb[0].mxu0
        %v1414 = vadd.f32 %v1180, %v1413
        %v1415 = vpop.f32.mrb[0].mxu0
        %v1416 = vadd.f32 %v1184, %v1415
        %1417 = vdwg.mxu0
        %1418 = vmatprep.subr.mxu0 %v1134
        %1419 = vmatpush1.msra.mxu0 %v1133
        %1420 = vmatprep.subr.mxu0 %v1142
        %1421 = vmatpush1.msra.mxu0 %v1141
        %1422 = vmatprep.subr.mxu0 %v1150
        %1423 = vmatpush1.msra.mxu0 %v1149
        %1424 = vmatprep.subr.mxu0 %v1158
        %1425 = vmatpush1.msra.mxu0 %v1157
        %1426 = vmatprep.subr.mxu0 0.0
        %1427 = vmatpush1.msra.mxu0 0.0
        %1428 = vmatprep.subr.mxu0 0.0
        %1429 = vmatpush1.msra.mxu0 0.0
        %1430 = vmatprep.subr.mxu0 0.0
        %1431 = vmatpush1.msra.mxu0 0.0
        %1432 = vmatprep.subr.mxu0 0.0
        %1433 = vmatpush1.msra.mxu0 0.0
        %1434 = vmatprep.subr.mxu0 0.0
        %1435 = vmatpush1.msra.mxu0 0.0
        %1436 = vmatprep.subr.mxu0 0.0
        %1437 = vmatpush1.msra.mxu0 0.0
        %1438 = vmatprep.subr.mxu0 0.0
        %1439 = vmatpush1.msra.mxu0 0.0
        %1440 = vmatprep.subr.mxu0 0.0
        %1441 = vmatpush1.msra.mxu0 0.0
        %1442 = vmatprep.subr.mxu0 0.0
        %1443 = vmatpush1.msra.mxu0 0.0
        %1444 = vmatprep.subr.mxu0 0.0
        %1445 = vmatpush1.msra.mxu0 0.0
        %1446 = vmatprep.subr.mxu0 0.0
        %1447 = vmatpush1.msra.mxu0 0.0
        %1448 = vmatprep.subr.mxu0 0.0
        %1449 = vmatpush1.msra.mxu0 0.0
        %1450 = vmatprep.subr.mxu0 0.0
        %1451 = vmatpush1.msra.mxu0 0.0
        %1452 = vmatprep.subr.mxu0 0.0
        %1453 = vmatpush1.msra.mxu0 0.0
        %1454 = vmatprep.subr.mxu0 0.0
        %1455 = vmatpush1.msra.mxu0 0.0
        %1456 = vmatprep.subr.mxu0 0.0
        %1457 = vmatpush1.msra.mxu0 0.0
        %1458 = vmatprep.subr.mxu0 0.0
        %1459 = vmatpush1.msra.mxu0 0.0
        %1460 = vmatprep.subr.mxu0 0.0
        %1461 = vmatpush1.msra.mxu0 0.0
        %1462 = vmatprep.subr.mxu0 0.0
        %1463 = vmatpush1.msra.mxu0 0.0
        %1464 = vmatprep.subr.mxu0 0.0
        %1465 = vmatpush1.msra.mxu0 0.0
        %1466 = vmatprep.subr.mxu0 0.0
        %1467 = vmatpush1.msra.mxu0 0.0
        %1468 = vmatprep.subr.mxu0 0.0
        %1469 = vmatpush1.msra.mxu0 0.0
        %1470 = vmatprep.subr.mxu0 0.0
        %1471 = vmatpush1.msra.mxu0 0.0
        %1472 = vmatprep.subr.mxu0 0.0
        %1473 = vmatpush1.msra.mxu0 0.0
        %1474 = vmatprep.subr.mxu0 0.0
        %1475 = vmatpush1.msra.mxu0 0.0
        %1476 = vmatprep.subr.mxu0 0.0
        %1477 = vmatpush1.msra.mxu0 0.0
        %1478 = vmatprep.subr.mxu0 0.0
        %1479 = vmatpush1.msra.mxu0 0.0
        %1480 = vmatprep.subr.mxu0 0.0
        %1481 = vmatpush1.msra.mxu0 0.0
        %1482 = vmatprep.mubr.f32.mxu0 0.0
        %1483 = vmatmul.mubr.f32.gmra.mrb[0].mxu0 %v1203
        %v1484 = vpop.f32.mrb[0].mxu0
        %v1485 = vadd.f32 %v1188, %v1484
        %v1486 = vpop.f32.mrb[0].mxu0
        %v1487 = vadd.f32 %v1192, %v1486
        %1488 = vdwg.mxu0
        %v1489 = vmax.f32 %v1272, 0.0
        %v1490 = vmax.f32 %v1274, 0.0
        %v1491 = vmax.f32 %v1343, 0.0
        %v1492 = vmax.f32 %v1345, 0.0
        %v1493 = vmax.f32 %v1414, 0.0
        %v1494 = vmax.f32 %v1416, 0.0
        %v1495 = vmax.f32 %v1485, 0.0
        %v1496 = vmax.f32 %v1487, 0.0
        %v1497 = vld [vmem:[%s647] sm:$0xf]
        %v1498 = vld [vmem:[%s647 + $0x4] sm:$0xf]
        %v1499 = vld [vmem:[%s647 + $0x8] sm:$0xf]
        %v1500 = vld [vmem:[%s647 + $0xc] sm:$0xf]
        %v1501 = vld [vmem:[%s647 + $0x10] sm:$0xf]
        %v1502 = vld [vmem:[%s647 + $0x14] sm:$0xf]
        %v1503 = vld [vmem:[%s647 + $0x18] sm:$0xf]
        %v1504 = vld [vmem:[%s647 + $0x1c] sm:$0xf]
        %v1505 = vld [vmem:[%s647 + $0x20] sm:$0xf]
        %v1506 = vld [vmem:[%s647 + $0x24] sm:$0xf]
        %v1507 = vld [vmem:[%s647 + $0x28] sm:$0xf]
        %v1508 = vld [vmem:[%s647 + $0x2c] sm:$0xf]
        %v1509 = vld [vmem:[%s647 + $0x30] sm:$0xf]
        %v1510 = vld [vmem:[%s647 + $0x34] sm:$0xf]
        %v1511 = vld [vmem:[%s647 + $0x38] sm:$0xf]
        %v1512 = vld [vmem:[%s647 + $0x3c] sm:$0xf]
        %v1513 = vld [vmem:[%s647 + $0x40] sm:$0xf]
        %v1514 = vld [vmem:[%s647 + $0x44] sm:$0xf]
        %v1515 = vld [vmem:[%s647 + $0x48] sm:$0xf]
        %v1516 = vld [vmem:[%s647 + $0x4c] sm:$0xf]
        %v1517 = vld [vmem:[%s647 + $0x50] sm:$0xf]
        %v1518 = vld [vmem:[%s647 + $0x54] sm:$0xf]
        %v1519 = vld [vmem:[%s647 + $0x58] sm:$0xf]
        %v1520 = vld [vmem:[%s647 + $0x5c] sm:$0xf]
        %v1521 = vld [vmem:[%s647 + $0x60] sm:$0xf]
        %v1522 = vld [vmem:[%s647 + $0x64] sm:$0xf]
        %v1523 = vld [vmem:[%s647 + $0x68] sm:$0xf]
        %v1524 = vld [vmem:[%s647 + $0x6c] sm:$0xf]
        %v1525 = vld [vmem:[%s647 + $0x70] sm:$0xf]
        %v1526 = vld [vmem:[%s647 + $0x74] sm:$0xf]
        %v1527 = vld [vmem:[%s647 + $0x78] sm:$0xf]
        %v1528 = vld [vmem:[%s647 + $0x7c] sm:$0xf]
        %v1529 = vld [vmem:[%s647 + $0x80] sm:$0xf]
        %v1530 = vld [vmem:[%s647 + $0x84] sm:$0xf]
        %v1531 = vld [vmem:[%s647 + $0x88] sm:$0xf]
        %v1532 = vld [vmem:[%s647 + $0x8c] sm:$0xf]
        %v1533 = vld [vmem:[%s647 + $0x90] sm:$0xf]
        %v1534 = vld [vmem:[%s647 + $0x94] sm:$0xf]
        %v1535 = vld [vmem:[%s647 + $0x98] sm:$0xf]
        %v1536 = vld [vmem:[%s647 + $0x9c] sm:$0xf]
        %v1537 = vld [vmem:[%s647 + $0xa0] sm:$0xf]
        %v1538 = vld [vmem:[%s647 + $0xa4] sm:$0xf]
        %v1539 = vld [vmem:[%s647 + $0xa8] sm:$0xf]
        %v1540 = vld [vmem:[%s647 + $0xac] sm:$0xf]
        %v1541 = vld [vmem:[%s647 + $0xb0] sm:$0xf]
        %v1542 = vld [vmem:[%s647 + $0xb4] sm:$0xf]
        %v1543 = vld [vmem:[%s647 + $0xb8] sm:$0xf]
        %v1544 = vld [vmem:[%s647 + $0xbc] sm:$0xf]
        %v1545 = vld [vmem:[%s647 + $0xc0] sm:$0xf]
        %v1546 = vld [vmem:[%s647 + $0xc4] sm:$0xf]
        %v1547 = vld [vmem:[%s647 + $0xc8] sm:$0xf]
        %v1548 = vld [vmem:[%s647 + $0xcc] sm:$0xf]
        %v1549 = vld [vmem:[%s647 + $0xd0] sm:$0xf]
        %v1550 = vld [vmem:[%s647 + $0xd4] sm:$0xf]
        %v1551 = vld [vmem:[%s647 + $0xd8] sm:$0xf]
        %v1552 = vld [vmem:[%s647 + $0xdc] sm:$0xf]
        %v1553 = vld [vmem:[%s647 + $0xe0] sm:$0xf]
        %v1554 = vld [vmem:[%s647 + $0xe4] sm:$0xf]
        %v1555 = vld [vmem:[%s647 + $0xe8] sm:$0xf]
        %v1556 = vld [vmem:[%s647 + $0xec] sm:$0xf]
        %v1557 = vld [vmem:[%s647 + $0xf0] sm:$0xf]
        %v1558 = vld [vmem:[%s647 + $0xf4] sm:$0xf]
        %v1559 = vld [vmem:[%s647 + $0xf8] sm:$0xf]
        %v1560 = vld [vmem:[%s647 + $0xfc] sm:$0xf]
        %v1561 = vld [vmem:[%s647 + $0x100] sm:$0xf]
        %v1562 = vld [vmem:[%s647 + $0x104] sm:$0xf]
        %v1563 = vld [vmem:[%s647 + $0x108] sm:$0xf]
        %v1564 = vld [vmem:[%s647 + $0x10c] sm:$0xf]
        %v1565 = vld [vmem:[%s647 + $0x110] sm:$0xf]
        %v1566 = vld [vmem:[%s647 + $0x114] sm:$0xf]
        %v1567 = vld [vmem:[%s647 + $0x118] sm:$0xf]
        %v1568 = vld [vmem:[%s647 + $0x11c] sm:$0xf]
        %v1569 = vld [vmem:[%s647 + $0x120] sm:$0xf]
        %v1570 = vld [vmem:[%s647 + $0x124] sm:$0xf]
        %v1571 = vld [vmem:[%s647 + $0x128] sm:$0xf]
        %v1572 = vld [vmem:[%s647 + $0x12c] sm:$0xf]
        %v1573 = vld [vmem:[%s647 + $0x130] sm:$0xf]
        %v1574 = vld [vmem:[%s647 + $0x134] sm:$0xf]
        %v1575 = vld [vmem:[%s647 + $0x138] sm:$0xf]
        %v1576 = vld [vmem:[%s647 + $0x13c] sm:$0xf]
        %v1577 = vld [vmem:[%s647 + $0x140] sm:$0xf]
        %v1578 = vld [vmem:[%s647 + $0x144] sm:$0xf]
        %v1579 = vld [vmem:[%s647 + $0x148] sm:$0xf]
        %v1580 = vld [vmem:[%s647 + $0x14c] sm:$0xf]
        %v1581 = vld [vmem:[%s647 + $0x150] sm:$0xf]
        %v1582 = vld [vmem:[%s647 + $0x154] sm:$0xf]
        %v1583 = vld [vmem:[%s647 + $0x158] sm:$0xf]
        %v1584 = vld [vmem:[%s647 + $0x15c] sm:$0xf]
        %v1585 = vld [vmem:[%s647 + $0x160] sm:$0xf]
        %v1586 = vld [vmem:[%s647 + $0x164] sm:$0xf]
        %v1587 = vld [vmem:[%s647 + $0x168] sm:$0xf]
        %v1588 = vld [vmem:[%s647 + $0x16c] sm:$0xf]
        %v1589 = vld [vmem:[%s647 + $0x170] sm:$0xf]
        %v1590 = vld [vmem:[%s647 + $0x174] sm:$0xf]
        %v1591 = vld [vmem:[%s647 + $0x178] sm:$0xf]
        %v1592 = vld [vmem:[%s647 + $0x17c] sm:$0xf]
        %v1593 = vld [vmem:[%s647 + $0x180] sm:$0xf]
        %v1594 = vld [vmem:[%s647 + $0x184] sm:$0xf]
        %v1595 = vld [vmem:[%s647 + $0x188] sm:$0xf]
        %v1596 = vld [vmem:[%s647 + $0x18c] sm:$0xf]
        %v1597 = vld [vmem:[%s647 + $0x190] sm:$0xf]
        %v1598 = vld [vmem:[%s647 + $0x194] sm:$0xf]
        %v1599 = vld [vmem:[%s647 + $0x198] sm:$0xf]
        %v1600 = vld [vmem:[%s647 + $0x19c] sm:$0xf]
        %v1601 = vld [vmem:[%s647 + $0x1a0] sm:$0xf]
        %v1602 = vld [vmem:[%s647 + $0x1a4] sm:$0xf]
        %v1603 = vld [vmem:[%s647 + $0x1a8] sm:$0xf]
        %v1604 = vld [vmem:[%s647 + $0x1ac] sm:$0xf]
        %v1605 = vld [vmem:[%s647 + $0x1b0] sm:$0xf]
        %v1606 = vld [vmem:[%s647 + $0x1b4] sm:$0xf]
        %v1607 = vld [vmem:[%s647 + $0x1b8] sm:$0xf]
        %v1608 = vld [vmem:[%s647 + $0x1bc] sm:$0xf]
        %v1609 = vld [vmem:[%s647 + $0x1c0] sm:$0xf]
        %v1610 = vld [vmem:[%s647 + $0x1c4] sm:$0xf]
        %v1611 = vld [vmem:[%s647 + $0x1c8] sm:$0xf]
        %v1612 = vld [vmem:[%s647 + $0x1cc] sm:$0xf]
        %v1613 = vld [vmem:[%s647 + $0x1d0] sm:$0xf]
        %v1614 = vld [vmem:[%s647 + $0x1d4] sm:$0xf]
        %v1615 = vld [vmem:[%s647 + $0x1d8] sm:$0xf]
        %v1616 = vld [vmem:[%s647 + $0x1dc] sm:$0xf]
        %v1617 = vld [vmem:[%s647 + $0x1e0] sm:$0xf]
        %v1618 = vld [vmem:[%s647 + $0x1e4] sm:$0xf]
        %v1619 = vld [vmem:[%s647 + $0x1e8] sm:$0xf]
        %v1620 = vld [vmem:[%s647 + $0x1ec] sm:$0xf]
        %v1621 = vld [vmem:[%s647 + $0x1f0] sm:$0xf]
        %v1622 = vld [vmem:[%s647 + $0x1f4] sm:$0xf]
        %v1623 = vld [vmem:[%s647 + $0x1f8] sm:$0xf]
        %v1624 = vld [vmem:[%s647 + $0x1fc] sm:$0xf]
        %v1625 = vunpack.c.l.bf16 %v1497
        %v1626 = vunpack.c.l.bf16 %v1498
        %v1627 = vunpack.c.l.bf16 %v1499
        %v1628 = vunpack.c.l.bf16 %v1500
        %v1629 = vunpack.c.l.bf16 %v1501
        %v1630 = vunpack.c.l.bf16 %v1502
        %v1631 = vunpack.c.l.bf16 %v1503
        %v1632 = vunpack.c.l.bf16 %v1504
        %v1633 = vunpack.c.l.bf16 %v1505
        %v1634 = vunpack.c.l.bf16 %v1506
        %v1635 = vunpack.c.l.bf16 %v1507
        %v1636 = vunpack.c.l.bf16 %v1508
        %v1637 = vunpack.c.l.bf16 %v1509
        %v1638 = vunpack.c.l.bf16 %v1510
        %v1639 = vunpack.c.l.bf16 %v1511
        %v1640 = vunpack.c.l.bf16 %v1512
        %v1641 = vunpack.c.l.bf16 %v1513
        %v1642 = vunpack.c.l.bf16 %v1514
        %v1643 = vunpack.c.l.bf16 %v1515
        %v1644 = vunpack.c.l.bf16 %v1516
        %v1645 = vunpack.c.l.bf16 %v1517
        %v1646 = vunpack.c.l.bf16 %v1518
        %v1647 = vunpack.c.l.bf16 %v1519
        %v1648 = vunpack.c.l.bf16 %v1520
        %v1649 = vunpack.c.l.bf16 %v1521
        %v1650 = vunpack.c.l.bf16 %v1522
        %v1651 = vunpack.c.l.bf16 %v1523
        %v1652 = vunpack.c.l.bf16 %v1524
        %v1653 = vunpack.c.l.bf16 %v1525
        %v1654 = vunpack.c.l.bf16 %v1526
        %v1655 = vunpack.c.l.bf16 %v1527
        %v1656 = vunpack.c.l.bf16 %v1528
        %v1657 = vunpack.c.l.bf16 %v1529
        %v1658 = vunpack.c.l.bf16 %v1530
        %v1659 = vunpack.c.l.bf16 %v1531
        %v1660 = vunpack.c.l.bf16 %v1532
        %v1661 = vunpack.c.l.bf16 %v1533
        %v1662 = vunpack.c.l.bf16 %v1534
        %v1663 = vunpack.c.l.bf16 %v1535
        %v1664 = vunpack.c.l.bf16 %v1536
        %v1665 = vunpack.c.l.bf16 %v1537
        %v1666 = vunpack.c.l.bf16 %v1538
        %v1667 = vunpack.c.l.bf16 %v1539
        %v1668 = vunpack.c.l.bf16 %v1540
        %v1669 = vunpack.c.l.bf16 %v1541
        %v1670 = vunpack.c.l.bf16 %v1542
        %v1671 = vunpack.c.l.bf16 %v1543
        %v1672 = vunpack.c.l.bf16 %v1544
        %v1673 = vunpack.c.l.bf16 %v1545
        %v1674 = vunpack.c.l.bf16 %v1546
        %v1675 = vunpack.c.l.bf16 %v1547
        %v1676 = vunpack.c.l.bf16 %v1548
        %v1677 = vunpack.c.l.bf16 %v1549
        %v1678 = vunpack.c.l.bf16 %v1550
        %v1679 = vunpack.c.l.bf16 %v1551
        %v1680 = vunpack.c.l.bf16 %v1552
        %v1681 = vunpack.c.l.bf16 %v1553
        %v1682 = vunpack.c.l.bf16 %v1554
        %v1683 = vunpack.c.l.bf16 %v1555
        %v1684 = vunpack.c.l.bf16 %v1556
        %v1685 = vunpack.c.l.bf16 %v1557
        %v1686 = vunpack.c.l.bf16 %v1558
        %v1687 = vunpack.c.l.bf16 %v1559
        %v1688 = vunpack.c.l.bf16 %v1560
        %v1689 = vunpack.c.l.bf16 %v1561
        %v1690 = vunpack.c.l.bf16 %v1562
        %v1691 = vunpack.c.l.bf16 %v1563
        %v1692 = vunpack.c.l.bf16 %v1564
        %v1693 = vunpack.c.l.bf16 %v1565
        %v1694 = vunpack.c.l.bf16 %v1566
        %v1695 = vunpack.c.l.bf16 %v1567
        %v1696 = vunpack.c.l.bf16 %v1568
        %v1697 = vunpack.c.l.bf16 %v1569
        %v1698 = vunpack.c.l.bf16 %v1570
        %v1699 = vunpack.c.l.bf16 %v1571
        %v1700 = vunpack.c.l.bf16 %v1572
        %v1701 = vunpack.c.l.bf16 %v1573
        %v1702 = vunpack.c.l.bf16 %v1574
        %v1703 = vunpack.c.l.bf16 %v1575
        %v1704 = vunpack.c.l.bf16 %v1576
        %v1705 = vunpack.c.l.bf16 %v1577
        %v1706 = vunpack.c.l.bf16 %v1578
        %v1707 = vunpack.c.l.bf16 %v1579
        %v1708 = vunpack.c.l.bf16 %v1580
        %v1709 = vunpack.c.l.bf16 %v1581
        %v1710 = vunpack.c.l.bf16 %v1582
        %v1711 = vunpack.c.l.bf16 %v1583
        %v1712 = vunpack.c.l.bf16 %v1584
        %v1713 = vunpack.c.l.bf16 %v1585
        %v1714 = vunpack.c.l.bf16 %v1586
        %v1715 = vunpack.c.l.bf16 %v1587
        %v1716 = vunpack.c.l.bf16 %v1588
        %v1717 = vunpack.c.l.bf16 %v1589
        %v1718 = vunpack.c.l.bf16 %v1590
        %v1719 = vunpack.c.l.bf16 %v1591
        %v1720 = vunpack.c.l.bf16 %v1592
        %v1721 = vunpack.c.l.bf16 %v1593
        %v1722 = vunpack.c.l.bf16 %v1594
        %v1723 = vunpack.c.l.bf16 %v1595
        %v1724 = vunpack.c.l.bf16 %v1596
        %v1725 = vunpack.c.l.bf16 %v1597
        %v1726 = vunpack.c.l.bf16 %v1598
        %v1727 = vunpack.c.l.bf16 %v1599
        %v1728 = vunpack.c.l.bf16 %v1600
        %v1729 = vunpack.c.l.bf16 %v1601
        %v1730 = vunpack.c.l.bf16 %v1602
        %v1731 = vunpack.c.l.bf16 %v1603
        %v1732 = vunpack.c.l.bf16 %v1604
        %v1733 = vunpack.c.l.bf16 %v1605
        %v1734 = vunpack.c.l.bf16 %v1606
        %v1735 = vunpack.c.l.bf16 %v1607
        %v1736 = vunpack.c.l.bf16 %v1608
        %v1737 = vunpack.c.l.bf16 %v1609
        %v1738 = vunpack.c.l.bf16 %v1610
        %v1739 = vunpack.c.l.bf16 %v1611
        %v1740 = vunpack.c.l.bf16 %v1612
        %v1741 = vunpack.c.l.bf16 %v1613
        %v1742 = vunpack.c.l.bf16 %v1614
        %v1743 = vunpack.c.l.bf16 %v1615
        %v1744 = vunpack.c.l.bf16 %v1616
        %v1745 = vunpack.c.l.bf16 %v1617
        %v1746 = vunpack.c.l.bf16 %v1618
        %v1747 = vunpack.c.l.bf16 %v1619
        %v1748 = vunpack.c.l.bf16 %v1620
        %v1749 = vunpack.c.l.bf16 %v1621
        %v1750 = vunpack.c.l.bf16 %v1622
        %v1751 = vunpack.c.l.bf16 %v1623
        %v1752 = vunpack.c.l.bf16 %v1624
        %v1753 = vld [vmem:[%s656] sm:$0x1]
        %v1755 = vlaneseq
        %v1756 = vshrl.u32 %v1755, 7
        %v1757 = vsub.s32 0, %v1756
        %v1758 = vrot.slane %v1753, %v1757
        %1760 = vmatprep.subr.mxu0 0.0
        %1761 = vmatpush1.msra.mxu0 %v1625
        %1762 = vmatprep.subr.mxu0 0.0
        %1763 = vmatpush1.msra.mxu0 %v1626
        %1764 = vmatprep.subr.mxu0 0.0
        %1765 = vmatpush1.msra.mxu0 %v1627
        %1766 = vmatprep.subr.mxu0 0.0
        %1767 = vmatpush1.msra.mxu0 %v1628
        %1768 = vmatprep.subr.mxu0 0.0
        %1769 = vmatpush1.msra.mxu0 %v1629
        %1770 = vmatprep.subr.mxu0 0.0
        %1771 = vmatpush1.msra.mxu0 %v1630
        %1772 = vmatprep.subr.mxu0 0.0
        %1773 = vmatpush1.msra.mxu0 %v1631
        %1774 = vmatprep.subr.mxu0 0.0
        %1775 = vmatpush1.msra.mxu0 %v1632
        %1776 = vmatprep.subr.mxu0 0.0
        %1777 = vmatpush1.msra.mxu0 %v1633
        %1778 = vmatprep.subr.mxu0 0.0
        %1779 = vmatpush1.msra.mxu0 %v1634
        %1780 = vmatprep.subr.mxu0 0.0
        %1781 = vmatpush1.msra.mxu0 %v1635
        %1782 = vmatprep.subr.mxu0 0.0
        %1783 = vmatpush1.msra.mxu0 %v1636
        %1784 = vmatprep.subr.mxu0 0.0
        %1785 = vmatpush1.msra.mxu0 %v1637
        %1786 = vmatprep.subr.mxu0 0.0
        %1787 = vmatpush1.msra.mxu0 %v1638
        %1788 = vmatprep.subr.mxu0 0.0
        %1789 = vmatpush1.msra.mxu0 %v1639
        %1790 = vmatprep.subr.mxu0 0.0
        %1791 = vmatpush1.msra.mxu0 %v1640
        %1792 = vmatprep.subr.mxu0 0.0
        %1793 = vmatpush1.msra.mxu0 %v1641
        %1794 = vmatprep.subr.mxu0 0.0
        %1795 = vmatpush1.msra.mxu0 %v1642
        %1796 = vmatprep.subr.mxu0 0.0
        %1797 = vmatpush1.msra.mxu0 %v1643
        %1798 = vmatprep.subr.mxu0 0.0
        %1799 = vmatpush1.msra.mxu0 %v1644
        %1800 = vmatprep.subr.mxu0 0.0
        %1801 = vmatpush1.msra.mxu0 %v1645
        %1802 = vmatprep.subr.mxu0 0.0
        %1803 = vmatpush1.msra.mxu0 %v1646
        %1804 = vmatprep.subr.mxu0 0.0
        %1805 = vmatpush1.msra.mxu0 %v1647
        %1806 = vmatprep.subr.mxu0 0.0
        %1807 = vmatpush1.msra.mxu0 %v1648
        %1808 = vmatprep.subr.mxu0 0.0
        %1809 = vmatpush1.msra.mxu0 %v1649
        %1810 = vmatprep.subr.mxu0 0.0
        %1811 = vmatpush1.msra.mxu0 %v1650
        %1812 = vmatprep.subr.mxu0 0.0
        %1813 = vmatpush1.msra.mxu0 %v1651
        %1814 = vmatprep.subr.mxu0 0.0
        %1815 = vmatpush1.msra.mxu0 %v1652
        %1816 = vmatprep.subr.mxu0 0.0
        %1817 = vmatpush1.msra.mxu0 %v1653
        %1818 = vmatprep.subr.mxu0 0.0
        %1819 = vmatpush1.msra.mxu0 %v1654
        %1820 = vmatprep.subr.mxu0 0.0
        %1821 = vmatpush1.msra.mxu0 %v1655
        %1822 = vmatprep.subr.mxu0 0.0
        %1823 = vmatpush1.msra.mxu0 %v1656
        %1824 = vmatprep.mubr.f32.mxu0 %v1490
        %1825 = vmatmul.mubr.f32.gmra.mrb[0].mxu0 %v1489
        %v1826 = vpop.f32.mrb[0].mxu0
        %v1827 = vadd.f32 %v1758, %v1826
        %v1828 = vpop.f32.mrb[0].mxu0
        %1829 = vdwg.mxu0
        %1830 = vmatprep.subr.mxu0 0.0
        %1831 = vmatpush1.msra.mxu0 %v1657
        %1832 = vmatprep.subr.mxu0 0.0
        %1833 = vmatpush1.msra.mxu0 %v1658
        %1834 = vmatprep.subr.mxu0 0.0
        %1835 = vmatpush1.msra.mxu0 %v1659
        %1836 = vmatprep.subr.mxu0 0.0
        %1837 = vmatpush1.msra.mxu0 %v1660
        %1838 = vmatprep.subr.mxu0 0.0
        %1839 = vmatpush1.msra.mxu0 %v1661
        %1840 = vmatprep.subr.mxu0 0.0
        %1841 = vmatpush1.msra.mxu0 %v1662
        %1842 = vmatprep.subr.mxu0 0.0
        %1843 = vmatpush1.msra.mxu0 %v1663
        %1844 = vmatprep.subr.mxu0 0.0
        %1845 = vmatpush1.msra.mxu0 %v1664
        %1846 = vmatprep.subr.mxu0 0.0
        %1847 = vmatpush1.msra.mxu0 %v1665
        %1848 = vmatprep.subr.mxu0 0.0
        %1849 = vmatpush1.msra.mxu0 %v1666
        %1850 = vmatprep.subr.mxu0 0.0
        %1851 = vmatpush1.msra.mxu0 %v1667
        %1852 = vmatprep.subr.mxu0 0.0
        %1853 = vmatpush1.msra.mxu0 %v1668
        %1854 = vmatprep.subr.mxu0 0.0
        %1855 = vmatpush1.msra.mxu0 %v1669
        %1856 = vmatprep.subr.mxu0 0.0
        %1857 = vmatpush1.msra.mxu0 %v1670
        %1858 = vmatprep.subr.mxu0 0.0
        %1859 = vmatpush1.msra.mxu0 %v1671
        %1860 = vmatprep.subr.mxu0 0.0
        %1861 = vmatpush1.msra.mxu0 %v1672
        %1862 = vmatprep.subr.mxu0 0.0
        %1863 = vmatpush1.msra.mxu0 %v1673
        %1864 = vmatprep.subr.mxu0 0.0
        %1865 = vmatpush1.msra.mxu0 %v1674
        %1866 = vmatprep.subr.mxu0 0.0
        %1867 = vmatpush1.msra.mxu0 %v1675
        %1868 = vmatprep.subr.mxu0 0.0
        %1869 = vmatpush1.msra.mxu0 %v1676
        %1870 = vmatprep.subr.mxu0 0.0
        %1871 = vmatpush1.msra.mxu0 %v1677
        %1872 = vmatprep.subr.mxu0 0.0
        %1873 = vmatpush1.msra.mxu0 %v1678
        %1874 = vmatprep.subr.mxu0 0.0
        %1875 = vmatpush1.msra.mxu0 %v1679
        %1876 = vmatprep.subr.mxu0 0.0
        %1877 = vmatpush1.msra.mxu0 %v1680
        %1878 = vmatprep.subr.mxu0 0.0
        %1879 = vmatpush1.msra.mxu0 %v1681
        %1880 = vmatprep.subr.mxu0 0.0
        %1881 = vmatpush1.msra.mxu0 %v1682
        %1882 = vmatprep.subr.mxu0 0.0
        %1883 = vmatpush1.msra.mxu0 %v1683
        %1884 = vmatprep.subr.mxu0 0.0
        %1885 = vmatpush1.msra.mxu0 %v1684
        %1886 = vmatprep.subr.mxu0 0.0
        %1887 = vmatpush1.msra.mxu0 %v1685
        %1888 = vmatprep.subr.mxu0 0.0
        %1889 = vmatpush1.msra.mxu0 %v1686
        %1890 = vmatprep.subr.mxu0 0.0
        %1891 = vmatpush1.msra.mxu0 %v1687
        %1892 = vmatprep.subr.mxu0 0.0
        %1893 = vmatpush1.msra.mxu0 %v1688
        %1894 = vmatprep.mubr.f32.mxu0 %v1492
        %1895 = vmatmul.mubr.f32.gmra.mrb[0].mxu0 %v1491
        %v1896 = vpop.f32.mrb[0].mxu0
        %v1897 = vadd.f32 %v1827, %v1896
        %v1898 = vpop.f32.mrb[0].mxu0
        %1899 = vdwg.mxu0
        %1900 = vmatprep.subr.mxu0 0.0
        %1901 = vmatpush1.msra.mxu0 %v1689
        %1902 = vmatprep.subr.mxu0 0.0
        %1903 = vmatpush1.msra.mxu0 %v1690
        %1904 = vmatprep.subr.mxu0 0.0
        %1905 = vmatpush1.msra.mxu0 %v1691
        %1906 = vmatprep.subr.mxu0 0.0
        %1907 = vmatpush1.msra.mxu0 %v1692
        %1908 = vmatprep.subr.mxu0 0.0
        %1909 = vmatpush1.msra.mxu0 %v1693
        %1910 = vmatprep.subr.mxu0 0.0
        %1911 = vmatpush1.msra.mxu0 %v1694
        %1912 = vmatprep.subr.mxu0 0.0
        %1913 = vmatpush1.msra.mxu0 %v1695
        %1914 = vmatprep.subr.mxu0 0.0
        %1915 = vmatpush1.msra.mxu0 %v1696
        %1916 = vmatprep.subr.mxu0 0.0
        %1917 = vmatpush1.msra.mxu0 %v1697
        %1918 = vmatprep.subr.mxu0 0.0
        %1919 = vmatpush1.msra.mxu0 %v1698
        %1920 = vmatprep.subr.mxu0 0.0
        %1921 = vmatpush1.msra.mxu0 %v1699
        %1922 = vmatprep.subr.mxu0 0.0
        %1923 = vmatpush1.msra.mxu0 %v1700
        %1924 = vmatprep.subr.mxu0 0.0
        %1925 = vmatpush1.msra.mxu0 %v1701
        %1926 = vmatprep.subr.mxu0 0.0
        %1927 = vmatpush1.msra.mxu0 %v1702
        %1928 = vmatprep.subr.mxu0 0.0
        %1929 = vmatpush1.msra.mxu0 %v1703
        %1930 = vmatprep.subr.mxu0 0.0
        %1931 = vmatpush1.msra.mxu0 %v1704
        %1932 = vmatprep.subr.mxu0 0.0
        %1933 = vmatpush1.msra.mxu0 %v1705
        %1934 = vmatprep.subr.mxu0 0.0
        %1935 = vmatpush1.msra.mxu0 %v1706
        %1936 = vmatprep.subr.mxu0 0.0
        %1937 = vmatpush1.msra.mxu0 %v1707
        %1938 = vmatprep.subr.mxu0 0.0
        %1939 = vmatpush1.msra.mxu0 %v1708
        %1940 = vmatprep.subr.mxu0 0.0
        %1941 = vmatpush1.msra.mxu0 %v1709
        %1942 = vmatprep.subr.mxu0 0.0
        %1943 = vmatpush1.msra.mxu0 %v1710
        %1944 = vmatprep.subr.mxu0 0.0
        %1945 = vmatpush1.msra.mxu0 %v1711
        %1946 = vmatprep.subr.mxu0 0.0
        %1947 = vmatpush1.msra.mxu0 %v1712
        %1948 = vmatprep.subr.mxu0 0.0
        %1949 = vmatpush1.msra.mxu0 %v1713
        %1950 = vmatprep.subr.mxu0 0.0
        %1951 = vmatpush1.msra.mxu0 %v1714
        %1952 = vmatprep.subr.mxu0 0.0
        %1953 = vmatpush1.msra.mxu0 %v1715
        %1954 = vmatprep.subr.mxu0 0.0
        %1955 = vmatpush1.msra.mxu0 %v1716
        %1956 = vmatprep.subr.mxu0 0.0
        %1957 = vmatpush1.msra.mxu0 %v1717
        %1958 = vmatprep.subr.mxu0 0.0
        %1959 = vmatpush1.msra.mxu0 %v1718
        %1960 = vmatprep.subr.mxu0 0.0
        %1961 = vmatpush1.msra.mxu0 %v1719
        %1962 = vmatprep.subr.mxu0 0.0
        %1963 = vmatpush1.msra.mxu0 %v1720
        %1964 = vmatprep.mubr.f32.mxu0 %v1494
        %1965 = vmatmul.mubr.f32.gmra.mrb[0].mxu0 %v1493
        %v1966 = vpop.f32.mrb[0].mxu0
        %v1967 = vadd.f32 %v1897, %v1966
        %v1968 = vpop.f32.mrb[0].mxu0
        %1969 = vdwg.mxu0
        %1970 = vmatprep.subr.mxu0 0.0
        %1971 = vmatpush1.msra.mxu0 %v1721
        %1972 = vmatprep.subr.mxu0 0.0
        %1973 = vmatpush1.msra.mxu0 %v1722
        %1974 = vmatprep.subr.mxu0 0.0
        %1975 = vmatpush1.msra.mxu0 %v1723
        %1976 = vmatprep.subr.mxu0 0.0
        %1977 = vmatpush1.msra.mxu0 %v1724
        %1978 = vmatprep.subr.mxu0 0.0
        %1979 = vmatpush1.msra.mxu0 %v1725
        %1980 = vmatprep.subr.mxu0 0.0
        %1981 = vmatpush1.msra.mxu0 %v1726
        %1982 = vmatprep.subr.mxu0 0.0
        %1983 = vmatpush1.msra.mxu0 %v1727
        %1984 = vmatprep.subr.mxu0 0.0
        %1985 = vmatpush1.msra.mxu0 %v1728
        %1986 = vmatprep.subr.mxu0 0.0
        %1987 = vmatpush1.msra.mxu0 %v1729
        %1988 = vmatprep.subr.mxu0 0.0
        %1989 = vmatpush1.msra.mxu0 %v1730
        %1990 = vmatprep.subr.mxu0 0.0
        %1991 = vmatpush1.msra.mxu0 %v1731
        %1992 = vmatprep.subr.mxu0 0.0
        %1993 = vmatpush1.msra.mxu0 %v1732
        %1994 = vmatprep.subr.mxu0 0.0
        %1995 = vmatpush1.msra.mxu0 %v1733
        %1996 = vmatprep.subr.mxu0 0.0
        %1997 = vmatpush1.msra.mxu0 %v1734
        %1998 = vmatprep.subr.mxu0 0.0
        %1999 = vmatpush1.msra.mxu0 %v1735
        %2000 = vmatprep.subr.mxu0 0.0
        %2001 = vmatpush1.msra.mxu0 %v1736
        %2002 = vmatprep.subr.mxu0 0.0
        %2003 = vmatpush1.msra.mxu0 %v1737
        %2004 = vmatprep.subr.mxu0 0.0
        %2005 = vmatpush1.msra.mxu0 %v1738
        %2006 = vmatprep.subr.mxu0 0.0
        %2007 = vmatpush1.msra.mxu0 %v1739
        %2008 = vmatprep.subr.mxu0 0.0
        %2009 = vmatpush1.msra.mxu0 %v1740
        %2010 = vmatprep.subr.mxu0 0.0
        %2011 = vmatpush1.msra.mxu0 %v1741
        %2012 = vmatprep.subr.mxu0 0.0
        %2013 = vmatpush1.msra.mxu0 %v1742
        %2014 = vmatprep.subr.mxu0 0.0
        %2015 = vmatpush1.msra.mxu0 %v1743
        %2016 = vmatprep.subr.mxu0 0.0
        %2017 = vmatpush1.msra.mxu0 %v1744
        %2018 = vmatprep.subr.mxu0 0.0
        %2019 = vmatpush1.msra.mxu0 %v1745
        %2020 = vmatprep.subr.mxu0 0.0
        %2021 = vmatpush1.msra.mxu0 %v1746
        %2022 = vmatprep.subr.mxu0 0.0
        %2023 = vmatpush1.msra.mxu0 %v1747
        %2024 = vmatprep.subr.mxu0 0.0
        %2025 = vmatpush1.msra.mxu0 %v1748
        %2026 = vmatprep.subr.mxu0 0.0
        %2027 = vmatpush1.msra.mxu0 %v1749
        %2028 = vmatprep.subr.mxu0 0.0
        %2029 = vmatpush1.msra.mxu0 %v1750
        %2030 = vmatprep.subr.mxu0 0.0
        %2031 = vmatpush1.msra.mxu0 %v1751
        %2032 = vmatprep.subr.mxu0 0.0
        %2033 = vmatpush1.msra.mxu0 %v1752
        %2034 = vmatprep.mubr.f32.mxu0 %v1496
        %2035 = vmatmul.mubr.f32.gmra.mrb[0].mxu0 %v1495
        %v2036 = vpop.f32.mrb[0].mxu0
        %v2037 = vadd.f32 %v1967, %v2036
        %v2038 = vpop.f32.mrb[0].mxu0
        %2039 = vdwg.mxu0
        %v2040 = vld [vmem:[%s665] sm:$0xff]
        %v2041 = vld [vmem:[%s665 + $0x8] sm:$0xff]
        %v2042 = vld [vmem:[%s665 + $0x10] sm:$0xff]
        %v2043 = vld [vmem:[%s665 + $0x18] sm:$0xff]
        %v2044 = vld [vmem:[%s665 + $0x20] sm:$0xff]
        %v2045 = vld [vmem:[%s665 + $0x28] sm:$0xff]
        %v2046 = vld [vmem:[%s665 + $0x30] sm:$0xff]
        %v2047 = vld [vmem:[%s665 + $0x38] sm:$0xff]
        %v2048 = vld [vmem:[%s665 + $0x40] sm:$0xff]
        %v2049 = vld [vmem:[%s665 + $0x48] sm:$0xff]
        %v2050 = vld [vmem:[%s665 + $0x50] sm:$0xff]
        %v2051 = vld [vmem:[%s665 + $0x58] sm:$0xff]
        %v2052 = vld [vmem:[%s665 + $0x60] sm:$0xff]
        %v2053 = vld [vmem:[%s665 + $0x68] sm:$0xff]
        %v2054 = vld [vmem:[%s665 + $0x70] sm:$0xff]
        %v2055 = vld [vmem:[%s665 + $0x78] sm:$0xff]
        %v2056 = vunpack.c.l.bf16 %v2040
        %v2057 = vunpack.c.h.bf16 %v2040
        %v2058 = vunpack.c.l.bf16 %v2041
        %v2059 = vunpack.c.h.bf16 %v2041
        %v2060 = vunpack.c.l.bf16 %v2042
        %v2061 = vunpack.c.h.bf16 %v2042
        %v2062 = vunpack.c.l.bf16 %v2043
        %v2063 = vunpack.c.h.bf16 %v2043
        %v2064 = vunpack.c.l.bf16 %v2044
        %v2065 = vunpack.c.h.bf16 %v2044
        %v2066 = vunpack.c.l.bf16 %v2045
        %v2067 = vunpack.c.h.bf16 %v2045
        %v2068 = vunpack.c.l.bf16 %v2046
        %v2069 = vunpack.c.h.bf16 %v2046
        %v2070 = vunpack.c.l.bf16 %v2047
        %v2071 = vunpack.c.h.bf16 %v2047
        %v2072 = vunpack.c.l.bf16 %v2048
        %v2073 = vunpack.c.h.bf16 %v2048
        %v2074 = vunpack.c.l.bf16 %v2049
        %v2075 = vunpack.c.h.bf16 %v2049
        %v2076 = vunpack.c.l.bf16 %v2050
        %v2077 = vunpack.c.h.bf16 %v2050
        %v2078 = vunpack.c.l.bf16 %v2051
        %v2079 = vunpack.c.h.bf16 %v2051
        %v2080 = vunpack.c.l.bf16 %v2052
        %v2081 = vunpack.c.h.bf16 %v2052
        %v2082 = vunpack.c.l.bf16 %v2053
        %v2083 = vunpack.c.h.bf16 %v2053
        %v2084 = vunpack.c.l.bf16 %v2054
        %v2085 = vunpack.c.h.bf16 %v2054
        %v2086 = vunpack.c.l.bf16 %v2055
        %v2087 = vunpack.c.h.bf16 %v2055
        %v2088 = vld [vmem:[%s674] sm:$0xff]
        %v2090 = vlaneseq
        %v2091 = vshrl.u32 %v2090, 7
        %v2092 = vsub.s32 0, %v2091
        %v2093 = vrot.slane %v2088, %v2092
        %v2094 = vlaneseq
        %v2095 = vshrl.u32 %v2094, 7
        %v2096 = vsub.s32 1, %v2095
        %v2097 = vrot.slane %v2088, %v2096
        %v2098 = vlaneseq
        %v2099 = vshrl.u32 %v2098, 7
        %v2100 = vsub.s32 2, %v2099
        %v2101 = vrot.slane %v2088, %v2100
        %v2102 = vlaneseq
        %v2103 = vshrl.u32 %v2102, 7
        %v2104 = vsub.s32 3, %v2103
        %v2105 = vrot.slane %v2088, %v2104
        %v2106 = vlaneseq
        %v2107 = vshrl.u32 %v2106, 7
        %v2108 = vsub.s32 4, %v2107
        %v2109 = vrot.slane %v2088, %v2108
        %v2110 = vlaneseq
        %v2111 = vshrl.u32 %v2110, 7
        %v2112 = vsub.s32 5, %v2111
        %v2113 = vrot.slane %v2088, %v2112
        %v2114 = vlaneseq
        %v2115 = vshrl.u32 %v2114, 7
        %v2116 = vsub.s32 6, %v2115
        %v2117 = vrot.slane %v2088, %v2116
        %v2118 = vlaneseq
        %v2119 = vshrl.u32 %v2118, 7
        %v2120 = vsub.s32 7, %v2119
        %v2121 = vrot.slane %v2088, %v2120
        %2130 = vmatprep.subr.mxu0 %v2057
        %2131 = vmatpush1.msra.mxu0 %v2056
        %2132 = vmatprep.subr.mxu0 %v2065
        %2133 = vmatpush1.msra.mxu0 %v2064
        %2134 = vmatprep.subr.mxu0 %v2073
        %2135 = vmatpush1.msra.mxu0 %v2072
        %2136 = vmatprep.subr.mxu0 %v2081
        %2137 = vmatpush1.msra.mxu0 %v2080
        %2138 = vmatprep.subr.mxu0 0.0
        %2139 = vmatpush1.msra.mxu0 0.0
        %2140 = vmatprep.subr.mxu0 0.0
        %2141 = vmatpush1.msra.mxu0 0.0
        %2142 = vmatprep.subr.mxu0 0.0
        %2143 = vmatpush1.msra.mxu0 0.0
        %2144 = vmatprep.subr.mxu0 0.0
        %2145 = vmatpush1.msra.mxu0 0.0
        %2146 = vmatprep.subr.mxu0 0.0
        %2147 = vmatpush1.msra.mxu0 0.0
        %2148 = vmatprep.subr.mxu0 0.0
        %2149 = vmatpush1.msra.mxu0 0.0
        %2150 = vmatprep.subr.mxu0 0.0
        %2151 = vmatpush1.msra.mxu0 0.0
        %2152 = vmatprep.subr.mxu0 0.0
        %2153 = vmatpush1.msra.mxu0 0.0
        %2154 = vmatprep.subr.mxu0 0.0
        %2155 = vmatpush1.msra.mxu0 0.0
        %2156 = vmatprep.subr.mxu0 0.0
        %2157 = vmatpush1.msra.mxu0 0.0
        %2158 = vmatprep.subr.mxu0 0.0
        %2159 = vmatpush1.msra.mxu0 0.0
        %2160 = vmatprep.subr.mxu0 0.0
        %2161 = vmatpush1.msra.mxu0 0.0
        %2162 = vmatprep.subr.mxu0 0.0
        %2163 = vmatpush1.msra.mxu0 0.0
        %2164 = vmatprep.subr.mxu0 0.0
        %2165 = vmatpush1.msra.mxu0 0.0
        %2166 = vmatprep.subr.mxu0 0.0
        %2167 = vmatpush1.msra.mxu0 0.0
        %2168 = vmatprep.subr.mxu0 0.0
        %2169 = vmatpush1.msra.mxu0 0.0
        %2170 = vmatprep.subr.mxu0 0.0
        %2171 = vmatpush1.msra.mxu0 0.0
        %2172 = vmatprep.subr.mxu0 0.0
        %2173 = vmatpush1.msra.mxu0 0.0
        %2174 = vmatprep.subr.mxu0 0.0
        %2175 = vmatpush1.msra.mxu0 0.0
        %2176 = vmatprep.subr.mxu0 0.0
        %2177 = vmatpush1.msra.mxu0 0.0
        %2178 = vmatprep.subr.mxu0 0.0
        %2179 = vmatpush1.msra.mxu0 0.0
        %2180 = vmatprep.subr.mxu0 0.0
        %2181 = vmatpush1.msra.mxu0 0.0
        %2182 = vmatprep.subr.mxu0 0.0
        %2183 = vmatpush1.msra.mxu0 0.0
        %2184 = vmatprep.subr.mxu0 0.0
        %2185 = vmatpush1.msra.mxu0 0.0
        %2186 = vmatprep.subr.mxu0 0.0
        %2187 = vmatpush1.msra.mxu0 0.0
        %2188 = vmatprep.subr.mxu0 0.0
        %2189 = vmatpush1.msra.mxu0 0.0
        %2190 = vmatprep.subr.mxu0 0.0
        %2191 = vmatpush1.msra.mxu0 0.0
        %2192 = vmatprep.subr.mxu0 0.0
        %2193 = vmatpush1.msra.mxu0 0.0
        %2194 = vmatprep.mubr.f32.mxu0 0.0
        %2195 = vmatmul.mubr.f32.gmra.mrb[0].mxu0 %v1203
        %v2196 = vpop.f32.mrb[0].mxu0
        %v2197 = vadd.f32 %v2093, %v2196
        %v2198 = vpop.f32.mrb[0].mxu0
        %v2199 = vadd.f32 %v2097, %v2198
        %2200 = vdwg.mxu0
        %2201 = vmatprep.subr.mxu0 %v2059
        %2202 = vmatpush1.msra.mxu0 %v2058
        %2203 = vmatprep.subr.mxu0 %v2067
        %2204 = vmatpush1.msra.mxu0 %v2066
        %2205 = vmatprep.subr.mxu0 %v2075
        %2206 = vmatpush1.msra.mxu0 %v2074
        %2207 = vmatprep.subr.mxu0 %v2083
        %2208 = vmatpush1.msra.mxu0 %v2082
        %2209 = vmatprep.subr.mxu0 0.0
        %2210 = vmatpush1.msra.mxu0 0.0
        %2211 = vmatprep.subr.mxu0 0.0
        %2212 = vmatpush1.msra.mxu0 0.0
        %2213 = vmatprep.subr.mxu0 0.0
        %2214 = vmatpush1.msra.mxu0 0.0
        %2215 = vmatprep.subr.mxu0 0.0
        %2216 = vmatpush1.msra.mxu0 0.0
        %2217 = vmatprep.subr.mxu0 0.0
        %2218 = vmatpush1.msra.mxu0 0.0
        %2219 = vmatprep.subr.mxu0 0.0
        %2220 = vmatpush1.msra.mxu0 0.0
        %2221 = vmatprep.subr.mxu0 0.0
        %2222 = vmatpush1.msra.mxu0 0.0
        %2223 = vmatprep.subr.mxu0 0.0
        %2224 = vmatpush1.msra.mxu0 0.0
        %2225 = vmatprep.subr.mxu0 0.0
        %2226 = vmatpush1.msra.mxu0 0.0
        %2227 = vmatprep.subr.mxu0 0.0
        %2228 = vmatpush1.msra.mxu0 0.0
        %2229 = vmatprep.subr.mxu0 0.0
        %2230 = vmatpush1.msra.mxu0 0.0
        %2231 = vmatprep.subr.mxu0 0.0
        %2232 = vmatpush1.msra.mxu0 0.0
        %2233 = vmatprep.subr.mxu0 0.0
        %2234 = vmatpush1.msra.mxu0 0.0
        %2235 = vmatprep.subr.mxu0 0.0
        %2236 = vmatpush1.msra.mxu0 0.0
        %2237 = vmatprep.subr.mxu0 0.0
        %2238 = vmatpush1.msra.mxu0 0.0
        %2239 = vmatprep.subr.mxu0 0.0
        %2240 = vmatpush1.msra.mxu0 0.0
        %2241 = vmatprep.subr.mxu0 0.0
        %2242 = vmatpush1.msra.mxu0 0.0
        %2243 = vmatprep.subr.mxu0 0.0
        %2244 = vmatpush1.msra.mxu0 0.0
        %2245 = vmatprep.subr.mxu0 0.0
        %2246 = vmatpush1.msra.mxu0 0.0
        %2247 = vmatprep.subr.mxu0 0.0
        %2248 = vmatpush1.msra.mxu0 0.0
        %2249 = vmatprep.subr.mxu0 0.0
        %2250 = vmatpush1.msra.mxu0 0.0
        %2251 = vmatprep.subr.mxu0 0.0
        %2252 = vmatpush1.msra.mxu0 0.0
        %2253 = vmatprep.subr.mxu0 0.0
        %2254 = vmatpush1.msra.mxu0 0.0
        %2255 = vmatprep.subr.mxu0 0.0
        %2256 = vmatpush1.msra.mxu0 0.0
        %2257 = vmatprep.subr.mxu0 0.0
        %2258 = vmatpush1.msra.mxu0 0.0
        %2259 = vmatprep.subr.mxu0 0.0
        %2260 = vmatpush1.msra.mxu0 0.0
        %2261 = vmatprep.subr.mxu0 0.0
        %2262 = vmatpush1.msra.mxu0 0.0
        %2263 = vmatprep.subr.mxu0 0.0
        %2264 = vmatpush1.msra.mxu0 0.0
        %2265 = vmatprep.mubr.f32.mxu0 0.0
        %2266 = vmatmul.mubr.f32.gmra.mrb[0].mxu0 %v1203
        %v2267 = vpop.f32.mrb[0].mxu0
        %v2268 = vadd.f32 %v2101, %v2267
        %v2269 = vpop.f32.mrb[0].mxu0
        %v2270 = vadd.f32 %v2105, %v2269
        %2271 = vdwg.mxu0
        %2272 = vmatprep.subr.mxu0 %v2061
        %2273 = vmatpush1.msra.mxu0 %v2060
        %2274 = vmatprep.subr.mxu0 %v2069
        %2275 = vmatpush1.msra.mxu0 %v2068
        %2276 = vmatprep.subr.mxu0 %v2077
        %2277 = vmatpush1.msra.mxu0 %v2076
        %2278 = vmatprep.subr.mxu0 %v2085
        %2279 = vmatpush1.msra.mxu0 %v2084
        %2280 = vmatprep.subr.mxu0 0.0
        %2281 = vmatpush1.msra.mxu0 0.0
        %2282 = vmatprep.subr.mxu0 0.0
        %2283 = vmatpush1.msra.mxu0 0.0
        %2284 = vmatprep.subr.mxu0 0.0
        %2285 = vmatpush1.msra.mxu0 0.0
        %2286 = vmatprep.subr.mxu0 0.0
        %2287 = vmatpush1.msra.mxu0 0.0
        %2288 = vmatprep.subr.mxu0 0.0
        %2289 = vmatpush1.msra.mxu0 0.0
        %2290 = vmatprep.subr.mxu0 0.0
        %2291 = vmatpush1.msra.mxu0 0.0
        %2292 = vmatprep.subr.mxu0 0.0
        %2293 = vmatpush1.msra.mxu0 0.0
        %2294 = vmatprep.subr.mxu0 0.0
        %2295 = vmatpush1.msra.mxu0 0.0
        %2296 = vmatprep.subr.mxu0 0.0
        %2297 = vmatpush1.msra.mxu0 0.0
        %2298 = vmatprep.subr.mxu0 0.0
        %2299 = vmatpush1.msra.mxu0 0.0
        %2300 = vmatprep.subr.mxu0 0.0
        %2301 = vmatpush1.msra.mxu0 0.0
        %2302 = vmatprep.subr.mxu0 0.0
        %2303 = vmatpush1.msra.mxu0 0.0
        %2304 = vmatprep.subr.mxu0 0.0
        %2305 = vmatpush1.msra.mxu0 0.0
        %2306 = vmatprep.subr.mxu0 0.0
        %2307 = vmatpush1.msra.mxu0 0.0
        %2308 = vmatprep.subr.mxu0 0.0
        %2309 = vmatpush1.msra.mxu0 0.0
        %2310 = vmatprep.subr.mxu0 0.0
        %2311 = vmatpush1.msra.mxu0 0.0
        %2312 = vmatprep.subr.mxu0 0.0
        %2313 = vmatpush1.msra.mxu0 0.0
        %2314 = vmatprep.subr.mxu0 0.0
        %2315 = vmatpush1.msra.mxu0 0.0
        %2316 = vmatprep.subr.mxu0 0.0
        %2317 = vmatpush1.msra.mxu0 0.0
        %2318 = vmatprep.subr.mxu0 0.0
        %2319 = vmatpush1.msra.mxu0 0.0
        %2320 = vmatprep.subr.mxu0 0.0
        %2321 = vmatpush1.msra.mxu0 0.0
        %2322 = vmatprep.subr.mxu0 0.0
        %2323 = vmatpush1.msra.mxu0 0.0
        %2324 = vmatprep.subr.mxu0 0.0
        %2325 = vmatpush1.msra.mxu0 0.0
        %2326 = vmatprep.subr.mxu0 0.0
        %2327 = vmatpush1.msra.mxu0 0.0
        %2328 = vmatprep.subr.mxu0 0.0
        %2329 = vmatpush1.msra.mxu0 0.0
        %2330 = vmatprep.subr.mxu0 0.0
        %2331 = vmatpush1.msra.mxu0 0.0
        %2332 = vmatprep.subr.mxu0 0.0
        %2333 = vmatpush1.msra.mxu0 0.0
        %2334 = vmatprep.subr.mxu0 0.0
        %2335 = vmatpush1.msra.mxu0 0.0
        %2336 = vmatprep.mubr.f32.mxu0 0.0
        %2337 = vmatmul.mubr.f32.gmra.mrb[0].mxu0 %v1203
        %v2338 = vpop.f32.mrb[0].mxu0
        %v2339 = vadd.f32 %v2109, %v2338
        %v2340 = vpop.f32.mrb[0].mxu0
        %v2341 = vadd.f32 %v2113, %v2340
        %2342 = vdwg.mxu0
        %2343 = vmatprep.subr.mxu0 %v2063
        %2344 = vmatpush1.msra.mxu0 %v2062
        %2345 = vmatprep.subr.mxu0 %v2071
        %2346 = vmatpush1.msra.mxu0 %v2070
        %2347 = vmatprep.subr.mxu0 %v2079
        %2348 = vmatpush1.msra.mxu0 %v2078
        %2349 = vmatprep.subr.mxu0 %v2087
        %2350 = vmatpush1.msra.mxu0 %v2086
        %2351 = vmatprep.subr.mxu0 0.0
        %2352 = vmatpush1.msra.mxu0 0.0
        %2353 = vmatprep.subr.mxu0 0.0
        %2354 = vmatpush1.msra.mxu0 0.0
        %2355 = vmatprep.subr.mxu0 0.0
        %2356 = vmatpush1.msra.mxu0 0.0
        %2357 = vmatprep.subr.mxu0 0.0
        %2358 = vmatpush1.msra.mxu0 0.0
        %2359 = vmatprep.subr.mxu0 0.0
        %2360 = vmatpush1.msra.mxu0 0.0
        %2361 = vmatprep.subr.mxu0 0.0
        %2362 = vmatpush1.msra.mxu0 0.0
        %2363 = vmatprep.subr.mxu0 0.0
        %2364 = vmatpush1.msra.mxu0 0.0
        %2365 = vmatprep.subr.mxu0 0.0
        %2366 = vmatpush1.msra.mxu0 0.0
        %2367 = vmatprep.subr.mxu0 0.0
        %2368 = vmatpush1.msra.mxu0 0.0
        %2369 = vmatprep.subr.mxu0 0.0
        %2370 = vmatpush1.msra.mxu0 0.0
        %2371 = vmatprep.subr.mxu0 0.0
        %2372 = vmatpush1.msra.mxu0 0.0
        %2373 = vmatprep.subr.mxu0 0.0
        %2374 = vmatpush1.msra.mxu0 0.0
        %2375 = vmatprep.subr.mxu0 0.0
        %2376 = vmatpush1.msra.mxu0 0.0
        %2377 = vmatprep.subr.mxu0 0.0
        %2378 = vmatpush1.msra.mxu0 0.0
        %2379 = vmatprep.subr.mxu0 0.0
        %2380 = vmatpush1.msra.mxu0 0.0
        %2381 = vmatprep.subr.mxu0 0.0
        %2382 = vmatpush1.msra.mxu0 0.0
        %2383 = vmatprep.subr.mxu0 0.0
        %2384 = vmatpush1.msra.mxu0 0.0
        %2385 = vmatprep.subr.mxu0 0.0
        %2386 = vmatpush1.msra.mxu0 0.0
        %2387 = vmatprep.subr.mxu0 0.0
        %2388 = vmatpush1.msra.mxu0 0.0
        %2389 = vmatprep.subr.mxu0 0.0
        %2390 = vmatpush1.msra.mxu0 0.0
        %2391 = vmatprep.subr.mxu0 0.0
        %2392 = vmatpush1.msra.mxu0 0.0
        %2393 = vmatprep.subr.mxu0 0.0
        %2394 = vmatpush1.msra.mxu0 0.0
        %2395 = vmatprep.subr.mxu0 0.0
        %2396 = vmatpush1.msra.mxu0 0.0
        %2397 = vmatprep.subr.mxu0 0.0
        %2398 = vmatpush1.msra.mxu0 0.0
        %2399 = vmatprep.subr.mxu0 0.0
        %2400 = vmatpush1.msra.mxu0 0.0
        %2401 = vmatprep.subr.mxu0 0.0
        %2402 = vmatpush1.msra.mxu0 0.0
        %2403 = vmatprep.subr.mxu0 0.0
        %2404 = vmatpush1.msra.mxu0 0.0
        %2405 = vmatprep.subr.mxu0 0.0
        %2406 = vmatpush1.msra.mxu0 0.0
        %2407 = vmatprep.mubr.f32.mxu0 0.0
        %2408 = vmatmul.mubr.f32.gmra.mrb[0].mxu0 %v1203
        %v2409 = vpop.f32.mrb[0].mxu0
        %v2410 = vadd.f32 %v2117, %v2409
        %v2411 = vpop.f32.mrb[0].mxu0
        %v2412 = vadd.f32 %v2121, %v2411
        %2413 = vdwg.mxu0
        %v2414 = vmax.f32 %v2197, 0.0
        %v2415 = vmax.f32 %v2199, 0.0
        %v2416 = vmax.f32 %v2268, 0.0
        %v2417 = vmax.f32 %v2270, 0.0
        %v2418 = vmax.f32 %v2339, 0.0
        %v2419 = vmax.f32 %v2341, 0.0
        %v2420 = vmax.f32 %v2410, 0.0
        %v2421 = vmax.f32 %v2412, 0.0
        %v2422 = vld [vmem:[%s683] sm:$0xf]
        %v2423 = vld [vmem:[%s683 + $0x4] sm:$0xf]
        %v2424 = vld [vmem:[%s683 + $0x8] sm:$0xf]
        %v2425 = vld [vmem:[%s683 + $0xc] sm:$0xf]
        %v2426 = vld [vmem:[%s683 + $0x10] sm:$0xf]
        %v2427 = vld [vmem:[%s683 + $0x14] sm:$0xf]
        %v2428 = vld [vmem:[%s683 + $0x18] sm:$0xf]
        %v2429 = vld [vmem:[%s683 + $0x1c] sm:$0xf]
        %v2430 = vld [vmem:[%s683 + $0x20] sm:$0xf]
        %v2431 = vld [vmem:[%s683 + $0x24] sm:$0xf]
        %v2432 = vld [vmem:[%s683 + $0x28] sm:$0xf]
        %v2433 = vld [vmem:[%s683 + $0x2c] sm:$0xf]
        %v2434 = vld [vmem:[%s683 + $0x30] sm:$0xf]
        %v2435 = vld [vmem:[%s683 + $0x34] sm:$0xf]
        %v2436 = vld [vmem:[%s683 + $0x38] sm:$0xf]
        %v2437 = vld [vmem:[%s683 + $0x3c] sm:$0xf]
        %v2438 = vld [vmem:[%s683 + $0x40] sm:$0xf]
        %v2439 = vld [vmem:[%s683 + $0x44] sm:$0xf]
        %v2440 = vld [vmem:[%s683 + $0x48] sm:$0xf]
        %v2441 = vld [vmem:[%s683 + $0x4c] sm:$0xf]
        %v2442 = vld [vmem:[%s683 + $0x50] sm:$0xf]
        %v2443 = vld [vmem:[%s683 + $0x54] sm:$0xf]
        %v2444 = vld [vmem:[%s683 + $0x58] sm:$0xf]
        %v2445 = vld [vmem:[%s683 + $0x5c] sm:$0xf]
        %v2446 = vld [vmem:[%s683 + $0x60] sm:$0xf]
        %v2447 = vld [vmem:[%s683 + $0x64] sm:$0xf]
        %v2448 = vld [vmem:[%s683 + $0x68] sm:$0xf]
        %v2449 = vld [vmem:[%s683 + $0x6c] sm:$0xf]
        %v2450 = vld [vmem:[%s683 + $0x70] sm:$0xf]
        %v2451 = vld [vmem:[%s683 + $0x74] sm:$0xf]
        %v2452 = vld [vmem:[%s683 + $0x78] sm:$0xf]
        %v2453 = vld [vmem:[%s683 + $0x7c] sm:$0xf]
        %v2454 = vld [vmem:[%s683 + $0x80] sm:$0xf]
        %v2455 = vld [vmem:[%s683 + $0x84] sm:$0xf]
        %v2456 = vld [vmem:[%s683 + $0x88] sm:$0xf]
        %v2457 = vld [vmem:[%s683 + $0x8c] sm:$0xf]
        %v2458 = vld [vmem:[%s683 + $0x90] sm:$0xf]
        %v2459 = vld [vmem:[%s683 + $0x94] sm:$0xf]
        %v2460 = vld [vmem:[%s683 + $0x98] sm:$0xf]
        %v2461 = vld [vmem:[%s683 + $0x9c] sm:$0xf]
        %v2462 = vld [vmem:[%s683 + $0xa0] sm:$0xf]
        %v2463 = vld [vmem:[%s683 + $0xa4] sm:$0xf]
        %v2464 = vld [vmem:[%s683 + $0xa8] sm:$0xf]
        %v2465 = vld [vmem:[%s683 + $0xac] sm:$0xf]
        %v2466 = vld [vmem:[%s683 + $0xb0] sm:$0xf]
        %v2467 = vld [vmem:[%s683 + $0xb4] sm:$0xf]
        %v2468 = vld [vmem:[%s683 + $0xb8] sm:$0xf]
        %v2469 = vld [vmem:[%s683 + $0xbc] sm:$0xf]
        %v2470 = vld [vmem:[%s683 + $0xc0] sm:$0xf]
        %v2471 = vld [vmem:[%s683 + $0xc4] sm:$0xf]
        %v2472 = vld [vmem:[%s683 + $0xc8] sm:$0xf]
        %v2473 = vld [vmem:[%s683 + $0xcc] sm:$0xf]
        %v2474 = vld [vmem:[%s683 + $0xd0] sm:$0xf]
        %v2475 = vld [vmem:[%s683 + $0xd4] sm:$0xf]
        %v2476 = vld [vmem:[%s683 + $0xd8] sm:$0xf]
        %v2477 = vld [vmem:[%s683 + $0xdc] sm:$0xf]
        %v2478 = vld [vmem:[%s683 + $0xe0] sm:$0xf]
        %v2479 = vld [vmem:[%s683 + $0xe4] sm:$0xf]
        %v2480 = vld [vmem:[%s683 + $0xe8] sm:$0xf]
        %v2481 = vld [vmem:[%s683 + $0xec] sm:$0xf]
        %v2482 = vld [vmem:[%s683 + $0xf0] sm:$0xf]
        %v2483 = vld [vmem:[%s683 + $0xf4] sm:$0xf]
        %v2484 = vld [vmem:[%s683 + $0xf8] sm:$0xf]
        %v2485 = vld [vmem:[%s683 + $0xfc] sm:$0xf]
        %v2486 = vld [vmem:[%s683 + $0x100] sm:$0xf]
        %v2487 = vld [vmem:[%s683 + $0x104] sm:$0xf]
        %v2488 = vld [vmem:[%s683 + $0x108] sm:$0xf]
        %v2489 = vld [vmem:[%s683 + $0x10c] sm:$0xf]
        %v2490 = vld [vmem:[%s683 + $0x110] sm:$0xf]
        %v2491 = vld [vmem:[%s683 + $0x114] sm:$0xf]
        %v2492 = vld [vmem:[%s683 + $0x118] sm:$0xf]
        %v2493 = vld [vmem:[%s683 + $0x11c] sm:$0xf]
        %v2494 = vld [vmem:[%s683 + $0x120] sm:$0xf]
        %v2495 = vld [vmem:[%s683 + $0x124] sm:$0xf]
        %v2496 = vld [vmem:[%s683 + $0x128] sm:$0xf]
        %v2497 = vld [vmem:[%s683 + $0x12c] sm:$0xf]
        %v2498 = vld [vmem:[%s683 + $0x130] sm:$0xf]
        %v2499 = vld [vmem:[%s683 + $0x134] sm:$0xf]
        %v2500 = vld [vmem:[%s683 + $0x138] sm:$0xf]
        %v2501 = vld [vmem:[%s683 + $0x13c] sm:$0xf]
        %v2502 = vld [vmem:[%s683 + $0x140] sm:$0xf]
        %v2503 = vld [vmem:[%s683 + $0x144] sm:$0xf]
        %v2504 = vld [vmem:[%s683 + $0x148] sm:$0xf]
        %v2505 = vld [vmem:[%s683 + $0x14c] sm:$0xf]
        %v2506 = vld [vmem:[%s683 + $0x150] sm:$0xf]
        %v2507 = vld [vmem:[%s683 + $0x154] sm:$0xf]
        %v2508 = vld [vmem:[%s683 + $0x158] sm:$0xf]
        %v2509 = vld [vmem:[%s683 + $0x15c] sm:$0xf]
        %v2510 = vld [vmem:[%s683 + $0x160] sm:$0xf]
        %v2511 = vld [vmem:[%s683 + $0x164] sm:$0xf]
        %v2512 = vld [vmem:[%s683 + $0x168] sm:$0xf]
        %v2513 = vld [vmem:[%s683 + $0x16c] sm:$0xf]
        %v2514 = vld [vmem:[%s683 + $0x170] sm:$0xf]
        %v2515 = vld [vmem:[%s683 + $0x174] sm:$0xf]
        %v2516 = vld [vmem:[%s683 + $0x178] sm:$0xf]
        %v2517 = vld [vmem:[%s683 + $0x17c] sm:$0xf]
        %v2518 = vld [vmem:[%s683 + $0x180] sm:$0xf]
        %v2519 = vld [vmem:[%s683 + $0x184] sm:$0xf]
        %v2520 = vld [vmem:[%s683 + $0x188] sm:$0xf]
        %v2521 = vld [vmem:[%s683 + $0x18c] sm:$0xf]
        %v2522 = vld [vmem:[%s683 + $0x190] sm:$0xf]
        %v2523 = vld [vmem:[%s683 + $0x194] sm:$0xf]
        %v2524 = vld [vmem:[%s683 + $0x198] sm:$0xf]
        %v2525 = vld [vmem:[%s683 + $0x19c] sm:$0xf]
        %v2526 = vld [vmem:[%s683 + $0x1a0] sm:$0xf]
        %v2527 = vld [vmem:[%s683 + $0x1a4] sm:$0xf]
        %v2528 = vld [vmem:[%s683 + $0x1a8] sm:$0xf]
        %v2529 = vld [vmem:[%s683 + $0x1ac] sm:$0xf]
        %v2530 = vld [vmem:[%s683 + $0x1b0] sm:$0xf]
        %v2531 = vld [vmem:[%s683 + $0x1b4] sm:$0xf]
        %v2532 = vld [vmem:[%s683 + $0x1b8] sm:$0xf]
        %v2533 = vld [vmem:[%s683 + $0x1bc] sm:$0xf]
        %v2534 = vld [vmem:[%s683 + $0x1c0] sm:$0xf]
        %v2535 = vld [vmem:[%s683 + $0x1c4] sm:$0xf]
        %v2536 = vld [vmem:[%s683 + $0x1c8] sm:$0xf]
        %v2537 = vld [vmem:[%s683 + $0x1cc] sm:$0xf]
        %v2538 = vld [vmem:[%s683 + $0x1d0] sm:$0xf]
        %v2539 = vld [vmem:[%s683 + $0x1d4] sm:$0xf]
        %v2540 = vld [vmem:[%s683 + $0x1d8] sm:$0xf]
        %v2541 = vld [vmem:[%s683 + $0x1dc] sm:$0xf]
        %v2542 = vld [vmem:[%s683 + $0x1e0] sm:$0xf]
        %v2543 = vld [vmem:[%s683 + $0x1e4] sm:$0xf]
        %v2544 = vld [vmem:[%s683 + $0x1e8] sm:$0xf]
        %v2545 = vld [vmem:[%s683 + $0x1ec] sm:$0xf]
        %v2546 = vld [vmem:[%s683 + $0x1f0] sm:$0xf]
        %v2547 = vld [vmem:[%s683 + $0x1f4] sm:$0xf]
        %v2548 = vld [vmem:[%s683 + $0x1f8] sm:$0xf]
        %v2549 = vld [vmem:[%s683 + $0x1fc] sm:$0xf]
        %v2550 = vunpack.c.l.bf16 %v2422
        %v2551 = vunpack.c.l.bf16 %v2423
        %v2552 = vunpack.c.l.bf16 %v2424
        %v2553 = vunpack.c.l.bf16 %v2425
        %v2554 = vunpack.c.l.bf16 %v2426
        %v2555 = vunpack.c.l.bf16 %v2427
        %v2556 = vunpack.c.l.bf16 %v2428
        %v2557 = vunpack.c.l.bf16 %v2429
        %v2558 = vunpack.c.l.bf16 %v2430
        %v2559 = vunpack.c.l.bf16 %v2431
        %v2560 = vunpack.c.l.bf16 %v2432
        %v2561 = vunpack.c.l.bf16 %v2433
        %v2562 = vunpack.c.l.bf16 %v2434
        %v2563 = vunpack.c.l.bf16 %v2435
        %v2564 = vunpack.c.l.bf16 %v2436
        %v2565 = vunpack.c.l.bf16 %v2437
        %v2566 = vunpack.c.l.bf16 %v2438
        %v2567 = vunpack.c.l.bf16 %v2439
        %v2568 = vunpack.c.l.bf16 %v2440
        %v2569 = vunpack.c.l.bf16 %v2441
        %v2570 = vunpack.c.l.bf16 %v2442
        %v2571 = vunpack.c.l.bf16 %v2443
        %v2572 = vunpack.c.l.bf16 %v2444
        %v2573 = vunpack.c.l.bf16 %v2445
        %v2574 = vunpack.c.l.bf16 %v2446
        %v2575 = vunpack.c.l.bf16 %v2447
        %v2576 = vunpack.c.l.bf16 %v2448
        %v2577 = vunpack.c.l.bf16 %v2449
        %v2578 = vunpack.c.l.bf16 %v2450
        %v2579 = vunpack.c.l.bf16 %v2451
        %v2580 = vunpack.c.l.bf16 %v2452
        %v2581 = vunpack.c.l.bf16 %v2453
        %v2582 = vunpack.c.l.bf16 %v2454
        %v2583 = vunpack.c.l.bf16 %v2455
        %v2584 = vunpack.c.l.bf16 %v2456
        %v2585 = vunpack.c.l.bf16 %v2457
        %v2586 = vunpack.c.l.bf16 %v2458
        %v2587 = vunpack.c.l.bf16 %v2459
        %v2588 = vunpack.c.l.bf16 %v2460
        %v2589 = vunpack.c.l.bf16 %v2461
        %v2590 = vunpack.c.l.bf16 %v2462
        %v2591 = vunpack.c.l.bf16 %v2463
        %v2592 = vunpack.c.l.bf16 %v2464
        %v2593 = vunpack.c.l.bf16 %v2465
        %v2594 = vunpack.c.l.bf16 %v2466
        %v2595 = vunpack.c.l.bf16 %v2467
        %v2596 = vunpack.c.l.bf16 %v2468
        %v2597 = vunpack.c.l.bf16 %v2469
        %v2598 = vunpack.c.l.bf16 %v2470
        %v2599 = vunpack.c.l.bf16 %v2471
        %v2600 = vunpack.c.l.bf16 %v2472
        %v2601 = vunpack.c.l.bf16 %v2473
        %v2602 = vunpack.c.l.bf16 %v2474
        %v2603 = vunpack.c.l.bf16 %v2475
        %v2604 = vunpack.c.l.bf16 %v2476
        %v2605 = vunpack.c.l.bf16 %v2477
        %v2606 = vunpack.c.l.bf16 %v2478
        %v2607 = vunpack.c.l.bf16 %v2479
        %v2608 = vunpack.c.l.bf16 %v2480
        %v2609 = vunpack.c.l.bf16 %v2481
        %v2610 = vunpack.c.l.bf16 %v2482
        %v2611 = vunpack.c.l.bf16 %v2483
        %v2612 = vunpack.c.l.bf16 %v2484
        %v2613 = vunpack.c.l.bf16 %v2485
        %v2614 = vunpack.c.l.bf16 %v2486
        %v2615 = vunpack.c.l.bf16 %v2487
        %v2616 = vunpack.c.l.bf16 %v2488
        %v2617 = vunpack.c.l.bf16 %v2489
        %v2618 = vunpack.c.l.bf16 %v2490
        %v2619 = vunpack.c.l.bf16 %v2491
        %v2620 = vunpack.c.l.bf16 %v2492
        %v2621 = vunpack.c.l.bf16 %v2493
        %v2622 = vunpack.c.l.bf16 %v2494
        %v2623 = vunpack.c.l.bf16 %v2495
        %v2624 = vunpack.c.l.bf16 %v2496
        %v2625 = vunpack.c.l.bf16 %v2497
        %v2626 = vunpack.c.l.bf16 %v2498
        %v2627 = vunpack.c.l.bf16 %v2499
        %v2628 = vunpack.c.l.bf16 %v2500
        %v2629 = vunpack.c.l.bf16 %v2501
        %v2630 = vunpack.c.l.bf16 %v2502
        %v2631 = vunpack.c.l.bf16 %v2503
        %v2632 = vunpack.c.l.bf16 %v2504
        %v2633 = vunpack.c.l.bf16 %v2505
        %v2634 = vunpack.c.l.bf16 %v2506
        %v2635 = vunpack.c.l.bf16 %v2507
        %v2636 = vunpack.c.l.bf16 %v2508
        %v2637 = vunpack.c.l.bf16 %v2509
        %v2638 = vunpack.c.l.bf16 %v2510
        %v2639 = vunpack.c.l.bf16 %v2511
        %v2640 = vunpack.c.l.bf16 %v2512
        %v2641 = vunpack.c.l.bf16 %v2513
        %v2642 = vunpack.c.l.bf16 %v2514
        %v2643 = vunpack.c.l.bf16 %v2515
        %v2644 = vunpack.c.l.bf16 %v2516
        %v2645 = vunpack.c.l.bf16 %v2517
        %v2646 = vunpack.c.l.bf16 %v2518
        %v2647 = vunpack.c.l.bf16 %v2519
        %v2648 = vunpack.c.l.bf16 %v2520
        %v2649 = vunpack.c.l.bf16 %v2521
        %v2650 = vunpack.c.l.bf16 %v2522
        %v2651 = vunpack.c.l.bf16 %v2523
        %v2652 = vunpack.c.l.bf16 %v2524
        %v2653 = vunpack.c.l.bf16 %v2525
        %v2654 = vunpack.c.l.bf16 %v2526
        %v2655 = vunpack.c.l.bf16 %v2527
        %v2656 = vunpack.c.l.bf16 %v2528
        %v2657 = vunpack.c.l.bf16 %v2529
        %v2658 = vunpack.c.l.bf16 %v2530
        %v2659 = vunpack.c.l.bf16 %v2531
        %v2660 = vunpack.c.l.bf16 %v2532
        %v2661 = vunpack.c.l.bf16 %v2533
        %v2662 = vunpack.c.l.bf16 %v2534
        %v2663 = vunpack.c.l.bf16 %v2535
        %v2664 = vunpack.c.l.bf16 %v2536
        %v2665 = vunpack.c.l.bf16 %v2537
        %v2666 = vunpack.c.l.bf16 %v2538
        %v2667 = vunpack.c.l.bf16 %v2539
        %v2668 = vunpack.c.l.bf16 %v2540
        %v2669 = vunpack.c.l.bf16 %v2541
        %v2670 = vunpack.c.l.bf16 %v2542
        %v2671 = vunpack.c.l.bf16 %v2543
        %v2672 = vunpack.c.l.bf16 %v2544
        %v2673 = vunpack.c.l.bf16 %v2545
        %v2674 = vunpack.c.l.bf16 %v2546
        %v2675 = vunpack.c.l.bf16 %v2547
        %v2676 = vunpack.c.l.bf16 %v2548
        %v2677 = vunpack.c.l.bf16 %v2549
        %v2678 = vld [vmem:[%s692] sm:$0x1]
        %v2680 = vlaneseq
        %v2681 = vshrl.u32 %v2680, 7
        %v2682 = vsub.s32 0, %v2681
        %v2683 = vrot.slane %v2678, %v2682
        %2685 = vmatprep.subr.mxu0 0.0
        %2686 = vmatpush1.msra.mxu0 %v2550
        %2687 = vmatprep.subr.mxu0 0.0
        %2688 = vmatpush1.msra.mxu0 %v2551
        %2689 = vmatprep.subr.mxu0 0.0
        %2690 = vmatpush1.msra.mxu0 %v2552
        %2691 = vmatprep.subr.mxu0 0.0
        %2692 = vmatpush1.msra.mxu0 %v2553
        %2693 = vmatprep.subr.mxu0 0.0
        %2694 = vmatpush1.msra.mxu0 %v2554
        %2695 = vmatprep.subr.mxu0 0.0
        %2696 = vmatpush1.msra.mxu0 %v2555
        %2697 = vmatprep.subr.mxu0 0.0
        %2698 = vmatpush1.msra.mxu0 %v2556
        %2699 = vmatprep.subr.mxu0 0.0
        %2700 = vmatpush1.msra.mxu0 %v2557
        %2701 = vmatprep.subr.mxu0 0.0
        %2702 = vmatpush1.msra.mxu0 %v2558
        %2703 = vmatprep.subr.mxu0 0.0
        %2704 = vmatpush1.msra.mxu0 %v2559
        %2705 = vmatprep.subr.mxu0 0.0
        %2706 = vmatpush1.msra.mxu0 %v2560
        %2707 = vmatprep.subr.mxu0 0.0
        %2708 = vmatpush1.msra.mxu0 %v2561
        %2709 = vmatprep.subr.mxu0 0.0
        %2710 = vmatpush1.msra.mxu0 %v2562
        %2711 = vmatprep.subr.mxu0 0.0
        %2712 = vmatpush1.msra.mxu0 %v2563
        %2713 = vmatprep.subr.mxu0 0.0
        %2714 = vmatpush1.msra.mxu0 %v2564
        %2715 = vmatprep.subr.mxu0 0.0
        %2716 = vmatpush1.msra.mxu0 %v2565
        %2717 = vmatprep.subr.mxu0 0.0
        %2718 = vmatpush1.msra.mxu0 %v2566
        %2719 = vmatprep.subr.mxu0 0.0
        %2720 = vmatpush1.msra.mxu0 %v2567
        %2721 = vmatprep.subr.mxu0 0.0
        %2722 = vmatpush1.msra.mxu0 %v2568
        %2723 = vmatprep.subr.mxu0 0.0
        %2724 = vmatpush1.msra.mxu0 %v2569
        %2725 = vmatprep.subr.mxu0 0.0
        %2726 = vmatpush1.msra.mxu0 %v2570
        %2727 = vmatprep.subr.mxu0 0.0
        %2728 = vmatpush1.msra.mxu0 %v2571
        %2729 = vmatprep.subr.mxu0 0.0
        %2730 = vmatpush1.msra.mxu0 %v2572
        %2731 = vmatprep.subr.mxu0 0.0
        %2732 = vmatpush1.msra.mxu0 %v2573
        %2733 = vmatprep.subr.mxu0 0.0
        %2734 = vmatpush1.msra.mxu0 %v2574
        %2735 = vmatprep.subr.mxu0 0.0
        %2736 = vmatpush1.msra.mxu0 %v2575
        %2737 = vmatprep.subr.mxu0 0.0
        %2738 = vmatpush1.msra.mxu0 %v2576
        %2739 = vmatprep.subr.mxu0 0.0
        %2740 = vmatpush1.msra.mxu0 %v2577
        %2741 = vmatprep.subr.mxu0 0.0
        %2742 = vmatpush1.msra.mxu0 %v2578
        %2743 = vmatprep.subr.mxu0 0.0
        %2744 = vmatpush1.msra.mxu0 %v2579
        %2745 = vmatprep.subr.mxu0 0.0
        %2746 = vmatpush1.msra.mxu0 %v2580
        %2747 = vmatprep.subr.mxu0 0.0
        %2748 = vmatpush1.msra.mxu0 %v2581
        %2749 = vmatprep.mubr.f32.mxu0 %v2415
        %2750 = vmatmul.mubr.f32.gmra.mrb[0].mxu0 %v2414
        %v2751 = vpop.f32.mrb[0].mxu0
        %v2752 = vadd.f32 %v2683, %v2751
        %v2753 = vpop.f32.mrb[0].mxu0
        %2754 = vdwg.mxu0
        %2755 = vmatprep.subr.mxu0 0.0
        %2756 = vmatpush1.msra.mxu0 %v2582
        %2757 = vmatprep.subr.mxu0 0.0
        %2758 = vmatpush1.msra.mxu0 %v2583
        %2759 = vmatprep.subr.mxu0 0.0
        %2760 = vmatpush1.msra.mxu0 %v2584
        %2761 = vmatprep.subr.mxu0 0.0
        %2762 = vmatpush1.msra.mxu0 %v2585
        %2763 = vmatprep.subr.mxu0 0.0
        %2764 = vmatpush1.msra.mxu0 %v2586
        %2765 = vmatprep.subr.mxu0 0.0
        %2766 = vmatpush1.msra.mxu0 %v2587
        %2767 = vmatprep.subr.mxu0 0.0
        %2768 = vmatpush1.msra.mxu0 %v2588
        %2769 = vmatprep.subr.mxu0 0.0
        %2770 = vmatpush1.msra.mxu0 %v2589
        %2771 = vmatprep.subr.mxu0 0.0
        %2772 = vmatpush1.msra.mxu0 %v2590
        %2773 = vmatprep.subr.mxu0 0.0
        %2774 = vmatpush1.msra.mxu0 %v2591
        %2775 = vmatprep.subr.mxu0 0.0
        %2776 = vmatpush1.msra.mxu0 %v2592
        %2777 = vmatprep.subr.mxu0 0.0
        %2778 = vmatpush1.msra.mxu0 %v2593
        %2779 = vmatprep.subr.mxu0 0.0
        %2780 = vmatpush1.msra.mxu0 %v2594
        %2781 = vmatprep.subr.mxu0 0.0
        %2782 = vmatpush1.msra.mxu0 %v2595
        %2783 = vmatprep.subr.mxu0 0.0
        %2784 = vmatpush1.msra.mxu0 %v2596
        %2785 = vmatprep.subr.mxu0 0.0
        %2786 = vmatpush1.msra.mxu0 %v2597
        %2787 = vmatprep.subr.mxu0 0.0
        %2788 = vmatpush1.msra.mxu0 %v2598
        %2789 = vmatprep.subr.mxu0 0.0
        %2790 = vmatpush1.msra.mxu0 %v2599
        %2791 = vmatprep.subr.mxu0 0.0
        %2792 = vmatpush1.msra.mxu0 %v2600
        %2793 = vmatprep.subr.mxu0 0.0
        %2794 = vmatpush1.msra.mxu0 %v2601
        %2795 = vmatprep.subr.mxu0 0.0
        %2796 = vmatpush1.msra.mxu0 %v2602
        %2797 = vmatprep.subr.mxu0 0.0
        %2798 = vmatpush1.msra.mxu0 %v2603
        %2799 = vmatprep.subr.mxu0 0.0
        %2800 = vmatpush1.msra.mxu0 %v2604
        %2801 = vmatprep.subr.mxu0 0.0
        %2802 = vmatpush1.msra.mxu0 %v2605
        %2803 = vmatprep.subr.mxu0 0.0
        %2804 = vmatpush1.msra.mxu0 %v2606
        %2805 = vmatprep.subr.mxu0 0.0
        %2806 = vmatpush1.msra.mxu0 %v2607
        %2807 = vmatprep.subr.mxu0 0.0
        %2808 = vmatpush1.msra.mxu0 %v2608
        %2809 = vmatprep.subr.mxu0 0.0
        %2810 = vmatpush1.msra.mxu0 %v2609
        %2811 = vmatprep.subr.mxu0 0.0
        %2812 = vmatpush1.msra.mxu0 %v2610
        %2813 = vmatprep.subr.mxu0 0.0
        %2814 = vmatpush1.msra.mxu0 %v2611
        %2815 = vmatprep.subr.mxu0 0.0
        %2816 = vmatpush1.msra.mxu0 %v2612
        %2817 = vmatprep.subr.mxu0 0.0
        %2818 = vmatpush1.msra.mxu0 %v2613
        %2819 = vmatprep.mubr.f32.mxu0 %v2417
        %2820 = vmatmul.mubr.f32.gmra.mrb[0].mxu0 %v2416
        %v2821 = vpop.f32.mrb[0].mxu0
        %v2822 = vadd.f32 %v2752, %v2821
        %v2823 = vpop.f32.mrb[0].mxu0
        %2824 = vdwg.mxu0
        %2825 = vmatprep.subr.mxu0 0.0
        %2826 = vmatpush1.msra.mxu0 %v2614
        %2827 = vmatprep.subr.mxu0 0.0
        %2828 = vmatpush1.msra.mxu0 %v2615
        %2829 = vmatprep.subr.mxu0 0.0
        %2830 = vmatpush1.msra.mxu0 %v2616
        %2831 = vmatprep.subr.mxu0 0.0
        %2832 = vmatpush1.msra.mxu0 %v2617
        %2833 = vmatprep.subr.mxu0 0.0
        %2834 = vmatpush1.msra.mxu0 %v2618
        %2835 = vmatprep.subr.mxu0 0.0
        %2836 = vmatpush1.msra.mxu0 %v2619
        %2837 = vmatprep.subr.mxu0 0.0
        %2838 = vmatpush1.msra.mxu0 %v2620
        %2839 = vmatprep.subr.mxu0 0.0
        %2840 = vmatpush1.msra.mxu0 %v2621
        %2841 = vmatprep.subr.mxu0 0.0
        %2842 = vmatpush1.msra.mxu0 %v2622
        %2843 = vmatprep.subr.mxu0 0.0
        %2844 = vmatpush1.msra.mxu0 %v2623
        %2845 = vmatprep.subr.mxu0 0.0
        %2846 = vmatpush1.msra.mxu0 %v2624
        %2847 = vmatprep.subr.mxu0 0.0
        %2848 = vmatpush1.msra.mxu0 %v2625
        %2849 = vmatprep.subr.mxu0 0.0
        %2850 = vmatpush1.msra.mxu0 %v2626
        %2851 = vmatprep.subr.mxu0 0.0
        %2852 = vmatpush1.msra.mxu0 %v2627
        %2853 = vmatprep.subr.mxu0 0.0
        %2854 = vmatpush1.msra.mxu0 %v2628
        %2855 = vmatprep.subr.mxu0 0.0
        %2856 = vmatpush1.msra.mxu0 %v2629
        %2857 = vmatprep.subr.mxu0 0.0
        %2858 = vmatpush1.msra.mxu0 %v2630
        %2859 = vmatprep.subr.mxu0 0.0
        %2860 = vmatpush1.msra.mxu0 %v2631
        %2861 = vmatprep.subr.mxu0 0.0
        %2862 = vmatpush1.msra.mxu0 %v2632
        %2863 = vmatprep.subr.mxu0 0.0
        %2864 = vmatpush1.msra.mxu0 %v2633
        %2865 = vmatprep.subr.mxu0 0.0
        %2866 = vmatpush1.msra.mxu0 %v2634
        %2867 = vmatprep.subr.mxu0 0.0
        %2868 = vmatpush1.msra.mxu0 %v2635
        %2869 = vmatprep.subr.mxu0 0.0
        %2870 = vmatpush1.msra.mxu0 %v2636
        %2871 = vmatprep.subr.mxu0 0.0
        %2872 = vmatpush1.msra.mxu0 %v2637
        %2873 = vmatprep.subr.mxu0 0.0
        %2874 = vmatpush1.msra.mxu0 %v2638
        %2875 = vmatprep.subr.mxu0 0.0
        %2876 = vmatpush1.msra.mxu0 %v2639
        %2877 = vmatprep.subr.mxu0 0.0
        %2878 = vmatpush1.msra.mxu0 %v2640
        %2879 = vmatprep.subr.mxu0 0.0
        %2880 = vmatpush1.msra.mxu0 %v2641
        %2881 = vmatprep.subr.mxu0 0.0
        %2882 = vmatpush1.msra.mxu0 %v2642
        %2883 = vmatprep.subr.mxu0 0.0
        %2884 = vmatpush1.msra.mxu0 %v2643
        %2885 = vmatprep.subr.mxu0 0.0
        %2886 = vmatpush1.msra.mxu0 %v2644
        %2887 = vmatprep.subr.mxu0 0.0
        %2888 = vmatpush1.msra.mxu0 %v2645
        %2889 = vmatprep.mubr.f32.mxu0 %v2419
        %2890 = vmatmul.mubr.f32.gmra.mrb[0].mxu0 %v2418
        %v2891 = vpop.f32.mrb[0].mxu0
        %v2892 = vadd.f32 %v2822, %v2891
        %v2893 = vpop.f32.mrb[0].mxu0
        %2894 = vdwg.mxu0
        %2895 = vmatprep.subr.mxu0 0.0
        %2896 = vmatpush1.msra.mxu0 %v2646
        %2897 = vmatprep.subr.mxu0 0.0
        %2898 = vmatpush1.msra.mxu0 %v2647
        %2899 = vmatprep.subr.mxu0 0.0
        %2900 = vmatpush1.msra.mxu0 %v2648
        %2901 = vmatprep.subr.mxu0 0.0
        %2902 = vmatpush1.msra.mxu0 %v2649
        %2903 = vmatprep.subr.mxu0 0.0
        %2904 = vmatpush1.msra.mxu0 %v2650
        %2905 = vmatprep.subr.mxu0 0.0
        %2906 = vmatpush1.msra.mxu0 %v2651
        %2907 = vmatprep.subr.mxu0 0.0
        %2908 = vmatpush1.msra.mxu0 %v2652
        %2909 = vmatprep.subr.mxu0 0.0
        %2910 = vmatpush1.msra.mxu0 %v2653
        %2911 = vmatprep.subr.mxu0 0.0
        %2912 = vmatpush1.msra.mxu0 %v2654
        %2913 = vmatprep.subr.mxu0 0.0
        %2914 = vmatpush1.msra.mxu0 %v2655
        %2915 = vmatprep.subr.mxu0 0.0
        %2916 = vmatpush1.msra.mxu0 %v2656
        %2917 = vmatprep.subr.mxu0 0.0
        %2918 = vmatpush1.msra.mxu0 %v2657
        %2919 = vmatprep.subr.mxu0 0.0
        %2920 = vmatpush1.msra.mxu0 %v2658
        %2921 = vmatprep.subr.mxu0 0.0
        %2922 = vmatpush1.msra.mxu0 %v2659
        %2923 = vmatprep.subr.mxu0 0.0
        %2924 = vmatpush1.msra.mxu0 %v2660
        %2925 = vmatprep.subr.mxu0 0.0
        %2926 = vmatpush1.msra.mxu0 %v2661
        %2927 = vmatprep.subr.mxu0 0.0
        %2928 = vmatpush1.msra.mxu0 %v2662
        %2929 = vmatprep.subr.mxu0 0.0
        %2930 = vmatpush1.msra.mxu0 %v2663
        %2931 = vmatprep.subr.mxu0 0.0
        %2932 = vmatpush1.msra.mxu0 %v2664
        %2933 = vmatprep.subr.mxu0 0.0
        %2934 = vmatpush1.msra.mxu0 %v2665
        %2935 = vmatprep.subr.mxu0 0.0
        %2936 = vmatpush1.msra.mxu0 %v2666
        %2937 = vmatprep.subr.mxu0 0.0
        %2938 = vmatpush1.msra.mxu0 %v2667
        %2939 = vmatprep.subr.mxu0 0.0
        %2940 = vmatpush1.msra.mxu0 %v2668
        %2941 = vmatprep.subr.mxu0 0.0
        %2942 = vmatpush1.msra.mxu0 %v2669
        %2943 = vmatprep.subr.mxu0 0.0
        %2944 = vmatpush1.msra.mxu0 %v2670
        %2945 = vmatprep.subr.mxu0 0.0
        %2946 = vmatpush1.msra.mxu0 %v2671
        %2947 = vmatprep.subr.mxu0 0.0
        %2948 = vmatpush1.msra.mxu0 %v2672
        %2949 = vmatprep.subr.mxu0 0.0
        %2950 = vmatpush1.msra.mxu0 %v2673
        %2951 = vmatprep.subr.mxu0 0.0
        %2952 = vmatpush1.msra.mxu0 %v2674
        %2953 = vmatprep.subr.mxu0 0.0
        %2954 = vmatpush1.msra.mxu0 %v2675
        %2955 = vmatprep.subr.mxu0 0.0
        %2956 = vmatpush1.msra.mxu0 %v2676
        %2957 = vmatprep.subr.mxu0 0.0
        %2958 = vmatpush1.msra.mxu0 %v2677
        %2959 = vmatprep.mubr.f32.mxu0 %v2421
        %2960 = vmatmul.mubr.f32.gmra.mrb[0].mxu0 %v2420
        %v2961 = vpop.f32.mrb[0].mxu0
        %v2962 = vadd.f32 %v2892, %v2961
        %v2963 = vpop.f32.mrb[0].mxu0
        %2964 = vdwg.mxu0
        %v2965 = vld [vmem:[%s612] sm:$0xff]
        %vm2966 = vcmask 64512
        %v2968 = vsel %vm2966, %v2965, 0
        %2970 = vmatprep.subr.mxu0 0.0
        %2971 = vmatpush1.msra.mxu0 %v2037
        %2972 = vmatprep.subr.mxu0 0.0
        %2973 = vmatpush1.msra.mxu0 0.0
        %2974 = vmatprep.subr.mxu0 0.0
        %2975 = vmatpush1.msra.mxu0 0.0
        %2976 = vmatprep.subr.mxu0 0.0
        %2977 = vmatpush1.msra.mxu0 0.0
        %2978 = vmatprep.subr.mxu0 0.0
        %2979 = vmatpush1.msra.mxu0 0.0
        %2980 = vmatprep.subr.mxu0 0.0
        %2981 = vmatpush1.msra.mxu0 0.0
        %2982 = vmatprep.subr.mxu0 0.0
        %2983 = vmatpush1.msra.mxu0 0.0
        %2984 = vmatprep.subr.mxu0 0.0
        %2985 = vmatpush1.msra.mxu0 0.0
        %2986 = vmatprep.subr.mxu0 0.0
        %2987 = vmatpush1.msra.mxu0 0.0
        %2988 = vmatprep.subr.mxu0 0.0
        %2989 = vmatpush1.msra.mxu0 0.0
        %2990 = vmatprep.subr.mxu0 0.0
        %2991 = vmatpush1.msra.mxu0 0.0
        %2992 = vmatprep.subr.mxu0 0.0
        %2993 = vmatpush1.msra.mxu0 0.0
        %2994 = vmatprep.subr.mxu0 0.0
        %2995 = vmatpush1.msra.mxu0 0.0
        %2996 = vmatprep.subr.mxu0 0.0
        %2997 = vmatpush1.msra.mxu0 0.0
        %2998 = vmatprep.subr.mxu0 0.0
        %2999 = vmatpush1.msra.mxu0 0.0
        %3000 = vmatprep.subr.mxu0 0.0
        %3001 = vmatpush1.msra.mxu0 0.0
        %3002 = vmatprep.subr.mxu0 0.0
        %3003 = vmatpush1.msra.mxu0 0.0
        %3004 = vmatprep.subr.mxu0 0.0
        %3005 = vmatpush1.msra.mxu0 0.0
        %3006 = vmatprep.subr.mxu0 0.0
        %3007 = vmatpush1.msra.mxu0 0.0
        %3008 = vmatprep.subr.mxu0 0.0
        %3009 = vmatpush1.msra.mxu0 0.0
        %3010 = vmatprep.subr.mxu0 0.0
        %3011 = vmatpush1.msra.mxu0 0.0
        %3012 = vmatprep.subr.mxu0 0.0
        %3013 = vmatpush1.msra.mxu0 0.0
        %3014 = vmatprep.subr.mxu0 0.0
        %3015 = vmatpush1.msra.mxu0 0.0
        %3016 = vmatprep.subr.mxu0 0.0
        %3017 = vmatpush1.msra.mxu0 0.0
        %3018 = vmatprep.subr.mxu0 0.0
        %3019 = vmatpush1.msra.mxu0 0.0
        %3020 = vmatprep.subr.mxu0 0.0
        %3021 = vmatpush1.msra.mxu0 0.0
        %3022 = vmatprep.subr.mxu0 0.0
        %3023 = vmatpush1.msra.mxu0 0.0
        %3024 = vmatprep.subr.mxu0 0.0
        %3025 = vmatpush1.msra.mxu0 0.0
        %3026 = vmatprep.subr.mxu0 0.0
        %3027 = vmatpush1.msra.mxu0 0.0
        %3028 = vmatprep.subr.mxu0 0.0
        %3029 = vmatpush1.msra.mxu0 0.0
        %3030 = vmatprep.subr.mxu0 0.0
        %3031 = vmatpush1.msra.mxu0 0.0
        %3032 = vmatprep.subr.mxu0 0.0
        %3033 = vmatpush1.msra.mxu0 0.0
        %3034 = vmatprep.mubr.f32.mxu0 0.0
        %3035 = vmatmul.mubr.f32.gmra.mrb[0].mxu0 %v2968
        %v3036 = vpop.f32.mrb[0].mxu0
        %v3037 = vadd.f32 0.0, %v3036
        %v3038 = vpop.f32.mrb[0].mxu0
        %3039 = vdwg.mxu0
        %3040 = vmatprep.subr.mxu0 %v792
        %3041 = vmatpush1.msra.mxu0 %v791
        %3042 = vmatprep.subr.mxu0 %v802
        %3043 = vmatpush1.msra.mxu0 %v801
        %3044 = vmatprep.subr.mxu0 %v812
        %3045 = vmatpush1.msra.mxu0 %v811
        %3046 = vmatprep.subr.mxu0 %v822
        %3047 = vmatpush1.msra.mxu0 %v821
        %3048 = vmatprep.subr.mxu0 %v832
        %3049 = vmatpush1.msra.mxu0 %v831
        %3050 = vmatprep.subr.mxu0 %v842
        %3051 = vmatpush1.msra.mxu0 %v841
        %3052 = vmatprep.subr.mxu0 %v852
        %3053 = vmatpush1.msra.mxu0 %v851
        %3054 = vmatprep.subr.mxu0 %v862
        %3055 = vmatpush1.msra.mxu0 %v861
        %3056 = vmatprep.subr.mxu0 %v872
        %3057 = vmatpush1.msra.mxu0 %v871
        %3058 = vmatprep.subr.mxu0 %v882
        %3059 = vmatpush1.msra.mxu0 %v881
        %3060 = vmatprep.subr.mxu0 %v892
        %3061 = vmatpush1.msra.mxu0 %v891
        %3062 = vmatprep.subr.mxu0 %v902
        %3063 = vmatpush1.msra.mxu0 %v901
        %3064 = vmatprep.subr.mxu0 %v912
        %3065 = vmatpush1.msra.mxu0 %v911
        %3066 = vmatprep.subr.mxu0 %v922
        %3067 = vmatpush1.msra.mxu0 %v921
        %3068 = vmatprep.subr.mxu0 %v932
        %3069 = vmatpush1.msra.mxu0 %v931
        %3070 = vmatprep.subr.mxu0 %v942
        %3071 = vmatpush1.msra.mxu0 %v941
        %3072 = vmatprep.subr.mxu0 0.0
        %3073 = vmatpush1.msra.mxu0 0.0
        %3074 = vmatprep.subr.mxu0 0.0
        %3075 = vmatpush1.msra.mxu0 0.0
        %3076 = vmatprep.subr.mxu0 0.0
        %3077 = vmatpush1.msra.mxu0 0.0
        %3078 = vmatprep.subr.mxu0 0.0
        %3079 = vmatpush1.msra.mxu0 0.0
        %3080 = vmatprep.subr.mxu0 0.0
        %3081 = vmatpush1.msra.mxu0 0.0
        %3082 = vmatprep.subr.mxu0 0.0
        %3083 = vmatpush1.msra.mxu0 0.0
        %3084 = vmatprep.subr.mxu0 0.0
        %3085 = vmatpush1.msra.mxu0 0.0
        %3086 = vmatprep.subr.mxu0 0.0
        %3087 = vmatpush1.msra.mxu0 0.0
        %3088 = vmatprep.subr.mxu0 0.0
        %3089 = vmatpush1.msra.mxu0 0.0
        %3090 = vmatprep.subr.mxu0 0.0
        %3091 = vmatpush1.msra.mxu0 0.0
        %3092 = vmatprep.subr.mxu0 0.0
        %3093 = vmatpush1.msra.mxu0 0.0
        %3094 = vmatprep.subr.mxu0 0.0
        %3095 = vmatpush1.msra.mxu0 0.0
        %3096 = vmatprep.subr.mxu0 0.0
        %3097 = vmatpush1.msra.mxu0 0.0
        %3098 = vmatprep.subr.mxu0 0.0
        %3099 = vmatpush1.msra.mxu0 0.0
        %3100 = vmatprep.subr.mxu0 0.0
        %3101 = vmatpush1.msra.mxu0 0.0
        %3102 = vmatprep.subr.mxu0 0.0
        %3103 = vmatpush1.msra.mxu0 0.0
        %3104 = vmatprep.mubr.f32.mxu0 0.0
        %3105 = vmatmul.mubr.f32.gmra.mrb[0].mxu0 %v3037
        %v3106 = vpop.f32.mrb[0].mxu0
        %v3107 = vadd.f32 0.0, %v3106
        %v3108 = vpop.f32.mrb[0].mxu0
        %v3109 = vadd.f32 0.0, %v3108
        %3110 = vdwg.mxu0
        %3111 = vmatprep.subr.mxu0 %v794
        %3112 = vmatpush1.msra.mxu0 %v793
        %3113 = vmatprep.subr.mxu0 %v804
        %3114 = vmatpush1.msra.mxu0 %v803
        %3115 = vmatprep.subr.mxu0 %v814
        %3116 = vmatpush1.msra.mxu0 %v813
        %3117 = vmatprep.subr.mxu0 %v824
        %3118 = vmatpush1.msra.mxu0 %v823
        %3119 = vmatprep.subr.mxu0 %v834
        %3120 = vmatpush1.msra.mxu0 %v833
        %3121 = vmatprep.subr.mxu0 %v844
        %3122 = vmatpush1.msra.mxu0 %v843
        %3123 = vmatprep.subr.mxu0 %v854
        %3124 = vmatpush1.msra.mxu0 %v853
        %3125 = vmatprep.subr.mxu0 %v864
        %3126 = vmatpush1.msra.mxu0 %v863
        %3127 = vmatprep.subr.mxu0 %v874
        %3128 = vmatpush1.msra.mxu0 %v873
        %3129 = vmatprep.subr.mxu0 %v884
        %3130 = vmatpush1.msra.mxu0 %v883
        %3131 = vmatprep.subr.mxu0 %v894
        %3132 = vmatpush1.msra.mxu0 %v893
        %3133 = vmatprep.subr.mxu0 %v904
        %3134 = vmatpush1.msra.mxu0 %v903
        %3135 = vmatprep.subr.mxu0 %v914
        %3136 = vmatpush1.msra.mxu0 %v913
        %3137 = vmatprep.subr.mxu0 %v924
        %3138 = vmatpush1.msra.mxu0 %v923
        %3139 = vmatprep.subr.mxu0 %v934
        %3140 = vmatpush1.msra.mxu0 %v933
        %3141 = vmatprep.subr.mxu0 %v944
        %3142 = vmatpush1.msra.mxu0 %v943
        %3143 = vmatprep.subr.mxu0 0.0
        %3144 = vmatpush1.msra.mxu0 0.0
        %3145 = vmatprep.subr.mxu0 0.0
        %3146 = vmatpush1.msra.mxu0 0.0
        %3147 = vmatprep.subr.mxu0 0.0
        %3148 = vmatpush1.msra.mxu0 0.0
        %3149 = vmatprep.subr.mxu0 0.0
        %3150 = vmatpush1.msra.mxu0 0.0
        %3151 = vmatprep.subr.mxu0 0.0
        %3152 = vmatpush1.msra.mxu0 0.0
        %3153 = vmatprep.subr.mxu0 0.0
        %3154 = vmatpush1.msra.mxu0 0.0
        %3155 = vmatprep.subr.mxu0 0.0
        %3156 = vmatpush1.msra.mxu0 0.0
        %3157 = vmatprep.subr.mxu0 0.0
        %3158 = vmatpush1.msra.mxu0 0.0
        %3159 = vmatprep.subr.mxu0 0.0
        %3160 = vmatpush1.msra.mxu0 0.0
        %3161 = vmatprep.subr.mxu0 0.0
        %3162 = vmatpush1.msra.mxu0 0.0
        %3163 = vmatprep.subr.mxu0 0.0
        %3164 = vmatpush1.msra.mxu0 0.0
        %3165 = vmatprep.subr.mxu0 0.0
        %3166 = vmatpush1.msra.mxu0 0.0
        %3167 = vmatprep.subr.mxu0 0.0
        %3168 = vmatpush1.msra.mxu0 0.0
        %3169 = vmatprep.subr.mxu0 0.0
        %3170 = vmatpush1.msra.mxu0 0.0
        %3171 = vmatprep.subr.mxu0 0.0
        %3172 = vmatpush1.msra.mxu0 0.0
        %3173 = vmatprep.subr.mxu0 0.0
        %3174 = vmatpush1.msra.mxu0 0.0
        %3175 = vmatprep.mubr.f32.mxu0 0.0
        %3176 = vmatmul.mubr.f32.gmra.mrb[0].mxu0 %v3037
        %v3177 = vpop.f32.mrb[0].mxu0
        %v3178 = vadd.f32 0.0, %v3177
        %v3179 = vpop.f32.mrb[0].mxu0
        %v3180 = vadd.f32 0.0, %v3179
        %3181 = vdwg.mxu0
        %3182 = vmatprep.subr.mxu0 %v796
        %3183 = vmatpush1.msra.mxu0 %v795
        %3184 = vmatprep.subr.mxu0 %v806
        %3185 = vmatpush1.msra.mxu0 %v805
        %3186 = vmatprep.subr.mxu0 %v816
        %3187 = vmatpush1.msra.mxu0 %v815
        %3188 = vmatprep.subr.mxu0 %v826
        %3189 = vmatpush1.msra.mxu0 %v825
        %3190 = vmatprep.subr.mxu0 %v836
        %3191 = vmatpush1.msra.mxu0 %v835
        %3192 = vmatprep.subr.mxu0 %v846
        %3193 = vmatpush1.msra.mxu0 %v845
        %3194 = vmatprep.subr.mxu0 %v856
        %3195 = vmatpush1.msra.mxu0 %v855
        %3196 = vmatprep.subr.mxu0 %v866
        %3197 = vmatpush1.msra.mxu0 %v865
        %3198 = vmatprep.subr.mxu0 %v876
        %3199 = vmatpush1.msra.mxu0 %v875
        %3200 = vmatprep.subr.mxu0 %v886
        %3201 = vmatpush1.msra.mxu0 %v885
        %3202 = vmatprep.subr.mxu0 %v896
        %3203 = vmatpush1.msra.mxu0 %v895
        %3204 = vmatprep.subr.mxu0 %v906
        %3205 = vmatpush1.msra.mxu0 %v905
        %3206 = vmatprep.subr.mxu0 %v916
        %3207 = vmatpush1.msra.mxu0 %v915
        %3208 = vmatprep.subr.mxu0 %v926
        %3209 = vmatpush1.msra.mxu0 %v925
        %3210 = vmatprep.subr.mxu0 %v936
        %3211 = vmatpush1.msra.mxu0 %v935
        %3212 = vmatprep.subr.mxu0 %v946
        %3213 = vmatpush1.msra.mxu0 %v945
        %3214 = vmatprep.subr.mxu0 0.0
        %3215 = vmatpush1.msra.mxu0 0.0
        %3216 = vmatprep.subr.mxu0 0.0
        %3217 = vmatpush1.msra.mxu0 0.0
        %3218 = vmatprep.subr.mxu0 0.0
        %3219 = vmatpush1.msra.mxu0 0.0
        %3220 = vmatprep.subr.mxu0 0.0
        %3221 = vmatpush1.msra.mxu0 0.0
        %3222 = vmatprep.subr.mxu0 0.0
        %3223 = vmatpush1.msra.mxu0 0.0
        %3224 = vmatprep.subr.mxu0 0.0
        %3225 = vmatpush1.msra.mxu0 0.0
        %3226 = vmatprep.subr.mxu0 0.0
        %3227 = vmatpush1.msra.mxu0 0.0
        %3228 = vmatprep.subr.mxu0 0.0
        %3229 = vmatpush1.msra.mxu0 0.0
        %3230 = vmatprep.subr.mxu0 0.0
        %3231 = vmatpush1.msra.mxu0 0.0
        %3232 = vmatprep.subr.mxu0 0.0
        %3233 = vmatpush1.msra.mxu0 0.0
        %3234 = vmatprep.subr.mxu0 0.0
        %3235 = vmatpush1.msra.mxu0 0.0
        %3236 = vmatprep.subr.mxu0 0.0
        %3237 = vmatpush1.msra.mxu0 0.0
        %3238 = vmatprep.subr.mxu0 0.0
        %3239 = vmatpush1.msra.mxu0 0.0
        %3240 = vmatprep.subr.mxu0 0.0
        %3241 = vmatpush1.msra.mxu0 0.0
        %3242 = vmatprep.subr.mxu0 0.0
        %3243 = vmatpush1.msra.mxu0 0.0
        %3244 = vmatprep.subr.mxu0 0.0
        %3245 = vmatpush1.msra.mxu0 0.0
        %3246 = vmatprep.mubr.f32.mxu0 0.0
        %3247 = vmatmul.mubr.f32.gmra.mrb[0].mxu0 %v3037
        %v3248 = vpop.f32.mrb[0].mxu0
        %v3249 = vadd.f32 0.0, %v3248
        %v3250 = vpop.f32.mrb[0].mxu0
        %v3251 = vadd.f32 0.0, %v3250
        %3252 = vdwg.mxu0
        %3253 = vmatprep.subr.mxu0 %v798
        %3254 = vmatpush1.msra.mxu0 %v797
        %3255 = vmatprep.subr.mxu0 %v808
        %3256 = vmatpush1.msra.mxu0 %v807
        %3257 = vmatprep.subr.mxu0 %v818
        %3258 = vmatpush1.msra.mxu0 %v817
        %3259 = vmatprep.subr.mxu0 %v828
        %3260 = vmatpush1.msra.mxu0 %v827
        %3261 = vmatprep.subr.mxu0 %v838
        %3262 = vmatpush1.msra.mxu0 %v837
        %3263 = vmatprep.subr.mxu0 %v848
        %3264 = vmatpush1.msra.mxu0 %v847
        %3265 = vmatprep.subr.mxu0 %v858
        %3266 = vmatpush1.msra.mxu0 %v857
        %3267 = vmatprep.subr.mxu0 %v868
        %3268 = vmatpush1.msra.mxu0 %v867
        %3269 = vmatprep.subr.mxu0 %v878
        %3270 = vmatpush1.msra.mxu0 %v877
        %3271 = vmatprep.subr.mxu0 %v888
        %3272 = vmatpush1.msra.mxu0 %v887
        %3273 = vmatprep.subr.mxu0 %v898
        %3274 = vmatpush1.msra.mxu0 %v897
        %3275 = vmatprep.subr.mxu0 %v908
        %3276 = vmatpush1.msra.mxu0 %v907
        %3277 = vmatprep.subr.mxu0 %v918
        %3278 = vmatpush1.msra.mxu0 %v917
        %3279 = vmatprep.subr.mxu0 %v928
        %3280 = vmatpush1.msra.mxu0 %v927
        %3281 = vmatprep.subr.mxu0 %v938
        %3282 = vmatpush1.msra.mxu0 %v937
        %3283 = vmatprep.subr.mxu0 %v948
        %3284 = vmatpush1.msra.mxu0 %v947
        %3285 = vmatprep.subr.mxu0 0.0
        %3286 = vmatpush1.msra.mxu0 0.0
        %3287 = vmatprep.subr.mxu0 0.0
        %3288 = vmatpush1.msra.mxu0 0.0
        %3289 = vmatprep.subr.mxu0 0.0
        %3290 = vmatpush1.msra.mxu0 0.0
        %3291 = vmatprep.subr.mxu0 0.0
        %3292 = vmatpush1.msra.mxu0 0.0
        %3293 = vmatprep.subr.mxu0 0.0
        %3294 = vmatpush1.msra.mxu0 0.0
        %3295 = vmatprep.subr.mxu0 0.0
        %3296 = vmatpush1.msra.mxu0 0.0
        %3297 = vmatprep.subr.mxu0 0.0
        %3298 = vmatpush1.msra.mxu0 0.0
        %3299 = vmatprep.subr.mxu0 0.0
        %3300 = vmatpush1.msra.mxu0 0.0
        %3301 = vmatprep.subr.mxu0 0.0
        %3302 = vmatpush1.msra.mxu0 0.0
        %3303 = vmatprep.subr.mxu0 0.0
        %3304 = vmatpush1.msra.mxu0 0.0
        %3305 = vmatprep.subr.mxu0 0.0
        %3306 = vmatpush1.msra.mxu0 0.0
        %3307 = vmatprep.subr.mxu0 0.0
        %3308 = vmatpush1.msra.mxu0 0.0
        %3309 = vmatprep.subr.mxu0 0.0
        %3310 = vmatpush1.msra.mxu0 0.0
        %3311 = vmatprep.subr.mxu0 0.0
        %3312 = vmatpush1.msra.mxu0 0.0
        %3313 = vmatprep.subr.mxu0 0.0
        %3314 = vmatpush1.msra.mxu0 0.0
        %3315 = vmatprep.subr.mxu0 0.0
        %3316 = vmatpush1.msra.mxu0 0.0
        %3317 = vmatprep.mubr.f32.mxu0 0.0
        %3318 = vmatmul.mubr.f32.gmra.mrb[0].mxu0 %v3037
        %v3319 = vpop.f32.mrb[0].mxu0
        %v3320 = vadd.f32 0.0, %v3319
        %v3321 = vpop.f32.mrb[0].mxu0
        %v3322 = vadd.f32 0.0, %v3321
        %3323 = vdwg.mxu0
        %3324 = vmatprep.subr.mxu0 %v800
        %3325 = vmatpush1.msra.mxu0 %v799
        %3326 = vmatprep.subr.mxu0 %v810
        %3327 = vmatpush1.msra.mxu0 %v809
        %3328 = vmatprep.subr.mxu0 %v820
        %3329 = vmatpush1.msra.mxu0 %v819
        %3330 = vmatprep.subr.mxu0 %v830
        %3331 = vmatpush1.msra.mxu0 %v829
        %3332 = vmatprep.subr.mxu0 %v840
        %3333 = vmatpush1.msra.mxu0 %v839
        %3334 = vmatprep.subr.mxu0 %v850
        %3335 = vmatpush1.msra.mxu0 %v849
        %3336 = vmatprep.subr.mxu0 %v860
        %3337 = vmatpush1.msra.mxu0 %v859
        %3338 = vmatprep.subr.mxu0 %v870
        %3339 = vmatpush1.msra.mxu0 %v869
        %3340 = vmatprep.subr.mxu0 %v880
        %3341 = vmatpush1.msra.mxu0 %v879
        %3342 = vmatprep.subr.mxu0 %v890
        %3343 = vmatpush1.msra.mxu0 %v889
        %3344 = vmatprep.subr.mxu0 %v900
        %3345 = vmatpush1.msra.mxu0 %v899
        %3346 = vmatprep.subr.mxu0 %v910
        %3347 = vmatpush1.msra.mxu0 %v909
        %3348 = vmatprep.subr.mxu0 %v920
        %3349 = vmatpush1.msra.mxu0 %v919
        %3350 = vmatprep.subr.mxu0 %v930
        %3351 = vmatpush1.msra.mxu0 %v929
        %3352 = vmatprep.subr.mxu0 %v940
        %3353 = vmatpush1.msra.mxu0 %v939
        %3354 = vmatprep.subr.mxu0 %v950
        %3355 = vmatpush1.msra.mxu0 %v949
        %3356 = vmatprep.subr.mxu0 0.0
        %3357 = vmatpush1.msra.mxu0 0.0
        %3358 = vmatprep.subr.mxu0 0.0
        %3359 = vmatpush1.msra.mxu0 0.0
        %3360 = vmatprep.subr.mxu0 0.0
        %3361 = vmatpush1.msra.mxu0 0.0
        %3362 = vmatprep.subr.mxu0 0.0
        %3363 = vmatpush1.msra.mxu0 0.0
        %3364 = vmatprep.subr.mxu0 0.0
        %3365 = vmatpush1.msra.mxu0 0.0
        %3366 = vmatprep.subr.mxu0 0.0
        %3367 = vmatpush1.msra.mxu0 0.0
        %3368 = vmatprep.subr.mxu0 0.0
        %3369 = vmatpush1.msra.mxu0 0.0
        %3370 = vmatprep.subr.mxu0 0.0
        %3371 = vmatpush1.msra.mxu0 0.0
        %3372 = vmatprep.subr.mxu0 0.0
        %3373 = vmatpush1.msra.mxu0 0.0
        %3374 = vmatprep.subr.mxu0 0.0
        %3375 = vmatpush1.msra.mxu0 0.0
        %3376 = vmatprep.subr.mxu0 0.0
        %3377 = vmatpush1.msra.mxu0 0.0
        %3378 = vmatprep.subr.mxu0 0.0
        %3379 = vmatpush1.msra.mxu0 0.0
        %3380 = vmatprep.subr.mxu0 0.0
        %3381 = vmatpush1.msra.mxu0 0.0
        %3382 = vmatprep.subr.mxu0 0.0
        %3383 = vmatpush1.msra.mxu0 0.0
        %3384 = vmatprep.subr.mxu0 0.0
        %3385 = vmatpush1.msra.mxu0 0.0
        %3386 = vmatprep.subr.mxu0 0.0
        %3387 = vmatpush1.msra.mxu0 0.0
        %3388 = vmatprep.mubr.f32.mxu0 0.0
        %3389 = vmatmul.mubr.f32.gmra.mrb[0].mxu0 %v3037
        %v3390 = vpop.f32.mrb[0].mxu0
        %v3391 = vadd.f32 0.0, %v3390
        %v3392 = vpop.f32.mrb[0].mxu0
        %v3393 = vadd.f32 0.0, %v3392
        %3394 = vdwg.mxu0
        %3395 = vmatprep.subr.mxu0 %v952
        %3396 = vmatpush1.msra.mxu0 %v951
        %3397 = vmatprep.subr.mxu0 %v962
        %3398 = vmatpush1.msra.mxu0 %v961
        %3399 = vmatprep.subr.mxu0 %v972
        %3400 = vmatpush1.msra.mxu0 %v971
        %3401 = vmatprep.subr.mxu0 %v982
        %3402 = vmatpush1.msra.mxu0 %v981
        %3403 = vmatprep.subr.mxu0 %v992
        %3404 = vmatpush1.msra.mxu0 %v991
        %3405 = vmatprep.subr.mxu0 %v1002
        %3406 = vmatpush1.msra.mxu0 %v1001
        %3407 = vmatprep.subr.mxu0 %v1012
        %3408 = vmatpush1.msra.mxu0 %v1011
        %3409 = vmatprep.subr.mxu0 %v1022
        %3410 = vmatpush1.msra.mxu0 %v1021
        %3411 = vmatprep.subr.mxu0 %v1032
        %3412 = vmatpush1.msra.mxu0 %v1031
        %3413 = vmatprep.subr.mxu0 %v1042
        %3414 = vmatpush1.msra.mxu0 %v1041
        %3415 = vmatprep.subr.mxu0 %v1052
        %3416 = vmatpush1.msra.mxu0 %v1051
        %3417 = vmatprep.subr.mxu0 %v1062
        %3418 = vmatpush1.msra.mxu0 %v1061
        %3419 = vmatprep.subr.mxu0 %v1072
        %3420 = vmatpush1.msra.mxu0 %v1071
        %3421 = vmatprep.subr.mxu0 %v1082
        %3422 = vmatpush1.msra.mxu0 %v1081
        %3423 = vmatprep.subr.mxu0 %v1092
        %3424 = vmatpush1.msra.mxu0 %v1091
        %3425 = vmatprep.subr.mxu0 %v1102
        %3426 = vmatpush1.msra.mxu0 %v1101
        %3427 = vmatprep.subr.mxu0 0.0
        %3428 = vmatpush1.msra.mxu0 0.0
        %3429 = vmatprep.subr.mxu0 0.0
        %3430 = vmatpush1.msra.mxu0 0.0
        %3431 = vmatprep.subr.mxu0 0.0
        %3432 = vmatpush1.msra.mxu0 0.0
        %3433 = vmatprep.subr.mxu0 0.0
        %3434 = vmatpush1.msra.mxu0 0.0
        %3435 = vmatprep.subr.mxu0 0.0
        %3436 = vmatpush1.msra.mxu0 0.0
        %3437 = vmatprep.subr.mxu0 0.0
        %3438 = vmatpush1.msra.mxu0 0.0
        %3439 = vmatprep.subr.mxu0 0.0
        %3440 = vmatpush1.msra.mxu0 0.0
        %3441 = vmatprep.subr.mxu0 0.0
        %3442 = vmatpush1.msra.mxu0 0.0
        %3443 = vmatprep.subr.mxu0 0.0
        %3444 = vmatpush1.msra.mxu0 0.0
        %3445 = vmatprep.subr.mxu0 0.0
        %3446 = vmatpush1.msra.mxu0 0.0
        %3447 = vmatprep.subr.mxu0 0.0
        %3448 = vmatpush1.msra.mxu0 0.0
        %3449 = vmatprep.subr.mxu0 0.0
        %3450 = vmatpush1.msra.mxu0 0.0
        %3451 = vmatprep.subr.mxu0 0.0
        %3452 = vmatpush1.msra.mxu0 0.0
        %3453 = vmatprep.subr.mxu0 0.0
        %3454 = vmatpush1.msra.mxu0 0.0
        %3455 = vmatprep.subr.mxu0 0.0
        %3456 = vmatpush1.msra.mxu0 0.0
        %3457 = vmatprep.subr.mxu0 0.0
        %3458 = vmatpush1.msra.mxu0 0.0
        %3459 = vmatprep.mubr.f32.mxu0 0.0
        %3460 = vmatmul.mubr.f32.gmra.mrb[0].mxu0 %v2962
        %v3461 = vpop.f32.mrb[0].mxu0
        %v3462 = vadd.f32 0.0, %v3461
        %v3463 = vpop.f32.mrb[0].mxu0
        %v3464 = vadd.f32 0.0, %v3463
        %3465 = vdwg.mxu0
        %3466 = vmatprep.subr.mxu0 %v954
        %3467 = vmatpush1.msra.mxu0 %v953
        %3468 = vmatprep.subr.mxu0 %v964
        %3469 = vmatpush1.msra.mxu0 %v963
        %3470 = vmatprep.subr.mxu0 %v974
        %3471 = vmatpush1.msra.mxu0 %v973
        %3472 = vmatprep.subr.mxu0 %v984
        %3473 = vmatpush1.msra.mxu0 %v983
        %3474 = vmatprep.subr.mxu0 %v994
        %3475 = vmatpush1.msra.mxu0 %v993
        %3476 = vmatprep.subr.mxu0 %v1004
        %3477 = vmatpush1.msra.mxu0 %v1003
        %3478 = vmatprep.subr.mxu0 %v1014
        %3479 = vmatpush1.msra.mxu0 %v1013
        %3480 = vmatprep.subr.mxu0 %v1024
        %3481 = vmatpush1.msra.mxu0 %v1023
        %3482 = vmatprep.subr.mxu0 %v1034
        %3483 = vmatpush1.msra.mxu0 %v1033
        %3484 = vmatprep.subr.mxu0 %v1044
        %3485 = vmatpush1.msra.mxu0 %v1043
        %3486 = vmatprep.subr.mxu0 %v1054
        %3487 = vmatpush1.msra.mxu0 %v1053
        %3488 = vmatprep.subr.mxu0 %v1064
        %3489 = vmatpush1.msra.mxu0 %v1063
        %3490 = vmatprep.subr.mxu0 %v1074
        %3491 = vmatpush1.msra.mxu0 %v1073
        %3492 = vmatprep.subr.mxu0 %v1084
        %3493 = vmatpush1.msra.mxu0 %v1083
        %3494 = vmatprep.subr.mxu0 %v1094
        %3495 = vmatpush1.msra.mxu0 %v1093
        %3496 = vmatprep.subr.mxu0 %v1104
        %3497 = vmatpush1.msra.mxu0 %v1103
        %3498 = vmatprep.subr.mxu0 0.0
        %3499 = vmatpush1.msra.mxu0 0.0
        %3500 = vmatprep.subr.mxu0 0.0
        %3501 = vmatpush1.msra.mxu0 0.0
        %3502 = vmatprep.subr.mxu0 0.0
        %3503 = vmatpush1.msra.mxu0 0.0
        %3504 = vmatprep.subr.mxu0 0.0
        %3505 = vmatpush1.msra.mxu0 0.0
        %3506 = vmatprep.subr.mxu0 0.0
        %3507 = vmatpush1.msra.mxu0 0.0
        %3508 = vmatprep.subr.mxu0 0.0
        %3509 = vmatpush1.msra.mxu0 0.0
        %3510 = vmatprep.subr.mxu0 0.0
        %3511 = vmatpush1.msra.mxu0 0.0
        %3512 = vmatprep.subr.mxu0 0.0
        %3513 = vmatpush1.msra.mxu0 0.0
        %3514 = vmatprep.subr.mxu0 0.0
        %3515 = vmatpush1.msra.mxu0 0.0
        %3516 = vmatprep.subr.mxu0 0.0
        %3517 = vmatpush1.msra.mxu0 0.0
        %3518 = vmatprep.subr.mxu0 0.0
        %3519 = vmatpush1.msra.mxu0 0.0
        %3520 = vmatprep.subr.mxu0 0.0
        %3521 = vmatpush1.msra.mxu0 0.0
        %3522 = vmatprep.subr.mxu0 0.0
        %3523 = vmatpush1.msra.mxu0 0.0
        %3524 = vmatprep.subr.mxu0 0.0
        %3525 = vmatpush1.msra.mxu0 0.0
        %3526 = vmatprep.subr.mxu0 0.0
        %3527 = vmatpush1.msra.mxu0 0.0
        %3528 = vmatprep.subr.mxu0 0.0
        %3529 = vmatpush1.msra.mxu0 0.0
        %3530 = vmatprep.mubr.f32.mxu0 0.0
        %3531 = vmatmul.mubr.f32.gmra.mrb[0].mxu0 %v2962
        %v3532 = vpop.f32.mrb[0].mxu0
        %v3533 = vadd.f32 0.0, %v3532
        %v3534 = vpop.f32.mrb[0].mxu0
        %v3535 = vadd.f32 0.0, %v3534
        %3536 = vdwg.mxu0
        %3537 = vmatprep.subr.mxu0 %v956
        %3538 = vmatpush1.msra.mxu0 %v955
        %3539 = vmatprep.subr.mxu0 %v966
        %3540 = vmatpush1.msra.mxu0 %v965
        %3541 = vmatprep.subr.mxu0 %v976
        %3542 = vmatpush1.msra.mxu0 %v975
        %3543 = vmatprep.subr.mxu0 %v986
        %3544 = vmatpush1.msra.mxu0 %v985
        %3545 = vmatprep.subr.mxu0 %v996
        %3546 = vmatpush1.msra.mxu0 %v995
        %3547 = vmatprep.subr.mxu0 %v1006
        %3548 = vmatpush1.msra.mxu0 %v1005
        %3549 = vmatprep.subr.mxu0 %v1016
        %3550 = vmatpush1.msra.mxu0 %v1015
        %3551 = vmatprep.subr.mxu0 %v1026
        %3552 = vmatpush1.msra.mxu0 %v1025
        %3553 = vmatprep.subr.mxu0 %v1036
        %3554 = vmatpush1.msra.mxu0 %v1035
        %3555 = vmatprep.subr.mxu0 %v1046
        %3556 = vmatpush1.msra.mxu0 %v1045
        %3557 = vmatprep.subr.mxu0 %v1056
        %3558 = vmatpush1.msra.mxu0 %v1055
        %3559 = vmatprep.subr.mxu0 %v1066
        %3560 = vmatpush1.msra.mxu0 %v1065
        %3561 = vmatprep.subr.mxu0 %v1076
        %3562 = vmatpush1.msra.mxu0 %v1075
        %3563 = vmatprep.subr.mxu0 %v1086
        %3564 = vmatpush1.msra.mxu0 %v1085
        %3565 = vmatprep.subr.mxu0 %v1096
        %3566 = vmatpush1.msra.mxu0 %v1095
        %3567 = vmatprep.subr.mxu0 %v1106
        %3568 = vmatpush1.msra.mxu0 %v1105
        %3569 = vmatprep.subr.mxu0 0.0
        %3570 = vmatpush1.msra.mxu0 0.0
        %3571 = vmatprep.subr.mxu0 0.0
        %3572 = vmatpush1.msra.mxu0 0.0
        %3573 = vmatprep.subr.mxu0 0.0
        %3574 = vmatpush1.msra.mxu0 0.0
        %3575 = vmatprep.subr.mxu0 0.0
        %3576 = vmatpush1.msra.mxu0 0.0
        %3577 = vmatprep.subr.mxu0 0.0
        %3578 = vmatpush1.msra.mxu0 0.0
        %3579 = vmatprep.subr.mxu0 0.0
        %3580 = vmatpush1.msra.mxu0 0.0
        %3581 = vmatprep.subr.mxu0 0.0
        %3582 = vmatpush1.msra.mxu0 0.0
        %3583 = vmatprep.subr.mxu0 0.0
        %3584 = vmatpush1.msra.mxu0 0.0
        %3585 = vmatprep.subr.mxu0 0.0
        %3586 = vmatpush1.msra.mxu0 0.0
        %3587 = vmatprep.subr.mxu0 0.0
        %3588 = vmatpush1.msra.mxu0 0.0
        %3589 = vmatprep.subr.mxu0 0.0
        %3590 = vmatpush1.msra.mxu0 0.0
        %3591 = vmatprep.subr.mxu0 0.0
        %3592 = vmatpush1.msra.mxu0 0.0
        %3593 = vmatprep.subr.mxu0 0.0
        %3594 = vmatpush1.msra.mxu0 0.0
        %3595 = vmatprep.subr.mxu0 0.0
        %3596 = vmatpush1.msra.mxu0 0.0
        %3597 = vmatprep.subr.mxu0 0.0
        %3598 = vmatpush1.msra.mxu0 0.0
        %3599 = vmatprep.subr.mxu0 0.0
        %3600 = vmatpush1.msra.mxu0 0.0
        %3601 = vmatprep.mubr.f32.mxu0 0.0
        %3602 = vmatmul.mubr.f32.gmra.mrb[0].mxu0 %v2962
        %v3603 = vpop.f32.mrb[0].mxu0
        %v3604 = vadd.f32 0.0, %v3603
        %v3605 = vpop.f32.mrb[0].mxu0
        %v3606 = vadd.f32 0.0, %v3605
        %3607 = vdwg.mxu0
        %3608 = vmatprep.subr.mxu0 %v958
        %3609 = vmatpush1.msra.mxu0 %v957
        %3610 = vmatprep.subr.mxu0 %v968
        %3611 = vmatpush1.msra.mxu0 %v967
        %3612 = vmatprep.subr.mxu0 %v978
        %3613 = vmatpush1.msra.mxu0 %v977
        %3614 = vmatprep.subr.mxu0 %v988
        %3615 = vmatpush1.msra.mxu0 %v987
        %3616 = vmatprep.subr.mxu0 %v998
        %3617 = vmatpush1.msra.mxu0 %v997
        %3618 = vmatprep.subr.mxu0 %v1008
        %3619 = vmatpush1.msra.mxu0 %v1007
        %3620 = vmatprep.subr.mxu0 %v1018
        %3621 = vmatpush1.msra.mxu0 %v1017
        %3622 = vmatprep.subr.mxu0 %v1028
        %3623 = vmatpush1.msra.mxu0 %v1027
        %3624 = vmatprep.subr.mxu0 %v1038
        %3625 = vmatpush1.msra.mxu0 %v1037
        %3626 = vmatprep.subr.mxu0 %v1048
        %3627 = vmatpush1.msra.mxu0 %v1047
        %3628 = vmatprep.subr.mxu0 %v1058
        %3629 = vmatpush1.msra.mxu0 %v1057
        %3630 = vmatprep.subr.mxu0 %v1068
        %3631 = vmatpush1.msra.mxu0 %v1067
        %3632 = vmatprep.subr.mxu0 %v1078
        %3633 = vmatpush1.msra.mxu0 %v1077
        %3634 = vmatprep.subr.mxu0 %v1088
        %3635 = vmatpush1.msra.mxu0 %v1087
        %3636 = vmatprep.subr.mxu0 %v1098
        %3637 = vmatpush1.msra.mxu0 %v1097
        %3638 = vmatprep.subr.mxu0 %v1108
        %3639 = vmatpush1.msra.mxu0 %v1107
        %3640 = vmatprep.subr.mxu0 0.0
        %3641 = vmatpush1.msra.mxu0 0.0
        %3642 = vmatprep.subr.mxu0 0.0
        %3643 = vmatpush1.msra.mxu0 0.0
        %3644 = vmatprep.subr.mxu0 0.0
        %3645 = vmatpush1.msra.mxu0 0.0
        %3646 = vmatprep.subr.mxu0 0.0
        %3647 = vmatpush1.msra.mxu0 0.0
        %3648 = vmatprep.subr.mxu0 0.0
        %3649 = vmatpush1.msra.mxu0 0.0
        %3650 = vmatprep.subr.mxu0 0.0
        %3651 = vmatpush1.msra.mxu0 0.0
        %3652 = vmatprep.subr.mxu0 0.0
        %3653 = vmatpush1.msra.mxu0 0.0
        %3654 = vmatprep.subr.mxu0 0.0
        %3655 = vmatpush1.msra.mxu0 0.0
        %3656 = vmatprep.subr.mxu0 0.0
        %3657 = vmatpush1.msra.mxu0 0.0
        %3658 = vmatprep.subr.mxu0 0.0
        %3659 = vmatpush1.msra.mxu0 0.0
        %3660 = vmatprep.subr.mxu0 0.0
        %3661 = vmatpush1.msra.mxu0 0.0
        %3662 = vmatprep.subr.mxu0 0.0
        %3663 = vmatpush1.msra.mxu0 0.0
        %3664 = vmatprep.subr.mxu0 0.0
        %3665 = vmatpush1.msra.mxu0 0.0
        %3666 = vmatprep.subr.mxu0 0.0
        %3667 = vmatpush1.msra.mxu0 0.0
        %3668 = vmatprep.subr.mxu0 0.0
        %3669 = vmatpush1.msra.mxu0 0.0
        %3670 = vmatprep.subr.mxu0 0.0
        %3671 = vmatpush1.msra.mxu0 0.0
        %3672 = vmatprep.mubr.f32.mxu0 0.0
        %3673 = vmatmul.mubr.f32.gmra.mrb[0].mxu0 %v2962
        %v3674 = vpop.f32.mrb[0].mxu0
        %v3675 = vadd.f32 0.0, %v3674
        %v3676 = vpop.f32.mrb[0].mxu0
        %v3677 = vadd.f32 0.0, %v3676
        %3678 = vdwg.mxu0
        %3679 = vmatprep.subr.mxu0 %v960
        %3680 = vmatpush1.msra.mxu0 %v959
        %3681 = vmatprep.subr.mxu0 %v970
        %3682 = vmatpush1.msra.mxu0 %v969
        %3683 = vmatprep.subr.mxu0 %v980
        %3684 = vmatpush1.msra.mxu0 %v979
        %3685 = vmatprep.subr.mxu0 %v990
        %3686 = vmatpush1.msra.mxu0 %v989
        %3687 = vmatprep.subr.mxu0 %v1000
        %3688 = vmatpush1.msra.mxu0 %v999
        %3689 = vmatprep.subr.mxu0 %v1010
        %3690 = vmatpush1.msra.mxu0 %v1009
        %3691 = vmatprep.subr.mxu0 %v1020
        %3692 = vmatpush1.msra.mxu0 %v1019
        %3693 = vmatprep.subr.mxu0 %v1030
        %3694 = vmatpush1.msra.mxu0 %v1029
        %3695 = vmatprep.subr.mxu0 %v1040
        %3696 = vmatpush1.msra.mxu0 %v1039
        %3697 = vmatprep.subr.mxu0 %v1050
        %3698 = vmatpush1.msra.mxu0 %v1049
        %3699 = vmatprep.subr.mxu0 %v1060
        %3700 = vmatpush1.msra.mxu0 %v1059
        %3701 = vmatprep.subr.mxu0 %v1070
        %3702 = vmatpush1.msra.mxu0 %v1069
        %3703 = vmatprep.subr.mxu0 %v1080
        %3704 = vmatpush1.msra.mxu0 %v1079
        %3705 = vmatprep.subr.mxu0 %v1090
        %3706 = vmatpush1.msra.mxu0 %v1089
        %3707 = vmatprep.subr.mxu0 %v1100
        %3708 = vmatpush1.msra.mxu0 %v1099
        %3709 = vmatprep.subr.mxu0 %v1110
        %3710 = vmatpush1.msra.mxu0 %v1109
        %3711 = vmatprep.subr.mxu0 0.0
        %3712 = vmatpush1.msra.mxu0 0.0
        %3713 = vmatprep.subr.mxu0 0.0
        %3714 = vmatpush1.msra.mxu0 0.0
        %3715 = vmatprep.subr.mxu0 0.0
        %3716 = vmatpush1.msra.mxu0 0.0
        %3717 = vmatprep.subr.mxu0 0.0
        %3718 = vmatpush1.msra.mxu0 0.0
        %3719 = vmatprep.subr.mxu0 0.0
        %3720 = vmatpush1.msra.mxu0 0.0
        %3721 = vmatprep.subr.mxu0 0.0
        %3722 = vmatpush1.msra.mxu0 0.0
        %3723 = vmatprep.subr.mxu0 0.0
        %3724 = vmatpush1.msra.mxu0 0.0
        %3725 = vmatprep.subr.mxu0 0.0
        %3726 = vmatpush1.msra.mxu0 0.0
        %3727 = vmatprep.subr.mxu0 0.0
        %3728 = vmatpush1.msra.mxu0 0.0
        %3729 = vmatprep.subr.mxu0 0.0
        %3730 = vmatpush1.msra.mxu0 0.0
        %3731 = vmatprep.subr.mxu0 0.0
        %3732 = vmatpush1.msra.mxu0 0.0
        %3733 = vmatprep.subr.mxu0 0.0
        %3734 = vmatpush1.msra.mxu0 0.0
        %3735 = vmatprep.subr.mxu0 0.0
        %3736 = vmatpush1.msra.mxu0 0.0
        %3737 = vmatprep.subr.mxu0 0.0
        %3738 = vmatpush1.msra.mxu0 0.0
        %3739 = vmatprep.subr.mxu0 0.0
        %3740 = vmatpush1.msra.mxu0 0.0
        %3741 = vmatprep.subr.mxu0 0.0
        %3742 = vmatpush1.msra.mxu0 0.0
        %3743 = vmatprep.mubr.f32.mxu0 0.0
        %3744 = vmatmul.mubr.f32.gmra.mrb[0].mxu0 %v2962
        %v3745 = vpop.f32.mrb[0].mxu0
        %v3746 = vadd.f32 0.0, %v3745
        %v3747 = vpop.f32.mrb[0].mxu0
        %v3748 = vadd.f32 0.0, %v3747
        %3749 = vdwg.mxu0
        %v3750 = vmul.f32 %v3107, %v3462
        %v3751 = vmul.f32 %v3109, %v3464
        %v3752 = vmul.f32 %v3178, %v3533
        %v3753 = vmul.f32 %v3180, %v3535
        %v3754 = vadd.f32 %v3750, %v3752
        %v3755 = vadd.f32 %v3751, %v3753
        %v3756 = vmul.f32 %v3249, %v3604
        %v3757 = vmul.f32 %v3251, %v3606
        %v3758 = vadd.f32 %v3754, %v3756
        %v3759 = vadd.f32 %v3755, %v3757
        %v3760 = vmul.f32 %v3320, %v3675
        %v3761 = vmul.f32 %v3322, %v3677
        %v3762 = vadd.f32 %v3758, %v3760
        %v3763 = vadd.f32 %v3759, %v3761
        %v3764 = vmul.f32 %v3391, %v3746
        %v3765 = vmul.f32 %v3393, %v3748
        %v3766 = vadd.f32 %v3762, %v3764
        %v3767 = vadd.f32 %v3763, %v3765
        %3768 = vst [vmem:[%s788] sm:$0xff] %v3766
        %3769 = vst [vmem:[%s788 + $0x8] sm:$0xff] %v3767
        %s3770 = scalar_lea.vmem %s629, 128 [#allocation9]
        %v3771 = vld [vmem:[%s3770] sm:$0xff]
        %v3772 = vld [vmem:[%s3770 + $0x8] sm:$0xff]
        %v3773 = vld [vmem:[%s3770 + $0x10] sm:$0xff]
        %v3774 = vld [vmem:[%s3770 + $0x18] sm:$0xff]
        %v3775 = vld [vmem:[%s3770 + $0x20] sm:$0xff]
        %v3776 = vld [vmem:[%s3770 + $0x28] sm:$0xff]
        %v3777 = vld [vmem:[%s3770 + $0x30] sm:$0xff]
        %v3778 = vld [vmem:[%s3770 + $0x38] sm:$0xff]
        %v3779 = vld [vmem:[%s3770 + $0x40] sm:$0xff]
        %v3780 = vld [vmem:[%s3770 + $0x48] sm:$0xff]
        %v3781 = vld [vmem:[%s3770 + $0x50] sm:$0xff]
        %v3782 = vld [vmem:[%s3770 + $0x58] sm:$0xff]
        %v3783 = vld [vmem:[%s3770 + $0x60] sm:$0xff]
        %v3784 = vld [vmem:[%s3770 + $0x68] sm:$0xff]
        %v3785 = vld [vmem:[%s3770 + $0x70] sm:$0xff]
        %v3786 = vld [vmem:[%s3770 + $0x78] sm:$0xff]
        %v3787 = vunpack.c.l.bf16 %v3771
        %v3788 = vunpack.c.h.bf16 %v3771
        %v3789 = vunpack.c.l.bf16 %v3772
        %v3790 = vunpack.c.h.bf16 %v3772
        %v3791 = vunpack.c.l.bf16 %v3773
        %v3792 = vunpack.c.h.bf16 %v3773
        %v3793 = vunpack.c.l.bf16 %v3774
        %v3794 = vunpack.c.h.bf16 %v3774
        %v3795 = vunpack.c.l.bf16 %v3775
        %v3796 = vunpack.c.h.bf16 %v3775
        %v3797 = vunpack.c.l.bf16 %v3776
        %v3798 = vunpack.c.h.bf16 %v3776
        %v3799 = vunpack.c.l.bf16 %v3777
        %v3800 = vunpack.c.h.bf16 %v3777
        %v3801 = vunpack.c.l.bf16 %v3778
        %v3802 = vunpack.c.h.bf16 %v3778
        %v3803 = vunpack.c.l.bf16 %v3779
        %v3804 = vunpack.c.h.bf16 %v3779
        %v3805 = vunpack.c.l.bf16 %v3780
        %v3806 = vunpack.c.h.bf16 %v3780
        %v3807 = vunpack.c.l.bf16 %v3781
        %v3808 = vunpack.c.h.bf16 %v3781
        %v3809 = vunpack.c.l.bf16 %v3782
        %v3810 = vunpack.c.h.bf16 %v3782
        %v3811 = vunpack.c.l.bf16 %v3783
        %v3812 = vunpack.c.h.bf16 %v3783
        %v3813 = vunpack.c.l.bf16 %v3784
        %v3814 = vunpack.c.h.bf16 %v3784
        %v3815 = vunpack.c.l.bf16 %v3785
        %v3816 = vunpack.c.h.bf16 %v3785
        %v3817 = vunpack.c.l.bf16 %v3786
        %v3818 = vunpack.c.h.bf16 %v3786
        %s3819 = scalar_lea.vmem %s638, 8 [#allocation10]
        %v3820 = vld [vmem:[%s3819] sm:$0xff]
        %v3822 = vlaneseq
        %v3823 = vshrl.u32 %v3822, 7
        %v3824 = vsub.s32 0, %v3823
        %v3825 = vrot.slane %v3820, %v3824
        %v3826 = vlaneseq
        %v3827 = vshrl.u32 %v3826, 7
        %v3828 = vsub.s32 1, %v3827
        %v3829 = vrot.slane %v3820, %v3828
        %v3830 = vlaneseq
        %v3831 = vshrl.u32 %v3830, 7
        %v3832 = vsub.s32 2, %v3831
        %v3833 = vrot.slane %v3820, %v3832
        %v3834 = vlaneseq
        %v3835 = vshrl.u32 %v3834, 7
        %v3836 = vsub.s32 3, %v3835
        %v3837 = vrot.slane %v3820, %v3836
        %v3838 = vlaneseq
        %v3839 = vshrl.u32 %v3838, 7
        %v3840 = vsub.s32 4, %v3839
        %v3841 = vrot.slane %v3820, %v3840
        %v3842 = vlaneseq
        %v3843 = vshrl.u32 %v3842, 7
        %v3844 = vsub.s32 5, %v3843
        %v3845 = vrot.slane %v3820, %v3844
        %v3846 = vlaneseq
        %v3847 = vshrl.u32 %v3846, 7
        %v3848 = vsub.s32 6, %v3847
        %v3849 = vrot.slane %v3820, %v3848
        %v3850 = vlaneseq
        %v3851 = vshrl.u32 %v3850, 7
        %v3852 = vsub.s32 7, %v3851
        %v3853 = vrot.slane %v3820, %v3852
        %3862 = vmatprep.subr.mxu0 %v3788
        %3863 = vmatpush1.msra.mxu0 %v3787
        %3864 = vmatprep.subr.mxu0 %v3796
        %3865 = vmatpush1.msra.mxu0 %v3795
        %3866 = vmatprep.subr.mxu0 %v3804
        %3867 = vmatpush1.msra.mxu0 %v3803
        %3868 = vmatprep.subr.mxu0 %v3812
        %3869 = vmatpush1.msra.mxu0 %v3811
        %3870 = vmatprep.subr.mxu0 0.0
        %3871 = vmatpush1.msra.mxu0 0.0
        %3872 = vmatprep.subr.mxu0 0.0
        %3873 = vmatpush1.msra.mxu0 0.0
        %3874 = vmatprep.subr.mxu0 0.0
        %3875 = vmatpush1.msra.mxu0 0.0
        %3876 = vmatprep.subr.mxu0 0.0
        %3877 = vmatpush1.msra.mxu0 0.0
        %3878 = vmatprep.subr.mxu0 0.0
        %3879 = vmatpush1.msra.mxu0 0.0
        %3880 = vmatprep.subr.mxu0 0.0
        %3881 = vmatpush1.msra.mxu0 0.0
        %3882 = vmatprep.subr.mxu0 0.0
        %3883 = vmatpush1.msra.mxu0 0.0
        %3884 = vmatprep.subr.mxu0 0.0
        %3885 = vmatpush1.msra.mxu0 0.0
        %3886 = vmatprep.subr.mxu0 0.0
        %3887 = vmatpush1.msra.mxu0 0.0
        %3888 = vmatprep.subr.mxu0 0.0
        %3889 = vmatpush1.msra.mxu0 0.0
        %3890 = vmatprep.subr.mxu0 0.0
        %3891 = vmatpush1.msra.mxu0 0.0
        %3892 = vmatprep.subr.mxu0 0.0
        %3893 = vmatpush1.msra.mxu0 0.0
        %3894 = vmatprep.subr.mxu0 0.0
        %3895 = vmatpush1.msra.mxu0 0.0
        %3896 = vmatprep.subr.mxu0 0.0
        %3897 = vmatpush1.msra.mxu0 0.0
        %3898 = vmatprep.subr.mxu0 0.0
        %3899 = vmatpush1.msra.mxu0 0.0
        %3900 = vmatprep.subr.mxu0 0.0
        %3901 = vmatpush1.msra.mxu0 0.0
        %3902 = vmatprep.subr.mxu0 0.0
        %3903 = vmatpush1.msra.mxu0 0.0
        %3904 = vmatprep.subr.mxu0 0.0
        %3905 = vmatpush1.msra.mxu0 0.0
        %3906 = vmatprep.subr.mxu0 0.0
        %3907 = vmatpush1.msra.mxu0 0.0
        %3908 = vmatprep.subr.mxu0 0.0
        %3909 = vmatpush1.msra.mxu0 0.0
        %3910 = vmatprep.subr.mxu0 0.0
        %3911 = vmatpush1.msra.mxu0 0.0
        %3912 = vmatprep.subr.mxu0 0.0
        %3913 = vmatpush1.msra.mxu0 0.0
        %3914 = vmatprep.subr.mxu0 0.0
        %3915 = vmatpush1.msra.mxu0 0.0
        %3916 = vmatprep.subr.mxu0 0.0
        %3917 = vmatpush1.msra.mxu0 0.0
        %3918 = vmatprep.subr.mxu0 0.0
        %3919 = vmatpush1.msra.mxu0 0.0
        %3920 = vmatprep.subr.mxu0 0.0
        %3921 = vmatpush1.msra.mxu0 0.0
        %3922 = vmatprep.subr.mxu0 0.0
        %3923 = vmatpush1.msra.mxu0 0.0
        %3924 = vmatprep.subr.mxu0 0.0
        %3925 = vmatpush1.msra.mxu0 0.0
        %3926 = vmatprep.mubr.f32.mxu0 0.0
        %3927 = vmatmul.mubr.f32.gmra.mrb[0].mxu0 %v1203
        %v3928 = vpop.f32.mrb[0].mxu0
        %v3929 = vadd.f32 %v3825, %v3928
        %v3930 = vpop.f32.mrb[0].mxu0
        %v3931 = vadd.f32 %v3829, %v3930
        %3932 = vdwg.mxu0
        %3933 = vmatprep.subr.mxu0 %v3790
        %3934 = vmatpush1.msra.mxu0 %v3789
        %3935 = vmatprep.subr.mxu0 %v3798
        %3936 = vmatpush1.msra.mxu0 %v3797
        %3937 = vmatprep.subr.mxu0 %v3806
        %3938 = vmatpush1.msra.mxu0 %v3805
        %3939 = vmatprep.subr.mxu0 %v3814
        %3940 = vmatpush1.msra.mxu0 %v3813
        %3941 = vmatprep.subr.mxu0 0.0
        %3942 = vmatpush1.msra.mxu0 0.0
        %3943 = vmatprep.subr.mxu0 0.0
        %3944 = vmatpush1.msra.mxu0 0.0
        %3945 = vmatprep.subr.mxu0 0.0
        %3946 = vmatpush1.msra.mxu0 0.0
        %3947 = vmatprep.subr.mxu0 0.0
        %3948 = vmatpush1.msra.mxu0 0.0
        %3949 = vmatprep.subr.mxu0 0.0
        %3950 = vmatpush1.msra.mxu0 0.0
        %3951 = vmatprep.subr.mxu0 0.0
        %3952 = vmatpush1.msra.mxu0 0.0
        %3953 = vmatprep.subr.mxu0 0.0
        %3954 = vmatpush1.msra.mxu0 0.0
        %3955 = vmatprep.subr.mxu0 0.0
        %3956 = vmatpush1.msra.mxu0 0.0
        %3957 = vmatprep.subr.mxu0 0.0
        %3958 = vmatpush1.msra.mxu0 0.0
        %3959 = vmatprep.subr.mxu0 0.0
        %3960 = vmatpush1.msra.mxu0 0.0
        %3961 = vmatprep.subr.mxu0 0.0
        %3962 = vmatpush1.msra.mxu0 0.0
        %3963 = vmatprep.subr.mxu0 0.0
        %3964 = vmatpush1.msra.mxu0 0.0
        %3965 = vmatprep.subr.mxu0 0.0
        %3966 = vmatpush1.msra.mxu0 0.0
        %3967 = vmatprep.subr.mxu0 0.0
        %3968 = vmatpush1.msra.mxu0 0.0
        %3969 = vmatprep.subr.mxu0 0.0
        %3970 = vmatpush1.msra.mxu0 0.0
        %3971 = vmatprep.subr.mxu0 0.0
        %3972 = vmatpush1.msra.mxu0 0.0
        %3973 = vmatprep.subr.mxu0 0.0
        %3974 = vmatpush1.msra.mxu0 0.0
        %3975 = vmatprep.subr.mxu0 0.0
        %3976 = vmatpush1.msra.mxu0 0.0
        %3977 = vmatprep.subr.mxu0 0.0
        %3978 = vmatpush1.msra.mxu0 0.0
        %3979 = vmatprep.subr.mxu0 0.0
        %3980 = vmatpush1.msra.mxu0 0.0
        %3981 = vmatprep.subr.mxu0 0.0
        %3982 = vmatpush1.msra.mxu0 0.0
        %3983 = vmatprep.subr.mxu0 0.0
        %3984 = vmatpush1.msra.mxu0 0.0
        %3985 = vmatprep.subr.mxu0 0.0
        %3986 = vmatpush1.msra.mxu0 0.0
        %3987 = vmatprep.subr.mxu0 0.0
        %3988 = vmatpush1.msra.mxu0 0.0
        %3989 = vmatprep.subr.mxu0 0.0
        %3990 = vmatpush1.msra.mxu0 0.0
        %3991 = vmatprep.subr.mxu0 0.0
        %3992 = vmatpush1.msra.mxu0 0.0
        %3993 = vmatprep.subr.mxu0 0.0
        %3994 = vmatpush1.msra.mxu0 0.0
        %3995 = vmatprep.subr.mxu0 0.0
        %3996 = vmatpush1.msra.mxu0 0.0
        %3997 = vmatprep.mubr.f32.mxu0 0.0
        %3998 = vmatmul.mubr.f32.gmra.mrb[0].mxu0 %v1203
        %v3999 = vpop.f32.mrb[0].mxu0
        %v4000 = vadd.f32 %v3833, %v3999
        %v4001 = vpop.f32.mrb[0].mxu0
        %v4002 = vadd.f32 %v3837, %v4001
        %4003 = vdwg.mxu0
        %4004 = vmatprep.subr.mxu0 %v3792
        %4005 = vmatpush1.msra.mxu0 %v3791
        %4006 = vmatprep.subr.mxu0 %v3800
        %4007 = vmatpush1.msra.mxu0 %v3799
        %4008 = vmatprep.subr.mxu0 %v3808
        %4009 = vmatpush1.msra.mxu0 %v3807
        %4010 = vmatprep.subr.mxu0 %v3816
        %4011 = vmatpush1.msra.mxu0 %v3815
        %4012 = vmatprep.subr.mxu0 0.0
        %4013 = vmatpush1.msra.mxu0 0.0
        %4014 = vmatprep.subr.mxu0 0.0
        %4015 = vmatpush1.msra.mxu0 0.0
        %4016 = vmatprep.subr.mxu0 0.0
        %4017 = vmatpush1.msra.mxu0 0.0
        %4018 = vmatprep.subr.mxu0 0.0
        %4019 = vmatpush1.msra.mxu0 0.0
        %4020 = vmatprep.subr.mxu0 0.0
        %4021 = vmatpush1.msra.mxu0 0.0
        %4022 = vmatprep.subr.mxu0 0.0
        %4023 = vmatpush1.msra.mxu0 0.0
        %4024 = vmatprep.subr.mxu0 0.0
        %4025 = vmatpush1.msra.mxu0 0.0
        %4026 = vmatprep.subr.mxu0 0.0
        %4027 = vmatpush1.msra.mxu0 0.0
        %4028 = vmatprep.subr.mxu0 0.0
        %4029 = vmatpush1.msra.mxu0 0.0
        %4030 = vmatprep.subr.mxu0 0.0
        %4031 = vmatpush1.msra.mxu0 0.0
        %4032 = vmatprep.subr.mxu0 0.0
        %4033 = vmatpush1.msra.mxu0 0.0
        %4034 = vmatprep.subr.mxu0 0.0
        %4035 = vmatpush1.msra.mxu0 0.0
        %4036 = vmatprep.subr.mxu0 0.0
        %4037 = vmatpush1.msra.mxu0 0.0
        %4038 = vmatprep.subr.mxu0 0.0
        %4039 = vmatpush1.msra.mxu0 0.0
        %4040 = vmatprep.subr.mxu0 0.0
        %4041 = vmatpush1.msra.mxu0 0.0
        %4042 = vmatprep.subr.mxu0 0.0
        %4043 = vmatpush1.msra.mxu0 0.0
        %4044 = vmatprep.subr.mxu0 0.0
        %4045 = vmatpush1.msra.mxu0 0.0
        %4046 = vmatprep.subr.mxu0 0.0
        %4047 = vmatpush1.msra.mxu0 0.0
        %4048 = vmatprep.subr.mxu0 0.0
        %4049 = vmatpush1.msra.mxu0 0.0
        %4050 = vmatprep.subr.mxu0 0.0
        %4051 = vmatpush1.msra.mxu0 0.0
        %4052 = vmatprep.subr.mxu0 0.0
        %4053 = vmatpush1.msra.mxu0 0.0
        %4054 = vmatprep.subr.mxu0 0.0
        %4055 = vmatpush1.msra.mxu0 0.0
        %4056 = vmatprep.subr.mxu0 0.0
        %4057 = vmatpush1.msra.mxu0 0.0
        %4058 = vmatprep.subr.mxu0 0.0
        %4059 = vmatpush1.msra.mxu0 0.0
        %4060 = vmatprep.subr.mxu0 0.0
        %4061 = vmatpush1.msra.mxu0 0.0
        %4062 = vmatprep.subr.mxu0 0.0
        %4063 = vmatpush1.msra.mxu0 0.0
        %4064 = vmatprep.subr.mxu0 0.0
        %4065 = vmatpush1.msra.mxu0 0.0
        %4066 = vmatprep.subr.mxu0 0.0
        %4067 = vmatpush1.msra.mxu0 0.0
        %4068 = vmatprep.mubr.f32.mxu0 0.0
        %4069 = vmatmul.mubr.f32.gmra.mrb[0].mxu0 %v1203
        %v4070 = vpop.f32.mrb[0].mxu0
        %v4071 = vadd.f32 %v3841, %v4070
        %v4072 = vpop.f32.mrb[0].mxu0
        %v4073 = vadd.f32 %v3845, %v4072
        %4074 = vdwg.mxu0
        %4075 = vmatprep.subr.mxu0 %v3794
        %4076 = vmatpush1.msra.mxu0 %v3793
        %4077 = vmatprep.subr.mxu0 %v3802
        %4078 = vmatpush1.msra.mxu0 %v3801
        %4079 = vmatprep.subr.mxu0 %v3810
        %4080 = vmatpush1.msra.mxu0 %v3809
        %4081 = vmatprep.subr.mxu0 %v3818
        %4082 = vmatpush1.msra.mxu0 %v3817
        %4083 = vmatprep.subr.mxu0 0.0
        %4084 = vmatpush1.msra.mxu0 0.0
        %4085 = vmatprep.subr.mxu0 0.0
        %4086 = vmatpush1.msra.mxu0 0.0
        %4087 = vmatprep.subr.mxu0 0.0
        %4088 = vmatpush1.msra.mxu0 0.0
        %4089 = vmatprep.subr.mxu0 0.0
        %4090 = vmatpush1.msra.mxu0 0.0
        %4091 = vmatprep.subr.mxu0 0.0
        %4092 = vmatpush1.msra.mxu0 0.0
        %4093 = vmatprep.subr.mxu0 0.0
        %4094 = vmatpush1.msra.mxu0 0.0
        %4095 = vmatprep.subr.mxu0 0.0
        %4096 = vmatpush1.msra.mxu0 0.0
        %4097 = vmatprep.subr.mxu0 0.0
        %4098 = vmatpush1.msra.mxu0 0.0
        %4099 = vmatprep.subr.mxu0 0.0
        %4100 = vmatpush1.msra.mxu0 0.0
        %4101 = vmatprep.subr.mxu0 0.0
        %4102 = vmatpush1.msra.mxu0 0.0
        %4103 = vmatprep.subr.mxu0 0.0
        %4104 = vmatpush1.msra.mxu0 0.0
        %4105 = vmatprep.subr.mxu0 0.0
        %4106 = vmatpush1.msra.mxu0 0.0
        %4107 = vmatprep.subr.mxu0 0.0
        %4108 = vmatpush1.msra.mxu0 0.0
        %4109 = vmatprep.subr.mxu0 0.0
        %4110 = vmatpush1.msra.mxu0 0.0
        %4111 = vmatprep.subr.mxu0 0.0
        %4112 = vmatpush1.msra.mxu0 0.0
        %4113 = vmatprep.subr.mxu0 0.0
        %4114 = vmatpush1.msra.mxu0 0.0
        %4115 = vmatprep.subr.mxu0 0.0
        %4116 = vmatpush1.msra.mxu0 0.0
        %4117 = vmatprep.subr.mxu0 0.0
        %4118 = vmatpush1.msra.mxu0 0.0
        %4119 = vmatprep.subr.mxu0 0.0
        %4120 = vmatpush1.msra.mxu0 0.0
        %4121 = vmatprep.subr.mxu0 0.0
        %4122 = vmatpush1.msra.mxu0 0.0
        %4123 = vmatprep.subr.mxu0 0.0
        %4124 = vmatpush1.msra.mxu0 0.0
        %4125 = vmatprep.subr.mxu0 0.0
        %4126 = vmatpush1.msra.mxu0 0.0
        %4127 = vmatprep.subr.mxu0 0.0
        %4128 = vmatpush1.msra.mxu0 0.0
        %4129 = vmatprep.subr.mxu0 0.0
        %4130 = vmatpush1.msra.mxu0 0.0
        %4131 = vmatprep.subr.mxu0 0.0
        %4132 = vmatpush1.msra.mxu0 0.0
        %4133 = vmatprep.subr.mxu0 0.0
        %4134 = vmatpush1.msra.mxu0 0.0
        %4135 = vmatprep.subr.mxu0 0.0
        %4136 = vmatpush1.msra.mxu0 0.0
        %4137 = vmatprep.subr.mxu0 0.0
        %4138 = vmatpush1.msra.mxu0 0.0
        %4139 = vmatprep.mubr.f32.mxu0 0.0
        %4140 = vmatmul.mubr.f32.gmra.mrb[0].mxu0 %v1203
        %v4141 = vpop.f32.mrb[0].mxu0
        %v4142 = vadd.f32 %v3849, %v4141
        %v4143 = vpop.f32.mrb[0].mxu0
        %v4144 = vadd.f32 %v3853, %v4143
        %4145 = vdwg.mxu0
        %v4146 = vmax.f32 %v3929, 0.0
        %v4147 = vmax.f32 %v3931, 0.0
        %v4148 = vmax.f32 %v4000, 0.0
        %v4149 = vmax.f32 %v4002, 0.0
        %v4150 = vmax.f32 %v4071, 0.0
        %v4151 = vmax.f32 %v4073, 0.0
        %v4152 = vmax.f32 %v4142, 0.0
        %v4153 = vmax.f32 %v4144, 0.0
        %s4154 = scalar_lea.vmem %s647, 512 [#allocation11]
        %v4155 = vld [vmem:[%s4154] sm:$0xf]
        %v4156 = vld [vmem:[%s4154 + $0x4] sm:$0xf]
        %v4157 = vld [vmem:[%s4154 + $0x8] sm:$0xf]
        %v4158 = vld [vmem:[%s4154 + $0xc] sm:$0xf]
        %v4159 = vld [vmem:[%s4154 + $0x10] sm:$0xf]
        %v4160 = vld [vmem:[%s4154 + $0x14] sm:$0xf]
        %v4161 = vld [vmem:[%s4154 + $0x18] sm:$0xf]
        %v4162 = vld [vmem:[%s4154 + $0x1c] sm:$0xf]
        %v4163 = vld [vmem:[%s4154 + $0x20] sm:$0xf]
        %v4164 = vld [vmem:[%s4154 + $0x24] sm:$0xf]
        %v4165 = vld [vmem:[%s4154 + $0x28] sm:$0xf]
        %v4166 = vld [vmem:[%s4154 + $0x2c] sm:$0xf]
        %v4167 = vld [vmem:[%s4154 + $0x30] sm:$0xf]
        %v4168 = vld [vmem:[%s4154 + $0x34] sm:$0xf]
        %v4169 = vld [vmem:[%s4154 + $0x38] sm:$0xf]
        %v4170 = vld [vmem:[%s4154 + $0x3c] sm:$0xf]
        %v4171 = vld [vmem:[%s4154 + $0x40] sm:$0xf]
        %v4172 = vld [vmem:[%s4154 + $0x44] sm:$0xf]
        %v4173 = vld [vmem:[%s4154 + $0x48] sm:$0xf]
        %v4174 = vld [vmem:[%s4154 + $0x4c] sm:$0xf]
        %v4175 = vld [vmem:[%s4154 + $0x50] sm:$0xf]
        %v4176 = vld [vmem:[%s4154 + $0x54] sm:$0xf]
        %v4177 = vld [vmem:[%s4154 + $0x58] sm:$0xf]
        %v4178 = vld [vmem:[%s4154 + $0x5c] sm:$0xf]
        %v4179 = vld [vmem:[%s4154 + $0x60] sm:$0xf]
        %v4180 = vld [vmem:[%s4154 + $0x64] sm:$0xf]
        %v4181 = vld [vmem:[%s4154 + $0x68] sm:$0xf]
        %v4182 = vld [vmem:[%s4154 + $0x6c] sm:$0xf]
        %v4183 = vld [vmem:[%s4154 + $0x70] sm:$0xf]
        %v4184 = vld [vmem:[%s4154 + $0x74] sm:$0xf]
        %v4185 = vld [vmem:[%s4154 + $0x78] sm:$0xf]
        %v4186 = vld [vmem:[%s4154 + $0x7c] sm:$0xf]
        %v4187 = vld [vmem:[%s4154 + $0x80] sm:$0xf]
        %v4188 = vld [vmem:[%s4154 + $0x84] sm:$0xf]
        %v4189 = vld [vmem:[%s4154 + $0x88] sm:$0xf]
        %v4190 = vld [vmem:[%s4154 + $0x8c] sm:$0xf]
        %v4191 = vld [vmem:[%s4154 + $0x90] sm:$0xf]
        %v4192 = vld [vmem:[%s4154 + $0x94] sm:$0xf]
        %v4193 = vld [vmem:[%s4154 + $0x98] sm:$0xf]
        %v4194 = vld [vmem:[%s4154 + $0x9c] sm:$0xf]
        %v4195 = vld [vmem:[%s4154 + $0xa0] sm:$0xf]
        %v4196 = vld [vmem:[%s4154 + $0xa4] sm:$0xf]
        %v4197 = vld [vmem:[%s4154 + $0xa8] sm:$0xf]
        %v4198 = vld [vmem:[%s4154 + $0xac] sm:$0xf]
        %v4199 = vld [vmem:[%s4154 + $0xb0] sm:$0xf]
        %v4200 = vld [vmem:[%s4154 + $0xb4] sm:$0xf]
        %v4201 = vld [vmem:[%s4154 + $0xb8] sm:$0xf]
        %v4202 = vld [vmem:[%s4154 + $0xbc] sm:$0xf]
        %v4203 = vld [vmem:[%s4154 + $0xc0] sm:$0xf]
        %v4204 = vld [vmem:[%s4154 + $0xc4] sm:$0xf]
        %v4205 = vld [vmem:[%s4154 + $0xc8] sm:$0xf]
        %v4206 = vld [vmem:[%s4154 + $0xcc] sm:$0xf]
        %v4207 = vld [vmem:[%s4154 + $0xd0] sm:$0xf]
        %v4208 = vld [vmem:[%s4154 + $0xd4] sm:$0xf]
        %v4209 = vld [vmem:[%s4154 + $0xd8] sm:$0xf]
        %v4210 = vld [vmem:[%s4154 + $0xdc] sm:$0xf]
        %v4211 = vld [vmem:[%s4154 + $0xe0] sm:$0xf]
        %v4212 = vld [vmem:[%s4154 + $0xe4] sm:$0xf]
        %v4213 = vld [vmem:[%s4154 + $0xe8] sm:$0xf]
        %v4214 = vld [vmem:[%s4154 + $0xec] sm:$0xf]
        %v4215 = vld [vmem:[%s4154 + $0xf0] sm:$0xf]
        %v4216 = vld [vmem:[%s4154 + $0xf4] sm:$0xf]
        %v4217 = vld [vmem:[%s4154 + $0xf8] sm:$0xf]
        %v4218 = vld [vmem:[%s4154 + $0xfc] sm:$0xf]
        %v4219 = vld [vmem:[%s4154 + $0x100] sm:$0xf]
        %v4220 = vld [vmem:[%s4154 + $0x104] sm:$0xf]
        %v4221 = vld [vmem:[%s4154 + $0x108] sm:$0xf]
        %v4222 = vld [vmem:[%s4154 + $0x10c] sm:$0xf]
        %v4223 = vld [vmem:[%s4154 + $0x110] sm:$0xf]
        %v4224 = vld [vmem:[%s4154 + $0x114] sm:$0xf]
        %v4225 = vld [vmem:[%s4154 + $0x118] sm:$0xf]
        %v4226 = vld [vmem:[%s4154 + $0x11c] sm:$0xf]
        %v4227 = vld [vmem:[%s4154 + $0x120] sm:$0xf]
        %v4228 = vld [vmem:[%s4154 + $0x124] sm:$0xf]
        %v4229 = vld [vmem:[%s4154 + $0x128] sm:$0xf]
        %v4230 = vld [vmem:[%s4154 + $0x12c] sm:$0xf]
        %v4231 = vld [vmem:[%s4154 + $0x130] sm:$0xf]
        %v4232 = vld [vmem:[%s4154 + $0x134] sm:$0xf]
        %v4233 = vld [vmem:[%s4154 + $0x138] sm:$0xf]
        %v4234 = vld [vmem:[%s4154 + $0x13c] sm:$0xf]
        %v4235 = vld [vmem:[%s4154 + $0x140] sm:$0xf]
        %v4236 = vld [vmem:[%s4154 + $0x144] sm:$0xf]
        %v4237 = vld [vmem:[%s4154 + $0x148] sm:$0xf]
        %v4238 = vld [vmem:[%s4154 + $0x14c] sm:$0xf]
        %v4239 = vld [vmem:[%s4154 + $0x150] sm:$0xf]
        %v4240 = vld [vmem:[%s4154 + $0x154] sm:$0xf]
        %v4241 = vld [vmem:[%s4154 + $0x158] sm:$0xf]
        %v4242 = vld [vmem:[%s4154 + $0x15c] sm:$0xf]
        %v4243 = vld [vmem:[%s4154 + $0x160] sm:$0xf]
        %v4244 = vld [vmem:[%s4154 + $0x164] sm:$0xf]
        %v4245 = vld [vmem:[%s4154 + $0x168] sm:$0xf]
        %v4246 = vld [vmem:[%s4154 + $0x16c] sm:$0xf]
        %v4247 = vld [vmem:[%s4154 + $0x170] sm:$0xf]
        %v4248 = vld [vmem:[%s4154 + $0x174] sm:$0xf]
        %v4249 = vld [vmem:[%s4154 + $0x178] sm:$0xf]
        %v4250 = vld [vmem:[%s4154 + $0x17c] sm:$0xf]
        %v4251 = vld [vmem:[%s4154 + $0x180] sm:$0xf]
        %v4252 = vld [vmem:[%s4154 + $0x184] sm:$0xf]
        %v4253 = vld [vmem:[%s4154 + $0x188] sm:$0xf]
        %v4254 = vld [vmem:[%s4154 + $0x18c] sm:$0xf]
        %v4255 = vld [vmem:[%s4154 + $0x190] sm:$0xf]
        %v4256 = vld [vmem:[%s4154 + $0x194] sm:$0xf]
        %v4257 = vld [vmem:[%s4154 + $0x198] sm:$0xf]
        %v4258 = vld [vmem:[%s4154 + $0x19c] sm:$0xf]
        %v4259 = vld [vmem:[%s4154 + $0x1a0] sm:$0xf]
        %v4260 = vld [vmem:[%s4154 + $0x1a4] sm:$0xf]
        %v4261 = vld [vmem:[%s4154 + $0x1a8] sm:$0xf]
        %v4262 = vld [vmem:[%s4154 + $0x1ac] sm:$0xf]
        %v4263 = vld [vmem:[%s4154 + $0x1b0] sm:$0xf]
        %v4264 = vld [vmem:[%s4154 + $0x1b4] sm:$0xf]
        %v4265 = vld [vmem:[%s4154 + $0x1b8] sm:$0xf]
        %v4266 = vld [vmem:[%s4154 + $0x1bc] sm:$0xf]
        %v4267 = vld [vmem:[%s4154 + $0x1c0] sm:$0xf]
        %v4268 = vld [vmem:[%s4154 + $0x1c4] sm:$0xf]
        %v4269 = vld [vmem:[%s4154 + $0x1c8] sm:$0xf]
        %v4270 = vld [vmem:[%s4154 + $0x1cc] sm:$0xf]
        %v4271 = vld [vmem:[%s4154 + $0x1d0] sm:$0xf]
        %v4272 = vld [vmem:[%s4154 + $0x1d4] sm:$0xf]
        %v4273 = vld [vmem:[%s4154 + $0x1d8] sm:$0xf]
        %v4274 = vld [vmem:[%s4154 + $0x1dc] sm:$0xf]
        %v4275 = vld [vmem:[%s4154 + $0x1e0] sm:$0xf]
        %v4276 = vld [vmem:[%s4154 + $0x1e4] sm:$0xf]
        %v4277 = vld [vmem:[%s4154 + $0x1e8] sm:$0xf]
        %v4278 = vld [vmem:[%s4154 + $0x1ec] sm:$0xf]
        %v4279 = vld [vmem:[%s4154 + $0x1f0] sm:$0xf]
        %v4280 = vld [vmem:[%s4154 + $0x1f4] sm:$0xf]
        %v4281 = vld [vmem:[%s4154 + $0x1f8] sm:$0xf]
        %v4282 = vld [vmem:[%s4154 + $0x1fc] sm:$0xf]
        %v4283 = vunpack.c.l.bf16 %v4155
        %v4284 = vunpack.c.l.bf16 %v4156
        %v4285 = vunpack.c.l.bf16 %v4157
        %v4286 = vunpack.c.l.bf16 %v4158
        %v4287 = vunpack.c.l.bf16 %v4159
        %v4288 = vunpack.c.l.bf16 %v4160
        %v4289 = vunpack.c.l.bf16 %v4161
        %v4290 = vunpack.c.l.bf16 %v4162
        %v4291 = vunpack.c.l.bf16 %v4163
        %v4292 = vunpack.c.l.bf16 %v4164
        %v4293 = vunpack.c.l.bf16 %v4165
        %v4294 = vunpack.c.l.bf16 %v4166
        %v4295 = vunpack.c.l.bf16 %v4167
        %v4296 = vunpack.c.l.bf16 %v4168
        %v4297 = vunpack.c.l.bf16 %v4169
        %v4298 = vunpack.c.l.bf16 %v4170
        %v4299 = vunpack.c.l.bf16 %v4171
        %v4300 = vunpack.c.l.bf16 %v4172
        %v4301 = vunpack.c.l.bf16 %v4173
        %v4302 = vunpack.c.l.bf16 %v4174
        %v4303 = vunpack.c.l.bf16 %v4175
        %v4304 = vunpack.c.l.bf16 %v4176
        %v4305 = vunpack.c.l.bf16 %v4177
        %v4306 = vunpack.c.l.bf16 %v4178
        %v4307 = vunpack.c.l.bf16 %v4179
        %v4308 = vunpack.c.l.bf16 %v4180
        %v4309 = vunpack.c.l.bf16 %v4181
        %v4310 = vunpack.c.l.bf16 %v4182
        %v4311 = vunpack.c.l.bf16 %v4183
        %v4312 = vunpack.c.l.bf16 %v4184
        %v4313 = vunpack.c.l.bf16 %v4185
        %v4314 = vunpack.c.l.bf16 %v4186
        %v4315 = vunpack.c.l.bf16 %v4187
        %v4316 = vunpack.c.l.bf16 %v4188
        %v4317 = vunpack.c.l.bf16 %v4189
        %v4318 = vunpack.c.l.bf16 %v4190
        %v4319 = vunpack.c.l.bf16 %v4191
        %v4320 = vunpack.c.l.bf16 %v4192
        %v4321 = vunpack.c.l.bf16 %v4193
        %v4322 = vunpack.c.l.bf16 %v4194
        %v4323 = vunpack.c.l.bf16 %v4195
        %v4324 = vunpack.c.l.bf16 %v4196
        %v4325 = vunpack.c.l.bf16 %v4197
        %v4326 = vunpack.c.l.bf16 %v4198
        %v4327 = vunpack.c.l.bf16 %v4199
        %v4328 = vunpack.c.l.bf16 %v4200
        %v4329 = vunpack.c.l.bf16 %v4201
        %v4330 = vunpack.c.l.bf16 %v4202
        %v4331 = vunpack.c.l.bf16 %v4203
        %v4332 = vunpack.c.l.bf16 %v4204
        %v4333 = vunpack.c.l.bf16 %v4205
        %v4334 = vunpack.c.l.bf16 %v4206
        %v4335 = vunpack.c.l.bf16 %v4207
        %v4336 = vunpack.c.l.bf16 %v4208
        %v4337 = vunpack.c.l.bf16 %v4209
        %v4338 = vunpack.c.l.bf16 %v4210
        %v4339 = vunpack.c.l.bf16 %v4211
        %v4340 = vunpack.c.l.bf16 %v4212
        %v4341 = vunpack.c.l.bf16 %v4213
        %v4342 = vunpack.c.l.bf16 %v4214
        %v4343 = vunpack.c.l.bf16 %v4215
        %v4344 = vunpack.c.l.bf16 %v4216
        %v4345 = vunpack.c.l.bf16 %v4217
        %v4346 = vunpack.c.l.bf16 %v4218
        %v4347 = vunpack.c.l.bf16 %v4219
        %v4348 = vunpack.c.l.bf16 %v4220
        %v4349 = vunpack.c.l.bf16 %v4221
        %v4350 = vunpack.c.l.bf16 %v4222
        %v4351 = vunpack.c.l.bf16 %v4223
        %v4352 = vunpack.c.l.bf16 %v4224
        %v4353 = vunpack.c.l.bf16 %v4225
        %v4354 = vunpack.c.l.bf16 %v4226
        %v4355 = vunpack.c.l.bf16 %v4227
        %v4356 = vunpack.c.l.bf16 %v4228
        %v4357 = vunpack.c.l.bf16 %v4229
        %v4358 = vunpack.c.l.bf16 %v4230
        %v4359 = vunpack.c.l.bf16 %v4231
        %v4360 = vunpack.c.l.bf16 %v4232
        %v4361 = vunpack.c.l.bf16 %v4233
        %v4362 = vunpack.c.l.bf16 %v4234
        %v4363 = vunpack.c.l.bf16 %v4235
        %v4364 = vunpack.c.l.bf16 %v4236
        %v4365 = vunpack.c.l.bf16 %v4237
        %v4366 = vunpack.c.l.bf16 %v4238
        %v4367 = vunpack.c.l.bf16 %v4239
        %v4368 = vunpack.c.l.bf16 %v4240
        %v4369 = vunpack.c.l.bf16 %v4241
        %v4370 = vunpack.c.l.bf16 %v4242
        %v4371 = vunpack.c.l.bf16 %v4243
        %v4372 = vunpack.c.l.bf16 %v4244
        %v4373 = vunpack.c.l.bf16 %v4245
        %v4374 = vunpack.c.l.bf16 %v4246
        %v4375 = vunpack.c.l.bf16 %v4247
        %v4376 = vunpack.c.l.bf16 %v4248
        %v4377 = vunpack.c.l.bf16 %v4249
        %v4378 = vunpack.c.l.bf16 %v4250
        %v4379 = vunpack.c.l.bf16 %v4251
        %v4380 = vunpack.c.l.bf16 %v4252
        %v4381 = vunpack.c.l.bf16 %v4253
        %v4382 = vunpack.c.l.bf16 %v4254
        %v4383 = vunpack.c.l.bf16 %v4255
        %v4384 = vunpack.c.l.bf16 %v4256
        %v4385 = vunpack.c.l.bf16 %v4257
        %v4386 = vunpack.c.l.bf16 %v4258
        %v4387 = vunpack.c.l.bf16 %v4259
        %v4388 = vunpack.c.l.bf16 %v4260
        %v4389 = vunpack.c.l.bf16 %v4261
        %v4390 = vunpack.c.l.bf16 %v4262
        %v4391 = vunpack.c.l.bf16 %v4263
        %v4392 = vunpack.c.l.bf16 %v4264
        %v4393 = vunpack.c.l.bf16 %v4265
        %v4394 = vunpack.c.l.bf16 %v4266
        %v4395 = vunpack.c.l.bf16 %v4267
        %v4396 = vunpack.c.l.bf16 %v4268
        %v4397 = vunpack.c.l.bf16 %v4269
        %v4398 = vunpack.c.l.bf16 %v4270
        %v4399 = vunpack.c.l.bf16 %v4271
        %v4400 = vunpack.c.l.bf16 %v4272
        %v4401 = vunpack.c.l.bf16 %v4273
        %v4402 = vunpack.c.l.bf16 %v4274
        %v4403 = vunpack.c.l.bf16 %v4275
        %v4404 = vunpack.c.l.bf16 %v4276
        %v4405 = vunpack.c.l.bf16 %v4277
        %v4406 = vunpack.c.l.bf16 %v4278
        %v4407 = vunpack.c.l.bf16 %v4279
        %v4408 = vunpack.c.l.bf16 %v4280
        %v4409 = vunpack.c.l.bf16 %v4281
        %v4410 = vunpack.c.l.bf16 %v4282
        %s4411 = scalar_lea.vmem %s656, 1 [#allocation12]
        %v4412 = vld [vmem:[%s4411] sm:$0x1]
        %v4414 = vlaneseq
        %v4415 = vshrl.u32 %v4414, 7
        %v4416 = vsub.s32 0, %v4415
        %v4417 = vrot.slane %v4412, %v4416
        %4419 = vmatprep.subr.mxu0 0.0
        %4420 = vmatpush1.msra.mxu0 %v4283
        %4421 = vmatprep.subr.mxu0 0.0
        %4422 = vmatpush1.msra.mxu0 %v4284
        %4423 = vmatprep.subr.mxu0 0.0
        %4424 = vmatpush1.msra.mxu0 %v4285
        %4425 = vmatprep.subr.mxu0 0.0
        %4426 = vmatpush1.msra.mxu0 %v4286
        %4427 = vmatprep.subr.mxu0 0.0
        %4428 = vmatpush1.msra.mxu0 %v4287
        %4429 = vmatprep.subr.mxu0 0.0
        %4430 = vmatpush1.msra.mxu0 %v4288
        %4431 = vmatprep.subr.mxu0 0.0
        %4432 = vmatpush1.msra.mxu0 %v4289
        %4433 = vmatprep.subr.mxu0 0.0
        %4434 = vmatpush1.msra.mxu0 %v4290
        %4435 = vmatprep.subr.mxu0 0.0
        %4436 = vmatpush1.msra.mxu0 %v4291
        %4437 = vmatprep.subr.mxu0 0.0
        %4438 = vmatpush1.msra.mxu0 %v4292
        %4439 = vmatprep.subr.mxu0 0.0
        %4440 = vmatpush1.msra.mxu0 %v4293
        %4441 = vmatprep.subr.mxu0 0.0
        %4442 = vmatpush1.msra.mxu0 %v4294
        %4443 = vmatprep.subr.mxu0 0.0
        %4444 = vmatpush1.msra.mxu0 %v4295
        %4445 = vmatprep.subr.mxu0 0.0
        %4446 = vmatpush1.msra.mxu0 %v4296
        %4447 = vmatprep.subr.mxu0 0.0
        %4448 = vmatpush1.msra.mxu0 %v4297
        %4449 = vmatprep.subr.mxu0 0.0
        %4450 = vmatpush1.msra.mxu0 %v4298
        %4451 = vmatprep.subr.mxu0 0.0
        %4452 = vmatpush1.msra.mxu0 %v4299
        %4453 = vmatprep.subr.mxu0 0.0
        %4454 = vmatpush1.msra.mxu0 %v4300
        %4455 = vmatprep.subr.mxu0 0.0
        %4456 = vmatpush1.msra.mxu0 %v4301
        %4457 = vmatprep.subr.mxu0 0.0
        %4458 = vmatpush1.msra.mxu0 %v4302
        %4459 = vmatprep.subr.mxu0 0.0
        %4460 = vmatpush1.msra.mxu0 %v4303
        %4461 = vmatprep.subr.mxu0 0.0
        %4462 = vmatpush1.msra.mxu0 %v4304
        %4463 = vmatprep.subr.mxu0 0.0
        %4464 = vmatpush1.msra.mxu0 %v4305
        %4465 = vmatprep.subr.mxu0 0.0
        %4466 = vmatpush1.msra.mxu0 %v4306
        %4467 = vmatprep.subr.mxu0 0.0
        %4468 = vmatpush1.msra.mxu0 %v4307
        %4469 = vmatprep.subr.mxu0 0.0
        %4470 = vmatpush1.msra.mxu0 %v4308
        %4471 = vmatprep.subr.mxu0 0.0
        %4472 = vmatpush1.msra.mxu0 %v4309
        %4473 = vmatprep.subr.mxu0 0.0
        %4474 = vmatpush1.msra.mxu0 %v4310
        %4475 = vmatprep.subr.mxu0 0.0
        %4476 = vmatpush1.msra.mxu0 %v4311
        %4477 = vmatprep.subr.mxu0 0.0
        %4478 = vmatpush1.msra.mxu0 %v4312
        %4479 = vmatprep.subr.mxu0 0.0
        %4480 = vmatpush1.msra.mxu0 %v4313
        %4481 = vmatprep.subr.mxu0 0.0
        %4482 = vmatpush1.msra.mxu0 %v4314
        %4483 = vmatprep.mubr.f32.mxu0 %v4147
        %4484 = vmatmul.mubr.f32.gmra.mrb[0].mxu0 %v4146
        %v4485 = vpop.f32.mrb[0].mxu0
        %v4486 = vadd.f32 %v4417, %v4485
        %v4487 = vpop.f32.mrb[0].mxu0
        %4488 = vdwg.mxu0
        %4489 = vmatprep.subr.mxu0 0.0
        %4490 = vmatpush1.msra.mxu0 %v4315
        %4491 = vmatprep.subr.mxu0 0.0
        %4492 = vmatpush1.msra.mxu0 %v4316
        %4493 = vmatprep.subr.mxu0 0.0
        %4494 = vmatpush1.msra.mxu0 %v4317
        %4495 = vmatprep.subr.mxu0 0.0
        %4496 = vmatpush1.msra.mxu0 %v4318
        %4497 = vmatprep.subr.mxu0 0.0
        %4498 = vmatpush1.msra.mxu0 %v4319
        %4499 = vmatprep.subr.mxu0 0.0
        %4500 = vmatpush1.msra.mxu0 %v4320
        %4501 = vmatprep.subr.mxu0 0.0
        %4502 = vmatpush1.msra.mxu0 %v4321
        %4503 = vmatprep.subr.mxu0 0.0
        %4504 = vmatpush1.msra.mxu0 %v4322
        %4505 = vmatprep.subr.mxu0 0.0
        %4506 = vmatpush1.msra.mxu0 %v4323
        %4507 = vmatprep.subr.mxu0 0.0
        %4508 = vmatpush1.msra.mxu0 %v4324
        %4509 = vmatprep.subr.mxu0 0.0
        %4510 = vmatpush1.msra.mxu0 %v4325
        %4511 = vmatprep.subr.mxu0 0.0
        %4512 = vmatpush1.msra.mxu0 %v4326
        %4513 = vmatprep.subr.mxu0 0.0
        %4514 = vmatpush1.msra.mxu0 %v4327
        %4515 = vmatprep.subr.mxu0 0.0
        %4516 = vmatpush1.msra.mxu0 %v4328
        %4517 = vmatprep.subr.mxu0 0.0
        %4518 = vmatpush1.msra.mxu0 %v4329
        %4519 = vmatprep.subr.mxu0 0.0
        %4520 = vmatpush1.msra.mxu0 %v4330
        %4521 = vmatprep.subr.mxu0 0.0
        %4522 = vmatpush1.msra.mxu0 %v4331
        %4523 = vmatprep.subr.mxu0 0.0
        %4524 = vmatpush1.msra.mxu0 %v4332
        %4525 = vmatprep.subr.mxu0 0.0
        %4526 = vmatpush1.msra.mxu0 %v4333
        %4527 = vmatprep.subr.mxu0 0.0
        %4528 = vmatpush1.msra.mxu0 %v4334
        %4529 = vmatprep.subr.mxu0 0.0
        %4530 = vmatpush1.msra.mxu0 %v4335
        %4531 = vmatprep.subr.mxu0 0.0
        %4532 = vmatpush1.msra.mxu0 %v4336
        %4533 = vmatprep.subr.mxu0 0.0
        %4534 = vmatpush1.msra.mxu0 %v4337
        %4535 = vmatprep.subr.mxu0 0.0
        %4536 = vmatpush1.msra.mxu0 %v4338
        %4537 = vmatprep.subr.mxu0 0.0
        %4538 = vmatpush1.msra.mxu0 %v4339
        %4539 = vmatprep.subr.mxu0 0.0
        %4540 = vmatpush1.msra.mxu0 %v4340
        %4541 = vmatprep.subr.mxu0 0.0
        %4542 = vmatpush1.msra.mxu0 %v4341
        %4543 = vmatprep.subr.mxu0 0.0
        %4544 = vmatpush1.msra.mxu0 %v4342
        %4545 = vmatprep.subr.mxu0 0.0
        %4546 = vmatpush1.msra.mxu0 %v4343
        %4547 = vmatprep.subr.mxu0 0.0
        %4548 = vmatpush1.msra.mxu0 %v4344
        %4549 = vmatprep.subr.mxu0 0.0
        %4550 = vmatpush1.msra.mxu0 %v4345
        %4551 = vmatprep.subr.mxu0 0.0
        %4552 = vmatpush1.msra.mxu0 %v4346
        %4553 = vmatprep.mubr.f32.mxu0 %v4149
        %4554 = vmatmul.mubr.f32.gmra.mrb[0].mxu0 %v4148
        %v4555 = vpop.f32.mrb[0].mxu0
        %v4556 = vadd.f32 %v4486, %v4555
        %v4557 = vpop.f32.mrb[0].mxu0
        %4558 = vdwg.mxu0
        %4559 = vmatprep.subr.mxu0 0.0
        %4560 = vmatpush1.msra.mxu0 %v4347
        %4561 = vmatprep.subr.mxu0 0.0
        %4562 = vmatpush1.msra.mxu0 %v4348
        %4563 = vmatprep.subr.mxu0 0.0
        %4564 = vmatpush1.msra.mxu0 %v4349
        %4565 = vmatprep.subr.mxu0 0.0
        %4566 = vmatpush1.msra.mxu0 %v4350
        %4567 = vmatprep.subr.mxu0 0.0
        %4568 = vmatpush1.msra.mxu0 %v4351
        %4569 = vmatprep.subr.mxu0 0.0
        %4570 = vmatpush1.msra.mxu0 %v4352
        %4571 = vmatprep.subr.mxu0 0.0
        %4572 = vmatpush1.msra.mxu0 %v4353
        %4573 = vmatprep.subr.mxu0 0.0
        %4574 = vmatpush1.msra.mxu0 %v4354
        %4575 = vmatprep.subr.mxu0 0.0
        %4576 = vmatpush1.msra.mxu0 %v4355
        %4577 = vmatprep.subr.mxu0 0.0
        %4578 = vmatpush1.msra.mxu0 %v4356
        %4579 = vmatprep.subr.mxu0 0.0
        %4580 = vmatpush1.msra.mxu0 %v4357
        %4581 = vmatprep.subr.mxu0 0.0
        %4582 = vmatpush1.msra.mxu0 %v4358
        %4583 = vmatprep.subr.mxu0 0.0
        %4584 = vmatpush1.msra.mxu0 %v4359
        %4585 = vmatprep.subr.mxu0 0.0
        %4586 = vmatpush1.msra.mxu0 %v4360
        %4587 = vmatprep.subr.mxu0 0.0
        %4588 = vmatpush1.msra.mxu0 %v4361
        %4589 = vmatprep.subr.mxu0 0.0
        %4590 = vmatpush1.msra.mxu0 %v4362
        %4591 = vmatprep.subr.mxu0 0.0
        %4592 = vmatpush1.msra.mxu0 %v4363
        %4593 = vmatprep.subr.mxu0 0.0
        %4594 = vmatpush1.msra.mxu0 %v4364
        %4595 = vmatprep.subr.mxu0 0.0
        %4596 = vmatpush1.msra.mxu0 %v4365
        %4597 = vmatprep.subr.mxu0 0.0
        %4598 = vmatpush1.msra.mxu0 %v4366
        %4599 = vmatprep.subr.mxu0 0.0
        %4600 = vmatpush1.msra.mxu0 %v4367
        %4601 = vmatprep.subr.mxu0 0.0
        %4602 = vmatpush1.msra.mxu0 %v4368
        %4603 = vmatprep.subr.mxu0 0.0
        %4604 = vmatpush1.msra.mxu0 %v4369
        %4605 = vmatprep.subr.mxu0 0.0
        %4606 = vmatpush1.msra.mxu0 %v4370
        %4607 = vmatprep.subr.mxu0 0.0
        %4608 = vmatpush1.msra.mxu0 %v4371
        %4609 = vmatprep.subr.mxu0 0.0
        %4610 = vmatpush1.msra.mxu0 %v4372
        %4611 = vmatprep.subr.mxu0 0.0
        %4612 = vmatpush1.msra.mxu0 %v4373
        %4613 = vmatprep.subr.mxu0 0.0
        %4614 = vmatpush1.msra.mxu0 %v4374
        %4615 = vmatprep.subr.mxu0 0.0
        %4616 = vmatpush1.msra.mxu0 %v4375
        %4617 = vmatprep.subr.mxu0 0.0
        %4618 = vmatpush1.msra.mxu0 %v4376
        %4619 = vmatprep.subr.mxu0 0.0
        %4620 = vmatpush1.msra.mxu0 %v4377
        %4621 = vmatprep.subr.mxu0 0.0
        %4622 = vmatpush1.msra.mxu0 %v4378
        %4623 = vmatprep.mubr.f32.mxu0 %v4151
        %4624 = vmatmul.mubr.f32.gmra.mrb[0].mxu0 %v4150
        %v4625 = vpop.f32.mrb[0].mxu0
        %v4626 = vadd.f32 %v4556, %v4625
        %v4627 = vpop.f32.mrb[0].mxu0
        %4628 = vdwg.mxu0
        %4629 = vmatprep.subr.mxu0 0.0
        %4630 = vmatpush1.msra.mxu0 %v4379
        %4631 = vmatprep.subr.mxu0 0.0
        %4632 = vmatpush1.msra.mxu0 %v4380
        %4633 = vmatprep.subr.mxu0 0.0
        %4634 = vmatpush1.msra.mxu0 %v4381
        %4635 = vmatprep.subr.mxu0 0.0
        %4636 = vmatpush1.msra.mxu0 %v4382
        %4637 = vmatprep.subr.mxu0 0.0
        %4638 = vmatpush1.msra.mxu0 %v4383
        %4639 = vmatprep.subr.mxu0 0.0
        %4640 = vmatpush1.msra.mxu0 %v4384
        %4641 = vmatprep.subr.mxu0 0.0
        %4642 = vmatpush1.msra.mxu0 %v4385
        %4643 = vmatprep.subr.mxu0 0.0
        %4644 = vmatpush1.msra.mxu0 %v4386
        %4645 = vmatprep.subr.mxu0 0.0
        %4646 = vmatpush1.msra.mxu0 %v4387
        %4647 = vmatprep.subr.mxu0 0.0
        %4648 = vmatpush1.msra.mxu0 %v4388
        %4649 = vmatprep.subr.mxu0 0.0
        %4650 = vmatpush1.msra.mxu0 %v4389
        %4651 = vmatprep.subr.mxu0 0.0
        %4652 = vmatpush1.msra.mxu0 %v4390
        %4653 = vmatprep.subr.mxu0 0.0
        %4654 = vmatpush1.msra.mxu0 %v4391
        %4655 = vmatprep.subr.mxu0 0.0
        %4656 = vmatpush1.msra.mxu0 %v4392
        %4657 = vmatprep.subr.mxu0 0.0
        %4658 = vmatpush1.msra.mxu0 %v4393
        %4659 = vmatprep.subr.mxu0 0.0
        %4660 = vmatpush1.msra.mxu0 %v4394
        %4661 = vmatprep.subr.mxu0 0.0
        %4662 = vmatpush1.msra.mxu0 %v4395
        %4663 = vmatprep.subr.mxu0 0.0
        %4664 = vmatpush1.msra.mxu0 %v4396
        %4665 = vmatprep.subr.mxu0 0.0
        %4666 = vmatpush1.msra.mxu0 %v4397
        %4667 = vmatprep.subr.mxu0 0.0
        %4668 = vmatpush1.msra.mxu0 %v4398
        %4669 = vmatprep.subr.mxu0 0.0
        %4670 = vmatpush1.msra.mxu0 %v4399
        %4671 = vmatprep.subr.mxu0 0.0
        %4672 = vmatpush1.msra.mxu0 %v4400
        %4673 = vmatprep.subr.mxu0 0.0
        %4674 = vmatpush1.msra.mxu0 %v4401
        %4675 = vmatprep.subr.mxu0 0.0
        %4676 = vmatpush1.msra.mxu0 %v4402
        %4677 = vmatprep.subr.mxu0 0.0
        %4678 = vmatpush1.msra.mxu0 %v4403
        %4679 = vmatprep.subr.mxu0 0.0
        %4680 = vmatpush1.msra.mxu0 %v4404
        %4681 = vmatprep.subr.mxu0 0.0
        %4682 = vmatpush1.msra.mxu0 %v4405
        %4683 = vmatprep.subr.mxu0 0.0
        %4684 = vmatpush1.msra.mxu0 %v4406
        %4685 = vmatprep.subr.mxu0 0.0
        %4686 = vmatpush1.msra.mxu0 %v4407
        %4687 = vmatprep.subr.mxu0 0.0
        %4688 = vmatpush1.msra.mxu0 %v4408
        %4689 = vmatprep.subr.mxu0 0.0
        %4690 = vmatpush1.msra.mxu0 %v4409
        %4691 = vmatprep.subr.mxu0 0.0
        %4692 = vmatpush1.msra.mxu0 %v4410
        %4693 = vmatprep.mubr.f32.mxu0 %v4153
        %4694 = vmatmul.mubr.f32.gmra.mrb[0].mxu0 %v4152
        %v4695 = vpop.f32.mrb[0].mxu0
        %v4696 = vadd.f32 %v4626, %v4695
        %v4697 = vpop.f32.mrb[0].mxu0
        %4698 = vdwg.mxu0
        %s4699 = scalar_lea.vmem %s665, 128 [#allocation13]
        %v4700 = vld [vmem:[%s4699] sm:$0xff]
        %v4701 = vld [vmem:[%s4699 + $0x8] sm:$0xff]
        %v4702 = vld [vmem:[%s4699 + $0x10] sm:$0xff]
        %v4703 = vld [vmem:[%s4699 + $0x18] sm:$0xff]
        %v4704 = vld [vmem:[%s4699 + $0x20] sm:$0xff]
        %v4705 = vld [vmem:[%s4699 + $0x28] sm:$0xff]
        %v4706 = vld [vmem:[%s4699 + $0x30] sm:$0xff]
        %v4707 = vld [vmem:[%s4699 + $0x38] sm:$0xff]
        %v4708 = vld [vmem:[%s4699 + $0x40] sm:$0xff]
        %v4709 = vld [vmem:[%s4699 + $0x48] sm:$0xff]
        %v4710 = vld [vmem:[%s4699 + $0x50] sm:$0xff]
        %v4711 = vld [vmem:[%s4699 + $0x58] sm:$0xff]
        %v4712 = vld [vmem:[%s4699 + $0x60] sm:$0xff]
        %v4713 = vld [vmem:[%s4699 + $0x68] sm:$0xff]
        %v4714 = vld [vmem:[%s4699 + $0x70] sm:$0xff]
        %v4715 = vld [vmem:[%s4699 + $0x78] sm:$0xff]
        %v4716 = vunpack.c.l.bf16 %v4700
        %v4717 = vunpack.c.h.bf16 %v4700
        %v4718 = vunpack.c.l.bf16 %v4701
        %v4719 = vunpack.c.h.bf16 %v4701
        %v4720 = vunpack.c.l.bf16 %v4702
        %v4721 = vunpack.c.h.bf16 %v4702
        %v4722 = vunpack.c.l.bf16 %v4703
        %v4723 = vunpack.c.h.bf16 %v4703
        %v4724 = vunpack.c.l.bf16 %v4704
        %v4725 = vunpack.c.h.bf16 %v4704
        %v4726 = vunpack.c.l.bf16 %v4705
        %v4727 = vunpack.c.h.bf16 %v4705
        %v4728 = vunpack.c.l.bf16 %v4706
        %v4729 = vunpack.c.h.bf16 %v4706
        %v4730 = vunpack.c.l.bf16 %v4707
        %v4731 = vunpack.c.h.bf16 %v4707
        %v4732 = vunpack.c.l.bf16 %v4708
        %v4733 = vunpack.c.h.bf16 %v4708
        %v4734 = vunpack.c.l.bf16 %v4709
        %v4735 = vunpack.c.h.bf16 %v4709
        %v4736 = vunpack.c.l.bf16 %v4710
        %v4737 = vunpack.c.h.bf16 %v4710
        %v4738 = vunpack.c.l.bf16 %v4711
        %v4739 = vunpack.c.h.bf16 %v4711
        %v4740 = vunpack.c.l.bf16 %v4712
        %v4741 = vunpack.c.h.bf16 %v4712
        %v4742 = vunpack.c.l.bf16 %v4713
        %v4743 = vunpack.c.h.bf16 %v4713
        %v4744 = vunpack.c.l.bf16 %v4714
        %v4745 = vunpack.c.h.bf16 %v4714
        %v4746 = vunpack.c.l.bf16 %v4715
        %v4747 = vunpack.c.h.bf16 %v4715
        %s4748 = scalar_lea.vmem %s674, 8 [#allocation14]
        %v4749 = vld [vmem:[%s4748] sm:$0xff]
        %v4751 = vlaneseq
        %v4752 = vshrl.u32 %v4751, 7
        %v4753 = vsub.s32 0, %v4752
        %v4754 = vrot.slane %v4749, %v4753
        %v4755 = vlaneseq
        %v4756 = vshrl.u32 %v4755, 7
        %v4757 = vsub.s32 1, %v4756
        %v4758 = vrot.slane %v4749, %v4757
        %v4759 = vlaneseq
        %v4760 = vshrl.u32 %v4759, 7
        %v4761 = vsub.s32 2, %v4760
        %v4762 = vrot.slane %v4749, %v4761
        %v4763 = vlaneseq
        %v4764 = vshrl.u32 %v4763, 7
        %v4765 = vsub.s32 3, %v4764
        %v4766 = vrot.slane %v4749, %v4765
        %v4767 = vlaneseq
        %v4768 = vshrl.u32 %v4767, 7
        %v4769 = vsub.s32 4, %v4768
        %v4770 = vrot.slane %v4749, %v4769
        %v4771 = vlaneseq
        %v4772 = vshrl.u32 %v4771, 7
        %v4773 = vsub.s32 5, %v4772
        %v4774 = vrot.slane %v4749, %v4773
        %v4775 = vlaneseq
        %v4776 = vshrl.u32 %v4775, 7
        %v4777 = vsub.s32 6, %v4776
        %v4778 = vrot.slane %v4749, %v4777
        %v4779 = vlaneseq
        %v4780 = vshrl.u32 %v4779, 7
        %v4781 = vsub.s32 7, %v4780
        %v4782 = vrot.slane %v4749, %v4781
        %4791 = vmatprep.subr.mxu0 %v4717
        %4792 = vmatpush1.msra.mxu0 %v4716
        %4793 = vmatprep.subr.mxu0 %v4725
        %4794 = vmatpush1.msra.mxu0 %v4724
        %4795 = vmatprep.subr.mxu0 %v4733
        %4796 = vmatpush1.msra.mxu0 %v4732
        %4797 = vmatprep.subr.mxu0 %v4741
        %4798 = vmatpush1.msra.mxu0 %v4740
        %4799 = vmatprep.subr.mxu0 0.0
        %4800 = vmatpush1.msra.mxu0 0.0
        %4801 = vmatprep.subr.mxu0 0.0
        %4802 = vmatpush1.msra.mxu0 0.0
        %4803 = vmatprep.subr.mxu0 0.0
        %4804 = vmatpush1.msra.mxu0 0.0
        %4805 = vmatprep.subr.mxu0 0.0
        %4806 = vmatpush1.msra.mxu0 0.0
        %4807 = vmatprep.subr.mxu0 0.0
        %4808 = vmatpush1.msra.mxu0 0.0
        %4809 = vmatprep.subr.mxu0 0.0
        %4810 = vmatpush1.msra.mxu0 0.0
        %4811 = vmatprep.subr.mxu0 0.0
        %4812 = vmatpush1.msra.mxu0 0.0
        %4813 = vmatprep.subr.mxu0 0.0
        %4814 = vmatpush1.msra.mxu0 0.0
        %4815 = vmatprep.subr.mxu0 0.0
        %4816 = vmatpush1.msra.mxu0 0.0
        %4817 = vmatprep.subr.mxu0 0.0
        %4818 = vmatpush1.msra.mxu0 0.0
        %4819 = vmatprep.subr.mxu0 0.0
        %4820 = vmatpush1.msra.mxu0 0.0
        %4821 = vmatprep.subr.mxu0 0.0
        %4822 = vmatpush1.msra.mxu0 0.0
        %4823 = vmatprep.subr.mxu0 0.0
        %4824 = vmatpush1.msra.mxu0 0.0
        %4825 = vmatprep.subr.mxu0 0.0
        %4826 = vmatpush1.msra.mxu0 0.0
        %4827 = vmatprep.subr.mxu0 0.0
        %4828 = vmatpush1.msra.mxu0 0.0
        %4829 = vmatprep.subr.mxu0 0.0
        %4830 = vmatpush1.msra.mxu0 0.0
        %4831 = vmatprep.subr.mxu0 0.0
        %4832 = vmatpush1.msra.mxu0 0.0
        %4833 = vmatprep.subr.mxu0 0.0
        %4834 = vmatpush1.msra.mxu0 0.0
        %4835 = vmatprep.subr.mxu0 0.0
        %4836 = vmatpush1.msra.mxu0 0.0
        %4837 = vmatprep.subr.mxu0 0.0
        %4838 = vmatpush1.msra.mxu0 0.0
        %4839 = vmatprep.subr.mxu0 0.0
        %4840 = vmatpush1.msra.mxu0 0.0
        %4841 = vmatprep.subr.mxu0 0.0
        %4842 = vmatpush1.msra.mxu0 0.0
        %4843 = vmatprep.subr.mxu0 0.0
        %4844 = vmatpush1.msra.mxu0 0.0
        %4845 = vmatprep.subr.mxu0 0.0
        %4846 = vmatpush1.msra.mxu0 0.0
        %4847 = vmatprep.subr.mxu0 0.0
        %4848 = vmatpush1.msra.mxu0 0.0
        %4849 = vmatprep.subr.mxu0 0.0
        %4850 = vmatpush1.msra.mxu0 0.0
        %4851 = vmatprep.subr.mxu0 0.0
        %4852 = vmatpush1.msra.mxu0 0.0
        %4853 = vmatprep.subr.mxu0 0.0
        %4854 = vmatpush1.msra.mxu0 0.0
        %4855 = vmatprep.mubr.f32.mxu0 0.0
        %4856 = vmatmul.mubr.f32.gmra.mrb[0].mxu0 %v1203
        %v4857 = vpop.f32.mrb[0].mxu0
        %v4858 = vadd.f32 %v4754, %v4857
        %v4859 = vpop.f32.mrb[0].mxu0
        %v4860 = vadd.f32 %v4758, %v4859
        %4861 = vdwg.mxu0
        %4862 = vmatprep.subr.mxu0 %v4719
        %4863 = vmatpush1.msra.mxu0 %v4718
        %4864 = vmatprep.subr.mxu0 %v4727
        %4865 = vmatpush1.msra.mxu0 %v4726
        %4866 = vmatprep.subr.mxu0 %v4735
        %4867 = vmatpush1.msra.mxu0 %v4734
        %4868 = vmatprep.subr.mxu0 %v4743
        %4869 = vmatpush1.msra.mxu0 %v4742
        %4870 = vmatprep.subr.mxu0 0.0
        %4871 = vmatpush1.msra.mxu0 0.0
        %4872 = vmatprep.subr.mxu0 0.0
        %4873 = vmatpush1.msra.mxu0 0.0
        %4874 = vmatprep.subr.mxu0 0.0
        %4875 = vmatpush1.msra.mxu0 0.0
        %4876 = vmatprep.subr.mxu0 0.0
        %4877 = vmatpush1.msra.mxu0 0.0
        %4878 = vmatprep.subr.mxu0 0.0
        %4879 = vmatpush1.msra.mxu0 0.0
        %4880 = vmatprep.subr.mxu0 0.0
        %4881 = vmatpush1.msra.mxu0 0.0
        %4882 = vmatprep.subr.mxu0 0.0
        %4883 = vmatpush1.msra.mxu0 0.0
        %4884 = vmatprep.subr.mxu0 0.0
        %4885 = vmatpush1.msra.mxu0 0.0
        %4886 = vmatprep.subr.mxu0 0.0
        %4887 = vmatpush1.msra.mxu0 0.0
        %4888 = vmatprep.subr.mxu0 0.0
        %4889 = vmatpush1.msra.mxu0 0.0
        %4890 = vmatprep.subr.mxu0 0.0
        %4891 = vmatpush1.msra.mxu0 0.0
        %4892 = vmatprep.subr.mxu0 0.0
        %4893 = vmatpush1.msra.mxu0 0.0
        %4894 = vmatprep.subr.mxu0 0.0
        %4895 = vmatpush1.msra.mxu0 0.0
        %4896 = vmatprep.subr.mxu0 0.0
        %4897 = vmatpush1.msra.mxu0 0.0
        %4898 = vmatprep.subr.mxu0 0.0
        %4899 = vmatpush1.msra.mxu0 0.0
        %4900 = vmatprep.subr.mxu0 0.0
        %4901 = vmatpush1.msra.mxu0 0.0
        %4902 = vmatprep.subr.mxu0 0.0
        %4903 = vmatpush1.msra.mxu0 0.0
        %4904 = vmatprep.subr.mxu0 0.0
        %4905 = vmatpush1.msra.mxu0 0.0
        %4906 = vmatprep.subr.mxu0 0.0
        %4907 = vmatpush1.msra.mxu0 0.0
        %4908 = vmatprep.subr.mxu0 0.0
        %4909 = vmatpush1.msra.mxu0 0.0
        %4910 = vmatprep.subr.mxu0 0.0
        %4911 = vmatpush1.msra.mxu0 0.0
        %4912 = vmatprep.subr.mxu0 0.0
        %4913 = vmatpush1.msra.mxu0 0.0
        %4914 = vmatprep.subr.mxu0 0.0
        %4915 = vmatpush1.msra.mxu0 0.0
        %4916 = vmatprep.subr.mxu0 0.0
        %4917 = vmatpush1.msra.mxu0 0.0
        %4918 = vmatprep.subr.mxu0 0.0
        %4919 = vmatpush1.msra.mxu0 0.0
        %4920 = vmatprep.subr.mxu0 0.0
        %4921 = vmatpush1.msra.mxu0 0.0
        %4922 = vmatprep.subr.mxu0 0.0
        %4923 = vmatpush1.msra.mxu0 0.0
        %4924 = vmatprep.subr.mxu0 0.0
        %4925 = vmatpush1.msra.mxu0 0.0
        %4926 = vmatprep.mubr.f32.mxu0 0.0
        %4927 = vmatmul.mubr.f32.gmra.mrb[0].mxu0 %v1203
        %v4928 = vpop.f32.mrb[0].mxu0
        %v4929 = vadd.f32 %v4762, %v4928
        %v4930 = vpop.f32.mrb[0].mxu0
        %v4931 = vadd.f32 %v4766, %v4930
        %4932 = vdwg.mxu0
        %4933 = vmatprep.subr.mxu0 %v4721
        %4934 = vmatpush1.msra.mxu0 %v4720
        %4935 = vmatprep.subr.mxu0 %v4729
        %4936 = vmatpush1.msra.mxu0 %v4728
        %4937 = vmatprep.subr.mxu0 %v4737
        %4938 = vmatpush1.msra.mxu0 %v4736
        %4939 = vmatprep.subr.mxu0 %v4745
        %4940 = vmatpush1.msra.mxu0 %v4744
        %4941 = vmatprep.subr.mxu0 0.0
        %4942 = vmatpush1.msra.mxu0 0.0
        %4943 = vmatprep.subr.mxu0 0.0
        %4944 = vmatpush1.msra.mxu0 0.0
        %4945 = vmatprep.subr.mxu0 0.0
        %4946 = vmatpush1.msra.mxu0 0.0
        %4947 = vmatprep.subr.mxu0 0.0
        %4948 = vmatpush1.msra.mxu0 0.0
        %4949 = vmatprep.subr.mxu0 0.0
        %4950 = vmatpush1.msra.mxu0 0.0
        %4951 = vmatprep.subr.mxu0 0.0
        %4952 = vmatpush1.msra.mxu0 0.0
        %4953 = vmatprep.subr.mxu0 0.0
        %4954 = vmatpush1.msra.mxu0 0.0
        %4955 = vmatprep.subr.mxu0 0.0
        %4956 = vmatpush1.msra.mxu0 0.0
        %4957 = vmatprep.subr.mxu0 0.0
        %4958 = vmatpush1.msra.mxu0 0.0
        %4959 = vmatprep.subr.mxu0 0.0
        %4960 = vmatpush1.msra.mxu0 0.0
        %4961 = vmatprep.subr.mxu0 0.0
        %4962 = vmatpush1.msra.mxu0 0.0
        %4963 = vmatprep.subr.mxu0 0.0
        %4964 = vmatpush1.msra.mxu0 0.0
        %4965 = vmatprep.subr.mxu0 0.0
        %4966 = vmatpush1.msra.mxu0 0.0
        %4967 = vmatprep.subr.mxu0 0.0
        %4968 = vmatpush1.msra.mxu0 0.0
        %4969 = vmatprep.subr.mxu0 0.0
        %4970 = vmatpush1.msra.mxu0 0.0
        %4971 = vmatprep.subr.mxu0 0.0
        %4972 = vmatpush1.msra.mxu0 0.0
        %4973 = vmatprep.subr.mxu0 0.0
        %4974 = vmatpush1.msra.mxu0 0.0
        %4975 = vmatprep.subr.mxu0 0.0
        %4976 = vmatpush1.msra.mxu0 0.0
        %4977 = vmatprep.subr.mxu0 0.0
        %4978 = vmatpush1.msra.mxu0 0.0
        %4979 = vmatprep.subr.mxu0 0.0
        %4980 = vmatpush1.msra.mxu0 0.0
        %4981 = vmatprep.subr.mxu0 0.0
        %4982 = vmatpush1.msra.mxu0 0.0
        %4983 = vmatprep.subr.mxu0 0.0
        %4984 = vmatpush1.msra.mxu0 0.0
        %4985 = vmatprep.subr.mxu0 0.0
        %4986 = vmatpush1.msra.mxu0 0.0
        %4987 = vmatprep.subr.mxu0 0.0
        %4988 = vmatpush1.msra.mxu0 0.0
        %4989 = vmatprep.subr.mxu0 0.0
        %4990 = vmatpush1.msra.mxu0 0.0
        %4991 = vmatprep.subr.mxu0 0.0
        %4992 = vmatpush1.msra.mxu0 0.0
        %4993 = vmatprep.subr.mxu0 0.0
        %4994 = vmatpush1.msra.mxu0 0.0
        %4995 = vmatprep.subr.mxu0 0.0
        %4996 = vmatpush1.msra.mxu0 0.0
        %4997 = vmatprep.mubr.f32.mxu0 0.0
        %4998 = vmatmul.mubr.f32.gmra.mrb[0].mxu0 %v1203
        %v4999 = vpop.f32.mrb[0].mxu0
        %v5000 = vadd.f32 %v4770, %v4999
        %v5001 = vpop.f32.mrb[0].mxu0
        %v5002 = vadd.f32 %v4774, %v5001
        %5003 = vdwg.mxu0
        %5004 = vmatprep.subr.mxu0 %v4723
        %5005 = vmatpush1.msra.mxu0 %v4722
        %5006 = vmatprep.subr.mxu0 %v4731
        %5007 = vmatpush1.msra.mxu0 %v4730
        %5008 = vmatprep.subr.mxu0 %v4739
        %5009 = vmatpush1.msra.mxu0 %v4738
        %5010 = vmatprep.subr.mxu0 %v4747
        %5011 = vmatpush1.msra.mxu0 %v4746
        %5012 = vmatprep.subr.mxu0 0.0
        %5013 = vmatpush1.msra.mxu0 0.0
        %5014 = vmatprep.subr.mxu0 0.0
        %5015 = vmatpush1.msra.mxu0 0.0
        %5016 = vmatprep.subr.mxu0 0.0
        %5017 = vmatpush1.msra.mxu0 0.0
        %5018 = vmatprep.subr.mxu0 0.0
        %5019 = vmatpush1.msra.mxu0 0.0
        %5020 = vmatprep.subr.mxu0 0.0
        %5021 = vmatpush1.msra.mxu0 0.0
        %5022 = vmatprep.subr.mxu0 0.0
        %5023 = vmatpush1.msra.mxu0 0.0
        %5024 = vmatprep.subr.mxu0 0.0
        %5025 = vmatpush1.msra.mxu0 0.0
        %5026 = vmatprep.subr.mxu0 0.0
        %5027 = vmatpush1.msra.mxu0 0.0
        %5028 = vmatprep.subr.mxu0 0.0
        %5029 = vmatpush1.msra.mxu0 0.0
        %5030 = vmatprep.subr.mxu0 0.0
        %5031 = vmatpush1.msra.mxu0 0.0
        %5032 = vmatprep.subr.mxu0 0.0
        %5033 = vmatpush1.msra.mxu0 0.0
        %5034 = vmatprep.subr.mxu0 0.0
        %5035 = vmatpush1.msra.mxu0 0.0
        %5036 = vmatprep.subr.mxu0 0.0
        %5037 = vmatpush1.msra.mxu0 0.0
        %5038 = vmatprep.subr.mxu0 0.0
        %5039 = vmatpush1.msra.mxu0 0.0
        %5040 = vmatprep.subr.mxu0 0.0
        %5041 = vmatpush1.msra.mxu0 0.0
        %5042 = vmatprep.subr.mxu0 0.0
        %5043 = vmatpush1.msra.mxu0 0.0
        %5044 = vmatprep.subr.mxu0 0.0
        %5045 = vmatpush1.msra.mxu0 0.0
        %5046 = vmatprep.subr.mxu0 0.0
        %5047 = vmatpush1.msra.mxu0 0.0
        %5048 = vmatprep.subr.mxu0 0.0
        %5049 = vmatpush1.msra.mxu0 0.0
        %5050 = vmatprep.subr.mxu0 0.0
        %5051 = vmatpush1.msra.mxu0 0.0
        %5052 = vmatprep.subr.mxu0 0.0
        %5053 = vmatpush1.msra.mxu0 0.0
        %5054 = vmatprep.subr.mxu0 0.0
        %5055 = vmatpush1.msra.mxu0 0.0
        %5056 = vmatprep.subr.mxu0 0.0
        %5057 = vmatpush1.msra.mxu0 0.0
        %5058 = vmatprep.subr.mxu0 0.0
        %5059 = vmatpush1.msra.mxu0 0.0
        %5060 = vmatprep.subr.mxu0 0.0
        %5061 = vmatpush1.msra.mxu0 0.0
        %5062 = vmatprep.subr.mxu0 0.0
        %5063 = vmatpush1.msra.mxu0 0.0
        %5064 = vmatprep.subr.mxu0 0.0
        %5065 = vmatpush1.msra.mxu0 0.0
        %5066 = vmatprep.subr.mxu0 0.0
        %5067 = vmatpush1.msra.mxu0 0.0
        %5068 = vmatprep.mubr.f32.mxu0 0.0
        %5069 = vmatmul.mubr.f32.gmra.mrb[0].mxu0 %v1203
        %v5070 = vpop.f32.mrb[0].mxu0
        %v5071 = vadd.f32 %v4778, %v5070
        %v5072 = vpop.f32.mrb[0].mxu0
        %v5073 = vadd.f32 %v4782, %v5072
        %5074 = vdwg.mxu0
        %v5075 = vmax.f32 %v4858, 0.0
        %v5076 = vmax.f32 %v4860, 0.0
        %v5077 = vmax.f32 %v4929, 0.0
        %v5078 = vmax.f32 %v4931, 0.0
        %v5079 = vmax.f32 %v5000, 0.0
        %v5080 = vmax.f32 %v5002, 0.0
        %v5081 = vmax.f32 %v5071, 0.0
        %v5082 = vmax.f32 %v5073, 0.0
        %s5083 = scalar_lea.vmem %s683, 512 [#allocation15]
        %v5084 = vld [vmem:[%s5083] sm:$0xf]
        %v5085 = vld [vmem:[%s5083 + $0x4] sm:$0xf]
        %v5086 = vld [vmem:[%s5083 + $0x8] sm:$0xf]
        %v5087 = vld [vmem:[%s5083 + $0xc] sm:$0xf]
        %v5088 = vld [vmem:[%s5083 + $0x10] sm:$0xf]
        %v5089 = vld [vmem:[%s5083 + $0x14] sm:$0xf]
        %v5090 = vld [vmem:[%s5083 + $0x18] sm:$0xf]
        %v5091 = vld [vmem:[%s5083 + $0x1c] sm:$0xf]
        %v5092 = vld [vmem:[%s5083 + $0x20] sm:$0xf]
        %v5093 = vld [vmem:[%s5083 + $0x24] sm:$0xf]
        %v5094 = vld [vmem:[%s5083 + $0x28] sm:$0xf]
        %v5095 = vld [vmem:[%s5083 + $0x2c] sm:$0xf]
        %v5096 = vld [vmem:[%s5083 + $0x30] sm:$0xf]
        %v5097 = vld [vmem:[%s5083 + $0x34] sm:$0xf]
        %v5098 = vld [vmem:[%s5083 + $0x38] sm:$0xf]
        %v5099 = vld [vmem:[%s5083 + $0x3c] sm:$0xf]
        %v5100 = vld [vmem:[%s5083 + $0x40] sm:$0xf]
        %v5101 = vld [vmem:[%s5083 + $0x44] sm:$0xf]
        %v5102 = vld [vmem:[%s5083 + $0x48] sm:$0xf]
        %v5103 = vld [vmem:[%s5083 + $0x4c] sm:$0xf]
        %v5104 = vld [vmem:[%s5083 + $0x50] sm:$0xf]
        %v5105 = vld [vmem:[%s5083 + $0x54] sm:$0xf]
        %v5106 = vld [vmem:[%s5083 + $0x58] sm:$0xf]
        %v5107 = vld [vmem:[%s5083 + $0x5c] sm:$0xf]
        %v5108 = vld [vmem:[%s5083 + $0x60] sm:$0xf]
        %v5109 = vld [vmem:[%s5083 + $0x64] sm:$0xf]
        %v5110 = vld [vmem:[%s5083 + $0x68] sm:$0xf]
        %v5111 = vld [vmem:[%s5083 + $0x6c] sm:$0xf]
        %v5112 = vld [vmem:[%s5083 + $0x70] sm:$0xf]
        %v5113 = vld [vmem:[%s5083 + $0x74] sm:$0xf]
        %v5114 = vld [vmem:[%s5083 + $0x78] sm:$0xf]
        %v5115 = vld [vmem:[%s5083 + $0x7c] sm:$0xf]
        %v5116 = vld [vmem:[%s5083 + $0x80] sm:$0xf]
        %v5117 = vld [vmem:[%s5083 + $0x84] sm:$0xf]
        %v5118 = vld [vmem:[%s5083 + $0x88] sm:$0xf]
        %v5119 = vld [vmem:[%s5083 + $0x8c] sm:$0xf]
        %v5120 = vld [vmem:[%s5083 + $0x90] sm:$0xf]
        %v5121 = vld [vmem:[%s5083 + $0x94] sm:$0xf]
        %v5122 = vld [vmem:[%s5083 + $0x98] sm:$0xf]
        %v5123 = vld [vmem:[%s5083 + $0x9c] sm:$0xf]
        %v5124 = vld [vmem:[%s5083 + $0xa0] sm:$0xf]
        %v5125 = vld [vmem:[%s5083 + $0xa4] sm:$0xf]
        %v5126 = vld [vmem:[%s5083 + $0xa8] sm:$0xf]
        %v5127 = vld [vmem:[%s5083 + $0xac] sm:$0xf]
        %v5128 = vld [vmem:[%s5083 + $0xb0] sm:$0xf]
        %v5129 = vld [vmem:[%s5083 + $0xb4] sm:$0xf]
        %v5130 = vld [vmem:[%s5083 + $0xb8] sm:$0xf]
        %v5131 = vld [vmem:[%s5083 + $0xbc] sm:$0xf]
        %v5132 = vld [vmem:[%s5083 + $0xc0] sm:$0xf]
        %v5133 = vld [vmem:[%s5083 + $0xc4] sm:$0xf]
        %v5134 = vld [vmem:[%s5083 + $0xc8] sm:$0xf]
        %v5135 = vld [vmem:[%s5083 + $0xcc] sm:$0xf]
        %v5136 = vld [vmem:[%s5083 + $0xd0] sm:$0xf]
        %v5137 = vld [vmem:[%s5083 + $0xd4] sm:$0xf]
        %v5138 = vld [vmem:[%s5083 + $0xd8] sm:$0xf]
        %v5139 = vld [vmem:[%s5083 + $0xdc] sm:$0xf]
        %v5140 = vld [vmem:[%s5083 + $0xe0] sm:$0xf]
        %v5141 = vld [vmem:[%s5083 + $0xe4] sm:$0xf]
        %v5142 = vld [vmem:[%s5083 + $0xe8] sm:$0xf]
        %v5143 = vld [vmem:[%s5083 + $0xec] sm:$0xf]
        %v5144 = vld [vmem:[%s5083 + $0xf0] sm:$0xf]
        %v5145 = vld [vmem:[%s5083 + $0xf4] sm:$0xf]
        %v5146 = vld [vmem:[%s5083 + $0xf8] sm:$0xf]
        %v5147 = vld [vmem:[%s5083 + $0xfc] sm:$0xf]
        %v5148 = vld [vmem:[%s5083 + $0x100] sm:$0xf]
        %v5149 = vld [vmem:[%s5083 + $0x104] sm:$0xf]
        %v5150 = vld [vmem:[%s5083 + $0x108] sm:$0xf]
        %v5151 = vld [vmem:[%s5083 + $0x10c] sm:$0xf]
        %v5152 = vld [vmem:[%s5083 + $0x110] sm:$0xf]
        %v5153 = vld [vmem:[%s5083 + $0x114] sm:$0xf]
        %v5154 = vld [vmem:[%s5083 + $0x118] sm:$0xf]
        %v5155 = vld [vmem:[%s5083 + $0x11c] sm:$0xf]
        %v5156 = vld [vmem:[%s5083 + $0x120] sm:$0xf]
        %v5157 = vld [vmem:[%s5083 + $0x124] sm:$0xf]
        %v5158 = vld [vmem:[%s5083 + $0x128] sm:$0xf]
        %v5159 = vld [vmem:[%s5083 + $0x12c] sm:$0xf]
        %v5160 = vld [vmem:[%s5083 + $0x130] sm:$0xf]
        %v5161 = vld [vmem:[%s5083 + $0x134] sm:$0xf]
        %v5162 = vld [vmem:[%s5083 + $0x138] sm:$0xf]
        %v5163 = vld [vmem:[%s5083 + $0x13c] sm:$0xf]
        %v5164 = vld [vmem:[%s5083 + $0x140] sm:$0xf]
        %v5165 = vld [vmem:[%s5083 + $0x144] sm:$0xf]
        %v5166 = vld [vmem:[%s5083 + $0x148] sm:$0xf]
        %v5167 = vld [vmem:[%s5083 + $0x14c] sm:$0xf]
        %v5168 = vld [vmem:[%s5083 + $0x150] sm:$0xf]
        %v5169 = vld [vmem:[%s5083 + $0x154] sm:$0xf]
        %v5170 = vld [vmem:[%s5083 + $0x158] sm:$0xf]
        %v5171 = vld [vmem:[%s5083 + $0x15c] sm:$0xf]
        %v5172 = vld [vmem:[%s5083 + $0x160] sm:$0xf]
        %v5173 = vld [vmem:[%s5083 + $0x164] sm:$0xf]
        %v5174 = vld [vmem:[%s5083 + $0x168] sm:$0xf]
        %v5175 = vld [vmem:[%s5083 + $0x16c] sm:$0xf]
        %v5176 = vld [vmem:[%s5083 + $0x170] sm:$0xf]
        %v5177 = vld [vmem:[%s5083 + $0x174] sm:$0xf]
        %v5178 = vld [vmem:[%s5083 + $0x178] sm:$0xf]
        %v5179 = vld [vmem:[%s5083 + $0x17c] sm:$0xf]
        %v5180 = vld [vmem:[%s5083 + $0x180] sm:$0xf]
        %v5181 = vld [vmem:[%s5083 + $0x184] sm:$0xf]
        %v5182 = vld [vmem:[%s5083 + $0x188] sm:$0xf]
        %v5183 = vld [vmem:[%s5083 + $0x18c] sm:$0xf]
        %v5184 = vld [vmem:[%s5083 + $0x190] sm:$0xf]
        %v5185 = vld [vmem:[%s5083 + $0x194] sm:$0xf]
        %v5186 = vld [vmem:[%s5083 + $0x198] sm:$0xf]
        %v5187 = vld [vmem:[%s5083 + $0x19c] sm:$0xf]
        %v5188 = vld [vmem:[%s5083 + $0x1a0] sm:$0xf]
        %v5189 = vld [vmem:[%s5083 + $0x1a4] sm:$0xf]
        %v5190 = vld [vmem:[%s5083 + $0x1a8] sm:$0xf]
        %v5191 = vld [vmem:[%s5083 + $0x1ac] sm:$0xf]
        %v5192 = vld [vmem:[%s5083 + $0x1b0] sm:$0xf]
        %v5193 = vld [vmem:[%s5083 + $0x1b4] sm:$0xf]
        %v5194 = vld [vmem:[%s5083 + $0x1b8] sm:$0xf]
        %v5195 = vld [vmem:[%s5083 + $0x1bc] sm:$0xf]
        %v5196 = vld [vmem:[%s5083 + $0x1c0] sm:$0xf]
        %v5197 = vld [vmem:[%s5083 + $0x1c4] sm:$0xf]
        %v5198 = vld [vmem:[%s5083 + $0x1c8] sm:$0xf]
        %v5199 = vld [vmem:[%s5083 + $0x1cc] sm:$0xf]
        %v5200 = vld [vmem:[%s5083 + $0x1d0] sm:$0xf]
        %v5201 = vld [vmem:[%s5083 + $0x1d4] sm:$0xf]
        %v5202 = vld [vmem:[%s5083 + $0x1d8] sm:$0xf]
        %v5203 = vld [vmem:[%s5083 + $0x1dc] sm:$0xf]
        %v5204 = vld [vmem:[%s5083 + $0x1e0] sm:$0xf]
        %v5205 = vld [vmem:[%s5083 + $0x1e4] sm:$0xf]
        %v5206 = vld [vmem:[%s5083 + $0x1e8] sm:$0xf]
        %v5207 = vld [vmem:[%s5083 + $0x1ec] sm:$0xf]
        %v5208 = vld [vmem:[%s5083 + $0x1f0] sm:$0xf]
        %v5209 = vld [vmem:[%s5083 + $0x1f4] sm:$0xf]
        %v5210 = vld [vmem:[%s5083 + $0x1f8] sm:$0xf]
        %v5211 = vld [vmem:[%s5083 + $0x1fc] sm:$0xf]
        %v5212 = vunpack.c.l.bf16 %v5084
        %v5213 = vunpack.c.l.bf16 %v5085
        %v5214 = vunpack.c.l.bf16 %v5086
        %v5215 = vunpack.c.l.bf16 %v5087
        %v5216 = vunpack.c.l.bf16 %v5088
        %v5217 = vunpack.c.l.bf16 %v5089
        %v5218 = vunpack.c.l.bf16 %v5090
        %v5219 = vunpack.c.l.bf16 %v5091
        %v5220 = vunpack.c.l.bf16 %v5092
        %v5221 = vunpack.c.l.bf16 %v5093
        %v5222 = vunpack.c.l.bf16 %v5094
        %v5223 = vunpack.c.l.bf16 %v5095
        %v5224 = vunpack.c.l.bf16 %v5096
        %v5225 = vunpack.c.l.bf16 %v5097
        %v5226 = vunpack.c.l.bf16 %v5098
        %v5227 = vunpack.c.l.bf16 %v5099
        %v5228 = vunpack.c.l.bf16 %v5100
        %v5229 = vunpack.c.l.bf16 %v5101
        %v5230 = vunpack.c.l.bf16 %v5102
        %v5231 = vunpack.c.l.bf16 %v5103
        %v5232 = vunpack.c.l.bf16 %v5104
        %v5233 = vunpack.c.l.bf16 %v5105
        %v5234 = vunpack.c.l.bf16 %v5106
        %v5235 = vunpack.c.l.bf16 %v5107
        %v5236 = vunpack.c.l.bf16 %v5108
        %v5237 = vunpack.c.l.bf16 %v5109
        %v5238 = vunpack.c.l.bf16 %v5110
        %v5239 = vunpack.c.l.bf16 %v5111
        %v5240 = vunpack.c.l.bf16 %v5112
        %v5241 = vunpack.c.l.bf16 %v5113
        %v5242 = vunpack.c.l.bf16 %v5114
        %v5243 = vunpack.c.l.bf16 %v5115
        %v5244 = vunpack.c.l.bf16 %v5116
        %v5245 = vunpack.c.l.bf16 %v5117
        %v5246 = vunpack.c.l.bf16 %v5118
        %v5247 = vunpack.c.l.bf16 %v5119
        %v5248 = vunpack.c.l.bf16 %v5120
        %v5249 = vunpack.c.l.bf16 %v5121
        %v5250 = vunpack.c.l.bf16 %v5122
        %v5251 = vunpack.c.l.bf16 %v5123
        %v5252 = vunpack.c.l.bf16 %v5124
        %v5253 = vunpack.c.l.bf16 %v5125
        %v5254 = vunpack.c.l.bf16 %v5126
        %v5255 = vunpack.c.l.bf16 %v5127
        %v5256 = vunpack.c.l.bf16 %v5128
        %v5257 = vunpack.c.l.bf16 %v5129
        %v5258 = vunpack.c.l.bf16 %v5130
        %v5259 = vunpack.c.l.bf16 %v5131
        %v5260 = vunpack.c.l.bf16 %v5132
        %v5261 = vunpack.c.l.bf16 %v5133
        %v5262 = vunpack.c.l.bf16 %v5134
        %v5263 = vunpack.c.l.bf16 %v5135
        %v5264 = vunpack.c.l.bf16 %v5136
        %v5265 = vunpack.c.l.bf16 %v5137
        %v5266 = vunpack.c.l.bf16 %v5138
        %v5267 = vunpack.c.l.bf16 %v5139
        %v5268 = vunpack.c.l.bf16 %v5140
        %v5269 = vunpack.c.l.bf16 %v5141
        %v5270 = vunpack.c.l.bf16 %v5142
        %v5271 = vunpack.c.l.bf16 %v5143
        %v5272 = vunpack.c.l.bf16 %v5144
        %v5273 = vunpack.c.l.bf16 %v5145
        %v5274 = vunpack.c.l.bf16 %v5146
        %v5275 = vunpack.c.l.bf16 %v5147
        %v5276 = vunpack.c.l.bf16 %v5148
        %v5277 = vunpack.c.l.bf16 %v5149
        %v5278 = vunpack.c.l.bf16 %v5150
        %v5279 = vunpack.c.l.bf16 %v5151
        %v5280 = vunpack.c.l.bf16 %v5152
        %v5281 = vunpack.c.l.bf16 %v5153
        %v5282 = vunpack.c.l.bf16 %v5154
        %v5283 = vunpack.c.l.bf16 %v5155
        %v5284 = vunpack.c.l.bf16 %v5156
        %v5285 = vunpack.c.l.bf16 %v5157
        %v5286 = vunpack.c.l.bf16 %v5158
        %v5287 = vunpack.c.l.bf16 %v5159
        %v5288 = vunpack.c.l.bf16 %v5160
        %v5289 = vunpack.c.l.bf16 %v5161
        %v5290 = vunpack.c.l.bf16 %v5162
        %v5291 = vunpack.c.l.bf16 %v5163
        %v5292 = vunpack.c.l.bf16 %v5164
        %v5293 = vunpack.c.l.bf16 %v5165
        %v5294 = vunpack.c.l.bf16 %v5166
        %v5295 = vunpack.c.l.bf16 %v5167
        %v5296 = vunpack.c.l.bf16 %v5168
        %v5297 = vunpack.c.l.bf16 %v5169
        %v5298 = vunpack.c.l.bf16 %v5170
        %v5299 = vunpack.c.l.bf16 %v5171
        %v5300 = vunpack.c.l.bf16 %v5172
        %v5301 = vunpack.c.l.bf16 %v5173
        %v5302 = vunpack.c.l.bf16 %v5174
        %v5303 = vunpack.c.l.bf16 %v5175
        %v5304 = vunpack.c.l.bf16 %v5176
        %v5305 = vunpack.c.l.bf16 %v5177
        %v5306 = vunpack.c.l.bf16 %v5178
        %v5307 = vunpack.c.l.bf16 %v5179
        %v5308 = vunpack.c.l.bf16 %v5180
        %v5309 = vunpack.c.l.bf16 %v5181
        %v5310 = vunpack.c.l.bf16 %v5182
        %v5311 = vunpack.c.l.bf16 %v5183
        %v5312 = vunpack.c.l.bf16 %v5184
        %v5313 = vunpack.c.l.bf16 %v5185
        %v5314 = vunpack.c.l.bf16 %v5186
        %v5315 = vunpack.c.l.bf16 %v5187
        %v5316 = vunpack.c.l.bf16 %v5188
        %v5317 = vunpack.c.l.bf16 %v5189
        %v5318 = vunpack.c.l.bf16 %v5190
        %v5319 = vunpack.c.l.bf16 %v5191
        %v5320 = vunpack.c.l.bf16 %v5192
        %v5321 = vunpack.c.l.bf16 %v5193
        %v5322 = vunpack.c.l.bf16 %v5194
        %v5323 = vunpack.c.l.bf16 %v5195
        %v5324 = vunpack.c.l.bf16 %v5196
        %v5325 = vunpack.c.l.bf16 %v5197
        %v5326 = vunpack.c.l.bf16 %v5198
        %v5327 = vunpack.c.l.bf16 %v5199
        %v5328 = vunpack.c.l.bf16 %v5200
        %v5329 = vunpack.c.l.bf16 %v5201
        %v5330 = vunpack.c.l.bf16 %v5202
        %v5331 = vunpack.c.l.bf16 %v5203
        %v5332 = vunpack.c.l.bf16 %v5204
        %v5333 = vunpack.c.l.bf16 %v5205
        %v5334 = vunpack.c.l.bf16 %v5206
        %v5335 = vunpack.c.l.bf16 %v5207
        %v5336 = vunpack.c.l.bf16 %v5208
        %v5337 = vunpack.c.l.bf16 %v5209
        %v5338 = vunpack.c.l.bf16 %v5210
        %v5339 = vunpack.c.l.bf16 %v5211
        %s5340 = scalar_lea.vmem %s692, 1 [#allocation16]
        %v5341 = vld [vmem:[%s5340] sm:$0x1]
        %v5343 = vlaneseq
        %v5344 = vshrl.u32 %v5343, 7
        %v5345 = vsub.s32 0, %v5344
        %v5346 = vrot.slane %v5341, %v5345
        %5348 = vmatprep.subr.mxu0 0.0
        %5349 = vmatpush1.msra.mxu0 %v5212
        %5350 = vmatprep.subr.mxu0 0.0
        %5351 = vmatpush1.msra.mxu0 %v5213
        %5352 = vmatprep.subr.mxu0 0.0
        %5353 = vmatpush1.msra.mxu0 %v5214
        %5354 = vmatprep.subr.mxu0 0.0
        %5355 = vmatpush1.msra.mxu0 %v5215
        %5356 = vmatprep.subr.mxu0 0.0
        %5357 = vmatpush1.msra.mxu0 %v5216
        %5358 = vmatprep.subr.mxu0 0.0
        %5359 = vmatpush1.msra.mxu0 %v5217
        %5360 = vmatprep.subr.mxu0 0.0
        %5361 = vmatpush1.msra.mxu0 %v5218
        %5362 = vmatprep.subr.mxu0 0.0
        %5363 = vmatpush1.msra.mxu0 %v5219
        %5364 = vmatprep.subr.mxu0 0.0
        %5365 = vmatpush1.msra.mxu0 %v5220
        %5366 = vmatprep.subr.mxu0 0.0
        %5367 = vmatpush1.msra.mxu0 %v5221
        %5368 = vmatprep.subr.mxu0 0.0
        %5369 = vmatpush1.msra.mxu0 %v5222
        %5370 = vmatprep.subr.mxu0 0.0
        %5371 = vmatpush1.msra.mxu0 %v5223
        %5372 = vmatprep.subr.mxu0 0.0
        %5373 = vmatpush1.msra.mxu0 %v5224
        %5374 = vmatprep.subr.mxu0 0.0
        %5375 = vmatpush1.msra.mxu0 %v5225
        %5376 = vmatprep.subr.mxu0 0.0
        %5377 = vmatpush1.msra.mxu0 %v5226
        %5378 = vmatprep.subr.mxu0 0.0
        %5379 = vmatpush1.msra.mxu0 %v5227
        %5380 = vmatprep.subr.mxu0 0.0
        %5381 = vmatpush1.msra.mxu0 %v5228
        %5382 = vmatprep.subr.mxu0 0.0
        %5383 = vmatpush1.msra.mxu0 %v5229
        %5384 = vmatprep.subr.mxu0 0.0
        %5385 = vmatpush1.msra.mxu0 %v5230
        %5386 = vmatprep.subr.mxu0 0.0
        %5387 = vmatpush1.msra.mxu0 %v5231
        %5388 = vmatprep.subr.mxu0 0.0
        %5389 = vmatpush1.msra.mxu0 %v5232
        %5390 = vmatprep.subr.mxu0 0.0
        %5391 = vmatpush1.msra.mxu0 %v5233
        %5392 = vmatprep.subr.mxu0 0.0
        %5393 = vmatpush1.msra.mxu0 %v5234
        %5394 = vmatprep.subr.mxu0 0.0
        %5395 = vmatpush1.msra.mxu0 %v5235
        %5396 = vmatprep.subr.mxu0 0.0
        %5397 = vmatpush1.msra.mxu0 %v5236
        %5398 = vmatprep.subr.mxu0 0.0
        %5399 = vmatpush1.msra.mxu0 %v5237
        %5400 = vmatprep.subr.mxu0 0.0
        %5401 = vmatpush1.msra.mxu0 %v5238
        %5402 = vmatprep.subr.mxu0 0.0
        %5403 = vmatpush1.msra.mxu0 %v5239
        %5404 = vmatprep.subr.mxu0 0.0
        %5405 = vmatpush1.msra.mxu0 %v5240
        %5406 = vmatprep.subr.mxu0 0.0
        %5407 = vmatpush1.msra.mxu0 %v5241
        %5408 = vmatprep.subr.mxu0 0.0
        %5409 = vmatpush1.msra.mxu0 %v5242
        %5410 = vmatprep.subr.mxu0 0.0
        %5411 = vmatpush1.msra.mxu0 %v5243
        %5412 = vmatprep.mubr.f32.mxu0 %v5076
        %5413 = vmatmul.mubr.f32.gmra.mrb[0].mxu0 %v5075
        %v5414 = vpop.f32.mrb[0].mxu0
        %v5415 = vadd.f32 %v5346, %v5414
        %v5416 = vpop.f32.mrb[0].mxu0
        %5417 = vdwg.mxu0
        %5418 = vmatprep.subr.mxu0 0.0
        %5419 = vmatpush1.msra.mxu0 %v5244
        %5420 = vmatprep.subr.mxu0 0.0
        %5421 = vmatpush1.msra.mxu0 %v5245
        %5422 = vmatprep.subr.mxu0 0.0
        %5423 = vmatpush1.msra.mxu0 %v5246
        %5424 = vmatprep.subr.mxu0 0.0
        %5425 = vmatpush1.msra.mxu0 %v5247
        %5426 = vmatprep.subr.mxu0 0.0
        %5427 = vmatpush1.msra.mxu0 %v5248
        %5428 = vmatprep.subr.mxu0 0.0
        %5429 = vmatpush1.msra.mxu0 %v5249
        %5430 = vmatprep.subr.mxu0 0.0
        %5431 = vmatpush1.msra.mxu0 %v5250
        %5432 = vmatprep.subr.mxu0 0.0
        %5433 = vmatpush1.msra.mxu0 %v5251
        %5434 = vmatprep.subr.mxu0 0.0
        %5435 = vmatpush1.msra.mxu0 %v5252
        %5436 = vmatprep.subr.mxu0 0.0
        %5437 = vmatpush1.msra.mxu0 %v5253
        %5438 = vmatprep.subr.mxu0 0.0
        %5439 = vmatpush1.msra.mxu0 %v5254
        %5440 = vmatprep.subr.mxu0 0.0
        %5441 = vmatpush1.msra.mxu0 %v5255
        %5442 = vmatprep.subr.mxu0 0.0
        %5443 = vmatpush1.msra.mxu0 %v5256
        %5444 = vmatprep.subr.mxu0 0.0
        %5445 = vmatpush1.msra.mxu0 %v5257
        %5446 = vmatprep.subr.mxu0 0.0
        %5447 = vmatpush1.msra.mxu0 %v5258
        %5448 = vmatprep.subr.mxu0 0.0
        %5449 = vmatpush1.msra.mxu0 %v5259
        %5450 = vmatprep.subr.mxu0 0.0
        %5451 = vmatpush1.msra.mxu0 %v5260
        %5452 = vmatprep.subr.mxu0 0.0
        %5453 = vmatpush1.msra.mxu0 %v5261
        %5454 = vmatprep.subr.mxu0 0.0
        %5455 = vmatpush1.msra.mxu0 %v5262
        %5456 = vmatprep.subr.mxu0 0.0
        %5457 = vmatpush1.msra.mxu0 %v5263
        %5458 = vmatprep.subr.mxu0 0.0
        %5459 = vmatpush1.msra.mxu0 %v5264
        %5460 = vmatprep.subr.mxu0 0.0
        %5461 = vmatpush1.msra.mxu0 %v5265
        %5462 = vmatprep.subr.mxu0 0.0
        %5463 = vmatpush1.msra.mxu0 %v5266
        %5464 = vmatprep.subr.mxu0 0.0
        %5465 = vmatpush1.msra.mxu0 %v5267
        %5466 = vmatprep.subr.mxu0 0.0
        %5467 = vmatpush1.msra.mxu0 %v5268
        %5468 = vmatprep.subr.mxu0 0.0
        %5469 = vmatpush1.msra.mxu0 %v5269
        %5470 = vmatprep.subr.mxu0 0.0
        %5471 = vmatpush1.msra.mxu0 %v5270
        %5472 = vmatprep.subr.mxu0 0.0
        %5473 = vmatpush1.msra.mxu0 %v5271
        %5474 = vmatprep.subr.mxu0 0.0
        %5475 = vmatpush1.msra.mxu0 %v5272
        %5476 = vmatprep.subr.mxu0 0.0
        %5477 = vmatpush1.msra.mxu0 %v5273
        %5478 = vmatprep.subr.mxu0 0.0
        %5479 = vmatpush1.msra.mxu0 %v5274
        %5480 = vmatprep.subr.mxu0 0.0
        %5481 = vmatpush1.msra.mxu0 %v5275
        %5482 = vmatprep.mubr.f32.mxu0 %v5078
        %5483 = vmatmul.mubr.f32.gmra.mrb[0].mxu0 %v5077
        %v5484 = vpop.f32.mrb[0].mxu0
        %v5485 = vadd.f32 %v5415, %v5484
        %v5486 = vpop.f32.mrb[0].mxu0
        %5487 = vdwg.mxu0
        %5488 = vmatprep.subr.mxu0 0.0
        %5489 = vmatpush1.msra.mxu0 %v5276
        %5490 = vmatprep.subr.mxu0 0.0
        %5491 = vmatpush1.msra.mxu0 %v5277
        %5492 = vmatprep.subr.mxu0 0.0
        %5493 = vmatpush1.msra.mxu0 %v5278
        %5494 = vmatprep.subr.mxu0 0.0
        %5495 = vmatpush1.msra.mxu0 %v5279
        %5496 = vmatprep.subr.mxu0 0.0
        %5497 = vmatpush1.msra.mxu0 %v5280
        %5498 = vmatprep.subr.mxu0 0.0
        %5499 = vmatpush1.msra.mxu0 %v5281
        %5500 = vmatprep.subr.mxu0 0.0
        %5501 = vmatpush1.msra.mxu0 %v5282
        %5502 = vmatprep.subr.mxu0 0.0
        %5503 = vmatpush1.msra.mxu0 %v5283
        %5504 = vmatprep.subr.mxu0 0.0
        %5505 = vmatpush1.msra.mxu0 %v5284
        %5506 = vmatprep.subr.mxu0 0.0
        %5507 = vmatpush1.msra.mxu0 %v5285
        %5508 = vmatprep.subr.mxu0 0.0
        %5509 = vmatpush1.msra.mxu0 %v5286
        %5510 = vmatprep.subr.mxu0 0.0
        %5511 = vmatpush1.msra.mxu0 %v5287
        %5512 = vmatprep.subr.mxu0 0.0
        %5513 = vmatpush1.msra.mxu0 %v5288
        %5514 = vmatprep.subr.mxu0 0.0
        %5515 = vmatpush1.msra.mxu0 %v5289
        %5516 = vmatprep.subr.mxu0 0.0
        %5517 = vmatpush1.msra.mxu0 %v5290
        %5518 = vmatprep.subr.mxu0 0.0
        %5519 = vmatpush1.msra.mxu0 %v5291
        %5520 = vmatprep.subr.mxu0 0.0
        %5521 = vmatpush1.msra.mxu0 %v5292
        %5522 = vmatprep.subr.mxu0 0.0
        %5523 = vmatpush1.msra.mxu0 %v5293
        %5524 = vmatprep.subr.mxu0 0.0
        %5525 = vmatpush1.msra.mxu0 %v5294
        %5526 = vmatprep.subr.mxu0 0.0
        %5527 = vmatpush1.msra.mxu0 %v5295
        %5528 = vmatprep.subr.mxu0 0.0
        %5529 = vmatpush1.msra.mxu0 %v5296
        %5530 = vmatprep.subr.mxu0 0.0
        %5531 = vmatpush1.msra.mxu0 %v5297
        %5532 = vmatprep.subr.mxu0 0.0
        %5533 = vmatpush1.msra.mxu0 %v5298
        %5534 = vmatprep.subr.mxu0 0.0
        %5535 = vmatpush1.msra.mxu0 %v5299
        %5536 = vmatprep.subr.mxu0 0.0
        %5537 = vmatpush1.msra.mxu0 %v5300
        %5538 = vmatprep.subr.mxu0 0.0
        %5539 = vmatpush1.msra.mxu0 %v5301
        %5540 = vmatprep.subr.mxu0 0.0
        %5541 = vmatpush1.msra.mxu0 %v5302
        %5542 = vmatprep.subr.mxu0 0.0
        %5543 = vmatpush1.msra.mxu0 %v5303
        %5544 = vmatprep.subr.mxu0 0.0
        %5545 = vmatpush1.msra.mxu0 %v5304
        %5546 = vmatprep.subr.mxu0 0.0
        %5547 = vmatpush1.msra.mxu0 %v5305
        %5548 = vmatprep.subr.mxu0 0.0
        %5549 = vmatpush1.msra.mxu0 %v5306
        %5550 = vmatprep.subr.mxu0 0.0
        %5551 = vmatpush1.msra.mxu0 %v5307
        %5552 = vmatprep.mubr.f32.mxu0 %v5080
        %5553 = vmatmul.mubr.f32.gmra.mrb[0].mxu0 %v5079
        %v5554 = vpop.f32.mrb[0].mxu0
        %v5555 = vadd.f32 %v5485, %v5554
        %v5556 = vpop.f32.mrb[0].mxu0
        %5557 = vdwg.mxu0
        %5558 = vmatprep.subr.mxu0 0.0
        %5559 = vmatpush1.msra.mxu0 %v5308
        %5560 = vmatprep.subr.mxu0 0.0
        %5561 = vmatpush1.msra.mxu0 %v5309
        %5562 = vmatprep.subr.mxu0 0.0
        %5563 = vmatpush1.msra.mxu0 %v5310
        %5564 = vmatprep.subr.mxu0 0.0
        %5565 = vmatpush1.msra.mxu0 %v5311
        %5566 = vmatprep.subr.mxu0 0.0
        %5567 = vmatpush1.msra.mxu0 %v5312
        %5568 = vmatprep.subr.mxu0 0.0
        %5569 = vmatpush1.msra.mxu0 %v5313
        %5570 = vmatprep.subr.mxu0 0.0
        %5571 = vmatpush1.msra.mxu0 %v5314
        %5572 = vmatprep.subr.mxu0 0.0
        %5573 = vmatpush1.msra.mxu0 %v5315
        %5574 = vmatprep.subr.mxu0 0.0
        %5575 = vmatpush1.msra.mxu0 %v5316
        %5576 = vmatprep.subr.mxu0 0.0
        %5577 = vmatpush1.msra.mxu0 %v5317
        %5578 = vmatprep.subr.mxu0 0.0
        %5579 = vmatpush1.msra.mxu0 %v5318
        %5580 = vmatprep.subr.mxu0 0.0
        %5581 = vmatpush1.msra.mxu0 %v5319
        %5582 = vmatprep.subr.mxu0 0.0
        %5583 = vmatpush1.msra.mxu0 %v5320
        %5584 = vmatprep.subr.mxu0 0.0
        %5585 = vmatpush1.msra.mxu0 %v5321
        %5586 = vmatprep.subr.mxu0 0.0
        %5587 = vmatpush1.msra.mxu0 %v5322
        %5588 = vmatprep.subr.mxu0 0.0
        %5589 = vmatpush1.msra.mxu0 %v5323
        %5590 = vmatprep.subr.mxu0 0.0
        %5591 = vmatpush1.msra.mxu0 %v5324
        %5592 = vmatprep.subr.mxu0 0.0
        %5593 = vmatpush1.msra.mxu0 %v5325
        %5594 = vmatprep.subr.mxu0 0.0
        %5595 = vmatpush1.msra.mxu0 %v5326
        %5596 = vmatprep.subr.mxu0 0.0
        %5597 = vmatpush1.msra.mxu0 %v5327
        %5598 = vmatprep.subr.mxu0 0.0
        %5599 = vmatpush1.msra.mxu0 %v5328
        %5600 = vmatprep.subr.mxu0 0.0
        %5601 = vmatpush1.msra.mxu0 %v5329
        %5602 = vmatprep.subr.mxu0 0.0
        %5603 = vmatpush1.msra.mxu0 %v5330
        %5604 = vmatprep.subr.mxu0 0.0
        %5605 = vmatpush1.msra.mxu0 %v5331
        %5606 = vmatprep.subr.mxu0 0.0
        %5607 = vmatpush1.msra.mxu0 %v5332
        %5608 = vmatprep.subr.mxu0 0.0
        %5609 = vmatpush1.msra.mxu0 %v5333
        %5610 = vmatprep.subr.mxu0 0.0
        %5611 = vmatpush1.msra.mxu0 %v5334
        %5612 = vmatprep.subr.mxu0 0.0
        %5613 = vmatpush1.msra.mxu0 %v5335
        %5614 = vmatprep.subr.mxu0 0.0
        %5615 = vmatpush1.msra.mxu0 %v5336
        %5616 = vmatprep.subr.mxu0 0.0
        %5617 = vmatpush1.msra.mxu0 %v5337
        %5618 = vmatprep.subr.mxu0 0.0
        %5619 = vmatpush1.msra.mxu0 %v5338
        %5620 = vmatprep.subr.mxu0 0.0
        %5621 = vmatpush1.msra.mxu0 %v5339
        %5622 = vmatprep.mubr.f32.mxu0 %v5082
        %5623 = vmatmul.mubr.f32.gmra.mrb[0].mxu0 %v5081
        %v5624 = vpop.f32.mrb[0].mxu0
        %v5625 = vadd.f32 %v5555, %v5624
        %v5626 = vpop.f32.mrb[0].mxu0
        %5627 = vdwg.mxu0
        %s5628 = scalar_lea.vmem %s612, 8 [#allocation4]
        %v5629 = vld [vmem:[%s5628] sm:$0xff]
        %v5631 = vsel %vm2966, %v5629, 0
        %5633 = vmatprep.subr.mxu0 0.0
        %5634 = vmatpush1.msra.mxu0 %v4696
        %5635 = vmatprep.subr.mxu0 0.0
        %5636 = vmatpush1.msra.mxu0 0.0
        %5637 = vmatprep.subr.mxu0 0.0
        %5638 = vmatpush1.msra.mxu0 0.0
        %5639 = vmatprep.subr.mxu0 0.0
        %5640 = vmatpush1.msra.mxu0 0.0
        %5641 = vmatprep.subr.mxu0 0.0
        %5642 = vmatpush1.msra.mxu0 0.0
        %5643 = vmatprep.subr.mxu0 0.0
        %5644 = vmatpush1.msra.mxu0 0.0
        %5645 = vmatprep.subr.mxu0 0.0
        %5646 = vmatpush1.msra.mxu0 0.0
        %5647 = vmatprep.subr.mxu0 0.0
        %5648 = vmatpush1.msra.mxu0 0.0
        %5649 = vmatprep.subr.mxu0 0.0
        %5650 = vmatpush1.msra.mxu0 0.0
        %5651 = vmatprep.subr.mxu0 0.0
        %5652 = vmatpush1.msra.mxu0 0.0
        %5653 = vmatprep.subr.mxu0 0.0
        %5654 = vmatpush1.msra.mxu0 0.0
        %5655 = vmatprep.subr.mxu0 0.0
        %5656 = vmatpush1.msra.mxu0 0.0
        %5657 = vmatprep.subr.mxu0 0.0
        %5658 = vmatpush1.msra.mxu0 0.0
        %5659 = vmatprep.subr.mxu0 0.0
        %5660 = vmatpush1.msra.mxu0 0.0
        %5661 = vmatprep.subr.mxu0 0.0
        %5662 = vmatpush1.msra.mxu0 0.0
        %5663 = vmatprep.subr.mxu0 0.0
        %5664 = vmatpush1.msra.mxu0 0.0
        %5665 = vmatprep.subr.mxu0 0.0
        %5666 = vmatpush1.msra.mxu0 0.0
        %5667 = vmatprep.subr.mxu0 0.0
        %5668 = vmatpush1.msra.mxu0 0.0
        %5669 = vmatprep.subr.mxu0 0.0
        %5670 = vmatpush1.msra.mxu0 0.0
        %5671 = vmatprep.subr.mxu0 0.0
        %5672 = vmatpush1.msra.mxu0 0.0
        %5673 = vmatprep.subr.mxu0 0.0
        %5674 = vmatpush1.msra.mxu0 0.0
        %5675 = vmatprep.subr.mxu0 0.0
        %5676 = vmatpush1.msra.mxu0 0.0
        %5677 = vmatprep.subr.mxu0 0.0
        %5678 = vmatpush1.msra.mxu0 0.0
        %5679 = vmatprep.subr.mxu0 0.0
        %5680 = vmatpush1.msra.mxu0 0.0
        %5681 = vmatprep.subr.mxu0 0.0
        %5682 = vmatpush1.msra.mxu0 0.0
        %5683 = vmatprep.subr.mxu0 0.0
        %5684 = vmatpush1.msra.mxu0 0.0
        %5685 = vmatprep.subr.mxu0 0.0
        %5686 = vmatpush1.msra.mxu0 0.0
        %5687 = vmatprep.subr.mxu0 0.0
        %5688 = vmatpush1.msra.mxu0 0.0
        %5689 = vmatprep.subr.mxu0 0.0
        %5690 = vmatpush1.msra.mxu0 0.0
        %5691 = vmatprep.subr.mxu0 0.0
        %5692 = vmatpush1.msra.mxu0 0.0
        %5693 = vmatprep.subr.mxu0 0.0
        %5694 = vmatpush1.msra.mxu0 0.0
        %5695 = vmatprep.subr.mxu0 0.0
        %5696 = vmatpush1.msra.mxu0 0.0
        %5697 = vmatprep.mubr.f32.mxu0 0.0
        %5698 = vmatmul.mubr.f32.gmra.mrb[0].mxu0 %v5631
        %v5699 = vpop.f32.mrb[0].mxu0
        %v5700 = vadd.f32 0.0, %v5699
        %v5701 = vpop.f32.mrb[0].mxu0
        %5702 = vdwg.mxu0
        %5703 = vmatprep.subr.mxu0 %v792
        %5704 = vmatpush1.msra.mxu0 %v791
        %5705 = vmatprep.subr.mxu0 %v802
        %5706 = vmatpush1.msra.mxu0 %v801
        %5707 = vmatprep.subr.mxu0 %v812
        %5708 = vmatpush1.msra.mxu0 %v811
        %5709 = vmatprep.subr.mxu0 %v822
        %5710 = vmatpush1.msra.mxu0 %v821
        %5711 = vmatprep.subr.mxu0 %v832
        %5712 = vmatpush1.msra.mxu0 %v831
        %5713 = vmatprep.subr.mxu0 %v842
        %5714 = vmatpush1.msra.mxu0 %v841
        %5715 = vmatprep.subr.mxu0 %v852
        %5716 = vmatpush1.msra.mxu0 %v851
        %5717 = vmatprep.subr.mxu0 %v862
        %5718 = vmatpush1.msra.mxu0 %v861
        %5719 = vmatprep.subr.mxu0 %v872
        %5720 = vmatpush1.msra.mxu0 %v871
        %5721 = vmatprep.subr.mxu0 %v882
        %5722 = vmatpush1.msra.mxu0 %v881
        %5723 = vmatprep.subr.mxu0 %v892
        %5724 = vmatpush1.msra.mxu0 %v891
        %5725 = vmatprep.subr.mxu0 %v902
        %5726 = vmatpush1.msra.mxu0 %v901
        %5727 = vmatprep.subr.mxu0 %v912
        %5728 = vmatpush1.msra.mxu0 %v911
        %5729 = vmatprep.subr.mxu0 %v922
        %5730 = vmatpush1.msra.mxu0 %v921
        %5731 = vmatprep.subr.mxu0 %v932
        %5732 = vmatpush1.msra.mxu0 %v931
        %5733 = vmatprep.subr.mxu0 %v942
        %5734 = vmatpush1.msra.mxu0 %v941
        %5735 = vmatprep.subr.mxu0 0.0
        %5736 = vmatpush1.msra.mxu0 0.0
        %5737 = vmatprep.subr.mxu0 0.0
        %5738 = vmatpush1.msra.mxu0 0.0
        %5739 = vmatprep.subr.mxu0 0.0
        %5740 = vmatpush1.msra.mxu0 0.0
        %5741 = vmatprep.subr.mxu0 0.0
        %5742 = vmatpush1.msra.mxu0 0.0
        %5743 = vmatprep.subr.mxu0 0.0
        %5744 = vmatpush1.msra.mxu0 0.0
        %5745 = vmatprep.subr.mxu0 0.0
        %5746 = vmatpush1.msra.mxu0 0.0
        %5747 = vmatprep.subr.mxu0 0.0
        %5748 = vmatpush1.msra.mxu0 0.0
        %5749 = vmatprep.subr.mxu0 0.0
        %5750 = vmatpush1.msra.mxu0 0.0
        %5751 = vmatprep.subr.mxu0 0.0
        %5752 = vmatpush1.msra.mxu0 0.0
        %5753 = vmatprep.subr.mxu0 0.0
        %5754 = vmatpush1.msra.mxu0 0.0
        %5755 = vmatprep.subr.mxu0 0.0
        %5756 = vmatpush1.msra.mxu0 0.0
        %5757 = vmatprep.subr.mxu0 0.0
        %5758 = vmatpush1.msra.mxu0 0.0
        %5759 = vmatprep.subr.mxu0 0.0
        %5760 = vmatpush1.msra.mxu0 0.0
        %5761 = vmatprep.subr.mxu0 0.0
        %5762 = vmatpush1.msra.mxu0 0.0
        %5763 = vmatprep.subr.mxu0 0.0
        %5764 = vmatpush1.msra.mxu0 0.0
        %5765 = vmatprep.subr.mxu0 0.0
        %5766 = vmatpush1.msra.mxu0 0.0
        %5767 = vmatprep.mubr.f32.mxu0 0.0
        %5768 = vmatmul.mubr.f32.gmra.mrb[0].mxu0 %v5700
        %v5769 = vpop.f32.mrb[0].mxu0
        %v5770 = vadd.f32 0.0, %v5769
        %v5771 = vpop.f32.mrb[0].mxu0
        %v5772 = vadd.f32 0.0, %v5771
        %5773 = vdwg.mxu0
        %5774 = vmatprep.subr.mxu0 %v794
        %5775 = vmatpush1.msra.mxu0 %v793
        %5776 = vmatprep.subr.mxu0 %v804
        %5777 = vmatpush1.msra.mxu0 %v803
        %5778 = vmatprep.subr.mxu0 %v814
        %5779 = vmatpush1.msra.mxu0 %v813
        %5780 = vmatprep.subr.mxu0 %v824
        %5781 = vmatpush1.msra.mxu0 %v823
        %5782 = vmatprep.subr.mxu0 %v834
        %5783 = vmatpush1.msra.mxu0 %v833
        %5784 = vmatprep.subr.mxu0 %v844
        %5785 = vmatpush1.msra.mxu0 %v843
        %5786 = vmatprep.subr.mxu0 %v854
        %5787 = vmatpush1.msra.mxu0 %v853
        %5788 = vmatprep.subr.mxu0 %v864
        %5789 = vmatpush1.msra.mxu0 %v863
        %5790 = vmatprep.subr.mxu0 %v874
        %5791 = vmatpush1.msra.mxu0 %v873
        %5792 = vmatprep.subr.mxu0 %v884
        %5793 = vmatpush1.msra.mxu0 %v883
        %5794 = vmatprep.subr.mxu0 %v894
        %5795 = vmatpush1.msra.mxu0 %v893
        %5796 = vmatprep.subr.mxu0 %v904
        %5797 = vmatpush1.msra.mxu0 %v903
        %5798 = vmatprep.subr.mxu0 %v914
        %5799 = vmatpush1.msra.mxu0 %v913
        %5800 = vmatprep.subr.mxu0 %v924
        %5801 = vmatpush1.msra.mxu0 %v923
        %5802 = vmatprep.subr.mxu0 %v934
        %5803 = vmatpush1.msra.mxu0 %v933
        %5804 = vmatprep.subr.mxu0 %v944
        %5805 = vmatpush1.msra.mxu0 %v943
        %5806 = vmatprep.subr.mxu0 0.0
        %5807 = vmatpush1.msra.mxu0 0.0
        %5808 = vmatprep.subr.mxu0 0.0
        %5809 = vmatpush1.msra.mxu0 0.0
        %5810 = vmatprep.subr.mxu0 0.0
        %5811 = vmatpush1.msra.mxu0 0.0
        %5812 = vmatprep.subr.mxu0 0.0
        %5813 = vmatpush1.msra.mxu0 0.0
        %5814 = vmatprep.subr.mxu0 0.0
        %5815 = vmatpush1.msra.mxu0 0.0
        %5816 = vmatprep.subr.mxu0 0.0
        %5817 = vmatpush1.msra.mxu0 0.0
        %5818 = vmatprep.subr.mxu0 0.0
        %5819 = vmatpush1.msra.mxu0 0.0
        %5820 = vmatprep.subr.mxu0 0.0
        %5821 = vmatpush1.msra.mxu0 0.0
        %5822 = vmatprep.subr.mxu0 0.0
        %5823 = vmatpush1.msra.mxu0 0.0
        %5824 = vmatprep.subr.mxu0 0.0
        %5825 = vmatpush1.msra.mxu0 0.0
        %5826 = vmatprep.subr.mxu0 0.0
        %5827 = vmatpush1.msra.mxu0 0.0
        %5828 = vmatprep.subr.mxu0 0.0
        %5829 = vmatpush1.msra.mxu0 0.0
        %5830 = vmatprep.subr.mxu0 0.0
        %5831 = vmatpush1.msra.mxu0 0.0
        %5832 = vmatprep.subr.mxu0 0.0
        %5833 = vmatpush1.msra.mxu0 0.0
        %5834 = vmatprep.subr.mxu0 0.0
        %5835 = vmatpush1.msra.mxu0 0.0
        %5836 = vmatprep.subr.mxu0 0.0
        %5837 = vmatpush1.msra.mxu0 0.0
        %5838 = vmatprep.mubr.f32.mxu0 0.0
        %5839 = vmatmul.mubr.f32.gmra.mrb[0].mxu0 %v5700
        %v5840 = vpop.f32.mrb[0].mxu0
        %v5841 = vadd.f32 0.0, %v5840
        %v5842 = vpop.f32.mrb[0].mxu0
        %v5843 = vadd.f32 0.0, %v5842
        %5844 = vdwg.mxu0
        %5845 = vmatprep.subr.mxu0 %v796
        %5846 = vmatpush1.msra.mxu0 %v795
        %5847 = vmatprep.subr.mxu0 %v806
        %5848 = vmatpush1.msra.mxu0 %v805
        %5849 = vmatprep.subr.mxu0 %v816
        %5850 = vmatpush1.msra.mxu0 %v815
        %5851 = vmatprep.subr.mxu0 %v826
        %5852 = vmatpush1.msra.mxu0 %v825
        %5853 = vmatprep.subr.mxu0 %v836
        %5854 = vmatpush1.msra.mxu0 %v835
        %5855 = vmatprep.subr.mxu0 %v846
        %5856 = vmatpush1.msra.mxu0 %v845
        %5857 = vmatprep.subr.mxu0 %v856
        %5858 = vmatpush1.msra.mxu0 %v855
        %5859 = vmatprep.subr.mxu0 %v866
        %5860 = vmatpush1.msra.mxu0 %v865
        %5861 = vmatprep.subr.mxu0 %v876
        %5862 = vmatpush1.msra.mxu0 %v875
        %5863 = vmatprep.subr.mxu0 %v886
        %5864 = vmatpush1.msra.mxu0 %v885
        %5865 = vmatprep.subr.mxu0 %v896
        %5866 = vmatpush1.msra.mxu0 %v895
        %5867 = vmatprep.subr.mxu0 %v906
        %5868 = vmatpush1.msra.mxu0 %v905
        %5869 = vmatprep.subr.mxu0 %v916
        %5870 = vmatpush1.msra.mxu0 %v915
        %5871 = vmatprep.subr.mxu0 %v926
        %5872 = vmatpush1.msra.mxu0 %v925
        %5873 = vmatprep.subr.mxu0 %v936
        %5874 = vmatpush1.msra.mxu0 %v935
        %5875 = vmatprep.subr.mxu0 %v946
        %5876 = vmatpush1.msra.mxu0 %v945
        %5877 = vmatprep.subr.mxu0 0.0
        %5878 = vmatpush1.msra.mxu0 0.0
        %5879 = vmatprep.subr.mxu0 0.0
        %5880 = vmatpush1.msra.mxu0 0.0
        %5881 = vmatprep.subr.mxu0 0.0
        %5882 = vmatpush1.msra.mxu0 0.0
        %5883 = vmatprep.subr.mxu0 0.0
        %5884 = vmatpush1.msra.mxu0 0.0
        %5885 = vmatprep.subr.mxu0 0.0
        %5886 = vmatpush1.msra.mxu0 0.0
        %5887 = vmatprep.subr.mxu0 0.0
        %5888 = vmatpush1.msra.mxu0 0.0
        %5889 = vmatprep.subr.mxu0 0.0
        %5890 = vmatpush1.msra.mxu0 0.0
        %5891 = vmatprep.subr.mxu0 0.0
        %5892 = vmatpush1.msra.mxu0 0.0
        %5893 = vmatprep.subr.mxu0 0.0
        %5894 = vmatpush1.msra.mxu0 0.0
        %5895 = vmatprep.subr.mxu0 0.0
        %5896 = vmatpush1.msra.mxu0 0.0
        %5897 = vmatprep.subr.mxu0 0.0
        %5898 = vmatpush1.msra.mxu0 0.0
        %5899 = vmatprep.subr.mxu0 0.0
        %5900 = vmatpush1.msra.mxu0 0.0
        %5901 = vmatprep.subr.mxu0 0.0
        %5902 = vmatpush1.msra.mxu0 0.0
        %5903 = vmatprep.subr.mxu0 0.0
        %5904 = vmatpush1.msra.mxu0 0.0
        %5905 = vmatprep.subr.mxu0 0.0
        %5906 = vmatpush1.msra.mxu0 0.0
        %5907 = vmatprep.subr.mxu0 0.0
        %5908 = vmatpush1.msra.mxu0 0.0
        %5909 = vmatprep.mubr.f32.mxu0 0.0
        %5910 = vmatmul.mubr.f32.gmra.mrb[0].mxu0 %v5700
        %v5911 = vpop.f32.mrb[0].mxu0
        %v5912 = vadd.f32 0.0, %v5911
        %v5913 = vpop.f32.mrb[0].mxu0
        %v5914 = vadd.f32 0.0, %v5913
        %5915 = vdwg.mxu0
        %5916 = vmatprep.subr.mxu0 %v798
        %5917 = vmatpush1.msra.mxu0 %v797
        %5918 = vmatprep.subr.mxu0 %v808
        %5919 = vmatpush1.msra.mxu0 %v807
        %5920 = vmatprep.subr.mxu0 %v818
        %5921 = vmatpush1.msra.mxu0 %v817
        %5922 = vmatprep.subr.mxu0 %v828
        %5923 = vmatpush1.msra.mxu0 %v827
        %5924 = vmatprep.subr.mxu0 %v838
        %5925 = vmatpush1.msra.mxu0 %v837
        %5926 = vmatprep.subr.mxu0 %v848
        %5927 = vmatpush1.msra.mxu0 %v847
        %5928 = vmatprep.subr.mxu0 %v858
        %5929 = vmatpush1.msra.mxu0 %v857
        %5930 = vmatprep.subr.mxu0 %v868
        %5931 = vmatpush1.msra.mxu0 %v867
        %5932 = vmatprep.subr.mxu0 %v878
        %5933 = vmatpush1.msra.mxu0 %v877
        %5934 = vmatprep.subr.mxu0 %v888
        %5935 = vmatpush1.msra.mxu0 %v887
        %5936 = vmatprep.subr.mxu0 %v898
        %5937 = vmatpush1.msra.mxu0 %v897
        %5938 = vmatprep.subr.mxu0 %v908
        %5939 = vmatpush1.msra.mxu0 %v907
        %5940 = vmatprep.subr.mxu0 %v918
        %5941 = vmatpush1.msra.mxu0 %v917
        %5942 = vmatprep.subr.mxu0 %v928
        %5943 = vmatpush1.msra.mxu0 %v927
        %5944 = vmatprep.subr.mxu0 %v938
        %5945 = vmatpush1.msra.mxu0 %v937
        %5946 = vmatprep.subr.mxu0 %v948
        %5947 = vmatpush1.msra.mxu0 %v947
        %5948 = vmatprep.subr.mxu0 0.0
        %5949 = vmatpush1.msra.mxu0 0.0
        %5950 = vmatprep.subr.mxu0 0.0
        %5951 = vmatpush1.msra.mxu0 0.0
        %5952 = vmatprep.subr.mxu0 0.0
        %5953 = vmatpush1.msra.mxu0 0.0
        %5954 = vmatprep.subr.mxu0 0.0
        %5955 = vmatpush1.msra.mxu0 0.0
        %5956 = vmatprep.subr.mxu0 0.0
        %5957 = vmatpush1.msra.mxu0 0.0
        %5958 = vmatprep.subr.mxu0 0.0
        %5959 = vmatpush1.msra.mxu0 0.0
        %5960 = vmatprep.subr.mxu0 0.0
        %5961 = vmatpush1.msra.mxu0 0.0
        %5962 = vmatprep.subr.mxu0 0.0
        %5963 = vmatpush1.msra.mxu0 0.0
        %5964 = vmatprep.subr.mxu0 0.0
        %5965 = vmatpush1.msra.mxu0 0.0
        %5966 = vmatprep.subr.mxu0 0.0
        %5967 = vmatpush1.msra.mxu0 0.0
        %5968 = vmatprep.subr.mxu0 0.0
        %5969 = vmatpush1.msra.mxu0 0.0
        %5970 = vmatprep.subr.mxu0 0.0
        %5971 = vmatpush1.msra.mxu0 0.0
        %5972 = vmatprep.subr.mxu0 0.0
        %5973 = vmatpush1.msra.mxu0 0.0
        %5974 = vmatprep.subr.mxu0 0.0
        %5975 = vmatpush1.msra.mxu0 0.0
        %5976 = vmatprep.subr.mxu0 0.0
        %5977 = vmatpush1.msra.mxu0 0.0
        %5978 = vmatprep.subr.mxu0 0.0
        %5979 = vmatpush1.msra.mxu0 0.0
        %5980 = vmatprep.mubr.f32.mxu0 0.0
        %5981 = vmatmul.mubr.f32.gmra.mrb[0].mxu0 %v5700
        %v5982 = vpop.f32.mrb[0].mxu0
        %v5983 = vadd.f32 0.0, %v5982
        %v5984 = vpop.f32.mrb[0].mxu0
        %v5985 = vadd.f32 0.0, %v5984
        %5986 = vdwg.mxu0
        %5987 = vmatprep.subr.mxu0 %v800
        %5988 = vmatpush1.msra.mxu0 %v799
        %5989 = vmatprep.subr.mxu0 %v810
        %5990 = vmatpush1.msra.mxu0 %v809
        %5991 = vmatprep.subr.mxu0 %v820
        %5992 = vmatpush1.msra.mxu0 %v819
        %5993 = vmatprep.subr.mxu0 %v830
        %5994 = vmatpush1.msra.mxu0 %v829
        %5995 = vmatprep.subr.mxu0 %v840
        %5996 = vmatpush1.msra.mxu0 %v839
        %5997 = vmatprep.subr.mxu0 %v850
        %5998 = vmatpush1.msra.mxu0 %v849
        %5999 = vmatprep.subr.mxu0 %v860
        %6000 = vmatpush1.msra.mxu0 %v859
        %6001 = vmatprep.subr.mxu0 %v870
        %6002 = vmatpush1.msra.mxu0 %v869
        %6003 = vmatprep.subr.mxu0 %v880
        %6004 = vmatpush1.msra.mxu0 %v879
        %6005 = vmatprep.subr.mxu0 %v890
        %6006 = vmatpush1.msra.mxu0 %v889
        %6007 = vmatprep.subr.mxu0 %v900
        %6008 = vmatpush1.msra.mxu0 %v899
        %6009 = vmatprep.subr.mxu0 %v910
        %6010 = vmatpush1.msra.mxu0 %v909
        %6011 = vmatprep.subr.mxu0 %v920
        %6012 = vmatpush1.msra.mxu0 %v919
        %6013 = vmatprep.subr.mxu0 %v930
        %6014 = vmatpush1.msra.mxu0 %v929
        %6015 = vmatprep.subr.mxu0 %v940
        %6016 = vmatpush1.msra.mxu0 %v939
        %6017 = vmatprep.subr.mxu0 %v950
        %6018 = vmatpush1.msra.mxu0 %v949
        %6019 = vmatprep.subr.mxu0 0.0
        %6020 = vmatpush1.msra.mxu0 0.0
        %6021 = vmatprep.subr.mxu0 0.0
        %6022 = vmatpush1.msra.mxu0 0.0
        %6023 = vmatprep.subr.mxu0 0.0
        %6024 = vmatpush1.msra.mxu0 0.0
        %6025 = vmatprep.subr.mxu0 0.0
        %6026 = vmatpush1.msra.mxu0 0.0
        %6027 = vmatprep.subr.mxu0 0.0
        %6028 = vmatpush1.msra.mxu0 0.0
        %6029 = vmatprep.subr.mxu0 0.0
        %6030 = vmatpush1.msra.mxu0 0.0
        %6031 = vmatprep.subr.mxu0 0.0
        %6032 = vmatpush1.msra.mxu0 0.0
        %6033 = vmatprep.subr.mxu0 0.0
        %6034 = vmatpush1.msra.mxu0 0.0
        %6035 = vmatprep.subr.mxu0 0.0
        %6036 = vmatpush1.msra.mxu0 0.0
        %6037 = vmatprep.subr.mxu0 0.0
        %6038 = vmatpush1.msra.mxu0 0.0
        %6039 = vmatprep.subr.mxu0 0.0
        %6040 = vmatpush1.msra.mxu0 0.0
        %6041 = vmatprep.subr.mxu0 0.0
        %6042 = vmatpush1.msra.mxu0 0.0
        %6043 = vmatprep.subr.mxu0 0.0
        %6044 = vmatpush1.msra.mxu0 0.0
        %6045 = vmatprep.subr.mxu0 0.0
        %6046 = vmatpush1.msra.mxu0 0.0
        %6047 = vmatprep.subr.mxu0 0.0
        %6048 = vmatpush1.msra.mxu0 0.0
        %6049 = vmatprep.subr.mxu0 0.0
        %6050 = vmatpush1.msra.mxu0 0.0
        %6051 = vmatprep.mubr.f32.mxu0 0.0
        %6052 = vmatmul.mubr.f32.gmra.mrb[0].mxu0 %v5700
        %v6053 = vpop.f32.mrb[0].mxu0
        %v6054 = vadd.f32 0.0, %v6053
        %v6055 = vpop.f32.mrb[0].mxu0
        %v6056 = vadd.f32 0.0, %v6055
        %6057 = vdwg.mxu0
        %6058 = vmatprep.subr.mxu0 %v952
        %6059 = vmatpush1.msra.mxu0 %v951
        %6060 = vmatprep.subr.mxu0 %v962
        %6061 = vmatpush1.msra.mxu0 %v961
        %6062 = vmatprep.subr.mxu0 %v972
        %6063 = vmatpush1.msra.mxu0 %v971
        %6064 = vmatprep.subr.mxu0 %v982
        %6065 = vmatpush1.msra.mxu0 %v981
        %6066 = vmatprep.subr.mxu0 %v992
        %6067 = vmatpush1.msra.mxu0 %v991
        %6068 = vmatprep.subr.mxu0 %v1002
        %6069 = vmatpush1.msra.mxu0 %v1001
        %6070 = vmatprep.subr.mxu0 %v1012
        %6071 = vmatpush1.msra.mxu0 %v1011
        %6072 = vmatprep.subr.mxu0 %v1022
        %6073 = vmatpush1.msra.mxu0 %v1021
        %6074 = vmatprep.subr.mxu0 %v1032
        %6075 = vmatpush1.msra.mxu0 %v1031
        %6076 = vmatprep.subr.mxu0 %v1042
        %6077 = vmatpush1.msra.mxu0 %v1041
        %6078 = vmatprep.subr.mxu0 %v1052
        %6079 = vmatpush1.msra.mxu0 %v1051
        %6080 = vmatprep.subr.mxu0 %v1062
        %6081 = vmatpush1.msra.mxu0 %v1061
        %6082 = vmatprep.subr.mxu0 %v1072
        %6083 = vmatpush1.msra.mxu0 %v1071
        %6084 = vmatprep.subr.mxu0 %v1082
        %6085 = vmatpush1.msra.mxu0 %v1081
        %6086 = vmatprep.subr.mxu0 %v1092
        %6087 = vmatpush1.msra.mxu0 %v1091
        %6088 = vmatprep.subr.mxu0 %v1102
        %6089 = vmatpush1.msra.mxu0 %v1101
        %6090 = vmatprep.subr.mxu0 0.0
        %6091 = vmatpush1.msra.mxu0 0.0
        %6092 = vmatprep.subr.mxu0 0.0
        %6093 = vmatpush1.msra.mxu0 0.0
        %6094 = vmatprep.subr.mxu0 0.0
        %6095 = vmatpush1.msra.mxu0 0.0
        %6096 = vmatprep.subr.mxu0 0.0
        %6097 = vmatpush1.msra.mxu0 0.0
        %6098 = vmatprep.subr.mxu0 0.0
        %6099 = vmatpush1.msra.mxu0 0.0
        %6100 = vmatprep.subr.mxu0 0.0
        %6101 = vmatpush1.msra.mxu0 0.0
        %6102 = vmatprep.subr.mxu0 0.0
        %6103 = vmatpush1.msra.mxu0 0.0
        %6104 = vmatprep.subr.mxu0 0.0
        %6105 = vmatpush1.msra.mxu0 0.0
        %6106 = vmatprep.subr.mxu0 0.0
        %6107 = vmatpush1.msra.mxu0 0.0
        %6108 = vmatprep.subr.mxu0 0.0
        %6109 = vmatpush1.msra.mxu0 0.0
        %6110 = vmatprep.subr.mxu0 0.0
        %6111 = vmatpush1.msra.mxu0 0.0
        %6112 = vmatprep.subr.mxu0 0.0
        %6113 = vmatpush1.msra.mxu0 0.0
        %6114 = vmatprep.subr.mxu0 0.0
        %6115 = vmatpush1.msra.mxu0 0.0
        %6116 = vmatprep.subr.mxu0 0.0
        %6117 = vmatpush1.msra.mxu0 0.0
        %6118 = vmatprep.subr.mxu0 0.0
        %6119 = vmatpush1.msra.mxu0 0.0
        %6120 = vmatprep.subr.mxu0 0.0
        %6121 = vmatpush1.msra.mxu0 0.0
        %6122 = vmatprep.mubr.f32.mxu0 0.0
        %6123 = vmatmul.mubr.f32.gmra.mrb[0].mxu0 %v5625
        %v6124 = vpop.f32.mrb[0].mxu0
        %v6125 = vadd.f32 0.0, %v6124
        %v6126 = vpop.f32.mrb[0].mxu0
        %v6127 = vadd.f32 0.0, %v6126
        %6128 = vdwg.mxu0
        %6129 = vmatprep.subr.mxu0 %v954
        %6130 = vmatpush1.msra.mxu0 %v953
        %6131 = vmatprep.subr.mxu0 %v964
        %6132 = vmatpush1.msra.mxu0 %v963
        %6133 = vmatprep.subr.mxu0 %v974
        %6134 = vmatpush1.msra.mxu0 %v973
        %6135 = vmatprep.subr.mxu0 %v984
        %6136 = vmatpush1.msra.mxu0 %v983
        %6137 = vmatprep.subr.mxu0 %v994
        %6138 = vmatpush1.msra.mxu0 %v993
        %6139 = vmatprep.subr.mxu0 %v1004
        %6140 = vmatpush1.msra.mxu0 %v1003
        %6141 = vmatprep.subr.mxu0 %v1014
        %6142 = vmatpush1.msra.mxu0 %v1013
        %6143 = vmatprep.subr.mxu0 %v1024
        %6144 = vmatpush1.msra.mxu0 %v1023
        %6145 = vmatprep.subr.mxu0 %v1034
        %6146 = vmatpush1.msra.mxu0 %v1033
        %6147 = vmatprep.subr.mxu0 %v1044
        %6148 = vmatpush1.msra.mxu0 %v1043
        %6149 = vmatprep.subr.mxu0 %v1054
        %6150 = vmatpush1.msra.mxu0 %v1053
        %6151 = vmatprep.subr.mxu0 %v1064
        %6152 = vmatpush1.msra.mxu0 %v1063
        %6153 = vmatprep.subr.mxu0 %v1074
        %6154 = vmatpush1.msra.mxu0 %v1073
        %6155 = vmatprep.subr.mxu0 %v1084
        %6156 = vmatpush1.msra.mxu0 %v1083
        %6157 = vmatprep.subr.mxu0 %v1094
        %6158 = vmatpush1.msra.mxu0 %v1093
        %6159 = vmatprep.subr.mxu0 %v1104
        %6160 = vmatpush1.msra.mxu0 %v1103
        %6161 = vmatprep.subr.mxu0 0.0
        %6162 = vmatpush1.msra.mxu0 0.0
        %6163 = vmatprep.subr.mxu0 0.0
        %6164 = vmatpush1.msra.mxu0 0.0
        %6165 = vmatprep.subr.mxu0 0.0
        %6166 = vmatpush1.msra.mxu0 0.0
        %6167 = vmatprep.subr.mxu0 0.0
        %6168 = vmatpush1.msra.mxu0 0.0
        %6169 = vmatprep.subr.mxu0 0.0
        %6170 = vmatpush1.msra.mxu0 0.0
        %6171 = vmatprep.subr.mxu0 0.0
        %6172 = vmatpush1.msra.mxu0 0.0
        %6173 = vmatprep.subr.mxu0 0.0
        %6174 = vmatpush1.msra.mxu0 0.0
        %6175 = vmatprep.subr.mxu0 0.0
        %6176 = vmatpush1.msra.mxu0 0.0
        %6177 = vmatprep.subr.mxu0 0.0
        %6178 = vmatpush1.msra.mxu0 0.0
        %6179 = vmatprep.subr.mxu0 0.0
        %6180 = vmatpush1.msra.mxu0 0.0
        %6181 = vmatprep.subr.mxu0 0.0
        %6182 = vmatpush1.msra.mxu0 0.0
        %6183 = vmatprep.subr.mxu0 0.0
        %6184 = vmatpush1.msra.mxu0 0.0
        %6185 = vmatprep.subr.mxu0 0.0
        %6186 = vmatpush1.msra.mxu0 0.0
        %6187 = vmatprep.subr.mxu0 0.0
        %6188 = vmatpush1.msra.mxu0 0.0
        %6189 = vmatprep.subr.mxu0 0.0
        %6190 = vmatpush1.msra.mxu0 0.0
        %6191 = vmatprep.subr.mxu0 0.0
        %6192 = vmatpush1.msra.mxu0 0.0
        %6193 = vmatprep.mubr.f32.mxu0 0.0
        %6194 = vmatmul.mubr.f32.gmra.mrb[0].mxu0 %v5625
        %v6195 = vpop.f32.mrb[0].mxu0
        %v6196 = vadd.f32 0.0, %v6195
        %v6197 = vpop.f32.mrb[0].mxu0
        %v6198 = vadd.f32 0.0, %v6197
        %6199 = vdwg.mxu0
        %6200 = vmatprep.subr.mxu0 %v956
        %6201 = vmatpush1.msra.mxu0 %v955
        %6202 = vmatprep.subr.mxu0 %v966
        %6203 = vmatpush1.msra.mxu0 %v965
        %6204 = vmatprep.subr.mxu0 %v976
        %6205 = vmatpush1.msra.mxu0 %v975
        %6206 = vmatprep.subr.mxu0 %v986
        %6207 = vmatpush1.msra.mxu0 %v985
        %6208 = vmatprep.subr.mxu0 %v996
        %6209 = vmatpush1.msra.mxu0 %v995
        %6210 = vmatprep.subr.mxu0 %v1006
        %6211 = vmatpush1.msra.mxu0 %v1005
        %6212 = vmatprep.subr.mxu0 %v1016
        %6213 = vmatpush1.msra.mxu0 %v1015
        %6214 = vmatprep.subr.mxu0 %v1026
        %6215 = vmatpush1.msra.mxu0 %v1025
        %6216 = vmatprep.subr.mxu0 %v1036
        %6217 = vmatpush1.msra.mxu0 %v1035
        %6218 = vmatprep.subr.mxu0 %v1046
        %6219 = vmatpush1.msra.mxu0 %v1045
        %6220 = vmatprep.subr.mxu0 %v1056
        %6221 = vmatpush1.msra.mxu0 %v1055
        %6222 = vmatprep.subr.mxu0 %v1066
        %6223 = vmatpush1.msra.mxu0 %v1065
        %6224 = vmatprep.subr.mxu0 %v1076
        %6225 = vmatpush1.msra.mxu0 %v1075
        %6226 = vmatprep.subr.mxu0 %v1086
        %6227 = vmatpush1.msra.mxu0 %v1085
        %6228 = vmatprep.subr.mxu0 %v1096
        %6229 = vmatpush1.msra.mxu0 %v1095
        %6230 = vmatprep.subr.mxu0 %v1106
        %6231 = vmatpush1.msra.mxu0 %v1105
        %6232 = vmatprep.subr.mxu0 0.0
        %6233 = vmatpush1.msra.mxu0 0.0
        %6234 = vmatprep.subr.mxu0 0.0
        %6235 = vmatpush1.msra.mxu0 0.0
        %6236 = vmatprep.subr.mxu0 0.0
        %6237 = vmatpush1.msra.mxu0 0.0
        %6238 = vmatprep.subr.mxu0 0.0
        %6239 = vmatpush1.msra.mxu0 0.0
        %6240 = vmatprep.subr.mxu0 0.0
        %6241 = vmatpush1.msra.mxu0 0.0
        %6242 = vmatprep.subr.mxu0 0.0
        %6243 = vmatpush1.msra.mxu0 0.0
        %6244 = vmatprep.subr.mxu0 0.0
        %6245 = vmatpush1.msra.mxu0 0.0
        %6246 = vmatprep.subr.mxu0 0.0
        %6247 = vmatpush1.msra.mxu0 0.0
        %6248 = vmatprep.subr.mxu0 0.0
        %6249 = vmatpush1.msra.mxu0 0.0
        %6250 = vmatprep.subr.mxu0 0.0
        %6251 = vmatpush1.msra.mxu0 0.0
        %6252 = vmatprep.subr.mxu0 0.0
        %6253 = vmatpush1.msra.mxu0 0.0
        %6254 = vmatprep.subr.mxu0 0.0
        %6255 = vmatpush1.msra.mxu0 0.0
        %6256 = vmatprep.subr.mxu0 0.0
        %6257 = vmatpush1.msra.mxu0 0.0
        %6258 = vmatprep.subr.mxu0 0.0
        %6259 = vmatpush1.msra.mxu0 0.0
        %6260 = vmatprep.subr.mxu0 0.0
        %6261 = vmatpush1.msra.mxu0 0.0
        %6262 = vmatprep.subr.mxu0 0.0
        %6263 = vmatpush1.msra.mxu0 0.0
        %6264 = vmatprep.mubr.f32.mxu0 0.0
        %6265 = vmatmul.mubr.f32.gmra.mrb[0].mxu0 %v5625
        %v6266 = vpop.f32.mrb[0].mxu0
        %v6267 = vadd.f32 0.0, %v6266
        %v6268 = vpop.f32.mrb[0].mxu0
        %v6269 = vadd.f32 0.0, %v6268
        %6270 = vdwg.mxu0
        %6271 = vmatprep.subr.mxu0 %v958
        %6272 = vmatpush1.msra.mxu0 %v957
        %6273 = vmatprep.subr.mxu0 %v968
        %6274 = vmatpush1.msra.mxu0 %v967
        %6275 = vmatprep.subr.mxu0 %v978
        %6276 = vmatpush1.msra.mxu0 %v977
        %6277 = vmatprep.subr.mxu0 %v988
        %6278 = vmatpush1.msra.mxu0 %v987
        %6279 = vmatprep.subr.mxu0 %v998
        %6280 = vmatpush1.msra.mxu0 %v997
        %6281 = vmatprep.subr.mxu0 %v1008
        %6282 = vmatpush1.msra.mxu0 %v1007
        %6283 = vmatprep.subr.mxu0 %v1018
        %6284 = vmatpush1.msra.mxu0 %v1017
        %6285 = vmatprep.subr.mxu0 %v1028
        %6286 = vmatpush1.msra.mxu0 %v1027
        %6287 = vmatprep.subr.mxu0 %v1038
        %6288 = vmatpush1.msra.mxu0 %v1037
        %6289 = vmatprep.subr.mxu0 %v1048
        %6290 = vmatpush1.msra.mxu0 %v1047
        %6291 = vmatprep.subr.mxu0 %v1058
        %6292 = vmatpush1.msra.mxu0 %v1057
        %6293 = vmatprep.subr.mxu0 %v1068
        %6294 = vmatpush1.msra.mxu0 %v1067
        %6295 = vmatprep.subr.mxu0 %v1078
        %6296 = vmatpush1.msra.mxu0 %v1077
        %6297 = vmatprep.subr.mxu0 %v1088
        %6298 = vmatpush1.msra.mxu0 %v1087
        %6299 = vmatprep.subr.mxu0 %v1098
        %6300 = vmatpush1.msra.mxu0 %v1097
        %6301 = vmatprep.subr.mxu0 %v1108
        %6302 = vmatpush1.msra.mxu0 %v1107
        %6303 = vmatprep.subr.mxu0 0.0
        %6304 = vmatpush1.msra.mxu0 0.0
        %6305 = vmatprep.subr.mxu0 0.0
        %6306 = vmatpush1.msra.mxu0 0.0
        %6307 = vmatprep.subr.mxu0 0.0
        %6308 = vmatpush1.msra.mxu0 0.0
        %6309 = vmatprep.subr.mxu0 0.0
        %6310 = vmatpush1.msra.mxu0 0.0
        %6311 = vmatprep.subr.mxu0 0.0
        %6312 = vmatpush1.msra.mxu0 0.0
        %6313 = vmatprep.subr.mxu0 0.0
        %6314 = vmatpush1.msra.mxu0 0.0
        %6315 = vmatprep.subr.mxu0 0.0
        %6316 = vmatpush1.msra.mxu0 0.0
        %6317 = vmatprep.subr.mxu0 0.0
        %6318 = vmatpush1.msra.mxu0 0.0
        %6319 = vmatprep.subr.mxu0 0.0
        %6320 = vmatpush1.msra.mxu0 0.0
        %6321 = vmatprep.subr.mxu0 0.0
        %6322 = vmatpush1.msra.mxu0 0.0
        %6323 = vmatprep.subr.mxu0 0.0
        %6324 = vmatpush1.msra.mxu0 0.0
        %6325 = vmatprep.subr.mxu0 0.0
        %6326 = vmatpush1.msra.mxu0 0.0
        %6327 = vmatprep.subr.mxu0 0.0
        %6328 = vmatpush1.msra.mxu0 0.0
        %6329 = vmatprep.subr.mxu0 0.0
        %6330 = vmatpush1.msra.mxu0 0.0
        %6331 = vmatprep.subr.mxu0 0.0
        %6332 = vmatpush1.msra.mxu0 0.0
        %6333 = vmatprep.subr.mxu0 0.0
        %6334 = vmatpush1.msra.mxu0 0.0
        %6335 = vmatprep.mubr.f32.mxu0 0.0
        %6336 = vmatmul.mubr.f32.gmra.mrb[0].mxu0 %v5625
        %v6337 = vpop.f32.mrb[0].mxu0
        %v6338 = vadd.f32 0.0, %v6337
        %v6339 = vpop.f32.mrb[0].mxu0
        %v6340 = vadd.f32 0.0, %v6339
        %6341 = vdwg.mxu0
        %6342 = vmatprep.subr.mxu0 %v960
        %6343 = vmatpush1.msra.mxu0 %v959
        %6344 = vmatprep.subr.mxu0 %v970
        %6345 = vmatpush1.msra.mxu0 %v969
        %6346 = vmatprep.subr.mxu0 %v980
        %6347 = vmatpush1.msra.mxu0 %v979
        %6348 = vmatprep.subr.mxu0 %v990
        %6349 = vmatpush1.msra.mxu0 %v989
        %6350 = vmatprep.subr.mxu0 %v1000
        %6351 = vmatpush1.msra.mxu0 %v999
        %6352 = vmatprep.subr.mxu0 %v1010
        %6353 = vmatpush1.msra.mxu0 %v1009
        %6354 = vmatprep.subr.mxu0 %v1020
        %6355 = vmatpush1.msra.mxu0 %v1019
        %6356 = vmatprep.subr.mxu0 %v1030
        %6357 = vmatpush1.msra.mxu0 %v1029
        %6358 = vmatprep.subr.mxu0 %v1040
        %6359 = vmatpush1.msra.mxu0 %v1039
        %6360 = vmatprep.subr.mxu0 %v1050
        %6361 = vmatpush1.msra.mxu0 %v1049
        %6362 = vmatprep.subr.mxu0 %v1060
        %6363 = vmatpush1.msra.mxu0 %v1059
        %6364 = vmatprep.subr.mxu0 %v1070
        %6365 = vmatpush1.msra.mxu0 %v1069
        %6366 = vmatprep.subr.mxu0 %v1080
        %6367 = vmatpush1.msra.mxu0 %v1079
        %6368 = vmatprep.subr.mxu0 %v1090
        %6369 = vmatpush1.msra.mxu0 %v1089
        %6370 = vmatprep.subr.mxu0 %v1100
        %6371 = vmatpush1.msra.mxu0 %v1099
        %6372 = vmatprep.subr.mxu0 %v1110
        %6373 = vmatpush1.msra.mxu0 %v1109
        %6374 = vmatprep.subr.mxu0 0.0
        %6375 = vmatpush1.msra.mxu0 0.0
        %6376 = vmatprep.subr.mxu0 0.0
        %6377 = vmatpush1.msra.mxu0 0.0
        %6378 = vmatprep.subr.mxu0 0.0
        %6379 = vmatpush1.msra.mxu0 0.0
        %6380 = vmatprep.subr.mxu0 0.0
        %6381 = vmatpush1.msra.mxu0 0.0
        %6382 = vmatprep.subr.mxu0 0.0
        %6383 = vmatpush1.msra.mxu0 0.0
        %6384 = vmatprep.subr.mxu0 0.0
        %6385 = vmatpush1.msra.mxu0 0.0
        %6386 = vmatprep.subr.mxu0 0.0
        %6387 = vmatpush1.msra.mxu0 0.0
        %6388 = vmatprep.subr.mxu0 0.0
        %6389 = vmatpush1.msra.mxu0 0.0
        %6390 = vmatprep.subr.mxu0 0.0
        %6391 = vmatpush1.msra.mxu0 0.0
        %6392 = vmatprep.subr.mxu0 0.0
        %6393 = vmatpush1.msra.mxu0 0.0
        %6394 = vmatprep.subr.mxu0 0.0
        %6395 = vmatpush1.msra.mxu0 0.0
        %6396 = vmatprep.subr.mxu0 0.0
        %6397 = vmatpush1.msra.mxu0 0.0
        %6398 = vmatprep.subr.mxu0 0.0
        %6399 = vmatpush1.msra.mxu0 0.0
        %6400 = vmatprep.subr.mxu0 0.0
        %6401 = vmatpush1.msra.mxu0 0.0
        %6402 = vmatprep.subr.mxu0 0.0
        %6403 = vmatpush1.msra.mxu0 0.0
        %6404 = vmatprep.subr.mxu0 0.0
        %6405 = vmatpush1.msra.mxu0 0.0
        %6406 = vmatprep.mubr.f32.mxu0 0.0
        %6407 = vmatmul.mubr.f32.gmra.mrb[0].mxu0 %v5625
        %v6408 = vpop.f32.mrb[0].mxu0
        %v6409 = vadd.f32 0.0, %v6408
        %v6410 = vpop.f32.mrb[0].mxu0
        %v6411 = vadd.f32 0.0, %v6410
        %6412 = vdwg.mxu0
        %v6413 = vmul.f32 %v5770, %v6125
        %v6414 = vmul.f32 %v5772, %v6127
        %v6415 = vmul.f32 %v5841, %v6196
        %v6416 = vmul.f32 %v5843, %v6198
        %v6417 = vadd.f32 %v6413, %v6415
        %v6418 = vadd.f32 %v6414, %v6416
        %v6419 = vmul.f32 %v5912, %v6267
        %v6420 = vmul.f32 %v5914, %v6269
        %v6421 = vadd.f32 %v6417, %v6419
        %v6422 = vadd.f32 %v6418, %v6420
        %v6423 = vmul.f32 %v5983, %v6338
        %v6424 = vmul.f32 %v5985, %v6340
        %v6425 = vadd.f32 %v6421, %v6423
        %v6426 = vadd.f32 %v6422, %v6424
        %v6427 = vmul.f32 %v6054, %v6409
        %v6428 = vmul.f32 %v6056, %v6411
        %v6429 = vadd.f32 %v6425, %v6427
        %v6430 = vadd.f32 %v6426, %v6428
        %s6431 = scalar_lea.vmem %s788, 16
        %6432 = vst [vmem:[%s6431] sm:$0xff] %v6429
        %6433 = vst [vmem:[%s6431 + $0x8] sm:$0xff] %v6430
        %s6434 = smul.u32 2, %s28
        %p6435 = scmp.lt.s32.totalorder %s6434, 11
        %s6436 = scalar_select %p6435, %s6434, 11
        %s6437 = smul.addr %s6436, 2
        %s6438 = smul.addr %s6437, 8
        %s6439 = scalar_lea.vmem %s12, %s6438
        // Predicated region
        $region117: #{async_tf_base_forward.3} parent=67 // pred_check
          %p6440 = pneg %p343
        $region118: #{async_tf_base_forward.3} parent=67 // pred_check_branch
          %6442 = sbr.rel (%p6440) target = $region120
        $region119: #{async_tf_base_forward.3} parent=67 // pred_region
          %s6443 = smul.u32 2, %s28
        $region120: #{async_tf_base_forward.3} parent=67 // pred_fallthru
          _
      $region68: #{async_tf_base_forward.3} parent=5 // pred_fallthru
        _
      %p6444 = scmp.le.s32.totalorder 2, %s23
      // Predicated region
      $region121: #{async_tf_base_forward.3} parent=5 // pred_check
        %p6445 = pneg %p6444
      $region122: #{async_tf_base_forward.3} parent=5 // pred_check_branch
        %6447 = sbr.rel (%p6445) target = $region124
      $region123: #{async_tf_base_forward.3} parent=5 // pred_region
        %s6448 = ssub.s32 %s23, 2
        // Predicated region
        $region125: #{async_tf_base_forward.3} parent=123 // pred_check
          %p6449 = pneg %p349
        $region126: #{async_tf_base_forward.3} parent=123 // pred_check_branch
          %6451 = sbr.rel (%p6449) target = $region128
        $region127: #{async_tf_base_forward.3} parent=123 // pred_region
          %s6452 = smul.u32 2, %s29
          %p6453 = scmp.lt.s32.totalorder %s6452, 11
          %s6454 = scalar_select %p6453, %s6452, 11
          %s6455 = smul.addr %s6454, 2
          %s6456 = smul.addr %s6455, 8
          %s6457 = scalar_lea.vmem %s12, %s6456
        $region128: #{async_tf_base_forward.3} parent=123 // pred_fallthru
          _
      $region124: #{async_tf_base_forward.3} parent=5 // pred_fallthru
        _
    $region6: #{async_tf_base_forward.3} parent=1 // loop_footer
      %s27 = sadd.s32 1, %s23
    $region7: #{async_tf_base_forward.3} parent=1 // loop_footer_branch
      %22 = sbr.rel target = $region3
    $region8: #{async_tf_base_forward.3} parent=1 // loop_exit
      _
    %6458 = vsyncpa [#allocation3], 1
    %s6459 = scalar_lea.sflag [#allocation3], 1
    %6460 = vsyncpa %s6459, 1
    %6461 = vsyncpa [#allocation5], 1
    %s6462 = scalar_lea.sflag [#allocation5], 1
    %6463 = vsyncpa %s6462, 1
    %6464 = vsyncpa [#allocation8], 1

</llo_original>
